<compile_context>
chip_gen: v7x
topology: tpu7x:2x2x1
jax: 0.10.0
libtpu: 0.0.40
codegen_flags: <defaults>
</compile_context>

<pallas_src>
import functools

import jax
import jax.numpy as jnp
from jax import lax
from jax.experimental import pallas as pl
from jax.experimental.pallas import tpu as pltpu


# --------------------------------------------------------------------------
# Kernel
# --------------------------------------------------------------------------
def _head_regressor_kernel(x_ref, mask_ref, w_ref, bw_ref, v_ref, bv_ref,
                           wr_ref, br_ref, o_ref, scores_ref, *, s_chunk):
    """One grid step == `block_b` batch rows.

    x_ref      : (Bb, S, H)   last_hidden_state tile, bf16
    mask_ref   : (Bb, 1, S)   attention mask, lane-dense, f32
    w_ref      : (H, Dh)      attention-head W, (in, out) layout, bf16
    bw_ref     : (1, Dh)      f32
    v_ref      : (1, 1, Dh)   attention-head V row, bf16
    bv_ref     : (1, 1, 1)    f32
    wr_ref     : (1, H)       regressor weight row, f32
    br_ref     : (1, 1)       f32
    o_ref      : (Bb, 1)      per-block logits, f32
    scores_ref : (Bb, 1, S)   VMEM scratch for lane-dense attention scores
    """
    Bb, S, H = x_ref.shape
    Dh = w_ref.shape[1]
    n_chunks = S // s_chunk                     # S % s_chunk == 0 (wrapper)

    # Hoisted broadcast (JAX does not CSE broadcast_in_dim inside the loop).
    vb = jnp.broadcast_to(v_ref[...], (Bb, 1, Dh))          # bf16

    # --- W(x) -> tanh -> V : tiled over the sequence -----------------------
    # Only the (Bb, 1, s_chunk) scores slice is kept; the (Bb*s_chunk, Dh)
    # f32 h intermediate dies at the end of each chunk, bounding VMEM/vreg
    # pressure (critical on v7x's 64 MiB VMEM at real RoBERTa sizes).
    def score_chunk(c, carry):
        s0 = pl.multiple_of(c * s_chunk, s_chunk)
        xc = x_ref[:, pl.ds(s0, s_chunk), :]                 # (Bb, sc, H) bf16
        h = jnp.dot(xc.reshape(Bb * s_chunk, H), w_ref[...],
                    preferred_element_type=jnp.float32)      # MXU, f32 acc
        h = jnp.tanh(h + bw_ref[...])                        # EUP
        h3 = h.astype(jnp.bfloat16).reshape(Bb, s_chunk, Dh)
        # Flash-style batched matvec -> lane-dense scores; bf16 operands keep
        # the MXU on its fast path (f32 accumulate via preferred_element_type).
        sc = jnp.einsum('bqd,bkd->bqk', vb, h3,
                        preferred_element_type=jnp.float32)  # (Bb, 1, sc)
        # attention_scores = attention_scores + attention_mask (raw 0/1 mask,
        # exactly as the torch module does).
        scores_ref[:, :, pl.ds(s0, s_chunk)] = (
            sc + bv_ref[...] + mask_ref[:, :, pl.ds(s0, s_chunk)])
        return carry

    lax.fori_loop(0, n_chunks, score_chunk, 0, unroll=(n_chunks <= 4))

    # --- softmax over the sequence axis (torch dim=1); lane-dense reduces --
    scores = scores_ref[...]                                 # (Bb, 1, S) f32
    scores = scores - jnp.max(scores, axis=-1, keepdims=True)
    p = jnp.exp(scores)
    p = p / jnp.sum(p, axis=-1, keepdims=True)               # exact divide

    # --- attentive_x = sum_s p * x : MXU contraction over S ----------------
    x = x_ref[...]                                           # (Bb, S, H) bf16
    attentive = jnp.einsum('bqs,bsh->bqh', p.astype(x.dtype), x,
                           preferred_element_type=jnp.float32)  # (Bb, 1, H)
    att2 = attentive[:, 0, :]                                # (Bb, H) f32

    # nn.Dropout(p) is the identity at inference time.

    # --- regressor Linear(H, 1): VPU multiply + lane reduce (no N=1 MXU) ---
    logits = jnp.sum(att2 * wr_ref[...], axis=-1, keepdims=True) + br_ref[...]
    o_ref[...] = logits.astype(o_ref.dtype)                  # (Bb, 1)


# --------------------------------------------------------------------------
# Sizing heuristics
# --------------------------------------------------------------------------
def _vmem_config():
    """Per-generation (budget for block sizing, scoped VMEM limit) in bytes."""
    try:
        cap = pltpu.get_tpu_info().vmem_capacity_bytes
    except Exception:
        cap = 64 << 20                        # conservative (v7x per-TC VMEM)
    budget = min(cap // 2 - (4 << 20), 56 << 20)   # ~28 MiB v7x, ~56 MiB v5e/v6e
    budget = max(budget, 8 << 20)
    limit = min(cap - (8 << 20), 112 << 20)        # scoped-VMEM limit we request
    limit = max(limit, 32 << 20)
    return budget, limit


def _pick_s_chunk(S, max_chunk=256):
    """Largest sublane-aligned divisor of S that is <= max_chunk."""
    for c in range(min(S, max_chunk), 0, -1):
        if S % c == 0 and c % 8 == 0:
            return c
    return S


def _resident_bytes(block_b, S, H, Dh, s_chunk, w_bufs):
    """Estimate of all VMEM resident per grid step (not just the x tile)."""
    x_tile = 2 * block_b * S * H * 2          # double-buffered bf16 x
    mask_t = 2 * block_b * S * 4              # double-buffered f32 mask
    weights = w_bufs * (H * Dh * 2 + Dh * 4 + Dh * 2 + H * 4 + 64)
    h_f32 = block_b * s_chunk * Dh * 4        # W-matmul chunk (f32)
    h_bf16 = block_b * s_chunk * Dh * 2       # bf16 copy fed to the V einsum
    scores = block_b * S * 4                  # lane-dense scores scratch
    misc = block_b * H * 4 + (1 << 20)        # attentive acc + headroom
    return x_tile + mask_t + weights + h_f32 + h_bf16 + scores + misc


def _pick_block_b(B, S, H, Dh, s_chunk, budget_bytes, *, min_grid_steps=8,
                  single_buffer_weights=True):
    """Largest batch block that (a) divides B, (b) keeps the (block_b, 1)
    output block sublane-aligned (multiple of 8, or full batch), (c) fits the
    full per-step resident-bytes estimate in the VMEM budget, and (d) leaves
    enough grid steps per TensorCore to hide the streamed x DMA."""
    w_bufs = 1 if single_buffer_weights else 2
    candidates = [d for d in range(1, B + 1)
                  if B % d == 0 and (d % 8 == 0 or d == B)]
    fitting = [d for d in candidates
               if _resident_bytes(d, S, H, Dh, s_chunk, w_bufs) <= budget_bytes]
    if not fitting:
        return min(candidates)
    for steps in (min_grid_steps, 4, 2):      # prefer a deep enough pipeline
        deep = [d for d in fitting if B // d >= steps]
        if deep:
            return max(deep)
    return max(fitting)


# --------------------------------------------------------------------------
# Wrapper
# --------------------------------------------------------------------------
def _make_specs(block_b, S, H, Dh, single_buffer_weights):
    def const_spec(shape, index_map):
        # Constant-index operands are fetched once; single-buffer them to
        # reclaim VMEM (most valuable on v7x's 64 MiB).
        if single_buffer_weights:
            return pl.BlockSpec(shape, index_map, pipeline_mode=pl.Buffered(1))
        return pl.BlockSpec(shape, index_map)

    in_specs = [
        pl.BlockSpec((block_b, S, H), lambda b: (b, 0, 0)),   # x (bf16)
        pl.BlockSpec((block_b, 1, S), lambda b: (b, 0, 0)),   # mask (f32)
        const_spec((H, Dh), lambda b: (0, 0)),                # W^T (bf16)
        const_spec((1, Dh), lambda b: (0, 0)),                # bW
        const_spec((1, 1, Dh), lambda b: (0, 0, 0)),          # V row (bf16)
        const_spec((1, 1, 1), lambda b: (0, 0, 0)),           # bV
        const_spec((1, H), lambda b: (0, 0)),                 # Wr row
        const_spec((1, 1), lambda b: (0, 0)),                 # br
    ]
    out_specs = pl.BlockSpec((block_b, 1), lambda b: (b, 0))
    return in_specs, out_specs


def roberta_head_regressor(last_hidden_state, attention_mask, params, *,
                           block_b=None, s_chunk=None):
    """Layout glue (dtype casts, transposes, mask reshape) + pallas_call."""
    B, S, H = last_hidden_state.shape
    Dh = params["W_w"].shape[0]          # torch Linear weight layout: (out, in)

    budget, vmem_limit = _vmem_config()
    if s_chunk is None:
        s_chunk = _pick_s_chunk(S)
    assert S % s_chunk == 0 and (s_chunk % 8 == 0 or s_chunk == S), s_chunk
    if block_b is None:
        block_b = _pick_block_b(B, S, H, Dh, s_chunk, budget)
    assert B % block_b == 0 and (block_b % 8 == 0 or block_b == B), block_b

    # Keep the big streamed input and the matmul weights in bf16 (MXU-native);
    # everything feeding the softmax / accumulators stays f32.
    x = last_hidden_state.astype(jnp.bfloat16)
    w_t = params["W_w"].T.astype(jnp.bfloat16)                 # (H, Dh)
    bw = params["W_b"].reshape(1, Dh).astype(jnp.float32)      # (1, Dh)
    v = params["V_w"].reshape(1, 1, Dh).astype(jnp.bfloat16)   # (1, 1, Dh)
    bv = params["V_b"].reshape(1, 1, 1).astype(jnp.float32)    # (1, 1, 1)
    wr = params["R_w"].reshape(1, H).astype(jnp.float32)       # (1, H)
    br = params["R_b"].reshape(1, 1).astype(jnp.float32)       # (1, 1)
    # Lane-dense mask layout: (B, 1, S) so the add and softmax work on full
    # 128-lane vregs.
    mask = attention_mask.astype(jnp.float32).reshape(B, 1, S)

    grid = (B // block_b,)
    kernel = functools.partial(_head_regressor_kernel, s_chunk=s_chunk)

    last_err = None
    for single_buffer_weights in (True, False):
        try:
            in_specs, out_specs = _make_specs(block_b, S, H, Dh,
                                              single_buffer_weights)
            call = pl.pallas_call(
                kernel,
                out_shape=jax.ShapeDtypeStruct((B, 1), jnp.float32),
                grid_spec=pltpu.PrefetchScalarGridSpec(
                    num_scalar_prefetch=0,
                    grid=grid,
                    in_specs=in_specs,
                    out_specs=out_specs,
                    scratch_shapes=[pltpu.VMEM((block_b, 1, S), jnp.float32)]),
                compiler_params=pltpu.CompilerParams(
                    dimension_semantics=("parallel",),   # batch blocks independent
                    vmem_limit_bytes=vmem_limit),
            )
            return call(x, mask, w_t, bw, v, bv, wr, br)
        except Exception as e:
            # pl.Buffered(1) (single-buffered constant weights) unsupported on
            # this JAX/Mosaic build -> retry with default double buffering.
            last_err = e
    raise last_err


# --------------------------------------------------------------------------
# Reference + demo
# --------------------------------------------------------------------------
def _torch_linear_init(key, out_dim, in_dim):
    """Deterministic nn.Linear-style init: U(-1/sqrt(in), 1/sqrt(in))."""
    kw, kb = jax.random.split(key)
    bound = 1.0 / jnp.sqrt(jnp.float32(in_dim))
    w = jax.random.uniform(kw, (out_dim, in_dim), jnp.float32, -bound, bound)
    b = jax.random.uniform(kb, (out_dim,), jnp.float32, -bound, bound)
    return w, b


def _reference(x, mask, params):
    """Pure-JAX f32 reference mirroring the torch forward."""
    x = x.astype(jnp.float32)
    h = jnp.tanh(x @ params["W_w"].T + params["W_b"])
    s = h @ params["V_w"].T + params["V_b"]                  # (B, S, 1)
    s = s + mask.astype(jnp.float32)[:, :, None]
    s = jax.nn.softmax(s, axis=1)
    av = jnp.sum(s * x, axis=1)                              # (B, H)
    return av @ params["R_w"].T + params["R_b"]              # (B, 1)


if __name__ == "__main__":
    # Small but tiling-realistic shapes: batch, seq_len, hidden_size.
    B, S, H = 16, 128, 256
    Dh = H                   # head_hidden_dim=None -> input_dim

    key = jax.random.PRNGKey(0)
    k_x, k_w, k_v, k_r, k_len = jax.random.split(key, 5)

    # Stand-in for roberta(**inputs)['last_hidden_state'] (bf16, backbone-native).
    last_hidden_state = jax.random.normal(k_x, (B, S, H), jnp.float32).astype(
        jnp.bfloat16)

    # attention_mask: 1 for real tokens, 0 for padding (deterministic lengths).
    lengths = jax.random.randint(k_len, (B,), S // 2, S + 1)
    attention_mask = (jnp.arange(S)[None, :] < lengths[:, None]).astype(jnp.float32)

    W_w, W_b = _torch_linear_init(k_w, Dh, H)   # head.W : Linear(H, Dh)
    V_w, V_b = _torch_linear_init(k_v, 1, Dh)   # head.V : Linear(Dh, 1)
    R_w, R_b = _torch_linear_init(k_r, 1, H)    # regressor : Linear(H, 1)
    params = {"W_w": W_w, "W_b": W_b, "V_w": V_w, "V_b": V_b,
              "R_w": R_w, "R_b": R_b}

    ref = _reference(last_hidden_state, attention_mask, params)

    # 1) Auto-sized batch block (VMEM- and pipeline-depth-aware).
    logits = roberta_head_regressor(last_hidden_state, attention_mask, params)
    logits = jax.block_until_ready(logits)
    assert logits.shape == (B, 1)
    # bf16 activations/weights in the kernel vs. f32 reference -> loose tol.
    assert jnp.allclose(logits, ref, rtol=2e-2, atol=2e-2), (logits, ref)

    # 2) Explicit block_b / s_chunk: exercises the multi-step grid pipeline and
    #    the in-kernel S-chunk loop (n_chunks=2).
    logits2 = roberta_head_regressor(last_hidden_state, attention_mask, params,
                                     block_b=8, s_chunk=64)
    logits2 = jax.block_until_ready(logits2)
    assert jnp.allclose(logits2, ref, rtol=2e-2, atol=2e-2), (logits2, ref)

    print("KERNEL_OK")
</pallas_src>

<mosaic_0001>
module attributes {stable_mosaic.version = 11 : i64} {
  func.func @_head_regressor_kernel(%arg0: i32, %arg1: memref<8x128x256xbf16, #tpu.memory_space<vmem>>, %arg2: memref<8x1x128xf32, #tpu.memory_space<vmem>>, %arg3: memref<256x256xbf16, #tpu.memory_space<vmem>>, %arg4: memref<1x256xf32, #tpu.memory_space<vmem>>, %arg5: memref<1x1x256xbf16, #tpu.memory_space<vmem>>, %arg6: memref<1x1x1xf32, #tpu.memory_space<vmem>>, %arg7: memref<1x256xf32, #tpu.memory_space<vmem>>, %arg8: memref<1x1xf32, #tpu.memory_space<vmem>>, %arg9: memref<8x1xf32, #tpu.memory_space<vmem>>, %arg10: memref<8x1x128xf32, #tpu.memory_space<vmem>>) attributes {dimension_semantics = [#tpu.dimension_semantics<parallel>], iteration_bounds = array<i64: 2>, scalar_prefetch = 0 : i64, scratch_operands = 1 : i64, tpu.core_type = #tpu.core_type<tc>, window_params = [{transform_indices = @transform_0, window_bounds = array<i64: 8, 128, 256>}, {transform_indices = @transform_1, window_bounds = array<i64: 8, 1, 128>}, {pipeline_mode = #tpu.pipeline_mode<synchronous>, transform_indices = @transform_2, window_bounds = array<i64: 256, 256>}, {pipeline_mode = #tpu.pipeline_mode<synchronous>, transform_indices = @transform_3, window_bounds = array<i64: 1, 256>}, {pipeline_mode = #tpu.pipeline_mode<synchronous>, transform_indices = @transform_4, window_bounds = array<i64: 1, 1, 256>}, {pipeline_mode = #tpu.pipeline_mode<synchronous>, transform_indices = @transform_5, window_bounds = array<i64: 1, 1, 1>}, {pipeline_mode = #tpu.pipeline_mode<synchronous>, transform_indices = @transform_6, window_bounds = array<i64: 1, 256>}, {pipeline_mode = #tpu.pipeline_mode<synchronous>, transform_indices = @transform_7, window_bounds = array<i64: 1, 1>}, {transform_indices = @transform_8, window_bounds = array<i64: 8, 1>}]} {
    %c0 = arith.constant 0 : index
    %c0_0 = arith.constant 0 : index
    %c0_1 = arith.constant 0 : index
    %0 = vector.load %arg5[%c0, %c0_0, %c0_1] : memref<1x1x256xbf16, #tpu.memory_space<vmem>>, vector<1x1x256xbf16>
    %1 = vector.shape_cast %0 : vector<1x1x256xbf16> to vector<1x1x256xbf16>
    %2 = vector.broadcast %1 : vector<1x1x256xbf16> to vector<8x1x256xbf16>
    %c0_i32 = arith.constant 0 : i32
    %c128_i32 = arith.constant 128 : i32
    %3 = arith.muli %c0_i32, %c128_i32 : i32
    %4 = tpu.assume_multiple %3, 128 : i32
    %c0_2 = arith.constant 0 : index
    %5 = arith.index_cast %4 : i32 to index
    %c0_3 = arith.constant 0 : index
    %6 = vector.load %arg1[%c0_2, %5, %c0_3] : memref<8x128x256xbf16, #tpu.memory_space<vmem>>, vector<8x128x256xbf16>
    %7 = vector.shape_cast %6 : vector<8x128x256xbf16> to vector<1024x256xbf16>
    %c0_4 = arith.constant 0 : index
    %c0_5 = arith.constant 0 : index
    %8 = vector.load %arg3[%c0_4, %c0_5] : memref<256x256xbf16, #tpu.memory_space<vmem>>, vector<256x256xbf16>
    %cst = arith.constant dense<0.000000e+00> : vector<1024x256xf32>
    %9 = tpu.matmul %7, %8, %cst {dimension_numbers = #tpu.dot_dimension_numbers<[1], [0], [0], [1], [0, 0, 1, 1], [], []>} : vector<1024x256xbf16>, vector<256x256xbf16>, vector<1024x256xf32> -> vector<1024x256xf32>
    %c0_6 = arith.constant 0 : index
    %c0_7 = arith.constant 0 : index
    %10 = vector.load %arg4[%c0_6, %c0_7] : memref<1x256xf32, #tpu.memory_space<vmem>>, vector<1x256xf32>
    %11 = vector.broadcast %10 : vector<1x256xf32> to vector<1024x256xf32>
    %12 = arith.addf %9, %11 : vector<1024x256xf32>
    %13 = math.tanh %12 : vector<1024x256xf32>
    %14 = arith.truncf %13 : vector<1024x256xf32> to vector<1024x256xbf16>
    %15 = vector.shape_cast %14 : vector<1024x256xbf16> to vector<8x128x256xbf16>
    "tpu.trace_start"() <{level = 10 : i32, message = "bqd,bkd->bqk"}> : () -> ()
    %cst_8 = arith.constant dense<0.000000e+00> : vector<8x1x128xf32>
    %16 = tpu.matmul %2, %15, %cst_8 {dimension_numbers = #tpu.dot_dimension_numbers<[2], [2], [1], [1], [0, 0, 0, 1, 1, 1], [0], [0]>} : vector<8x1x256xbf16>, vector<8x128x256xbf16>, vector<8x1x128xf32> -> vector<8x1x128xf32>
    "tpu.trace_stop"() : () -> ()
    %c0_9 = arith.constant 0 : index
    %c0_10 = arith.constant 0 : index
    %c0_11 = arith.constant 0 : index
    %17 = vector.load %arg6[%c0_9, %c0_10, %c0_11] : memref<1x1x1xf32, #tpu.memory_space<vmem>>, vector<1x1x1xf32>
    %18 = vector.broadcast %17 : vector<1x1x1xf32> to vector<8x1x128xf32>
    %19 = arith.addf %16, %18 : vector<8x1x128xf32>
    %c0_12 = arith.constant 0 : index
    %c0_13 = arith.constant 0 : index
    %20 = arith.index_cast %4 : i32 to index
    %21 = vector.load %arg2[%c0_12, %c0_13, %20] : memref<8x1x128xf32, #tpu.memory_space<vmem>>, vector<8x1x128xf32>
    %22 = arith.addf %19, %21 : vector<8x1x128xf32>
    %c0_14 = arith.constant 0 : index
    %c0_15 = arith.constant 0 : index
    %23 = arith.index_cast %4 : i32 to index
    %24 = vector.load %arg10[%c0_14, %c0_15, %23] : memref<8x1x128xf32, #tpu.memory_space<vmem>>, vector<8x1x128xf32>
    tpu.vector_store %arg10[%c0_14, %c0_15, %23], %22 {strides = array<i32>} : memref<8x1x128xf32, #tpu.memory_space<vmem>>, vector<8x1x128xf32>,
    %c1_i32 = arith.constant 1 : i32
    %c0_16 = arith.constant 0 : index
    %c0_17 = arith.constant 0 : index
    %c0_18 = arith.constant 0 : index
    %25 = vector.load %arg10[%c0_16, %c0_17, %c0_18] : memref<8x1x128xf32, #tpu.memory_space<vmem>>, vector<8x1x128xf32>
    %cst_19 = arith.constant dense<0xFF800000> : vector<8x1xf32>
    %26 = vector.multi_reduction <maximumf>, %25, %cst_19 [2] : vector<8x1x128xf32> to vector<8x1xf32>
    %27 = vector.shape_cast %26 : vector<8x1xf32> to vector<8x1x1xf32>
    %28 = vector.broadcast %27 : vector<8x1x1xf32> to vector<8x1x128xf32>
    %29 = arith.subf %25, %28 : vector<8x1x128xf32>
    %30 = math.exp %29 : vector<8x1x128xf32>
    %cst_20 = arith.constant dense<0.000000e+00> : vector<8x1xf32>
    %31 = vector.multi_reduction <add>, %30, %cst_20 [2] : vector<8x1x128xf32> to vector<8x1xf32>
    %32 = vector.shape_cast %31 : vector<8x1xf32> to vector<8x1x1xf32>
    %33 = vector.broadcast %32 : vector<8x1x1xf32> to vector<8x1x128xf32>
    %34 = arith.divf %30, %33 : vector<8x1x128xf32>
    %c0_21 = arith.constant 0 : index
    %c0_22 = arith.constant 0 : index
    %c0_23 = arith.constant 0 : index
    %35 = vector.load %arg1[%c0_21, %c0_22, %c0_23] : memref<8x128x256xbf16, #tpu.memory_space<vmem>>, vector<8x128x256xbf16>
    %36 = arith.truncf %34 : vector<8x1x128xf32> to vector<8x1x128xbf16>
    "tpu.trace_start"() <{level = 10 : i32, message = "bqs,bsh->bqh"}> : () -> ()
    %cst_24 = arith.constant dense<0.000000e+00> : vector<8x1x256xf32>
    %37 = tpu.matmul %36, %35, %cst_24 {dimension_numbers = #tpu.dot_dimension_numbers<[2], [1], [1], [2], [0, 0, 0, 1, 1, 2], [0], [0]>} : vector<8x1x128xbf16>, vector<8x128x256xbf16>, vector<8x1x256xf32> -> vector<8x1x256xf32>
    "tpu.trace_stop"() : () -> ()
    %38 = vector.shape_cast %37 : vector<8x1x256xf32> to vector<8x256xf32>
    %c0_25 = arith.constant 0 : index
    %c0_26 = arith.constant 0 : index
    %39 = vector.load %arg7[%c0_25, %c0_26] : memref<1x256xf32, #tpu.memory_space<vmem>>, vector<1x256xf32>
    %40 = vector.broadcast %39 : vector<1x256xf32> to vector<8x256xf32>
    %41 = arith.mulf %38, %40 : vector<8x256xf32>
    %cst_27 = arith.constant dense<0.000000e+00> : vector<8xf32>
    %42 = vector.multi_reduction <add>, %41, %cst_27 [1] : vector<8x256xf32> to vector<8xf32>
    %43 = vector.shape_cast %42 : vector<8xf32> to vector<8x1xf32>
    %c0_28 = arith.constant 0 : index
    %c0_29 = arith.constant 0 : index
    %44 = vector.load %arg8[%c0_28, %c0_29] : memref<1x1xf32, #tpu.memory_space<vmem>>, vector<1x1xf32>
    %45 = vector.broadcast %44 : vector<1x1xf32> to vector<8x1xf32>
    %46 = arith.addf %43, %45 : vector<8x1xf32>
    %c0_30 = arith.constant 0 : index
    %c0_31 = arith.constant 0 : index
    %47 = vector.load %arg9[%c0_30, %c0_31] : memref<8x1xf32, #tpu.memory_space<vmem>>, vector<8x1xf32>
    tpu.vector_store %arg9[%c0_30, %c0_31], %46 {strides = array<i32>} : memref<8x1xf32, #tpu.memory_space<vmem>>, vector<8x1xf32>,
    return
  }
  func.func @transform_0(%arg0: i32) -> (i32, i32, i32) {
    %c0_i32 = arith.constant 0 : i32
    %c0_i32_0 = arith.constant 0 : i32
    %c0_i32_1 = arith.constant 0 : i32
    return %arg0, %c0_i32, %c0_i32_0 : i32, i32, i32
  }
  func.func @transform_1(%arg0: i32) -> (i32, i32, i32) {
    %c0_i32 = arith.constant 0 : i32
    %c0_i32_0 = arith.constant 0 : i32
    %c0_i32_1 = arith.constant 0 : i32
    return %arg0, %c0_i32, %c0_i32_0 : i32, i32, i32
  }
  func.func @transform_2(%arg0: i32) -> (i32, i32) {
    %c0_i32 = arith.constant 0 : i32
    %c0_i32_0 = arith.constant 0 : i32
    %c0_i32_1 = arith.constant 0 : i32
    return %c0_i32, %c0_i32_0 : i32, i32
  }
  func.func @transform_3(%arg0: i32) -> (i32, i32) {
    %c0_i32 = arith.constant 0 : i32
    %c0_i32_0 = arith.constant 0 : i32
    %c0_i32_1 = arith.constant 0 : i32
    return %c0_i32, %c0_i32_0 : i32, i32
  }
  func.func @transform_4(%arg0: i32) -> (i32, i32, i32) {
    %c0_i32 = arith.constant 0 : i32
    %c0_i32_0 = arith.constant 0 : i32
    %c0_i32_1 = arith.constant 0 : i32
    %c0_i32_2 = arith.constant 0 : i32
    return %c0_i32, %c0_i32_0, %c0_i32_1 : i32, i32, i32
  }
  func.func @transform_5(%arg0: i32) -> (i32, i32, i32) {
    %c0_i32 = arith.constant 0 : i32
    %c0_i32_0 = arith.constant 0 : i32
    %c0_i32_1 = arith.constant 0 : i32
    %c0_i32_2 = arith.constant 0 : i32
    return %c0_i32, %c0_i32_0, %c0_i32_1 : i32, i32, i32
  }
  func.func @transform_6(%arg0: i32) -> (i32, i32) {
    %c0_i32 = arith.constant 0 : i32
    %c0_i32_0 = arith.constant 0 : i32
    %c0_i32_1 = arith.constant 0 : i32
    return %c0_i32, %c0_i32_0 : i32, i32
  }
  func.func @transform_7(%arg0: i32) -> (i32, i32) {
    %c0_i32 = arith.constant 0 : i32
    %c0_i32_0 = arith.constant 0 : i32
    %c0_i32_1 = arith.constant 0 : i32
    return %c0_i32, %c0_i32_0 : i32, i32
  }
  func.func @transform_8(%arg0: i32) -> (i32, i32) {
    %c0_i32 = arith.constant 0 : i32
    %c0_i32_0 = arith.constant 0 : i32
    return %arg0, %c0_i32 : i32, i32
  }
}

module attributes {stable_mosaic.version = 11 : i64} {
  func.func @_head_regressor_kernel(%arg0: i32, %arg1: memref<8x128x256xbf16, #tpu.memory_space<vmem>>, %arg2: memref<8x1x128xf32, #tpu.memory_space<vmem>>, %arg3: memref<256x256xbf16, #tpu.memory_space<vmem>>, %arg4: memref<1x256xf32, #tpu.memory_space<vmem>>, %arg5: memref<1x1x256xbf16, #tpu.memory_space<vmem>>, %arg6: memref<1x1x1xf32, #tpu.memory_space<vmem>>, %arg7: memref<1x256xf32, #tpu.memory_space<vmem>>, %arg8: memref<1x1xf32, #tpu.memory_space<vmem>>, %arg9: memref<8x1xf32, #tpu.memory_space<vmem>>, %arg10: memref<8x1x128xf32, #tpu.memory_space<vmem>>) attributes {dimension_semantics = [#tpu.dimension_semantics<parallel>], iteration_bounds = array<i64: 2>, scalar_prefetch = 0 : i64, scratch_operands = 1 : i64, tpu.core_type = #tpu.core_type<tc>, window_params = [{transform_indices = @transform_0, window_bounds = array<i64: 8, 128, 256>}, {transform_indices = @transform_1, window_bounds = array<i64: 8, 1, 128>}, {pipeline_mode = #tpu.pipeline_mode<synchronous>, transform_indices = @transform_2, window_bounds = array<i64: 256, 256>}, {pipeline_mode = #tpu.pipeline_mode<synchronous>, transform_indices = @transform_3, window_bounds = array<i64: 1, 256>}, {pipeline_mode = #tpu.pipeline_mode<synchronous>, transform_indices = @transform_4, window_bounds = array<i64: 1, 1, 256>}, {pipeline_mode = #tpu.pipeline_mode<synchronous>, transform_indices = @transform_5, window_bounds = array<i64: 1, 1, 1>}, {pipeline_mode = #tpu.pipeline_mode<synchronous>, transform_indices = @transform_6, window_bounds = array<i64: 1, 256>}, {pipeline_mode = #tpu.pipeline_mode<synchronous>, transform_indices = @transform_7, window_bounds = array<i64: 1, 1>}, {transform_indices = @transform_8, window_bounds = array<i64: 8, 1>}]} {
    %c0 = arith.constant 0 : index
    %c0_0 = arith.constant 0 : index
    %c0_1 = arith.constant 0 : index
    %0 = vector.load %arg5[%c0, %c0_0, %c0_1] : memref<1x1x256xbf16, #tpu.memory_space<vmem>>, vector<1x1x256xbf16>
    %1 = vector.shape_cast %0 : vector<1x1x256xbf16> to vector<1x1x256xbf16>
    %2 = vector.broadcast %1 : vector<1x1x256xbf16> to vector<8x1x256xbf16>
    %c0_i32 = arith.constant 0 : i32
    %c128_i32 = arith.constant 128 : i32
    %3 = arith.muli %c0_i32, %c128_i32 : i32
    %4 = tpu.assume_multiple %3, 128 : i32
    %c0_2 = arith.constant 0 : index
    %5 = arith.index_cast %4 : i32 to index
    %c0_3 = arith.constant 0 : index
    %6 = vector.load %arg1[%c0_2, %5, %c0_3] : memref<8x128x256xbf16, #tpu.memory_space<vmem>>, vector<8x128x256xbf16>
    %7 = vector.shape_cast %6 : vector<8x128x256xbf16> to vector<1024x256xbf16>
    %c0_4 = arith.constant 0 : index
    %c0_5 = arith.constant 0 : index
    %8 = vector.load %arg3[%c0_4, %c0_5] : memref<256x256xbf16, #tpu.memory_space<vmem>>, vector<256x256xbf16>
    %cst = arith.constant dense<0.000000e+00> : vector<1024x256xf32>
    %9 = tpu.matmul %7, %8, %cst {dimension_numbers = #tpu.dot_dimension_numbers<[1], [0], [0], [1], [0, 0, 1, 1], [], []>} : vector<1024x256xbf16>, vector<256x256xbf16>, vector<1024x256xf32> -> vector<1024x256xf32>
    %c0_6 = arith.constant 0 : index
    %c0_7 = arith.constant 0 : index
    %10 = vector.load %arg4[%c0_6, %c0_7] : memref<1x256xf32, #tpu.memory_space<vmem>>, vector<1x256xf32>
    %11 = vector.broadcast %10 : vector<1x256xf32> to vector<1024x256xf32>
    %12 = arith.addf %9, %11 : vector<1024x256xf32>
    %13 = math.tanh %12 : vector<1024x256xf32>
    %14 = arith.truncf %13 : vector<1024x256xf32> to vector<1024x256xbf16>
    %15 = vector.shape_cast %14 : vector<1024x256xbf16> to vector<8x128x256xbf16>
    "tpu.trace_start"() <{level = 10 : i32, message = "bqd,bkd->bqk"}> : () -> ()
    %cst_8 = arith.constant dense<0.000000e+00> : vector<8x1x128xf32>
    %16 = tpu.matmul %2, %15, %cst_8 {dimension_numbers = #tpu.dot_dimension_numbers<[2], [2], [1], [1], [0, 0, 0, 1, 1, 1], [0], [0]>} : vector<8x1x256xbf16>, vector<8x128x256xbf16>, vector<8x1x128xf32> -> vector<8x1x128xf32>
    "tpu.trace_stop"() : () -> ()
    %c0_9 = arith.constant 0 : index
    %c0_10 = arith.constant 0 : index
    %c0_11 = arith.constant 0 : index
    %17 = vector.load %arg6[%c0_9, %c0_10, %c0_11] : memref<1x1x1xf32, #tpu.memory_space<vmem>>, vector<1x1x1xf32>
    %18 = vector.broadcast %17 : vector<1x1x1xf32> to vector<8x1x128xf32>
    %19 = arith.addf %16, %18 : vector<8x1x128xf32>
    %c0_12 = arith.constant 0 : index
    %c0_13 = arith.constant 0 : index
    %20 = arith.index_cast %4 : i32 to index
    %21 = vector.load %arg2[%c0_12, %c0_13, %20] : memref<8x1x128xf32, #tpu.memory_space<vmem>>, vector<8x1x128xf32>
    %22 = arith.addf %19, %21 : vector<8x1x128xf32>
    %c0_14 = arith.constant 0 : index
    %c0_15 = arith.constant 0 : index
    %23 = arith.index_cast %4 : i32 to index
    %24 = vector.load %arg10[%c0_14, %c0_15, %23] : memref<8x1x128xf32, #tpu.memory_space<vmem>>, vector<8x1x128xf32>
    tpu.vector_store %arg10[%c0_14, %c0_15, %23], %22 {strides = array<i32>} : memref<8x1x128xf32, #tpu.memory_space<vmem>>, vector<8x1x128xf32>,
    %c1_i32 = arith.constant 1 : i32
    %c0_16 = arith.constant 0 : index
    %c0_17 = arith.constant 0 : index
    %c0_18 = arith.constant 0 : index
    %25 = vector.load %arg10[%c0_16, %c0_17, %c0_18] : memref<8x1x128xf32, #tpu.memory_space<vmem>>, vector<8x1x128xf32>
    %cst_19 = arith.constant dense<0xFF800000> : vector<8x1xf32>
    %26 = vector.multi_reduction <maximumf>, %25, %cst_19 [2] : vector<8x1x128xf32> to vector<8x1xf32>
    %27 = vector.shape_cast %26 : vector<8x1xf32> to vector<8x1x1xf32>
    %28 = vector.broadcast %27 : vector<8x1x1xf32> to vector<8x1x128xf32>
    %29 = arith.subf %25, %28 : vector<8x1x128xf32>
    %30 = math.exp %29 : vector<8x1x128xf32>
    %cst_20 = arith.constant dense<0.000000e+00> : vector<8x1xf32>
    %31 = vector.multi_reduction <add>, %30, %cst_20 [2] : vector<8x1x128xf32> to vector<8x1xf32>
    %32 = vector.shape_cast %31 : vector<8x1xf32> to vector<8x1x1xf32>
    %33 = vector.broadcast %32 : vector<8x1x1xf32> to vector<8x1x128xf32>
    %34 = arith.divf %30, %33 : vector<8x1x128xf32>
    %c0_21 = arith.constant 0 : index
    %c0_22 = arith.constant 0 : index
    %c0_23 = arith.constant 0 : index
    %35 = vector.load %arg1[%c0_21, %c0_22, %c0_23] : memref<8x128x256xbf16, #tpu.memory_space<vmem>>, vector<8x128x256xbf16>
    %36 = arith.truncf %34 : vector<8x1x128xf32> to vector<8x1x128xbf16>
    "tpu.trace_start"() <{level = 10 : i32, message = "bqs,bsh->bqh"}> : () -> ()
    %cst_24 = arith.constant dense<0.000000e+00> : vector<8x1x256xf32>
    %37 = tpu.matmul %36, %35, %cst_24 {dimension_numbers = #tpu.dot_dimension_numbers<[2], [1], [1], [2], [0, 0, 0, 1, 1, 2], [0], [0]>} : vector<8x1x128xbf16>, vector<8x128x256xbf16>, vector<8x1x256xf32> -> vector<8x1x256xf32>
    "tpu.trace_stop"() : () -> ()
    %38 = vector.shape_cast %37 : vector<8x1x256xf32> to vector<8x256xf32>
    %c0_25 = arith.constant 0 : index
    %c0_26 = arith.constant 0 : index
    %39 = vector.load %arg7[%c0_25, %c0_26] : memref<1x256xf32, #tpu.memory_space<vmem>>, vector<1x256xf32>
    %40 = vector.broadcast %39 : vector<1x256xf32> to vector<8x256xf32>
    %41 = arith.mulf %38, %40 : vector<8x256xf32>
    %cst_27 = arith.constant dense<0.000000e+00> : vector<8xf32>
    %42 = vector.multi_reduction <add>, %41, %cst_27 [1] : vector<8x256xf32> to vector<8xf32>
    %43 = vector.shape_cast %42 : vector<8xf32> to vector<8x1xf32>
    %c0_28 = arith.constant 0 : index
    %c0_29 = arith.constant 0 : index
    %44 = vector.load %arg8[%c0_28, %c0_29] : memref<1x1xf32, #tpu.memory_space<vmem>>, vector<1x1xf32>
    %45 = vector.broadcast %44 : vector<1x1xf32> to vector<8x1xf32>
    %46 = arith.addf %43, %45 : vector<8x1xf32>
    %c0_30 = arith.constant 0 : index
    %c0_31 = arith.constant 0 : index
    %47 = vector.load %arg9[%c0_30, %c0_31] : memref<8x1xf32, #tpu.memory_space<vmem>>, vector<8x1xf32>
    tpu.vector_store %arg9[%c0_30, %c0_31], %46 {strides = array<i32>} : memref<8x1xf32, #tpu.memory_space<vmem>>, vector<8x1xf32>,
    return
  }
  func.func @transform_0(%arg0: i32) -> (i32, i32, i32) {
    %c0_i32 = arith.constant 0 : i32
    %c0_i32_0 = arith.constant 0 : i32
    %c0_i32_1 = arith.constant 0 : i32
    return %arg0, %c0_i32, %c0_i32_0 : i32, i32, i32
  }
  func.func @transform_1(%arg0: i32) -> (i32, i32, i32) {
    %c0_i32 = arith.constant 0 : i32
    %c0_i32_0 = arith.constant 0 : i32
    %c0_i32_1 = arith.constant 0 : i32
    return %arg0, %c0_i32, %c0_i32_0 : i32, i32, i32
  }
  func.func @transform_2(%arg0: i32) -> (i32, i32) {
    %c0_i32 = arith.constant 0 : i32
    %c0_i32_0 = arith.constant 0 : i32
    %c0_i32_1 = arith.constant 0 : i32
    return %c0_i32, %c0_i32_0 : i32, i32
  }
  func.func @transform_3(%arg0: i32) -> (i32, i32) {
    %c0_i32 = arith.constant 0 : i32
    %c0_i32_0 = arith.constant 0 : i32
    %c0_i32_1 = arith.constant 0 : i32
    return %c0_i32, %c0_i32_0 : i32, i32
  }
  func.func @transform_4(%arg0: i32) -> (i32, i32, i32) {
    %c0_i32 = arith.constant 0 : i32
    %c0_i32_0 = arith.constant 0 : i32
    %c0_i32_1 = arith.constant 0 : i32
    %c0_i32_2 = arith.constant 0 : i32
    return %c0_i32, %c0_i32_0, %c0_i32_1 : i32, i32, i32
  }
  func.func @transform_5(%arg0: i32) -> (i32, i32, i32) {
    %c0_i32 = arith.constant 0 : i32
    %c0_i32_0 = arith.constant 0 : i32
    %c0_i32_1 = arith.constant 0 : i32
    %c0_i32_2 = arith.constant 0 : i32
    return %c0_i32, %c0_i32_0, %c0_i32_1 : i32, i32, i32
  }
  func.func @transform_6(%arg0: i32) -> (i32, i32) {
    %c0_i32 = arith.constant 0 : i32
    %c0_i32_0 = arith.constant 0 : i32
    %c0_i32_1 = arith.constant 0 : i32
    return %c0_i32, %c0_i32_0 : i32, i32
  }
  func.func @transform_7(%arg0: i32) -> (i32, i32) {
    %c0_i32 = arith.constant 0 : i32
    %c0_i32_0 = arith.constant 0 : i32
    %c0_i32_1 = arith.constant 0 : i32
    return %c0_i32, %c0_i32_0 : i32, i32
  }
  func.func @transform_8(%arg0: i32) -> (i32, i32) {
    %c0_i32 = arith.constant 0 : i32
    %c0_i32_0 = arith.constant 0 : i32
    return %arg0, %c0_i32 : i32, i32
  }
}

</mosaic_0001>

<llo_original>
// kernel: tpu_custom_call.1
$region0: #{tpu_custom_call.1}
  #allocation0 [shape = 'u32[]', space=smem, size = 0x4, offset = 0x4, fixed_abs, tag = 'smem constant byte address 0x4 - core index']
  #allocation1 [shape = 'u32[144,128]{1,0:T(1,128)}', space=vmem, size = 0x12000, scoped, tag = 'internal scratch']
  #allocation2 [shape = 'f32[8,1,128]{2,1,0:T(1,128)}', space=vmem, size = 0x1000, scoped, tag = 'scratch operand']
  #allocation3 [shape = 'f32[1,1,1]{2,1,0:T(1,128)S(1)}', space=vmem, size = 0x200, scoped, tag = 'scoped memory for tpu_custom_call.1']
  #allocation4 [shape = 'f32[1,1]{1,0:T(1,128)S(1)}', space=vmem, size = 0x200, scoped, tag = 'scoped memory for tpu_custom_call.1']
  %s0 = inlined_call_operand.hbm [shape: bf16[16,128,256], index: 0, kind: input, shape index: {}]
  %s1 = inlined_call_operand.hbm [shape: f32[16,1,128], index: 1, kind: input, shape index: {}]
  %s2 = inlined_call_operand.hbm [shape: bf16[256,256], index: 2, kind: input, shape index: {}]
  %s3 = inlined_call_operand.vmem [shape: f32[1,256], index: 3, kind: input, shape index: {}]
  %s4 = inlined_call_operand.vmem [shape: bf16[1,1,256], index: 4, kind: input, shape index: {}]
  %s5 = inlined_call_operand.<no memory space> [shape: f32[1,1,1], index: 5, kind: input, shape index: {}]
  %s6 = inlined_call_operand.vmem [shape: f32[1,256], index: 6, kind: input, shape index: {}]
  %s7 = inlined_call_operand.<no memory space> [shape: f32[1,1], index: 7, kind: input, shape index: {}]
  %s8 = inlined_call_operand.vmem [shape: f32[16,1], index: 8, kind: output, shape index: {}]
  %s9 = sld [smem:[#allocation0]]
  $region77: #{tpu_custom_call.1} parent=0
    _
  %s11 = ssub.s32 1, %s9
  %s12 = scalar_select 0, %s11, %s9
  %v13 = vstv %s5
  %14 = vst [vmem:[#allocation3] sm:$0x1] %v13
  %v15 = vstv %s7
  %16 = vst [vmem:[#allocation4] sm:$0x1] %v15
  $region1: #{tpu_custom_call.1} parent=0
    #allocation5 [shape = 'u8[1048576]{0}', space=vmem, size = 0x100000, scoped, tag = 'input window, operand 0']
    #allocation6 [shape = 's32[2]{0}', space=sflag, size = 0x8, scoped, tag = 'scoped memory for tpu_custom_call.1']
    #allocation7 [shape = 'u8[8192]{0}', space=vmem, size = 0x2000, scoped, tag = 'input window, operand 1']
    #allocation8 [shape = 's32[2]{0}', space=sflag, size = 0x8, scoped, tag = 'scoped memory for tpu_custom_call.1']
    #allocation9 [shape = 'u8[131072]{0}', space=vmem, size = 0x20000, scoped, tag = 'input window, operand 2, single buffered']
    %17 = vsyncpa [#allocation6], 0
    %s18 = scalar_lea.sflag [#allocation6], 1
    %19 = vsyncpa %s18, 0
    %20 = vsyncpa [#allocation8], 0
    %s21 = scalar_lea.sflag [#allocation8], 1
    %22 = vsyncpa %s21, 0
    loop: start=0, step=1, limit=4
    $region2: #{tpu_custom_call.1} parent=1 // loop_pre_header
      _
    $region3: #{tpu_custom_call.1} parent=1 // loop_header
      %s24 = sphi 0, %s28
      %p25 = scmp.ge.s32.totalorder %s24, 4
      %s34 = sphi 0, %s36
      %s37 = sphi 0, %s34
      %s38 = sphi 0, %s37
      %s54 = sphi 0, %s38
      %s60 = sphi 0, %s62
      %s63 = sphi 0, %s60
      %s64 = sphi 0, %s63
      %s80 = sphi 0, %s64
      %s84 = sphi 0, %s84
      %s86 = sphi 0, %s84
      %s87 = sphi 0, %s86
      %s101 = sphi 0, %s87
      %s105 = sphi 0, %s105
      %s107 = sphi 0, %s105
      %s108 = sphi 0, %s107
      %s122 = sphi 0, %s108
      %s126 = sphi 0, %s126
      %s128 = sphi 0, %s126
      %s129 = sphi 0, %s128
      %s143 = sphi 0, %s129
      %s147 = sphi 0, %s147
      %s149 = sphi 0, %s147
      %s150 = sphi 0, %s149
      %s164 = sphi 0, %s150
      %s168 = sphi 0, %s168
      %s170 = sphi 0, %s168
      %s171 = sphi 0, %s170
      %s185 = sphi 0, %s171
      %s189 = sphi 0, %s189
      %s191 = sphi 0, %s189
      %s192 = sphi 0, %s191
      %s206 = sphi 0, %s192
      %s212 = sphi 0, %s214
      %s215 = sphi 0, %s212
      %s216 = sphi 0, %s215
      %s232 = sphi 0, %s216
    $region4: #{tpu_custom_call.1} parent=1 // loop_header_branch
      %27 = sbr.rel (%p25) target = $region8
    $region5: #{tpu_custom_call.1} parent=1 // loop_body
      %s29 = ssub.s32 %s24, 1
      %s30 = ssub.s32 %s24, 2
      %s31 = sadd.s32 %s24, 1
      %s32 = ssub.s32 %s24, %s31
      %p33 = scmp.eq.s32.totalorder %s32, 0
      %s35 = sadd.s32 %s34, 1
      %s36 = scalar_select %p33, %s34, %s35
      %p39 = pneg %p33
      %p40 = scmp.eq.s32.totalorder %s24, 1
      %p41 = por %p39, %p40
      %p42 = scmp.ne.s32.totalorder %s34, %s37
      %p43 = scmp.eq.s32.totalorder %s24, 0
      %p44 = por %p42, %p43
      %p45 = scmp.ne.s32.totalorder %s34, %s37
      %p46 = scmp.eq.s32.totalorder %s29, 1
      %p47 = por %p45, %p46
      %p48 = scmp.ne.s32.totalorder %s37, %s38
      %p49 = scmp.eq.s32.totalorder %s29, 0
      %p50 = por %p48, %p49
      %p51 = scmp.ne.s32.totalorder %s37, %s38
      %p52 = scmp.eq.s32.totalorder %s30, 1
      %p53 = por %p51, %p52
      %p55 = scmp.ne.s32.totalorder %s38, %s54
      %p56 = scmp.eq.s32.totalorder %s30, 0
      %p57 = por %p55, %p56
      %s58 = ssub.s32 %s24, %s31
      %p59 = scmp.eq.s32.totalorder %s58, 0
      %s61 = sadd.s32 %s60, 1
      %s62 = scalar_select %p59, %s60, %s61
      %p65 = pneg %p59
      %p66 = scmp.eq.s32.totalorder %s24, 1
      %p67 = por %p65, %p66
      %p68 = scmp.ne.s32.totalorder %s60, %s63
      %p69 = scmp.eq.s32.totalorder %s24, 0
      %p70 = por %p68, %p69
      %p71 = scmp.ne.s32.totalorder %s60, %s63
      %p72 = scmp.eq.s32.totalorder %s29, 1
      %p73 = por %p71, %p72
      %p74 = scmp.ne.s32.totalorder %s63, %s64
      %p75 = scmp.eq.s32.totalorder %s29, 0
      %p76 = por %p74, %p75
      %p77 = scmp.ne.s32.totalorder %s63, %s64
      %p78 = scmp.eq.s32.totalorder %s30, 1
      %p79 = por %p77, %p78
      %p81 = scmp.ne.s32.totalorder %s64, %s80
      %p82 = scmp.eq.s32.totalorder %s30, 0
      %p83 = por %p81, %p82
      %s85 = sadd.s32 %s84, 1
      %p88 = scmp.eq.s32.totalorder %s24, 1
      %p89 = scmp.ne.s32.totalorder %s84, %s86
      %p90 = scmp.eq.s32.totalorder %s24, 0
      %p91 = por %p89, %p90
      %p92 = scmp.ne.s32.totalorder %s84, %s86
      %p93 = scmp.eq.s32.totalorder %s29, 1
      %p94 = por %p92, %p93
      %p95 = scmp.ne.s32.totalorder %s86, %s87
      %p96 = scmp.eq.s32.totalorder %s29, 0
      %p97 = por %p95, %p96
      %p98 = scmp.ne.s32.totalorder %s86, %s87
      %p99 = scmp.eq.s32.totalorder %s30, 1
      %p100 = por %p98, %p99
      %p102 = scmp.ne.s32.totalorder %s87, %s101
      %p103 = scmp.eq.s32.totalorder %s30, 0
      %p104 = por %p102, %p103
      %s106 = sadd.s32 %s105, 1
      %p109 = scmp.eq.s32.totalorder %s24, 1
      %p110 = scmp.ne.s32.totalorder %s105, %s107
      %p111 = scmp.eq.s32.totalorder %s24, 0
      %p112 = por %p110, %p111
      %p113 = scmp.ne.s32.totalorder %s105, %s107
      %p114 = scmp.eq.s32.totalorder %s29, 1
      %p115 = por %p113, %p114
      %p116 = scmp.ne.s32.totalorder %s107, %s108
      %p117 = scmp.eq.s32.totalorder %s29, 0
      %p118 = por %p116, %p117
      %p119 = scmp.ne.s32.totalorder %s107, %s108
      %p120 = scmp.eq.s32.totalorder %s30, 1
      %p121 = por %p119, %p120
      %p123 = scmp.ne.s32.totalorder %s108, %s122
      %p124 = scmp.eq.s32.totalorder %s30, 0
      %p125 = por %p123, %p124
      %s127 = sadd.s32 %s126, 1
      %p130 = scmp.eq.s32.totalorder %s24, 1
      %p131 = scmp.ne.s32.totalorder %s126, %s128
      %p132 = scmp.eq.s32.totalorder %s24, 0
      %p133 = por %p131, %p132
      %p134 = scmp.ne.s32.totalorder %s126, %s128
      %p135 = scmp.eq.s32.totalorder %s29, 1
      %p136 = por %p134, %p135
      %p137 = scmp.ne.s32.totalorder %s128, %s129
      %p138 = scmp.eq.s32.totalorder %s29, 0
      %p139 = por %p137, %p138
      %p140 = scmp.ne.s32.totalorder %s128, %s129
      %p141 = scmp.eq.s32.totalorder %s30, 1
      %p142 = por %p140, %p141
      %p144 = scmp.ne.s32.totalorder %s129, %s143
      %p145 = scmp.eq.s32.totalorder %s30, 0
      %p146 = por %p144, %p145
      %s148 = sadd.s32 %s147, 1
      %p151 = scmp.eq.s32.totalorder %s24, 1
      %p152 = scmp.ne.s32.totalorder %s147, %s149
      %p153 = scmp.eq.s32.totalorder %s24, 0
      %p154 = por %p152, %p153
      %p155 = scmp.ne.s32.totalorder %s147, %s149
      %p156 = scmp.eq.s32.totalorder %s29, 1
      %p157 = por %p155, %p156
      %p158 = scmp.ne.s32.totalorder %s149, %s150
      %p159 = scmp.eq.s32.totalorder %s29, 0
      %p160 = por %p158, %p159
      %p161 = scmp.ne.s32.totalorder %s149, %s150
      %p162 = scmp.eq.s32.totalorder %s30, 1
      %p163 = por %p161, %p162
      %p165 = scmp.ne.s32.totalorder %s150, %s164
      %p166 = scmp.eq.s32.totalorder %s30, 0
      %p167 = por %p165, %p166
      %s169 = sadd.s32 %s168, 1
      %p172 = scmp.eq.s32.totalorder %s24, 1
      %p173 = scmp.ne.s32.totalorder %s168, %s170
      %p174 = scmp.eq.s32.totalorder %s24, 0
      %p175 = por %p173, %p174
      %p176 = scmp.ne.s32.totalorder %s168, %s170
      %p177 = scmp.eq.s32.totalorder %s29, 1
      %p178 = por %p176, %p177
      %p179 = scmp.ne.s32.totalorder %s170, %s171
      %p180 = scmp.eq.s32.totalorder %s29, 0
      %p181 = por %p179, %p180
      %p182 = scmp.ne.s32.totalorder %s170, %s171
      %p183 = scmp.eq.s32.totalorder %s30, 1
      %p184 = por %p182, %p183
      %p186 = scmp.ne.s32.totalorder %s171, %s185
      %p187 = scmp.eq.s32.totalorder %s30, 0
      %p188 = por %p186, %p187
      %s190 = sadd.s32 %s189, 1
      %p193 = scmp.eq.s32.totalorder %s24, 1
      %p194 = scmp.ne.s32.totalorder %s189, %s191
      %p195 = scmp.eq.s32.totalorder %s24, 0
      %p196 = por %p194, %p195
      %p197 = scmp.ne.s32.totalorder %s189, %s191
      %p198 = scmp.eq.s32.totalorder %s29, 1
      %p199 = por %p197, %p198
      %p200 = scmp.ne.s32.totalorder %s191, %s192
      %p201 = scmp.eq.s32.totalorder %s29, 0
      %p202 = por %p200, %p201
      %p203 = scmp.ne.s32.totalorder %s191, %s192
      %p204 = scmp.eq.s32.totalorder %s30, 1
      %p205 = por %p203, %p204
      %p207 = scmp.ne.s32.totalorder %s192, %s206
      %p208 = scmp.eq.s32.totalorder %s30, 0
      %p209 = por %p207, %p208
      %s210 = ssub.s32 %s24, %s31
      %p211 = scmp.eq.s32.totalorder %s210, 0
      %s213 = sadd.s32 %s212, 1
      %s214 = scalar_select %p211, %s212, %s213
      %p217 = pneg %p211
      %p218 = scmp.eq.s32.totalorder %s24, 1
      %p219 = por %p217, %p218
      %p220 = scmp.ne.s32.totalorder %s212, %s215
      %p221 = scmp.eq.s32.totalorder %s24, 0
      %p222 = por %p220, %p221
      %p223 = scmp.ne.s32.totalorder %s212, %s215
      %p224 = scmp.eq.s32.totalorder %s29, 1
      %p225 = por %p223, %p224
      %p226 = scmp.ne.s32.totalorder %s215, %s216
      %p227 = scmp.eq.s32.totalorder %s29, 0
      %p228 = por %p226, %p227
      %p229 = scmp.ne.s32.totalorder %s215, %s216
      %p230 = scmp.eq.s32.totalorder %s30, 1
      %p231 = por %p229, %p230
      %p233 = scmp.ne.s32.totalorder %s216, %s232
      %p234 = scmp.eq.s32.totalorder %s30, 0
      %p235 = por %p233, %p234
      %p236 = scmp.le.s32.totalorder 1, %s24
      %p237 = scmp.lt.s32.totalorder %s24, 3
      %p238 = pnand %p236, %p237
      %p239 = pneg %p238
      // Predicated region
      $region9: #{tpu_custom_call.1} parent=5 // pred_check
        _
      $region10: #{tpu_custom_call.1} parent=5 // pred_check_branch
        %241 = sbr.rel (%p238) target = $region12
      $region11: #{tpu_custom_call.1} parent=5 // pred_region
        %s242 = ssub.s32 %s24, 1
        // Predicated region
        $region13: #{tpu_custom_call.1} parent=11 // pred_check
          %p243 = pneg %p97
        $region14: #{tpu_custom_call.1} parent=11 // pred_check_branch
          %245 = sbr.rel (%p243) target = $region16
        $region15: #{tpu_custom_call.1} parent=11 // pred_region
          %s247 = ssub.s32 4096, 4096
          %248 = vsyncadd [#allocation8], %s247
          %s249 = sshll.u32 [#allocation9], 4
          %s250 = int_to_ptr.vmem [resolvable:$true] %s249
          %255 = dma.hbm_to_vmem [thread:$0]  %s2, 4096, %s250, [#allocation8], 128, 128, 8
        $region16: #{tpu_custom_call.1} parent=11 // pred_fallthru
          _
        // Predicated region
        $region17: #{tpu_custom_call.1} parent=11 // pred_check
          %p256 = pneg %p118
        $region18: #{tpu_custom_call.1} parent=11 // pred_check_branch
          %258 = sbr.rel (%p256) target = $region20
        $region19: #{tpu_custom_call.1} parent=11 // pred_region
          _
        $region20: #{tpu_custom_call.1} parent=11 // pred_fallthru
          _
        // Predicated region
        $region21: #{tpu_custom_call.1} parent=11 // pred_check
          %p259 = pneg %p139
        $region22: #{tpu_custom_call.1} parent=11 // pred_check_branch
          %261 = sbr.rel (%p259) target = $region24
        $region23: #{tpu_custom_call.1} parent=11 // pred_region
          _
        $region24: #{tpu_custom_call.1} parent=11 // pred_fallthru
          _
        // Predicated region
        $region25: #{tpu_custom_call.1} parent=11 // pred_check
          %p262 = pneg %p160
        $region26: #{tpu_custom_call.1} parent=11 // pred_check_branch
          %264 = sbr.rel (%p262) target = $region28
        $region27: #{tpu_custom_call.1} parent=11 // pred_region
          _
        $region28: #{tpu_custom_call.1} parent=11 // pred_fallthru
          _
        // Predicated region
        $region29: #{tpu_custom_call.1} parent=11 // pred_check
          %p265 = pneg %p181
        $region30: #{tpu_custom_call.1} parent=11 // pred_check_branch
          %267 = sbr.rel (%p265) target = $region32
        $region31: #{tpu_custom_call.1} parent=11 // pred_region
          _
        $region32: #{tpu_custom_call.1} parent=11 // pred_fallthru
          _
        // Predicated region
        $region33: #{tpu_custom_call.1} parent=11 // pred_check
          %p268 = pneg %p202
        $region34: #{tpu_custom_call.1} parent=11 // pred_check_branch
          %270 = sbr.rel (%p268) target = $region36
        $region35: #{tpu_custom_call.1} parent=11 // pred_region
          _
        $region36: #{tpu_custom_call.1} parent=11 // pred_fallthru
          _
      $region12: #{tpu_custom_call.1} parent=5 // pred_fallthru
        _
      %p271 = scmp.lt.s32.totalorder %s24, 2
      // Predicated region
      $region37: #{tpu_custom_call.1} parent=5 // pred_check
        %p272 = pneg %p271
      $region38: #{tpu_custom_call.1} parent=5 // pred_check_branch
        %274 = sbr.rel (%p272) target = $region40
      $region39: #{tpu_custom_call.1} parent=5 // pred_region
        // Predicated region
        $region41: #{tpu_custom_call.1} parent=39 // pred_check
          %p275 = pneg %p44
        $region42: #{tpu_custom_call.1} parent=39 // pred_check_branch
          %277 = sbr.rel (%p275) target = $region44
        $region43: #{tpu_custom_call.1} parent=39 // pred_region
          %s278 = sand.u32 %s34, 1
          %s279 = scalar_lea.sflag [#allocation6], %s278
          %s280 = sand.u32 %s34, 1
          %s281 = smul.addr %s280, 1024
          %s282 = scalar_lea.vmem [#allocation5], %s281
          %s283 = smul.u32 8, %s24
          %s285 = ssub.s32 16384, 16384
          %286 = vsyncadd %s279, %s285
          %s287 = smul.addr %s283, 32
          %s288 = smul.addr %s287, 64
          %s289 = scalar_lea.hbm %s0, %s288
          %s290 = sshll.u32 %s282, 4
          %s291 = int_to_ptr.vmem [resolvable:$true] %s290
          %296 = dma.hbm_to_vmem [thread:$0]  %s289, 16384, %s291, %s279, 128, 128, 8
        $region44: #{tpu_custom_call.1} parent=39 // pred_fallthru
          _
        // Predicated region
        $region45: #{tpu_custom_call.1} parent=39 // pred_check
          %p297 = pneg %p70
        $region46: #{tpu_custom_call.1} parent=39 // pred_check_branch
          %299 = sbr.rel (%p297) target = $region48
        $region47: #{tpu_custom_call.1} parent=39 // pred_region
          %s300 = sand.u32 %s24, 1
          %s301 = scalar_lea.sflag [#allocation8], %s300
          %s302 = sand.u32 %s60, 1
          %s303 = smul.addr %s302, 8
          %s304 = scalar_lea.vmem [#allocation7], %s303
          %s305 = smul.u32 8, %s24
          %s307 = ssub.s32 128, 128
          %308 = vsyncadd %s301, %s307
          %s309 = smul.addr %s305, 16
          %s310 = scalar_lea.hbm %s1, %s309
          %s311 = sshll.u32 %s304, 4
          %s312 = int_to_ptr.vmem [resolvable:$true] %s311
          %317 = dma.hbm_to_vmem [thread:$0]  %s310, 128, %s312, %s301, 16, 16, 1
        $region48: #{tpu_custom_call.1} parent=39 // pred_fallthru
          _
      $region40: #{tpu_custom_call.1} parent=5 // pred_fallthru
        _
      %p318 = scmp.le.s32.totalorder 1, %s24
      %p319 = scmp.lt.s32.totalorder %s24, 3
      %p320 = pnand %p318, %p319
      %p321 = pneg %p320
      // Predicated region
      $region49: #{tpu_custom_call.1} parent=5 // pred_check
        _
      $region50: #{tpu_custom_call.1} parent=5 // pred_check_branch
        %323 = sbr.rel (%p320) target = $region52
      $region51: #{tpu_custom_call.1} parent=5 // pred_region
        %s324 = ssub.s32 %s24, 1
        %s325 = sand.u32 %s37, 1
        %s326 = scalar_lea.sflag [#allocation6], %s325
        %s327 = sand.u32 %s37, 1
        %s328 = smul.addr %s327, 1024
        %s329 = scalar_lea.vmem [#allocation5], %s328
        // Predicated region
        $region53: #{tpu_custom_call.1} parent=51 // pred_check
          %p330 = pneg %p50
        $region54: #{tpu_custom_call.1} parent=51 // pred_check_branch
          %332 = sbr.rel (%p330) target = $region56
        $region55: #{tpu_custom_call.1} parent=51 // pred_region
          %333 = dma.done %s326, 16384
        $region56: #{tpu_custom_call.1} parent=51 // pred_fallthru
          _
        %s334 = sand.u32 %s29, 1
        %s335 = scalar_lea.sflag [#allocation8], %s334
        %s336 = sand.u32 %s63, 1
        %s337 = smul.addr %s336, 8
        %s338 = scalar_lea.vmem [#allocation7], %s337
        // Predicated region
        $region57: #{tpu_custom_call.1} parent=51 // pred_check
          %p339 = pneg %p76
        $region58: #{tpu_custom_call.1} parent=51 // pred_check_branch
          %341 = sbr.rel (%p339) target = $region60
        $region59: #{tpu_custom_call.1} parent=51 // pred_region
          %342 = dma.done %s335, 128
        $region60: #{tpu_custom_call.1} parent=51 // pred_fallthru
          _
        // Predicated region
        $region61: #{tpu_custom_call.1} parent=51 // pred_check
          %p343 = pneg %p97
        $region62: #{tpu_custom_call.1} parent=51 // pred_check_branch
          %345 = sbr.rel (%p343) target = $region64
        $region63: #{tpu_custom_call.1} parent=51 // pred_region
          %346 = dma.done [#allocation8], 4096
        $region64: #{tpu_custom_call.1} parent=51 // pred_fallthru
          _
        %s347 = sand.u32 %s37, 1
        %s348 = scalar_lea.sflag [#allocation6], %s347
        %s349 = sand.u32 %s37, 1
        %s350 = smul.addr %s349, 1024
        %s351 = scalar_lea.vmem [#allocation5], %s350
        %p352 = pneg %p50
        %p353 = pneg %p47
        %s354 = sand.u32 %s29, 1
        %s355 = scalar_lea.sflag [#allocation8], %s354
        %s356 = sand.u32 %s63, 1
        %s357 = smul.addr %s356, 8
        %s358 = scalar_lea.vmem [#allocation7], %s357
        %p359 = pneg %p76
        %p360 = pneg %p73
        %p361 = pneg %p97
        %p362 = pneg %p94
        %p363 = pneg %p118
        %p364 = pneg %p115
        %p365 = pneg %p139
        %p366 = pneg %p136
        %p367 = pneg %p160
        %p368 = pneg %p157
        %p369 = pneg %p181
        %p370 = pneg %p178
        %p371 = pneg %p202
        %p372 = pneg %p199
        %p373 = pneg %p228
        %p374 = pneg %p225
        %p375 = scmp.lt.s32.totalorder %s29, 1
        %s376 = scalar_select %p375, %s29, 1
        %s377 = smul.addr %s376, 8
        %s378 = scalar_lea.vmem %s8, %s377
        %s379 = smul.u32 8, %s29
        %s380 = smul.u32 8, %s29
        %p381 = scmp.lt.s32.totalorder %s29, 1
        %s382 = scalar_select %p381, %s29, 1
        %s383 = smul.addr %s382, 8
        %s384 = scalar_lea.vmem %s8, %s383
        %v386 = vld [vmem:[%s4] sm:$0x3]
        %s387 = smul.u32 0, 2
        %s388 = smul.addr %s387, 4
        %s389 = scalar_lea.vmem %s329, %s388 [#allocation5]
        %v390 = vld [vmem:[%s389] sm:$0xff]
        %v391 = vld [vmem:[%s389 + $0x8] sm:$0xff]
        %v392 = vld [vmem:[%s389 + $0x10] sm:$0xff]
        %v393 = vld [vmem:[%s389 + $0x18] sm:$0xff]
        %v394 = vld [vmem:[%s389 + $0x20] sm:$0xff]
        %v395 = vld [vmem:[%s389 + $0x28] sm:$0xff]
        %v396 = vld [vmem:[%s389 + $0x30] sm:$0xff]
        %v397 = vld [vmem:[%s389 + $0x38] sm:$0xff]
        %v398 = vld [vmem:[%s389 + $0x40] sm:$0xff]
        %v399 = vld [vmem:[%s389 + $0x48] sm:$0xff]
        %v400 = vld [vmem:[%s389 + $0x50] sm:$0xff]
        %v401 = vld [vmem:[%s389 + $0x58] sm:$0xff]
        %v402 = vld [vmem:[%s389 + $0x60] sm:$0xff]
        %v403 = vld [vmem:[%s389 + $0x68] sm:$0xff]
        %v404 = vld [vmem:[%s389 + $0x70] sm:$0xff]
        %v405 = vld [vmem:[%s389 + $0x78] sm:$0xff]
        %v406 = vld [vmem:[%s389 + $0x80] sm:$0xff]
        %v407 = vld [vmem:[%s389 + $0x88] sm:$0xff]
        %v408 = vld [vmem:[%s389 + $0x90] sm:$0xff]
        %v409 = vld [vmem:[%s389 + $0x98] sm:$0xff]
        %v410 = vld [vmem:[%s389 + $0xa0] sm:$0xff]
        %v411 = vld [vmem:[%s389 + $0xa8] sm:$0xff]
        %v412 = vld [vmem:[%s389 + $0xb0] sm:$0xff]
        %v413 = vld [vmem:[%s389 + $0xb8] sm:$0xff]
        %v414 = vld [vmem:[%s389 + $0xc0] sm:$0xff]
        %v415 = vld [vmem:[%s389 + $0xc8] sm:$0xff]
        %v416 = vld [vmem:[%s389 + $0xd0] sm:$0xff]
        %v417 = vld [vmem:[%s389 + $0xd8] sm:$0xff]
        %v418 = vld [vmem:[%s389 + $0xe0] sm:$0xff]
        %v419 = vld [vmem:[%s389 + $0xe8] sm:$0xff]
        %v420 = vld [vmem:[%s389 + $0xf0] sm:$0xff]
        %v421 = vld [vmem:[%s389 + $0xf8] sm:$0xff]
        %v422 = vld [vmem:[%s389 + $0x100] sm:$0xff]
        %v423 = vld [vmem:[%s389 + $0x108] sm:$0xff]
        %v424 = vld [vmem:[%s389 + $0x110] sm:$0xff]
        %v425 = vld [vmem:[%s389 + $0x118] sm:$0xff]
        %v426 = vld [vmem:[%s389 + $0x120] sm:$0xff]
        %v427 = vld [vmem:[%s389 + $0x128] sm:$0xff]
        %v428 = vld [vmem:[%s389 + $0x130] sm:$0xff]
        %v429 = vld [vmem:[%s389 + $0x138] sm:$0xff]
        %v430 = vld [vmem:[%s389 + $0x140] sm:$0xff]
        %v431 = vld [vmem:[%s389 + $0x148] sm:$0xff]
        %v432 = vld [vmem:[%s389 + $0x150] sm:$0xff]
        %v433 = vld [vmem:[%s389 + $0x158] sm:$0xff]
        %v434 = vld [vmem:[%s389 + $0x160] sm:$0xff]
        %v435 = vld [vmem:[%s389 + $0x168] sm:$0xff]
        %v436 = vld [vmem:[%s389 + $0x170] sm:$0xff]
        %v437 = vld [vmem:[%s389 + $0x178] sm:$0xff]
        %v438 = vld [vmem:[%s389 + $0x180] sm:$0xff]
        %v439 = vld [vmem:[%s389 + $0x188] sm:$0xff]
        %v440 = vld [vmem:[%s389 + $0x190] sm:$0xff]
        %v441 = vld [vmem:[%s389 + $0x198] sm:$0xff]
        %v442 = vld [vmem:[%s389 + $0x1a0] sm:$0xff]
        %v443 = vld [vmem:[%s389 + $0x1a8] sm:$0xff]
        %v444 = vld [vmem:[%s389 + $0x1b0] sm:$0xff]
        %v445 = vld [vmem:[%s389 + $0x1b8] sm:$0xff]
        %v446 = vld [vmem:[%s389 + $0x1c0] sm:$0xff]
        %v447 = vld [vmem:[%s389 + $0x1c8] sm:$0xff]
        %v448 = vld [vmem:[%s389 + $0x1d0] sm:$0xff]
        %v449 = vld [vmem:[%s389 + $0x1d8] sm:$0xff]
        %v450 = vld [vmem:[%s389 + $0x1e0] sm:$0xff]
        %v451 = vld [vmem:[%s389 + $0x1e8] sm:$0xff]
        %v452 = vld [vmem:[%s389 + $0x1f0] sm:$0xff]
        %v453 = vld [vmem:[%s389 + $0x1f8] sm:$0xff]
        %v454 = vld [vmem:[%s389 + $0x200] sm:$0xff]
        %v455 = vld [vmem:[%s389 + $0x208] sm:$0xff]
        %v456 = vld [vmem:[%s389 + $0x210] sm:$0xff]
        %v457 = vld [vmem:[%s389 + $0x218] sm:$0xff]
        %v458 = vld [vmem:[%s389 + $0x220] sm:$0xff]
        %v459 = vld [vmem:[%s389 + $0x228] sm:$0xff]
        %v460 = vld [vmem:[%s389 + $0x230] sm:$0xff]
        %v461 = vld [vmem:[%s389 + $0x238] sm:$0xff]
        %v462 = vld [vmem:[%s389 + $0x240] sm:$0xff]
        %v463 = vld [vmem:[%s389 + $0x248] sm:$0xff]
        %v464 = vld [vmem:[%s389 + $0x250] sm:$0xff]
        %v465 = vld [vmem:[%s389 + $0x258] sm:$0xff]
        %v466 = vld [vmem:[%s389 + $0x260] sm:$0xff]
        %v467 = vld [vmem:[%s389 + $0x268] sm:$0xff]
        %v468 = vld [vmem:[%s389 + $0x270] sm:$0xff]
        %v469 = vld [vmem:[%s389 + $0x278] sm:$0xff]
        %v470 = vld [vmem:[%s389 + $0x280] sm:$0xff]
        %v471 = vld [vmem:[%s389 + $0x288] sm:$0xff]
        %v472 = vld [vmem:[%s389 + $0x290] sm:$0xff]
        %v473 = vld [vmem:[%s389 + $0x298] sm:$0xff]
        %v474 = vld [vmem:[%s389 + $0x2a0] sm:$0xff]
        %v475 = vld [vmem:[%s389 + $0x2a8] sm:$0xff]
        %v476 = vld [vmem:[%s389 + $0x2b0] sm:$0xff]
        %v477 = vld [vmem:[%s389 + $0x2b8] sm:$0xff]
        %v478 = vld [vmem:[%s389 + $0x2c0] sm:$0xff]
        %v479 = vld [vmem:[%s389 + $0x2c8] sm:$0xff]
        %v480 = vld [vmem:[%s389 + $0x2d0] sm:$0xff]
        %v481 = vld [vmem:[%s389 + $0x2d8] sm:$0xff]
        %v482 = vld [vmem:[%s389 + $0x2e0] sm:$0xff]
        %v483 = vld [vmem:[%s389 + $0x2e8] sm:$0xff]
        %v484 = vld [vmem:[%s389 + $0x2f0] sm:$0xff]
        %v485 = vld [vmem:[%s389 + $0x2f8] sm:$0xff]
        %v486 = vld [vmem:[%s389 + $0x300] sm:$0xff]
        %v487 = vld [vmem:[%s389 + $0x308] sm:$0xff]
        %v488 = vld [vmem:[%s389 + $0x310] sm:$0xff]
        %v489 = vld [vmem:[%s389 + $0x318] sm:$0xff]
        %v490 = vld [vmem:[%s389 + $0x320] sm:$0xff]
        %v491 = vld [vmem:[%s389 + $0x328] sm:$0xff]
        %v492 = vld [vmem:[%s389 + $0x330] sm:$0xff]
        %v493 = vld [vmem:[%s389 + $0x338] sm:$0xff]
        %v494 = vld [vmem:[%s389 + $0x340] sm:$0xff]
        %v495 = vld [vmem:[%s389 + $0x348] sm:$0xff]
        %v496 = vld [vmem:[%s389 + $0x350] sm:$0xff]
        %v497 = vld [vmem:[%s389 + $0x358] sm:$0xff]
        %v498 = vld [vmem:[%s389 + $0x360] sm:$0xff]
        %v499 = vld [vmem:[%s389 + $0x368] sm:$0xff]
        %v500 = vld [vmem:[%s389 + $0x370] sm:$0xff]
        %v501 = vld [vmem:[%s389 + $0x378] sm:$0xff]
        %v502 = vld [vmem:[%s389 + $0x380] sm:$0xff]
        %v503 = vld [vmem:[%s389 + $0x388] sm:$0xff]
        %v504 = vld [vmem:[%s389 + $0x390] sm:$0xff]
        %v505 = vld [vmem:[%s389 + $0x398] sm:$0xff]
        %v506 = vld [vmem:[%s389 + $0x3a0] sm:$0xff]
        %v507 = vld [vmem:[%s389 + $0x3a8] sm:$0xff]
        %v508 = vld [vmem:[%s389 + $0x3b0] sm:$0xff]
        %v509 = vld [vmem:[%s389 + $0x3b8] sm:$0xff]
        %v510 = vld [vmem:[%s389 + $0x3c0] sm:$0xff]
        %v511 = vld [vmem:[%s389 + $0x3c8] sm:$0xff]
        %v512 = vld [vmem:[%s389 + $0x3d0] sm:$0xff]
        %v513 = vld [vmem:[%s389 + $0x3d8] sm:$0xff]
        %v514 = vld [vmem:[%s389 + $0x3e0] sm:$0xff]
        %v515 = vld [vmem:[%s389 + $0x3e8] sm:$0xff]
        %v516 = vld [vmem:[%s389 + $0x3f0] sm:$0xff]
        %v517 = vld [vmem:[%s389 + $0x3f8] sm:$0xff]
        %v518 = vld [vmem:[#allocation9] sm:$0xff]
        %v519 = vld [vmem:[#allocation9 + $0x8] sm:$0xff]
        %v520 = vld [vmem:[#allocation9 + $0x10] sm:$0xff]
        %v521 = vld [vmem:[#allocation9 + $0x18] sm:$0xff]
        %v522 = vld [vmem:[#allocation9 + $0x20] sm:$0xff]
        %v523 = vld [vmem:[#allocation9 + $0x28] sm:$0xff]
        %v524 = vld [vmem:[#allocation9 + $0x30] sm:$0xff]
        %v525 = vld [vmem:[#allocation9 + $0x38] sm:$0xff]
        %v526 = vld [vmem:[#allocation9 + $0x40] sm:$0xff]
        %v527 = vld [vmem:[#allocation9 + $0x48] sm:$0xff]
        %v528 = vld [vmem:[#allocation9 + $0x50] sm:$0xff]
        %v529 = vld [vmem:[#allocation9 + $0x58] sm:$0xff]
        %v530 = vld [vmem:[#allocation9 + $0x60] sm:$0xff]
        %v531 = vld [vmem:[#allocation9 + $0x68] sm:$0xff]
        %v532 = vld [vmem:[#allocation9 + $0x70] sm:$0xff]
        %v533 = vld [vmem:[#allocation9 + $0x78] sm:$0xff]
        %v534 = vld [vmem:[#allocation9 + $0x80] sm:$0xff]
        %v535 = vld [vmem:[#allocation9 + $0x88] sm:$0xff]
        %v536 = vld [vmem:[#allocation9 + $0x90] sm:$0xff]
        %v537 = vld [vmem:[#allocation9 + $0x98] sm:$0xff]
        %v538 = vld [vmem:[#allocation9 + $0xa0] sm:$0xff]
        %v539 = vld [vmem:[#allocation9 + $0xa8] sm:$0xff]
        %v540 = vld [vmem:[#allocation9 + $0xb0] sm:$0xff]
        %v541 = vld [vmem:[#allocation9 + $0xb8] sm:$0xff]
        %v542 = vld [vmem:[#allocation9 + $0xc0] sm:$0xff]
        %v543 = vld [vmem:[#allocation9 + $0xc8] sm:$0xff]
        %v544 = vld [vmem:[#allocation9 + $0xd0] sm:$0xff]
        %v545 = vld [vmem:[#allocation9 + $0xd8] sm:$0xff]
        %v546 = vld [vmem:[#allocation9 + $0xe0] sm:$0xff]
        %v547 = vld [vmem:[#allocation9 + $0xe8] sm:$0xff]
        %v548 = vld [vmem:[#allocation9 + $0xf0] sm:$0xff]
        %v549 = vld [vmem:[#allocation9 + $0xf8] sm:$0xff]
        %v550 = vld [vmem:[%s3] sm:$0x3]
        %v552 = vlaneseq
        %v553 = vshrl.u32 %v552, 7
        %v554 = vsub.s32 0, %v553
        %v555 = vrot.slane %v550, %v554
        %v556 = vlaneseq
        %v557 = vshrl.u32 %v556, 7
        %v558 = vsub.s32 1, %v557
        %v559 = vrot.slane %v550, %v558
        %v690 = vunpack.c.l.b16 %v390
        %v691 = vunpack.c.h.b16 %v390
        %v692 = vunpack.c.l.b16 %v391
        %v693 = vunpack.c.h.b16 %v391
        %v694 = vunpack.c.l.b16 %v392
        %v695 = vunpack.c.h.b16 %v392
        %v696 = vunpack.c.l.b16 %v393
        %v697 = vunpack.c.h.b16 %v393
        %v698 = vunpack.c.l.b16 %v394
        %v699 = vunpack.c.h.b16 %v394
        %v700 = vunpack.c.l.b16 %v395
        %v701 = vunpack.c.h.b16 %v395
        %v702 = vunpack.c.l.b16 %v396
        %v703 = vunpack.c.h.b16 %v396
        %v704 = vunpack.c.l.b16 %v397
        %v705 = vunpack.c.h.b16 %v397
        %v706 = vunpack.c.l.b16 %v398
        %v707 = vunpack.c.h.b16 %v398
        %v708 = vunpack.c.l.b16 %v399
        %v709 = vunpack.c.h.b16 %v399
        %v710 = vunpack.c.l.b16 %v400
        %v711 = vunpack.c.h.b16 %v400
        %v712 = vunpack.c.l.b16 %v401
        %v713 = vunpack.c.h.b16 %v401
        %v714 = vunpack.c.l.b16 %v402
        %v715 = vunpack.c.h.b16 %v402
        %v716 = vunpack.c.l.b16 %v403
        %v717 = vunpack.c.h.b16 %v403
        %v718 = vunpack.c.l.b16 %v404
        %v719 = vunpack.c.h.b16 %v404
        %v720 = vunpack.c.l.b16 %v405
        %v721 = vunpack.c.h.b16 %v405
        %v722 = vunpack.c.l.b16 %v406
        %v723 = vunpack.c.h.b16 %v406
        %v724 = vunpack.c.l.b16 %v407
        %v725 = vunpack.c.h.b16 %v407
        %v726 = vunpack.c.l.b16 %v408
        %v727 = vunpack.c.h.b16 %v408
        %v728 = vunpack.c.l.b16 %v409
        %v729 = vunpack.c.h.b16 %v409
        %v730 = vunpack.c.l.b16 %v410
        %v731 = vunpack.c.h.b16 %v410
        %v732 = vunpack.c.l.b16 %v411
        %v733 = vunpack.c.h.b16 %v411
        %v734 = vunpack.c.l.b16 %v412
        %v735 = vunpack.c.h.b16 %v412
        %v736 = vunpack.c.l.b16 %v413
        %v737 = vunpack.c.h.b16 %v413
        %v738 = vunpack.c.l.b16 %v414
        %v739 = vunpack.c.h.b16 %v414
        %v740 = vunpack.c.l.b16 %v415
        %v741 = vunpack.c.h.b16 %v415
        %v742 = vunpack.c.l.b16 %v416
        %v743 = vunpack.c.h.b16 %v416
        %v744 = vunpack.c.l.b16 %v417
        %v745 = vunpack.c.h.b16 %v417
        %v746 = vunpack.c.l.b16 %v418
        %v747 = vunpack.c.h.b16 %v418
        %v748 = vunpack.c.l.b16 %v419
        %v749 = vunpack.c.h.b16 %v419
        %v750 = vunpack.c.l.b16 %v420
        %v751 = vunpack.c.h.b16 %v420
        %v752 = vunpack.c.l.b16 %v421
        %v753 = vunpack.c.h.b16 %v421
        %v754 = vunpack.c.l.b16 %v422
        %v755 = vunpack.c.h.b16 %v422
        %v756 = vunpack.c.l.b16 %v423
        %v757 = vunpack.c.h.b16 %v423
        %v758 = vunpack.c.l.b16 %v424
        %v759 = vunpack.c.h.b16 %v424
        %v760 = vunpack.c.l.b16 %v425
        %v761 = vunpack.c.h.b16 %v425
        %v762 = vunpack.c.l.b16 %v426
        %v763 = vunpack.c.h.b16 %v426
        %v764 = vunpack.c.l.b16 %v427
        %v765 = vunpack.c.h.b16 %v427
        %v766 = vunpack.c.l.b16 %v428
        %v767 = vunpack.c.h.b16 %v428
        %v768 = vunpack.c.l.b16 %v429
        %v769 = vunpack.c.h.b16 %v429
        %v770 = vunpack.c.l.b16 %v430
        %v771 = vunpack.c.h.b16 %v430
        %v772 = vunpack.c.l.b16 %v431
        %v773 = vunpack.c.h.b16 %v431
        %v774 = vunpack.c.l.b16 %v432
        %v775 = vunpack.c.h.b16 %v432
        %v776 = vunpack.c.l.b16 %v433
        %v777 = vunpack.c.h.b16 %v433
        %v778 = vunpack.c.l.b16 %v434
        %v779 = vunpack.c.h.b16 %v434
        %v780 = vunpack.c.l.b16 %v435
        %v781 = vunpack.c.h.b16 %v435
        %v782 = vunpack.c.l.b16 %v436
        %v783 = vunpack.c.h.b16 %v436
        %v784 = vunpack.c.l.b16 %v437
        %v785 = vunpack.c.h.b16 %v437
        %v786 = vunpack.c.l.b16 %v438
        %v787 = vunpack.c.h.b16 %v438
        %v788 = vunpack.c.l.b16 %v439
        %v789 = vunpack.c.h.b16 %v439
        %v790 = vunpack.c.l.b16 %v440
        %v791 = vunpack.c.h.b16 %v440
        %v792 = vunpack.c.l.b16 %v441
        %v793 = vunpack.c.h.b16 %v441
        %v794 = vunpack.c.l.b16 %v442
        %v795 = vunpack.c.h.b16 %v442
        %v796 = vunpack.c.l.b16 %v443
        %v797 = vunpack.c.h.b16 %v443
        %v798 = vunpack.c.l.b16 %v444
        %v799 = vunpack.c.h.b16 %v444
        %v800 = vunpack.c.l.b16 %v445
        %v801 = vunpack.c.h.b16 %v445
        %v802 = vunpack.c.l.b16 %v446
        %v803 = vunpack.c.h.b16 %v446
        %v804 = vunpack.c.l.b16 %v447
        %v805 = vunpack.c.h.b16 %v447
        %v806 = vunpack.c.l.b16 %v448
        %v807 = vunpack.c.h.b16 %v448
        %v808 = vunpack.c.l.b16 %v449
        %v809 = vunpack.c.h.b16 %v449
        %v810 = vunpack.c.l.b16 %v450
        %v811 = vunpack.c.h.b16 %v450
        %v812 = vunpack.c.l.b16 %v451
        %v813 = vunpack.c.h.b16 %v451
        %v814 = vunpack.c.l.b16 %v452
        %v815 = vunpack.c.h.b16 %v452
        %v816 = vunpack.c.l.b16 %v453
        %v817 = vunpack.c.h.b16 %v453
        %v818 = vunpack.c.l.b16 %v454
        %v819 = vunpack.c.h.b16 %v454
        %v820 = vunpack.c.l.b16 %v455
        %v821 = vunpack.c.h.b16 %v455
        %v822 = vunpack.c.l.b16 %v456
        %v823 = vunpack.c.h.b16 %v456
        %v824 = vunpack.c.l.b16 %v457
        %v825 = vunpack.c.h.b16 %v457
        %v826 = vunpack.c.l.b16 %v458
        %v827 = vunpack.c.h.b16 %v458
        %v828 = vunpack.c.l.b16 %v459
        %v829 = vunpack.c.h.b16 %v459
        %v830 = vunpack.c.l.b16 %v460
        %v831 = vunpack.c.h.b16 %v460
        %v832 = vunpack.c.l.b16 %v461
        %v833 = vunpack.c.h.b16 %v461
        %v834 = vunpack.c.l.b16 %v462
        %v835 = vunpack.c.h.b16 %v462
        %v836 = vunpack.c.l.b16 %v463
        %v837 = vunpack.c.h.b16 %v463
        %v838 = vunpack.c.l.b16 %v464
        %v839 = vunpack.c.h.b16 %v464
        %v840 = vunpack.c.l.b16 %v465
        %v841 = vunpack.c.h.b16 %v465
        %v842 = vunpack.c.l.b16 %v466
        %v843 = vunpack.c.h.b16 %v466
        %v844 = vunpack.c.l.b16 %v467
        %v845 = vunpack.c.h.b16 %v467
        %v846 = vunpack.c.l.b16 %v468
        %v847 = vunpack.c.h.b16 %v468
        %v848 = vunpack.c.l.b16 %v469
        %v849 = vunpack.c.h.b16 %v469
        %v850 = vunpack.c.l.b16 %v470
        %v851 = vunpack.c.h.b16 %v470
        %v852 = vunpack.c.l.b16 %v471
        %v853 = vunpack.c.h.b16 %v471
        %v854 = vunpack.c.l.b16 %v472
        %v855 = vunpack.c.h.b16 %v472
        %v856 = vunpack.c.l.b16 %v473
        %v857 = vunpack.c.h.b16 %v473
        %v858 = vunpack.c.l.b16 %v474
        %v859 = vunpack.c.h.b16 %v474
        %v860 = vunpack.c.l.b16 %v475
        %v861 = vunpack.c.h.b16 %v475
        %v862 = vunpack.c.l.b16 %v476
        %v863 = vunpack.c.h.b16 %v476
        %v864 = vunpack.c.l.b16 %v477
        %v865 = vunpack.c.h.b16 %v477
        %v866 = vunpack.c.l.b16 %v478
        %v867 = vunpack.c.h.b16 %v478
        %v868 = vunpack.c.l.b16 %v479
        %v869 = vunpack.c.h.b16 %v479
        %v870 = vunpack.c.l.b16 %v480
        %v871 = vunpack.c.h.b16 %v480
        %v872 = vunpack.c.l.b16 %v481
        %v873 = vunpack.c.h.b16 %v481
        %v874 = vunpack.c.l.b16 %v482
        %v875 = vunpack.c.h.b16 %v482
        %v876 = vunpack.c.l.b16 %v483
        %v877 = vunpack.c.h.b16 %v483
        %v878 = vunpack.c.l.b16 %v484
        %v879 = vunpack.c.h.b16 %v484
        %v880 = vunpack.c.l.b16 %v485
        %v881 = vunpack.c.h.b16 %v485
        %v882 = vunpack.c.l.b16 %v486
        %v883 = vunpack.c.h.b16 %v486
        %v884 = vunpack.c.l.b16 %v487
        %v885 = vunpack.c.h.b16 %v487
        %v886 = vunpack.c.l.b16 %v488
        %v887 = vunpack.c.h.b16 %v488
        %v888 = vunpack.c.l.b16 %v489
        %v889 = vunpack.c.h.b16 %v489
        %v890 = vunpack.c.l.b16 %v490
        %v891 = vunpack.c.h.b16 %v490
        %v892 = vunpack.c.l.b16 %v491
        %v893 = vunpack.c.h.b16 %v491
        %v894 = vunpack.c.l.b16 %v492
        %v895 = vunpack.c.h.b16 %v492
        %v896 = vunpack.c.l.b16 %v493
        %v897 = vunpack.c.h.b16 %v493
        %v898 = vunpack.c.l.b16 %v494
        %v899 = vunpack.c.h.b16 %v494
        %v900 = vunpack.c.l.b16 %v495
        %v901 = vunpack.c.h.b16 %v495
        %v902 = vunpack.c.l.b16 %v496
        %v903 = vunpack.c.h.b16 %v496
        %v904 = vunpack.c.l.b16 %v497
        %v905 = vunpack.c.h.b16 %v497
        %v906 = vunpack.c.l.b16 %v498
        %v907 = vunpack.c.h.b16 %v498
        %v908 = vunpack.c.l.b16 %v499
        %v909 = vunpack.c.h.b16 %v499
        %v910 = vunpack.c.l.b16 %v500
        %v911 = vunpack.c.h.b16 %v500
        %v912 = vunpack.c.l.b16 %v501
        %v913 = vunpack.c.h.b16 %v501
        %v914 = vunpack.c.l.b16 %v502
        %v915 = vunpack.c.h.b16 %v502
        %v916 = vunpack.c.l.b16 %v503
        %v917 = vunpack.c.h.b16 %v503
        %v918 = vunpack.c.l.b16 %v504
        %v919 = vunpack.c.h.b16 %v504
        %v920 = vunpack.c.l.b16 %v505
        %v921 = vunpack.c.h.b16 %v505
        %v922 = vunpack.c.l.b16 %v506
        %v923 = vunpack.c.h.b16 %v506
        %v924 = vunpack.c.l.b16 %v507
        %v925 = vunpack.c.h.b16 %v507
        %v926 = vunpack.c.l.b16 %v508
        %v927 = vunpack.c.h.b16 %v508
        %v928 = vunpack.c.l.b16 %v509
        %v929 = vunpack.c.h.b16 %v509
        %v930 = vunpack.c.l.b16 %v510
        %v931 = vunpack.c.h.b16 %v510
        %v932 = vunpack.c.l.b16 %v511
        %v933 = vunpack.c.h.b16 %v511
        %v934 = vunpack.c.l.b16 %v512
        %v935 = vunpack.c.h.b16 %v512
        %v936 = vunpack.c.l.b16 %v513
        %v937 = vunpack.c.h.b16 %v513
        %v938 = vunpack.c.l.b16 %v514
        %v939 = vunpack.c.h.b16 %v514
        %v940 = vunpack.c.l.b16 %v515
        %v941 = vunpack.c.h.b16 %v515
        %v942 = vunpack.c.l.b16 %v516
        %v943 = vunpack.c.h.b16 %v516
        %v944 = vunpack.c.l.b16 %v517
        %v945 = vunpack.c.h.b16 %v517
        %v946 = vpack.c.b16 %v692, %v690
        %v947 = vpack.c.b16 %v693, %v691
        %v948 = vpack.c.b16 %v696, %v694
        %v949 = vpack.c.b16 %v697, %v695
        %v950 = vpack.c.b16 %v700, %v698
        %v951 = vpack.c.b16 %v701, %v699
        %v952 = vpack.c.b16 %v704, %v702
        %v953 = vpack.c.b16 %v705, %v703
        %v954 = vpack.c.b16 %v708, %v706
        %v955 = vpack.c.b16 %v709, %v707
        %v956 = vpack.c.b16 %v712, %v710
        %v957 = vpack.c.b16 %v713, %v711
        %v958 = vpack.c.b16 %v716, %v714
        %v959 = vpack.c.b16 %v717, %v715
        %v960 = vpack.c.b16 %v720, %v718
        %v961 = vpack.c.b16 %v721, %v719
        %v962 = vpack.c.b16 %v724, %v722
        %v963 = vpack.c.b16 %v725, %v723
        %v964 = vpack.c.b16 %v728, %v726
        %v965 = vpack.c.b16 %v729, %v727
        %v966 = vpack.c.b16 %v732, %v730
        %v967 = vpack.c.b16 %v733, %v731
        %v968 = vpack.c.b16 %v736, %v734
        %v969 = vpack.c.b16 %v737, %v735
        %v970 = vpack.c.b16 %v740, %v738
        %v971 = vpack.c.b16 %v741, %v739
        %v972 = vpack.c.b16 %v744, %v742
        %v973 = vpack.c.b16 %v745, %v743
        %v974 = vpack.c.b16 %v748, %v746
        %v975 = vpack.c.b16 %v749, %v747
        %v976 = vpack.c.b16 %v752, %v750
        %v977 = vpack.c.b16 %v753, %v751
        %v978 = vpack.c.b16 %v756, %v754
        %v979 = vpack.c.b16 %v757, %v755
        %v980 = vpack.c.b16 %v760, %v758
        %v981 = vpack.c.b16 %v761, %v759
        %v982 = vpack.c.b16 %v764, %v762
        %v983 = vpack.c.b16 %v765, %v763
        %v984 = vpack.c.b16 %v768, %v766
        %v985 = vpack.c.b16 %v769, %v767
        %v986 = vpack.c.b16 %v772, %v770
        %v987 = vpack.c.b16 %v773, %v771
        %v988 = vpack.c.b16 %v776, %v774
        %v989 = vpack.c.b16 %v777, %v775
        %v990 = vpack.c.b16 %v780, %v778
        %v991 = vpack.c.b16 %v781, %v779
        %v992 = vpack.c.b16 %v784, %v782
        %v993 = vpack.c.b16 %v785, %v783
        %v994 = vpack.c.b16 %v788, %v786
        %v995 = vpack.c.b16 %v789, %v787
        %v996 = vpack.c.b16 %v792, %v790
        %v997 = vpack.c.b16 %v793, %v791
        %v998 = vpack.c.b16 %v796, %v794
        %v999 = vpack.c.b16 %v797, %v795
        %v1000 = vpack.c.b16 %v800, %v798
        %v1001 = vpack.c.b16 %v801, %v799
        %v1002 = vpack.c.b16 %v804, %v802
        %v1003 = vpack.c.b16 %v805, %v803
        %v1004 = vpack.c.b16 %v808, %v806
        %v1005 = vpack.c.b16 %v809, %v807
        %v1006 = vpack.c.b16 %v812, %v810
        %v1007 = vpack.c.b16 %v813, %v811
        %v1008 = vpack.c.b16 %v816, %v814
        %v1009 = vpack.c.b16 %v817, %v815
        %v1010 = vpack.c.b16 %v820, %v818
        %v1011 = vpack.c.b16 %v821, %v819
        %v1012 = vpack.c.b16 %v824, %v822
        %v1013 = vpack.c.b16 %v825, %v823
        %v1014 = vpack.c.b16 %v828, %v826
        %v1015 = vpack.c.b16 %v829, %v827
        %v1016 = vpack.c.b16 %v832, %v830
        %v1017 = vpack.c.b16 %v833, %v831
        %v1018 = vpack.c.b16 %v836, %v834
        %v1019 = vpack.c.b16 %v837, %v835
        %v1020 = vpack.c.b16 %v840, %v838
        %v1021 = vpack.c.b16 %v841, %v839
        %v1022 = vpack.c.b16 %v844, %v842
        %v1023 = vpack.c.b16 %v845, %v843
        %v1024 = vpack.c.b16 %v848, %v846
        %v1025 = vpack.c.b16 %v849, %v847
        %v1026 = vpack.c.b16 %v852, %v850
        %v1027 = vpack.c.b16 %v853, %v851
        %v1028 = vpack.c.b16 %v856, %v854
        %v1029 = vpack.c.b16 %v857, %v855
        %v1030 = vpack.c.b16 %v860, %v858
        %v1031 = vpack.c.b16 %v861, %v859
        %v1032 = vpack.c.b16 %v864, %v862
        %v1033 = vpack.c.b16 %v865, %v863
        %v1034 = vpack.c.b16 %v868, %v866
        %v1035 = vpack.c.b16 %v869, %v867
        %v1036 = vpack.c.b16 %v872, %v870
        %v1037 = vpack.c.b16 %v873, %v871
        %v1038 = vpack.c.b16 %v876, %v874
        %v1039 = vpack.c.b16 %v877, %v875
        %v1040 = vpack.c.b16 %v880, %v878
        %v1041 = vpack.c.b16 %v881, %v879
        %v1042 = vpack.c.b16 %v884, %v882
        %v1043 = vpack.c.b16 %v885, %v883
        %v1044 = vpack.c.b16 %v888, %v886
        %v1045 = vpack.c.b16 %v889, %v887
        %v1046 = vpack.c.b16 %v892, %v890
        %v1047 = vpack.c.b16 %v893, %v891
        %v1048 = vpack.c.b16 %v896, %v894
        %v1049 = vpack.c.b16 %v897, %v895
        %v1050 = vpack.c.b16 %v900, %v898
        %v1051 = vpack.c.b16 %v901, %v899
        %v1052 = vpack.c.b16 %v904, %v902
        %v1053 = vpack.c.b16 %v905, %v903
        %v1054 = vpack.c.b16 %v908, %v906
        %v1055 = vpack.c.b16 %v909, %v907
        %v1056 = vpack.c.b16 %v912, %v910
        %v1057 = vpack.c.b16 %v913, %v911
        %v1058 = vpack.c.b16 %v916, %v914
        %v1059 = vpack.c.b16 %v917, %v915
        %v1060 = vpack.c.b16 %v920, %v918
        %v1061 = vpack.c.b16 %v921, %v919
        %v1062 = vpack.c.b16 %v924, %v922
        %v1063 = vpack.c.b16 %v925, %v923
        %v1064 = vpack.c.b16 %v928, %v926
        %v1065 = vpack.c.b16 %v929, %v927
        %v1066 = vpack.c.b16 %v932, %v930
        %v1067 = vpack.c.b16 %v933, %v931
        %v1068 = vpack.c.b16 %v936, %v934
        %v1069 = vpack.c.b16 %v937, %v935
        %v1070 = vpack.c.b16 %v940, %v938
        %v1071 = vpack.c.b16 %v941, %v939
        %v1072 = vpack.c.b16 %v944, %v942
        %v1073 = vpack.c.b16 %v945, %v943
        %v1234 = vunpack.c.l.b16 %v518
        %v1235 = vunpack.c.h.b16 %v518
        %v1236 = vunpack.c.l.b16 %v519
        %v1237 = vunpack.c.h.b16 %v519
        %v1238 = vunpack.c.l.b16 %v520
        %v1239 = vunpack.c.h.b16 %v520
        %v1240 = vunpack.c.l.b16 %v521
        %v1241 = vunpack.c.h.b16 %v521
        %v1242 = vunpack.c.l.b16 %v522
        %v1243 = vunpack.c.h.b16 %v522
        %v1244 = vunpack.c.l.b16 %v523
        %v1245 = vunpack.c.h.b16 %v523
        %v1246 = vunpack.c.l.b16 %v524
        %v1247 = vunpack.c.h.b16 %v524
        %v1248 = vunpack.c.l.b16 %v525
        %v1249 = vunpack.c.h.b16 %v525
        %v1250 = vunpack.c.l.b16 %v526
        %v1251 = vunpack.c.h.b16 %v526
        %v1252 = vunpack.c.l.b16 %v527
        %v1253 = vunpack.c.h.b16 %v527
        %v1254 = vunpack.c.l.b16 %v528
        %v1255 = vunpack.c.h.b16 %v528
        %v1256 = vunpack.c.l.b16 %v529
        %v1257 = vunpack.c.h.b16 %v529
        %v1258 = vunpack.c.l.b16 %v530
        %v1259 = vunpack.c.h.b16 %v530
        %v1260 = vunpack.c.l.b16 %v531
        %v1261 = vunpack.c.h.b16 %v531
        %v1262 = vunpack.c.l.b16 %v532
        %v1263 = vunpack.c.h.b16 %v532
        %v1264 = vunpack.c.l.b16 %v533
        %v1265 = vunpack.c.h.b16 %v533
        %v1266 = vunpack.c.l.b16 %v534
        %v1267 = vunpack.c.h.b16 %v534
        %v1268 = vunpack.c.l.b16 %v535
        %v1269 = vunpack.c.h.b16 %v535
        %v1270 = vunpack.c.l.b16 %v536
        %v1271 = vunpack.c.h.b16 %v536
        %v1272 = vunpack.c.l.b16 %v537
        %v1273 = vunpack.c.h.b16 %v537
        %v1274 = vunpack.c.l.b16 %v538
        %v1275 = vunpack.c.h.b16 %v538
        %v1276 = vunpack.c.l.b16 %v539
        %v1277 = vunpack.c.h.b16 %v539
        %v1278 = vunpack.c.l.b16 %v540
        %v1279 = vunpack.c.h.b16 %v540
        %v1280 = vunpack.c.l.b16 %v541
        %v1281 = vunpack.c.h.b16 %v541
        %v1282 = vunpack.c.l.b16 %v542
        %v1283 = vunpack.c.h.b16 %v542
        %v1284 = vunpack.c.l.b16 %v543
        %v1285 = vunpack.c.h.b16 %v543
        %v1286 = vunpack.c.l.b16 %v544
        %v1287 = vunpack.c.h.b16 %v544
        %v1288 = vunpack.c.l.b16 %v545
        %v1289 = vunpack.c.h.b16 %v545
        %v1290 = vunpack.c.l.b16 %v546
        %v1291 = vunpack.c.h.b16 %v546
        %v1292 = vunpack.c.l.b16 %v547
        %v1293 = vunpack.c.h.b16 %v547
        %v1294 = vunpack.c.l.b16 %v548
        %v1295 = vunpack.c.h.b16 %v548
        %v1296 = vunpack.c.l.b16 %v549
        %v1297 = vunpack.c.h.b16 %v549
        %v1298 = vpack.c.b16 %v1236, %v1234
        %v1299 = vpack.c.b16 %v1237, %v1235
        %v1300 = vpack.c.b16 %v1240, %v1238
        %v1301 = vpack.c.b16 %v1241, %v1239
        %v1302 = vpack.c.b16 %v1244, %v1242
        %v1303 = vpack.c.b16 %v1245, %v1243
        %v1304 = vpack.c.b16 %v1248, %v1246
        %v1305 = vpack.c.b16 %v1249, %v1247
        %v1306 = vpack.c.b16 %v1252, %v1250
        %v1307 = vpack.c.b16 %v1253, %v1251
        %v1308 = vpack.c.b16 %v1256, %v1254
        %v1309 = vpack.c.b16 %v1257, %v1255
        %v1310 = vpack.c.b16 %v1260, %v1258
        %v1311 = vpack.c.b16 %v1261, %v1259
        %v1312 = vpack.c.b16 %v1264, %v1262
        %v1313 = vpack.c.b16 %v1265, %v1263
        %v1314 = vpack.c.b16 %v1268, %v1266
        %v1315 = vpack.c.b16 %v1269, %v1267
        %v1316 = vpack.c.b16 %v1272, %v1270
        %v1317 = vpack.c.b16 %v1273, %v1271
        %v1318 = vpack.c.b16 %v1276, %v1274
        %v1319 = vpack.c.b16 %v1277, %v1275
        %v1320 = vpack.c.b16 %v1280, %v1278
        %v1321 = vpack.c.b16 %v1281, %v1279
        %v1322 = vpack.c.b16 %v1284, %v1282
        %v1323 = vpack.c.b16 %v1285, %v1283
        %v1324 = vpack.c.b16 %v1288, %v1286
        %v1325 = vpack.c.b16 %v1289, %v1287
        %v1326 = vpack.c.b16 %v1292, %v1290
        %v1327 = vpack.c.b16 %v1293, %v1291
        %v1328 = vpack.c.b16 %v1296, %v1294
        %v1329 = vpack.c.b16 %v1297, %v1295
        %1362 = vmatprep.subr.bf16.mxu0 %v1299
        %1363 = vmatpush1.bf16.msra.mxu0 %v1298
        %1364 = vmatprep.subr.bf16.mxu0 %v1301
        %1365 = vmatpush1.bf16.msra.mxu0 %v1300
        %1366 = vmatprep.subr.bf16.mxu0 %v1303
        %1367 = vmatpush1.bf16.msra.mxu0 %v1302
        %1368 = vmatprep.subr.bf16.mxu0 %v1305
        %1369 = vmatpush1.bf16.msra.mxu0 %v1304
        %1370 = vmatprep.subr.bf16.mxu0 %v1307
        %1371 = vmatpush1.bf16.msra.mxu0 %v1306
        %1372 = vmatprep.subr.bf16.mxu0 %v1309
        %1373 = vmatpush1.bf16.msra.mxu0 %v1308
        %1374 = vmatprep.subr.bf16.mxu0 %v1311
        %1375 = vmatpush1.bf16.msra.mxu0 %v1310
        %1376 = vmatprep.subr.bf16.mxu0 %v1313
        %1377 = vmatpush1.bf16.msra.mxu0 %v1312
        %1378 = vmatprep.subr.bf16.mxu0 %v1315
        %1379 = vmatpush1.bf16.msra.mxu0 %v1314
        %1380 = vmatprep.subr.bf16.mxu0 %v1317
        %1381 = vmatpush1.bf16.msra.mxu0 %v1316
        %1382 = vmatprep.subr.bf16.mxu0 %v1319
        %1383 = vmatpush1.bf16.msra.mxu0 %v1318
        %1384 = vmatprep.subr.bf16.mxu0 %v1321
        %1385 = vmatpush1.bf16.msra.mxu0 %v1320
        %1386 = vmatprep.subr.bf16.mxu0 %v1323
        %1387 = vmatpush1.bf16.msra.mxu0 %v1322
        %1388 = vmatprep.subr.bf16.mxu0 %v1325
        %1389 = vmatpush1.bf16.msra.mxu0 %v1324
        %1390 = vmatprep.subr.bf16.mxu0 %v1327
        %1391 = vmatpush1.bf16.msra.mxu0 %v1326
        %1392 = vmatprep.subr.bf16.mxu0 %v1329
        %1393 = vmatpush1.bf16.msra.mxu0 %v1328
        %1394 = vmatprep.mubr.bf16.mxu0 %v947
        %1395 = vmatmul.mubr.bf16.gmra.mrb[0].mxu0 %v946
        %v1396 = vpop.f32.mrb[0].mxu0
        %v1397 = vadd.f32 %v555, %v1396
        %v1398 = vpop.f32.mrb[0].mxu0
        %v1399 = vadd.f32 %v559, %v1398
        %v1400 = vpop.f32.mrb[0].mxu0
        %v1401 = vadd.f32 %v555, %v1400
        %v1402 = vpop.f32.mrb[0].mxu0
        %v1403 = vadd.f32 %v559, %v1402
        %1404 = vmatprep.mubr.bf16.mxu0 %v949
        %1405 = vmatmul.mubr.bf16.gmra.mrb[0].mxu0 %v948
        %v1406 = vpop.f32.mrb[0].mxu0
        %v1407 = vadd.f32 %v555, %v1406
        %v1408 = vpop.f32.mrb[0].mxu0
        %v1409 = vadd.f32 %v559, %v1408
        %v1410 = vpop.f32.mrb[0].mxu0
        %v1411 = vadd.f32 %v555, %v1410
        %v1412 = vpop.f32.mrb[0].mxu0
        %v1413 = vadd.f32 %v559, %v1412
        %1414 = vmatprep.mubr.bf16.mxu0 %v951
        %1415 = vmatmul.mubr.bf16.gmra.mrb[0].mxu0 %v950
        %v1416 = vpop.f32.mrb[0].mxu0
        %v1417 = vadd.f32 %v555, %v1416
        %v1418 = vpop.f32.mrb[0].mxu0
        %v1419 = vadd.f32 %v559, %v1418
        %v1420 = vpop.f32.mrb[0].mxu0
        %v1421 = vadd.f32 %v555, %v1420
        %v1422 = vpop.f32.mrb[0].mxu0
        %v1423 = vadd.f32 %v559, %v1422
        %1424 = vmatprep.mubr.bf16.mxu0 %v953
        %1425 = vmatmul.mubr.bf16.gmra.mrb[0].mxu0 %v952
        %v1426 = vpop.f32.mrb[0].mxu0
        %v1427 = vadd.f32 %v555, %v1426
        %v1428 = vpop.f32.mrb[0].mxu0
        %v1429 = vadd.f32 %v559, %v1428
        %v1430 = vpop.f32.mrb[0].mxu0
        %v1431 = vadd.f32 %v555, %v1430
        %v1432 = vpop.f32.mrb[0].mxu0
        %v1433 = vadd.f32 %v559, %v1432
        %1434 = vmatprep.mubr.bf16.mxu0 %v955
        %1435 = vmatmul.mubr.bf16.gmra.mrb[0].mxu0 %v954
        %v1436 = vpop.f32.mrb[0].mxu0
        %v1437 = vadd.f32 %v555, %v1436
        %v1438 = vpop.f32.mrb[0].mxu0
        %v1439 = vadd.f32 %v559, %v1438
        %v1440 = vpop.f32.mrb[0].mxu0
        %v1441 = vadd.f32 %v555, %v1440
        %v1442 = vpop.f32.mrb[0].mxu0
        %v1443 = vadd.f32 %v559, %v1442
        %1444 = vmatprep.mubr.bf16.mxu0 %v957
        %1445 = vmatmul.mubr.bf16.gmra.mrb[0].mxu0 %v956
        %v1446 = vpop.f32.mrb[0].mxu0
        %v1447 = vadd.f32 %v555, %v1446
        %v1448 = vpop.f32.mrb[0].mxu0
        %v1449 = vadd.f32 %v559, %v1448
        %v1450 = vpop.f32.mrb[0].mxu0
        %v1451 = vadd.f32 %v555, %v1450
        %v1452 = vpop.f32.mrb[0].mxu0
        %v1453 = vadd.f32 %v559, %v1452
        %1454 = vmatprep.mubr.bf16.mxu0 %v959
        %1455 = vmatmul.mubr.bf16.gmra.mrb[0].mxu0 %v958
        %v1456 = vpop.f32.mrb[0].mxu0
        %v1457 = vadd.f32 %v555, %v1456
        %v1458 = vpop.f32.mrb[0].mxu0
        %v1459 = vadd.f32 %v559, %v1458
        %v1460 = vpop.f32.mrb[0].mxu0
        %v1461 = vadd.f32 %v555, %v1460
        %v1462 = vpop.f32.mrb[0].mxu0
        %v1463 = vadd.f32 %v559, %v1462
        %1464 = vmatprep.mubr.bf16.mxu0 %v961
        %1465 = vmatmul.mubr.bf16.gmra.mrb[0].mxu0 %v960
        %v1466 = vpop.f32.mrb[0].mxu0
        %v1467 = vadd.f32 %v555, %v1466
        %v1468 = vpop.f32.mrb[0].mxu0
        %v1469 = vadd.f32 %v559, %v1468
        %v1470 = vpop.f32.mrb[0].mxu0
        %v1471 = vadd.f32 %v555, %v1470
        %v1472 = vpop.f32.mrb[0].mxu0
        %v1473 = vadd.f32 %v559, %v1472
        %1474 = vmatprep.mubr.bf16.mxu0 %v963
        %1475 = vmatmul.mubr.bf16.gmra.mrb[0].mxu0 %v962
        %v1476 = vpop.f32.mrb[0].mxu0
        %v1477 = vadd.f32 %v555, %v1476
        %v1478 = vpop.f32.mrb[0].mxu0
        %v1479 = vadd.f32 %v559, %v1478
        %v1480 = vpop.f32.mrb[0].mxu0
        %v1481 = vadd.f32 %v555, %v1480
        %v1482 = vpop.f32.mrb[0].mxu0
        %v1483 = vadd.f32 %v559, %v1482
        %1484 = vmatprep.mubr.bf16.mxu0 %v965
        %1485 = vmatmul.mubr.bf16.gmra.mrb[0].mxu0 %v964
        %v1486 = vpop.f32.mrb[0].mxu0
        %v1487 = vadd.f32 %v555, %v1486
        %v1488 = vpop.f32.mrb[0].mxu0
        %v1489 = vadd.f32 %v559, %v1488
        %v1490 = vpop.f32.mrb[0].mxu0
        %v1491 = vadd.f32 %v555, %v1490
        %v1492 = vpop.f32.mrb[0].mxu0
        %v1493 = vadd.f32 %v559, %v1492
        %1494 = vmatprep.mubr.bf16.mxu0 %v967
        %1495 = vmatmul.mubr.bf16.gmra.mrb[0].mxu0 %v966
        %v1496 = vpop.f32.mrb[0].mxu0
        %v1497 = vadd.f32 %v555, %v1496
        %v1498 = vpop.f32.mrb[0].mxu0
        %v1499 = vadd.f32 %v559, %v1498
        %v1500 = vpop.f32.mrb[0].mxu0
        %v1501 = vadd.f32 %v555, %v1500
        %v1502 = vpop.f32.mrb[0].mxu0
        %v1503 = vadd.f32 %v559, %v1502
        %1504 = vmatprep.mubr.bf16.mxu0 %v969
        %1505 = vmatmul.mubr.bf16.gmra.mrb[0].mxu0 %v968
        %v1506 = vpop.f32.mrb[0].mxu0
        %v1507 = vadd.f32 %v555, %v1506
        %v1508 = vpop.f32.mrb[0].mxu0
        %v1509 = vadd.f32 %v559, %v1508
        %v1510 = vpop.f32.mrb[0].mxu0
        %v1511 = vadd.f32 %v555, %v1510
        %v1512 = vpop.f32.mrb[0].mxu0
        %v1513 = vadd.f32 %v559, %v1512
        %1514 = vmatprep.mubr.bf16.mxu0 %v971
        %1515 = vmatmul.mubr.bf16.gmra.mrb[0].mxu0 %v970
        %v1516 = vpop.f32.mrb[0].mxu0
        %v1517 = vadd.f32 %v555, %v1516
        %v1518 = vpop.f32.mrb[0].mxu0
        %v1519 = vadd.f32 %v559, %v1518
        %v1520 = vpop.f32.mrb[0].mxu0
        %v1521 = vadd.f32 %v555, %v1520
        %v1522 = vpop.f32.mrb[0].mxu0
        %v1523 = vadd.f32 %v559, %v1522
        %1524 = vmatprep.mubr.bf16.mxu0 %v973
        %1525 = vmatmul.mubr.bf16.gmra.mrb[0].mxu0 %v972
        %v1526 = vpop.f32.mrb[0].mxu0
        %v1527 = vadd.f32 %v555, %v1526
        %v1528 = vpop.f32.mrb[0].mxu0
        %v1529 = vadd.f32 %v559, %v1528
        %v1530 = vpop.f32.mrb[0].mxu0
        %v1531 = vadd.f32 %v555, %v1530
        %v1532 = vpop.f32.mrb[0].mxu0
        %v1533 = vadd.f32 %v559, %v1532
        %1534 = vmatprep.mubr.bf16.mxu0 %v975
        %1535 = vmatmul.mubr.bf16.gmra.mrb[0].mxu0 %v974
        %v1536 = vpop.f32.mrb[0].mxu0
        %v1537 = vadd.f32 %v555, %v1536
        %v1538 = vpop.f32.mrb[0].mxu0
        %v1539 = vadd.f32 %v559, %v1538
        %v1540 = vpop.f32.mrb[0].mxu0
        %v1541 = vadd.f32 %v555, %v1540
        %v1542 = vpop.f32.mrb[0].mxu0
        %v1543 = vadd.f32 %v559, %v1542
        %1544 = vmatprep.mubr.bf16.mxu0 %v977
        %1545 = vmatmul.mubr.bf16.gmra.mrb[0].mxu0 %v976
        %v1546 = vpop.f32.mrb[0].mxu0
        %v1547 = vadd.f32 %v555, %v1546
        %v1548 = vpop.f32.mrb[0].mxu0
        %v1549 = vadd.f32 %v559, %v1548
        %v1550 = vpop.f32.mrb[0].mxu0
        %v1551 = vadd.f32 %v555, %v1550
        %v1552 = vpop.f32.mrb[0].mxu0
        %v1553 = vadd.f32 %v559, %v1552
        %1554 = vmatprep.mubr.bf16.mxu0 %v979
        %1555 = vmatmul.mubr.bf16.gmra.mrb[0].mxu0 %v978
        %v1556 = vpop.f32.mrb[0].mxu0
        %v1557 = vadd.f32 %v555, %v1556
        %v1558 = vpop.f32.mrb[0].mxu0
        %v1559 = vadd.f32 %v559, %v1558
        %v1560 = vpop.f32.mrb[0].mxu0
        %v1561 = vadd.f32 %v555, %v1560
        %v1562 = vpop.f32.mrb[0].mxu0
        %v1563 = vadd.f32 %v559, %v1562
        %1564 = vmatprep.mubr.bf16.mxu0 %v981
        %1565 = vmatmul.mubr.bf16.gmra.mrb[0].mxu0 %v980
        %v1566 = vpop.f32.mrb[0].mxu0
        %v1567 = vadd.f32 %v555, %v1566
        %v1568 = vpop.f32.mrb[0].mxu0
        %v1569 = vadd.f32 %v559, %v1568
        %v1570 = vpop.f32.mrb[0].mxu0
        %v1571 = vadd.f32 %v555, %v1570
        %v1572 = vpop.f32.mrb[0].mxu0
        %v1573 = vadd.f32 %v559, %v1572
        %1574 = vmatprep.mubr.bf16.mxu0 %v983
        %1575 = vmatmul.mubr.bf16.gmra.mrb[0].mxu0 %v982
        %v1576 = vpop.f32.mrb[0].mxu0
        %v1577 = vadd.f32 %v555, %v1576
        %v1578 = vpop.f32.mrb[0].mxu0
        %v1579 = vadd.f32 %v559, %v1578
        %v1580 = vpop.f32.mrb[0].mxu0
        %v1581 = vadd.f32 %v555, %v1580
        %v1582 = vpop.f32.mrb[0].mxu0
        %v1583 = vadd.f32 %v559, %v1582
        %1584 = vmatprep.mubr.bf16.mxu0 %v985
        %1585 = vmatmul.mubr.bf16.gmra.mrb[0].mxu0 %v984
        %v1586 = vpop.f32.mrb[0].mxu0
        %v1587 = vadd.f32 %v555, %v1586
        %v1588 = vpop.f32.mrb[0].mxu0
        %v1589 = vadd.f32 %v559, %v1588
        %v1590 = vpop.f32.mrb[0].mxu0
        %v1591 = vadd.f32 %v555, %v1590
        %v1592 = vpop.f32.mrb[0].mxu0
        %v1593 = vadd.f32 %v559, %v1592
        %1594 = vmatprep.mubr.bf16.mxu0 %v987
        %1595 = vmatmul.mubr.bf16.gmra.mrb[0].mxu0 %v986
        %v1596 = vpop.f32.mrb[0].mxu0
        %v1597 = vadd.f32 %v555, %v1596
        %v1598 = vpop.f32.mrb[0].mxu0
        %v1599 = vadd.f32 %v559, %v1598
        %v1600 = vpop.f32.mrb[0].mxu0
        %v1601 = vadd.f32 %v555, %v1600
        %v1602 = vpop.f32.mrb[0].mxu0
        %v1603 = vadd.f32 %v559, %v1602
        %1604 = vmatprep.mubr.bf16.mxu0 %v989
        %1605 = vmatmul.mubr.bf16.gmra.mrb[0].mxu0 %v988
        %v1606 = vpop.f32.mrb[0].mxu0
        %v1607 = vadd.f32 %v555, %v1606
        %v1608 = vpop.f32.mrb[0].mxu0
        %v1609 = vadd.f32 %v559, %v1608
        %v1610 = vpop.f32.mrb[0].mxu0
        %v1611 = vadd.f32 %v555, %v1610
        %v1612 = vpop.f32.mrb[0].mxu0
        %v1613 = vadd.f32 %v559, %v1612
        %1614 = vmatprep.mubr.bf16.mxu0 %v991
        %1615 = vmatmul.mubr.bf16.gmra.mrb[0].mxu0 %v990
        %v1616 = vpop.f32.mrb[0].mxu0
        %v1617 = vadd.f32 %v555, %v1616
        %v1618 = vpop.f32.mrb[0].mxu0
        %v1619 = vadd.f32 %v559, %v1618
        %v1620 = vpop.f32.mrb[0].mxu0
        %v1621 = vadd.f32 %v555, %v1620
        %v1622 = vpop.f32.mrb[0].mxu0
        %v1623 = vadd.f32 %v559, %v1622
        %1624 = vmatprep.mubr.bf16.mxu0 %v993
        %1625 = vmatmul.mubr.bf16.gmra.mrb[0].mxu0 %v992
        %v1626 = vpop.f32.mrb[0].mxu0
        %v1627 = vadd.f32 %v555, %v1626
        %v1628 = vpop.f32.mrb[0].mxu0
        %v1629 = vadd.f32 %v559, %v1628
        %v1630 = vpop.f32.mrb[0].mxu0
        %v1631 = vadd.f32 %v555, %v1630
        %v1632 = vpop.f32.mrb[0].mxu0
        %v1633 = vadd.f32 %v559, %v1632
        %1634 = vmatprep.mubr.bf16.mxu0 %v995
        %1635 = vmatmul.mubr.bf16.gmra.mrb[0].mxu0 %v994
        %v1636 = vpop.f32.mrb[0].mxu0
        %v1637 = vadd.f32 %v555, %v1636
        %v1638 = vpop.f32.mrb[0].mxu0
        %v1639 = vadd.f32 %v559, %v1638
        %v1640 = vpop.f32.mrb[0].mxu0
        %v1641 = vadd.f32 %v555, %v1640
        %v1642 = vpop.f32.mrb[0].mxu0
        %v1643 = vadd.f32 %v559, %v1642
        %1644 = vmatprep.mubr.bf16.mxu0 %v997
        %1645 = vmatmul.mubr.bf16.gmra.mrb[0].mxu0 %v996
        %v1646 = vpop.f32.mrb[0].mxu0
        %v1647 = vadd.f32 %v555, %v1646
        %v1648 = vpop.f32.mrb[0].mxu0
        %v1649 = vadd.f32 %v559, %v1648
        %v1650 = vpop.f32.mrb[0].mxu0
        %v1651 = vadd.f32 %v555, %v1650
        %v1652 = vpop.f32.mrb[0].mxu0
        %v1653 = vadd.f32 %v559, %v1652
        %1654 = vmatprep.mubr.bf16.mxu0 %v999
        %1655 = vmatmul.mubr.bf16.gmra.mrb[0].mxu0 %v998
        %v1656 = vpop.f32.mrb[0].mxu0
        %v1657 = vadd.f32 %v555, %v1656
        %v1658 = vpop.f32.mrb[0].mxu0
        %v1659 = vadd.f32 %v559, %v1658
        %v1660 = vpop.f32.mrb[0].mxu0
        %v1661 = vadd.f32 %v555, %v1660
        %v1662 = vpop.f32.mrb[0].mxu0
        %v1663 = vadd.f32 %v559, %v1662
        %1664 = vmatprep.mubr.bf16.mxu0 %v1001
        %1665 = vmatmul.mubr.bf16.gmra.mrb[0].mxu0 %v1000
        %v1666 = vpop.f32.mrb[0].mxu0
        %v1667 = vadd.f32 %v555, %v1666
        %v1668 = vpop.f32.mrb[0].mxu0
        %v1669 = vadd.f32 %v559, %v1668
        %v1670 = vpop.f32.mrb[0].mxu0
        %v1671 = vadd.f32 %v555, %v1670
        %v1672 = vpop.f32.mrb[0].mxu0
        %v1673 = vadd.f32 %v559, %v1672
        %1674 = vmatprep.mubr.bf16.mxu0 %v1003
        %1675 = vmatmul.mubr.bf16.gmra.mrb[0].mxu0 %v1002
        %v1676 = vpop.f32.mrb[0].mxu0
        %v1677 = vadd.f32 %v555, %v1676
        %v1678 = vpop.f32.mrb[0].mxu0
        %v1679 = vadd.f32 %v559, %v1678
        %v1680 = vpop.f32.mrb[0].mxu0
        %v1681 = vadd.f32 %v555, %v1680
        %v1682 = vpop.f32.mrb[0].mxu0
        %v1683 = vadd.f32 %v559, %v1682
        %1684 = vmatprep.mubr.bf16.mxu0 %v1005
        %1685 = vmatmul.mubr.bf16.gmra.mrb[0].mxu0 %v1004
        %v1686 = vpop.f32.mrb[0].mxu0
        %v1687 = vadd.f32 %v555, %v1686
        %v1688 = vpop.f32.mrb[0].mxu0
        %v1689 = vadd.f32 %v559, %v1688
        %v1690 = vpop.f32.mrb[0].mxu0
        %v1691 = vadd.f32 %v555, %v1690
        %v1692 = vpop.f32.mrb[0].mxu0
        %v1693 = vadd.f32 %v559, %v1692
        %1694 = vmatprep.mubr.bf16.mxu0 %v1007
        %1695 = vmatmul.mubr.bf16.gmra.mrb[0].mxu0 %v1006
        %v1696 = vpop.f32.mrb[0].mxu0
        %v1697 = vadd.f32 %v555, %v1696
        %v1698 = vpop.f32.mrb[0].mxu0
        %v1699 = vadd.f32 %v559, %v1698
        %v1700 = vpop.f32.mrb[0].mxu0
        %v1701 = vadd.f32 %v555, %v1700
        %v1702 = vpop.f32.mrb[0].mxu0
        %v1703 = vadd.f32 %v559, %v1702
        %1704 = vmatprep.mubr.bf16.mxu0 %v1009
        %1705 = vmatmul.mubr.bf16.gmra.mrb[0].mxu0 %v1008
        %v1706 = vpop.f32.mrb[0].mxu0
        %v1707 = vadd.f32 %v555, %v1706
        %v1708 = vpop.f32.mrb[0].mxu0
        %v1709 = vadd.f32 %v559, %v1708
        %v1710 = vpop.f32.mrb[0].mxu0
        %v1711 = vadd.f32 %v555, %v1710
        %v1712 = vpop.f32.mrb[0].mxu0
        %v1713 = vadd.f32 %v559, %v1712
        %1714 = vmatprep.mubr.bf16.mxu0 %v1011
        %1715 = vmatmul.mubr.bf16.gmra.mrb[0].mxu0 %v1010
        %v1716 = vpop.f32.mrb[0].mxu0
        %v1717 = vadd.f32 %v555, %v1716
        %v1718 = vpop.f32.mrb[0].mxu0
        %v1719 = vadd.f32 %v559, %v1718
        %v1720 = vpop.f32.mrb[0].mxu0
        %v1721 = vadd.f32 %v555, %v1720
        %v1722 = vpop.f32.mrb[0].mxu0
        %v1723 = vadd.f32 %v559, %v1722
        %1724 = vmatprep.mubr.bf16.mxu0 %v1013
        %1725 = vmatmul.mubr.bf16.gmra.mrb[0].mxu0 %v1012
        %v1726 = vpop.f32.mrb[0].mxu0
        %v1727 = vadd.f32 %v555, %v1726
        %v1728 = vpop.f32.mrb[0].mxu0
        %v1729 = vadd.f32 %v559, %v1728
        %v1730 = vpop.f32.mrb[0].mxu0
        %v1731 = vadd.f32 %v555, %v1730
        %v1732 = vpop.f32.mrb[0].mxu0
        %v1733 = vadd.f32 %v559, %v1732
        %1734 = vmatprep.mubr.bf16.mxu0 %v1015
        %1735 = vmatmul.mubr.bf16.gmra.mrb[0].mxu0 %v1014
        %v1736 = vpop.f32.mrb[0].mxu0
        %v1737 = vadd.f32 %v555, %v1736
        %v1738 = vpop.f32.mrb[0].mxu0
        %v1739 = vadd.f32 %v559, %v1738
        %v1740 = vpop.f32.mrb[0].mxu0
        %v1741 = vadd.f32 %v555, %v1740
        %v1742 = vpop.f32.mrb[0].mxu0
        %v1743 = vadd.f32 %v559, %v1742
        %1744 = vmatprep.mubr.bf16.mxu0 %v1017
        %1745 = vmatmul.mubr.bf16.gmra.mrb[0].mxu0 %v1016
        %v1746 = vpop.f32.mrb[0].mxu0
        %v1747 = vadd.f32 %v555, %v1746
        %v1748 = vpop.f32.mrb[0].mxu0
        %v1749 = vadd.f32 %v559, %v1748
        %v1750 = vpop.f32.mrb[0].mxu0
        %v1751 = vadd.f32 %v555, %v1750
        %v1752 = vpop.f32.mrb[0].mxu0
        %v1753 = vadd.f32 %v559, %v1752
        %1754 = vmatprep.mubr.bf16.mxu0 %v1019
        %1755 = vmatmul.mubr.bf16.gmra.mrb[0].mxu0 %v1018
        %v1756 = vpop.f32.mrb[0].mxu0
        %v1757 = vadd.f32 %v555, %v1756
        %v1758 = vpop.f32.mrb[0].mxu0
        %v1759 = vadd.f32 %v559, %v1758
        %v1760 = vpop.f32.mrb[0].mxu0
        %v1761 = vadd.f32 %v555, %v1760
        %v1762 = vpop.f32.mrb[0].mxu0
        %v1763 = vadd.f32 %v559, %v1762
        %1764 = vmatprep.mubr.bf16.mxu0 %v1021
        %1765 = vmatmul.mubr.bf16.gmra.mrb[0].mxu0 %v1020
        %v1766 = vpop.f32.mrb[0].mxu0
        %v1767 = vadd.f32 %v555, %v1766
        %v1768 = vpop.f32.mrb[0].mxu0
        %v1769 = vadd.f32 %v559, %v1768
        %v1770 = vpop.f32.mrb[0].mxu0
        %v1771 = vadd.f32 %v555, %v1770
        %v1772 = vpop.f32.mrb[0].mxu0
        %v1773 = vadd.f32 %v559, %v1772
        %1774 = vmatprep.mubr.bf16.mxu0 %v1023
        %1775 = vmatmul.mubr.bf16.gmra.mrb[0].mxu0 %v1022
        %v1776 = vpop.f32.mrb[0].mxu0
        %v1777 = vadd.f32 %v555, %v1776
        %v1778 = vpop.f32.mrb[0].mxu0
        %v1779 = vadd.f32 %v559, %v1778
        %v1780 = vpop.f32.mrb[0].mxu0
        %v1781 = vadd.f32 %v555, %v1780
        %v1782 = vpop.f32.mrb[0].mxu0
        %v1783 = vadd.f32 %v559, %v1782
        %1784 = vmatprep.mubr.bf16.mxu0 %v1025
        %1785 = vmatmul.mubr.bf16.gmra.mrb[0].mxu0 %v1024
        %v1786 = vpop.f32.mrb[0].mxu0
        %v1787 = vadd.f32 %v555, %v1786
        %v1788 = vpop.f32.mrb[0].mxu0
        %v1789 = vadd.f32 %v559, %v1788
        %v1790 = vpop.f32.mrb[0].mxu0
        %v1791 = vadd.f32 %v555, %v1790
        %v1792 = vpop.f32.mrb[0].mxu0
        %v1793 = vadd.f32 %v559, %v1792
        %1794 = vmatprep.mubr.bf16.mxu0 %v1027
        %1795 = vmatmul.mubr.bf16.gmra.mrb[0].mxu0 %v1026
        %v1796 = vpop.f32.mrb[0].mxu0
        %v1797 = vadd.f32 %v555, %v1796
        %v1798 = vpop.f32.mrb[0].mxu0
        %v1799 = vadd.f32 %v559, %v1798
        %v1800 = vpop.f32.mrb[0].mxu0
        %v1801 = vadd.f32 %v555, %v1800
        %v1802 = vpop.f32.mrb[0].mxu0
        %v1803 = vadd.f32 %v559, %v1802
        %1804 = vmatprep.mubr.bf16.mxu0 %v1029
        %1805 = vmatmul.mubr.bf16.gmra.mrb[0].mxu0 %v1028
        %v1806 = vpop.f32.mrb[0].mxu0
        %v1807 = vadd.f32 %v555, %v1806
        %v1808 = vpop.f32.mrb[0].mxu0
        %v1809 = vadd.f32 %v559, %v1808
        %v1810 = vpop.f32.mrb[0].mxu0
        %v1811 = vadd.f32 %v555, %v1810
        %v1812 = vpop.f32.mrb[0].mxu0
        %v1813 = vadd.f32 %v559, %v1812
        %1814 = vmatprep.mubr.bf16.mxu0 %v1031
        %1815 = vmatmul.mubr.bf16.gmra.mrb[0].mxu0 %v1030
        %v1816 = vpop.f32.mrb[0].mxu0
        %v1817 = vadd.f32 %v555, %v1816
        %v1818 = vpop.f32.mrb[0].mxu0
        %v1819 = vadd.f32 %v559, %v1818
        %v1820 = vpop.f32.mrb[0].mxu0
        %v1821 = vadd.f32 %v555, %v1820
        %v1822 = vpop.f32.mrb[0].mxu0
        %v1823 = vadd.f32 %v559, %v1822
        %1824 = vmatprep.mubr.bf16.mxu0 %v1033
        %1825 = vmatmul.mubr.bf16.gmra.mrb[0].mxu0 %v1032
        %v1826 = vpop.f32.mrb[0].mxu0
        %v1827 = vadd.f32 %v555, %v1826
        %v1828 = vpop.f32.mrb[0].mxu0
        %v1829 = vadd.f32 %v559, %v1828
        %v1830 = vpop.f32.mrb[0].mxu0
        %v1831 = vadd.f32 %v555, %v1830
        %v1832 = vpop.f32.mrb[0].mxu0
        %v1833 = vadd.f32 %v559, %v1832
        %1834 = vmatprep.mubr.bf16.mxu0 %v1035
        %1835 = vmatmul.mubr.bf16.gmra.mrb[0].mxu0 %v1034
        %v1836 = vpop.f32.mrb[0].mxu0
        %v1837 = vadd.f32 %v555, %v1836
        %v1838 = vpop.f32.mrb[0].mxu0
        %v1839 = vadd.f32 %v559, %v1838
        %v1840 = vpop.f32.mrb[0].mxu0
        %v1841 = vadd.f32 %v555, %v1840
        %v1842 = vpop.f32.mrb[0].mxu0
        %v1843 = vadd.f32 %v559, %v1842
        %1844 = vmatprep.mubr.bf16.mxu0 %v1037
        %1845 = vmatmul.mubr.bf16.gmra.mrb[0].mxu0 %v1036
        %v1846 = vpop.f32.mrb[0].mxu0
        %v1847 = vadd.f32 %v555, %v1846
        %v1848 = vpop.f32.mrb[0].mxu0
        %v1849 = vadd.f32 %v559, %v1848
        %v1850 = vpop.f32.mrb[0].mxu0
        %v1851 = vadd.f32 %v555, %v1850
        %v1852 = vpop.f32.mrb[0].mxu0
        %v1853 = vadd.f32 %v559, %v1852
        %1854 = vmatprep.mubr.bf16.mxu0 %v1039
        %1855 = vmatmul.mubr.bf16.gmra.mrb[0].mxu0 %v1038
        %v1856 = vpop.f32.mrb[0].mxu0
        %v1857 = vadd.f32 %v555, %v1856
        %v1858 = vpop.f32.mrb[0].mxu0
        %v1859 = vadd.f32 %v559, %v1858
        %v1860 = vpop.f32.mrb[0].mxu0
        %v1861 = vadd.f32 %v555, %v1860
        %v1862 = vpop.f32.mrb[0].mxu0
        %v1863 = vadd.f32 %v559, %v1862
        %1864 = vmatprep.mubr.bf16.mxu0 %v1041
        %1865 = vmatmul.mubr.bf16.gmra.mrb[0].mxu0 %v1040
        %v1866 = vpop.f32.mrb[0].mxu0
        %v1867 = vadd.f32 %v555, %v1866
        %v1868 = vpop.f32.mrb[0].mxu0
        %v1869 = vadd.f32 %v559, %v1868
        %v1870 = vpop.f32.mrb[0].mxu0
        %v1871 = vadd.f32 %v555, %v1870
        %v1872 = vpop.f32.mrb[0].mxu0
        %v1873 = vadd.f32 %v559, %v1872
        %1874 = vmatprep.mubr.bf16.mxu0 %v1043
        %1875 = vmatmul.mubr.bf16.gmra.mrb[0].mxu0 %v1042
        %v1876 = vpop.f32.mrb[0].mxu0
        %v1877 = vadd.f32 %v555, %v1876
        %v1878 = vpop.f32.mrb[0].mxu0
        %v1879 = vadd.f32 %v559, %v1878
        %v1880 = vpop.f32.mrb[0].mxu0
        %v1881 = vadd.f32 %v555, %v1880
        %v1882 = vpop.f32.mrb[0].mxu0
        %v1883 = vadd.f32 %v559, %v1882
        %1884 = vmatprep.mubr.bf16.mxu0 %v1045
        %1885 = vmatmul.mubr.bf16.gmra.mrb[0].mxu0 %v1044
        %v1886 = vpop.f32.mrb[0].mxu0
        %v1887 = vadd.f32 %v555, %v1886
        %v1888 = vpop.f32.mrb[0].mxu0
        %v1889 = vadd.f32 %v559, %v1888
        %v1890 = vpop.f32.mrb[0].mxu0
        %v1891 = vadd.f32 %v555, %v1890
        %v1892 = vpop.f32.mrb[0].mxu0
        %v1893 = vadd.f32 %v559, %v1892
        %1894 = vmatprep.mubr.bf16.mxu0 %v1047
        %1895 = vmatmul.mubr.bf16.gmra.mrb[0].mxu0 %v1046
        %v1896 = vpop.f32.mrb[0].mxu0
        %v1897 = vadd.f32 %v555, %v1896
        %v1898 = vpop.f32.mrb[0].mxu0
        %v1899 = vadd.f32 %v559, %v1898
        %v1900 = vpop.f32.mrb[0].mxu0
        %v1901 = vadd.f32 %v555, %v1900
        %v1902 = vpop.f32.mrb[0].mxu0
        %v1903 = vadd.f32 %v559, %v1902
        %1904 = vmatprep.mubr.bf16.mxu0 %v1049
        %1905 = vmatmul.mubr.bf16.gmra.mrb[0].mxu0 %v1048
        %v1906 = vpop.f32.mrb[0].mxu0
        %v1907 = vadd.f32 %v555, %v1906
        %v1908 = vpop.f32.mrb[0].mxu0
        %v1909 = vadd.f32 %v559, %v1908
        %v1910 = vpop.f32.mrb[0].mxu0
        %v1911 = vadd.f32 %v555, %v1910
        %v1912 = vpop.f32.mrb[0].mxu0
        %v1913 = vadd.f32 %v559, %v1912
        %1914 = vmatprep.mubr.bf16.mxu0 %v1051
        %1915 = vmatmul.mubr.bf16.gmra.mrb[0].mxu0 %v1050
        %v1916 = vpop.f32.mrb[0].mxu0
        %v1917 = vadd.f32 %v555, %v1916
        %v1918 = vpop.f32.mrb[0].mxu0
        %v1919 = vadd.f32 %v559, %v1918
        %v1920 = vpop.f32.mrb[0].mxu0
        %v1921 = vadd.f32 %v555, %v1920
        %v1922 = vpop.f32.mrb[0].mxu0
        %v1923 = vadd.f32 %v559, %v1922
        %1924 = vmatprep.mubr.bf16.mxu0 %v1053
        %1925 = vmatmul.mubr.bf16.gmra.mrb[0].mxu0 %v1052
        %v1926 = vpop.f32.mrb[0].mxu0
        %v1927 = vadd.f32 %v555, %v1926
        %v1928 = vpop.f32.mrb[0].mxu0
        %v1929 = vadd.f32 %v559, %v1928
        %v1930 = vpop.f32.mrb[0].mxu0
        %v1931 = vadd.f32 %v555, %v1930
        %v1932 = vpop.f32.mrb[0].mxu0
        %v1933 = vadd.f32 %v559, %v1932
        %1934 = vmatprep.mubr.bf16.mxu0 %v1055
        %1935 = vmatmul.mubr.bf16.gmra.mrb[0].mxu0 %v1054
        %v1936 = vpop.f32.mrb[0].mxu0
        %v1937 = vadd.f32 %v555, %v1936
        %v1938 = vpop.f32.mrb[0].mxu0
        %v1939 = vadd.f32 %v559, %v1938
        %v1940 = vpop.f32.mrb[0].mxu0
        %v1941 = vadd.f32 %v555, %v1940
        %v1942 = vpop.f32.mrb[0].mxu0
        %v1943 = vadd.f32 %v559, %v1942
        %1944 = vmatprep.mubr.bf16.mxu0 %v1057
        %1945 = vmatmul.mubr.bf16.gmra.mrb[0].mxu0 %v1056
        %v1946 = vpop.f32.mrb[0].mxu0
        %v1947 = vadd.f32 %v555, %v1946
        %v1948 = vpop.f32.mrb[0].mxu0
        %v1949 = vadd.f32 %v559, %v1948
        %v1950 = vpop.f32.mrb[0].mxu0
        %v1951 = vadd.f32 %v555, %v1950
        %v1952 = vpop.f32.mrb[0].mxu0
        %v1953 = vadd.f32 %v559, %v1952
        %1954 = vmatprep.mubr.bf16.mxu0 %v1059
        %1955 = vmatmul.mubr.bf16.gmra.mrb[0].mxu0 %v1058
        %v1956 = vpop.f32.mrb[0].mxu0
        %v1957 = vadd.f32 %v555, %v1956
        %v1958 = vpop.f32.mrb[0].mxu0
        %v1959 = vadd.f32 %v559, %v1958
        %v1960 = vpop.f32.mrb[0].mxu0
        %v1961 = vadd.f32 %v555, %v1960
        %v1962 = vpop.f32.mrb[0].mxu0
        %v1963 = vadd.f32 %v559, %v1962
        %1964 = vmatprep.mubr.bf16.mxu0 %v1061
        %1965 = vmatmul.mubr.bf16.gmra.mrb[0].mxu0 %v1060
        %v1966 = vpop.f32.mrb[0].mxu0
        %v1967 = vadd.f32 %v555, %v1966
        %v1968 = vpop.f32.mrb[0].mxu0
        %v1969 = vadd.f32 %v559, %v1968
        %v1970 = vpop.f32.mrb[0].mxu0
        %v1971 = vadd.f32 %v555, %v1970
        %v1972 = vpop.f32.mrb[0].mxu0
        %v1973 = vadd.f32 %v559, %v1972
        %1974 = vmatprep.mubr.bf16.mxu0 %v1063
        %1975 = vmatmul.mubr.bf16.gmra.mrb[0].mxu0 %v1062
        %v1976 = vpop.f32.mrb[0].mxu0
        %v1977 = vadd.f32 %v555, %v1976
        %v1978 = vpop.f32.mrb[0].mxu0
        %v1979 = vadd.f32 %v559, %v1978
        %v1980 = vpop.f32.mrb[0].mxu0
        %v1981 = vadd.f32 %v555, %v1980
        %v1982 = vpop.f32.mrb[0].mxu0
        %v1983 = vadd.f32 %v559, %v1982
        %1984 = vmatprep.mubr.bf16.mxu0 %v1065
        %1985 = vmatmul.mubr.bf16.gmra.mrb[0].mxu0 %v1064
        %v1986 = vpop.f32.mrb[0].mxu0
        %v1987 = vadd.f32 %v555, %v1986
        %v1988 = vpop.f32.mrb[0].mxu0
        %v1989 = vadd.f32 %v559, %v1988
        %v1990 = vpop.f32.mrb[0].mxu0
        %v1991 = vadd.f32 %v555, %v1990
        %v1992 = vpop.f32.mrb[0].mxu0
        %v1993 = vadd.f32 %v559, %v1992
        %1994 = vmatprep.mubr.bf16.mxu0 %v1067
        %1995 = vmatmul.mubr.bf16.gmra.mrb[0].mxu0 %v1066
        %v1996 = vpop.f32.mrb[0].mxu0
        %v1997 = vadd.f32 %v555, %v1996
        %v1998 = vpop.f32.mrb[0].mxu0
        %v1999 = vadd.f32 %v559, %v1998
        %v2000 = vpop.f32.mrb[0].mxu0
        %v2001 = vadd.f32 %v555, %v2000
        %v2002 = vpop.f32.mrb[0].mxu0
        %v2003 = vadd.f32 %v559, %v2002
        %2004 = vmatprep.mubr.bf16.mxu0 %v1069
        %2005 = vmatmul.mubr.bf16.gmra.mrb[0].mxu0 %v1068
        %v2006 = vpop.f32.mrb[0].mxu0
        %v2007 = vadd.f32 %v555, %v2006
        %v2008 = vpop.f32.mrb[0].mxu0
        %v2009 = vadd.f32 %v559, %v2008
        %v2010 = vpop.f32.mrb[0].mxu0
        %v2011 = vadd.f32 %v555, %v2010
        %v2012 = vpop.f32.mrb[0].mxu0
        %v2013 = vadd.f32 %v559, %v2012
        %2014 = vmatprep.mubr.bf16.mxu0 %v1071
        %2015 = vmatmul.mubr.bf16.gmra.mrb[0].mxu0 %v1070
        %v2016 = vpop.f32.mrb[0].mxu0
        %v2017 = vadd.f32 %v555, %v2016
        %v2018 = vpop.f32.mrb[0].mxu0
        %v2019 = vadd.f32 %v559, %v2018
        %v2020 = vpop.f32.mrb[0].mxu0
        %v2021 = vadd.f32 %v555, %v2020
        %v2022 = vpop.f32.mrb[0].mxu0
        %v2023 = vadd.f32 %v559, %v2022
        %2024 = vmatprep.mubr.bf16.mxu0 %v1073
        %2025 = vmatmul.mubr.bf16.gmra.mrb[0].mxu0 %v1072
        %v2026 = vpop.f32.mrb[0].mxu0
        %v2027 = vadd.f32 %v555, %v2026
        %v2028 = vpop.f32.mrb[0].mxu0
        %v2029 = vadd.f32 %v559, %v2028
        %v2030 = vpop.f32.mrb[0].mxu0
        %v2031 = vadd.f32 %v555, %v2030
        %v2032 = vpop.f32.mrb[0].mxu0
        %v2033 = vadd.f32 %v559, %v2032
        %2034 = vdwg.mxu0
        %v2035 = vtanh.pop %v1397
        %v2036 = vtanh.pop %v1399
        %v2037 = vtanh.pop %v1401
        %v2038 = vtanh.pop %v1403
        %v2039 = vtanh.pop %v1407
        %v2040 = vtanh.pop %v1409
        %v2041 = vtanh.pop %v1411
        %v2042 = vtanh.pop %v1413
        %v2043 = vtanh.pop %v1417
        %v2044 = vtanh.pop %v1419
        %v2045 = vtanh.pop %v1421
        %v2046 = vtanh.pop %v1423
        %v2047 = vtanh.pop %v1427
        %v2048 = vtanh.pop %v1429
        %v2049 = vtanh.pop %v1431
        %v2050 = vtanh.pop %v1433
        %v2051 = vtanh.pop %v1437
        %v2052 = vtanh.pop %v1439
        %v2053 = vtanh.pop %v1441
        %v2054 = vtanh.pop %v1443
        %v2055 = vtanh.pop %v1447
        %v2056 = vtanh.pop %v1449
        %v2057 = vtanh.pop %v1451
        %v2058 = vtanh.pop %v1453
        %v2059 = vtanh.pop %v1457
        %v2060 = vtanh.pop %v1459
        %v2061 = vtanh.pop %v1461
        %v2062 = vtanh.pop %v1463
        %v2063 = vtanh.pop %v1467
        %v2064 = vtanh.pop %v1469
        %v2065 = vtanh.pop %v1471
        %v2066 = vtanh.pop %v1473
        %v2067 = vtanh.pop %v1477
        %v2068 = vtanh.pop %v1479
        %v2069 = vtanh.pop %v1481
        %v2070 = vtanh.pop %v1483
        %v2071 = vtanh.pop %v1487
        %v2072 = vtanh.pop %v1489
        %v2073 = vtanh.pop %v1491
        %v2074 = vtanh.pop %v1493
        %v2075 = vtanh.pop %v1497
        %v2076 = vtanh.pop %v1499
        %v2077 = vtanh.pop %v1501
        %v2078 = vtanh.pop %v1503
        %v2079 = vtanh.pop %v1507
        %v2080 = vtanh.pop %v1509
        %v2081 = vtanh.pop %v1511
        %v2082 = vtanh.pop %v1513
        %v2083 = vtanh.pop %v1517
        %v2084 = vtanh.pop %v1519
        %v2085 = vtanh.pop %v1521
        %v2086 = vtanh.pop %v1523
        %v2087 = vtanh.pop %v1527
        %v2088 = vtanh.pop %v1529
        %v2089 = vtanh.pop %v1531
        %v2090 = vtanh.pop %v1533
        %v2091 = vtanh.pop %v1537
        %v2092 = vtanh.pop %v1539
        %v2093 = vtanh.pop %v1541
        %v2094 = vtanh.pop %v1543
        %v2095 = vtanh.pop %v1547
        %v2096 = vtanh.pop %v1549
        %v2097 = vtanh.pop %v1551
        %v2098 = vtanh.pop %v1553
        %v2099 = vtanh.pop %v1557
        %v2100 = vtanh.pop %v1559
        %v2101 = vtanh.pop %v1561
        %v2102 = vtanh.pop %v1563
        %v2103 = vtanh.pop %v1567
        %v2104 = vtanh.pop %v1569
        %v2105 = vtanh.pop %v1571
        %v2106 = vtanh.pop %v1573
        %v2107 = vtanh.pop %v1577
        %v2108 = vtanh.pop %v1579
        %v2109 = vtanh.pop %v1581
        %v2110 = vtanh.pop %v1583
        %v2111 = vtanh.pop %v1587
        %v2112 = vtanh.pop %v1589
        %v2113 = vtanh.pop %v1591
        %v2114 = vtanh.pop %v1593
        %v2115 = vtanh.pop %v1597
        %v2116 = vtanh.pop %v1599
        %v2117 = vtanh.pop %v1601
        %v2118 = vtanh.pop %v1603
        %v2119 = vtanh.pop %v1607
        %v2120 = vtanh.pop %v1609
        %v2121 = vtanh.pop %v1611
        %v2122 = vtanh.pop %v1613
        %v2123 = vtanh.pop %v1617
        %v2124 = vtanh.pop %v1619
        %v2125 = vtanh.pop %v1621
        %v2126 = vtanh.pop %v1623
        %v2127 = vtanh.pop %v1627
        %v2128 = vtanh.pop %v1629
        %v2129 = vtanh.pop %v1631
        %v2130 = vtanh.pop %v1633
        %v2131 = vtanh.pop %v1637
        %v2132 = vtanh.pop %v1639
        %v2133 = vtanh.pop %v1641
        %v2134 = vtanh.pop %v1643
        %v2135 = vtanh.pop %v1647
        %v2136 = vtanh.pop %v1649
        %v2137 = vtanh.pop %v1651
        %v2138 = vtanh.pop %v1653
        %v2139 = vtanh.pop %v1657
        %v2140 = vtanh.pop %v1659
        %v2141 = vtanh.pop %v1661
        %v2142 = vtanh.pop %v1663
        %v2143 = vtanh.pop %v1667
        %v2144 = vtanh.pop %v1669
        %v2145 = vtanh.pop %v1671
        %v2146 = vtanh.pop %v1673
        %v2147 = vtanh.pop %v1677
        %v2148 = vtanh.pop %v1679
        %v2149 = vtanh.pop %v1681
        %v2150 = vtanh.pop %v1683
        %v2151 = vtanh.pop %v1687
        %v2152 = vtanh.pop %v1689
        %v2153 = vtanh.pop %v1691
        %v2154 = vtanh.pop %v1693
        %v2155 = vtanh.pop %v1697
        %v2156 = vtanh.pop %v1699
        %v2157 = vtanh.pop %v1701
        %v2158 = vtanh.pop %v1703
        %v2159 = vtanh.pop %v1707
        %v2160 = vtanh.pop %v1709
        %v2161 = vtanh.pop %v1711
        %v2162 = vtanh.pop %v1713
        %v2163 = vtanh.pop %v1717
        %v2164 = vtanh.pop %v1719
        %v2165 = vtanh.pop %v1721
        %v2166 = vtanh.pop %v1723
        %v2167 = vtanh.pop %v1727
        %v2168 = vtanh.pop %v1729
        %v2169 = vtanh.pop %v1731
        %v2170 = vtanh.pop %v1733
        %v2171 = vtanh.pop %v1737
        %v2172 = vtanh.pop %v1739
        %v2173 = vtanh.pop %v1741
        %v2174 = vtanh.pop %v1743
        %v2175 = vtanh.pop %v1747
        %v2176 = vtanh.pop %v1749
        %v2177 = vtanh.pop %v1751
        %v2178 = vtanh.pop %v1753
        %v2179 = vtanh.pop %v1757
        %v2180 = vtanh.pop %v1759
        %v2181 = vtanh.pop %v1761
        %v2182 = vtanh.pop %v1763
        %v2183 = vtanh.pop %v1767
        %v2184 = vtanh.pop %v1769
        %v2185 = vtanh.pop %v1771
        %v2186 = vtanh.pop %v1773
        %v2187 = vtanh.pop %v1777
        %v2188 = vtanh.pop %v1779
        %v2189 = vtanh.pop %v1781
        %v2190 = vtanh.pop %v1783
        %v2191 = vtanh.pop %v1787
        %v2192 = vtanh.pop %v1789
        %v2193 = vtanh.pop %v1791
        %v2194 = vtanh.pop %v1793
        %v2195 = vtanh.pop %v1797
        %v2196 = vtanh.pop %v1799
        %v2197 = vtanh.pop %v1801
        %v2198 = vtanh.pop %v1803
        %v2199 = vtanh.pop %v1807
        %v2200 = vtanh.pop %v1809
        %v2201 = vtanh.pop %v1811
        %v2202 = vtanh.pop %v1813
        %v2203 = vtanh.pop %v1817
        %v2204 = vtanh.pop %v1819
        %v2205 = vtanh.pop %v1821
        %v2206 = vtanh.pop %v1823
        %v2207 = vtanh.pop %v1827
        %v2208 = vtanh.pop %v1829
        %v2209 = vtanh.pop %v1831
        %v2210 = vtanh.pop %v1833
        %v2211 = vtanh.pop %v1837
        %v2212 = vtanh.pop %v1839
        %v2213 = vtanh.pop %v1841
        %v2214 = vtanh.pop %v1843
        %v2215 = vtanh.pop %v1847
        %v2216 = vtanh.pop %v1849
        %v2217 = vtanh.pop %v1851
        %v2218 = vtanh.pop %v1853
        %v2219 = vtanh.pop %v1857
        %v2220 = vtanh.pop %v1859
        %v2221 = vtanh.pop %v1861
        %v2222 = vtanh.pop %v1863
        %v2223 = vtanh.pop %v1867
        %v2224 = vtanh.pop %v1869
        %v2225 = vtanh.pop %v1871
        %v2226 = vtanh.pop %v1873
        %v2227 = vtanh.pop %v1877
        %v2228 = vtanh.pop %v1879
        %v2229 = vtanh.pop %v1881
        %v2230 = vtanh.pop %v1883
        %v2231 = vtanh.pop %v1887
        %v2232 = vtanh.pop %v1889
        %v2233 = vtanh.pop %v1891
        %v2234 = vtanh.pop %v1893
        %v2235 = vtanh.pop %v1897
        %v2236 = vtanh.pop %v1899
        %v2237 = vtanh.pop %v1901
        %v2238 = vtanh.pop %v1903
        %v2239 = vtanh.pop %v1907
        %v2240 = vtanh.pop %v1909
        %v2241 = vtanh.pop %v1911
        %v2242 = vtanh.pop %v1913
        %v2243 = vtanh.pop %v1917
        %v2244 = vtanh.pop %v1919
        %v2245 = vtanh.pop %v1921
        %v2246 = vtanh.pop %v1923
        %v2247 = vtanh.pop %v1927
        %v2248 = vtanh.pop %v1929
        %v2249 = vtanh.pop %v1931
        %v2250 = vtanh.pop %v1933
        %v2251 = vtanh.pop %v1937
        %v2252 = vtanh.pop %v1939
        %v2253 = vtanh.pop %v1941
        %v2254 = vtanh.pop %v1943
        %v2255 = vtanh.pop %v1947
        %v2256 = vtanh.pop %v1949
        %v2257 = vtanh.pop %v1951
        %v2258 = vtanh.pop %v1953
        %v2259 = vtanh.pop %v1957
        %v2260 = vtanh.pop %v1959
        %v2261 = vtanh.pop %v1961
        %v2262 = vtanh.pop %v1963
        %v2263 = vtanh.pop %v1967
        %v2264 = vtanh.pop %v1969
        %v2265 = vtanh.pop %v1971
        %v2266 = vtanh.pop %v1973
        %v2267 = vtanh.pop %v1977
        %v2268 = vtanh.pop %v1979
        %v2269 = vtanh.pop %v1981
        %v2270 = vtanh.pop %v1983
        %v2271 = vtanh.pop %v1987
        %v2272 = vtanh.pop %v1989
        %v2273 = vtanh.pop %v1991
        %v2274 = vtanh.pop %v1993
        %v2275 = vtanh.pop %v1997
        %v2276 = vtanh.pop %v1999
        %v2277 = vtanh.pop %v2001
        %v2278 = vtanh.pop %v2003
        %v2279 = vtanh.pop %v2007
        %v2280 = vtanh.pop %v2009
        %v2281 = vtanh.pop %v2011
        %v2282 = vtanh.pop %v2013
        %v2283 = vtanh.pop %v2017
        %v2284 = vtanh.pop %v2019
        %v2285 = vtanh.pop %v2021
        %v2286 = vtanh.pop %v2023
        %v2287 = vtanh.pop %v2027
        %v2288 = vtanh.pop %v2029
        %v2289 = vtanh.pop %v2031
        %v2290 = vtanh.pop %v2033
        %v2291 = vpack.c.bf16 %v2037, %v2035
        %v2292 = vpack.c.bf16 %v2038, %v2036
        %v2293 = vpack.c.bf16 %v2041, %v2039
        %v2294 = vpack.c.bf16 %v2042, %v2040
        %v2295 = vpack.c.bf16 %v2045, %v2043
        %v2296 = vpack.c.bf16 %v2046, %v2044
        %v2297 = vpack.c.bf16 %v2049, %v2047
        %v2298 = vpack.c.bf16 %v2050, %v2048
        %v2299 = vpack.c.bf16 %v2053, %v2051
        %v2300 = vpack.c.bf16 %v2054, %v2052
        %v2301 = vpack.c.bf16 %v2057, %v2055
        %v2302 = vpack.c.bf16 %v2058, %v2056
        %v2303 = vpack.c.bf16 %v2061, %v2059
        %v2304 = vpack.c.bf16 %v2062, %v2060
        %v2305 = vpack.c.bf16 %v2065, %v2063
        %v2306 = vpack.c.bf16 %v2066, %v2064
        %v2307 = vpack.c.bf16 %v2069, %v2067
        %v2308 = vpack.c.bf16 %v2070, %v2068
        %v2309 = vpack.c.bf16 %v2073, %v2071
        %v2310 = vpack.c.bf16 %v2074, %v2072
        %v2311 = vpack.c.bf16 %v2077, %v2075
        %v2312 = vpack.c.bf16 %v2078, %v2076
        %v2313 = vpack.c.bf16 %v2081, %v2079
        %v2314 = vpack.c.bf16 %v2082, %v2080
        %v2315 = vpack.c.bf16 %v2085, %v2083
        %v2316 = vpack.c.bf16 %v2086, %v2084
        %v2317 = vpack.c.bf16 %v2089, %v2087
        %v2318 = vpack.c.bf16 %v2090, %v2088
        %v2319 = vpack.c.bf16 %v2093, %v2091
        %v2320 = vpack.c.bf16 %v2094, %v2092
        %v2321 = vpack.c.bf16 %v2097, %v2095
        %v2322 = vpack.c.bf16 %v2098, %v2096
        %v2323 = vpack.c.bf16 %v2101, %v2099
        %v2324 = vpack.c.bf16 %v2102, %v2100
        %v2325 = vpack.c.bf16 %v2105, %v2103
        %v2326 = vpack.c.bf16 %v2106, %v2104
        %v2327 = vpack.c.bf16 %v2109, %v2107
        %v2328 = vpack.c.bf16 %v2110, %v2108
        %v2329 = vpack.c.bf16 %v2113, %v2111
        %v2330 = vpack.c.bf16 %v2114, %v2112
        %v2331 = vpack.c.bf16 %v2117, %v2115
        %v2332 = vpack.c.bf16 %v2118, %v2116
        %v2333 = vpack.c.bf16 %v2121, %v2119
        %v2334 = vpack.c.bf16 %v2122, %v2120
        %v2335 = vpack.c.bf16 %v2125, %v2123
        %v2336 = vpack.c.bf16 %v2126, %v2124
        %v2337 = vpack.c.bf16 %v2129, %v2127
        %v2338 = vpack.c.bf16 %v2130, %v2128
        %v2339 = vpack.c.bf16 %v2133, %v2131
        %v2340 = vpack.c.bf16 %v2134, %v2132
        %v2341 = vpack.c.bf16 %v2137, %v2135
        %v2342 = vpack.c.bf16 %v2138, %v2136
        %v2343 = vpack.c.bf16 %v2141, %v2139
        %v2344 = vpack.c.bf16 %v2142, %v2140
        %v2345 = vpack.c.bf16 %v2145, %v2143
        %v2346 = vpack.c.bf16 %v2146, %v2144
        %v2347 = vpack.c.bf16 %v2149, %v2147
        %v2348 = vpack.c.bf16 %v2150, %v2148
        %v2349 = vpack.c.bf16 %v2153, %v2151
        %v2350 = vpack.c.bf16 %v2154, %v2152
        %v2351 = vpack.c.bf16 %v2157, %v2155
        %v2352 = vpack.c.bf16 %v2158, %v2156
        %v2353 = vpack.c.bf16 %v2161, %v2159
        %v2354 = vpack.c.bf16 %v2162, %v2160
        %v2355 = vpack.c.bf16 %v2165, %v2163
        %v2356 = vpack.c.bf16 %v2166, %v2164
        %v2357 = vpack.c.bf16 %v2169, %v2167
        %v2358 = vpack.c.bf16 %v2170, %v2168
        %v2359 = vpack.c.bf16 %v2173, %v2171
        %v2360 = vpack.c.bf16 %v2174, %v2172
        %v2361 = vpack.c.bf16 %v2177, %v2175
        %v2362 = vpack.c.bf16 %v2178, %v2176
        %v2363 = vpack.c.bf16 %v2181, %v2179
        %v2364 = vpack.c.bf16 %v2182, %v2180
        %v2365 = vpack.c.bf16 %v2185, %v2183
        %v2366 = vpack.c.bf16 %v2186, %v2184
        %v2367 = vpack.c.bf16 %v2189, %v2187
        %v2368 = vpack.c.bf16 %v2190, %v2188
        %v2369 = vpack.c.bf16 %v2193, %v2191
        %v2370 = vpack.c.bf16 %v2194, %v2192
        %v2371 = vpack.c.bf16 %v2197, %v2195
        %v2372 = vpack.c.bf16 %v2198, %v2196
        %v2373 = vpack.c.bf16 %v2201, %v2199
        %v2374 = vpack.c.bf16 %v2202, %v2200
        %v2375 = vpack.c.bf16 %v2205, %v2203
        %v2376 = vpack.c.bf16 %v2206, %v2204
        %v2377 = vpack.c.bf16 %v2209, %v2207
        %v2378 = vpack.c.bf16 %v2210, %v2208
        %v2379 = vpack.c.bf16 %v2213, %v2211
        %v2380 = vpack.c.bf16 %v2214, %v2212
        %v2381 = vpack.c.bf16 %v2217, %v2215
        %v2382 = vpack.c.bf16 %v2218, %v2216
        %v2383 = vpack.c.bf16 %v2221, %v2219
        %v2384 = vpack.c.bf16 %v2222, %v2220
        %v2385 = vpack.c.bf16 %v2225, %v2223
        %v2386 = vpack.c.bf16 %v2226, %v2224
        %v2387 = vpack.c.bf16 %v2229, %v2227
        %v2388 = vpack.c.bf16 %v2230, %v2228
        %v2389 = vpack.c.bf16 %v2233, %v2231
        %v2390 = vpack.c.bf16 %v2234, %v2232
        %v2391 = vpack.c.bf16 %v2237, %v2235
        %v2392 = vpack.c.bf16 %v2238, %v2236
        %v2393 = vpack.c.bf16 %v2241, %v2239
        %v2394 = vpack.c.bf16 %v2242, %v2240
        %v2395 = vpack.c.bf16 %v2245, %v2243
        %v2396 = vpack.c.bf16 %v2246, %v2244
        %v2397 = vpack.c.bf16 %v2249, %v2247
        %v2398 = vpack.c.bf16 %v2250, %v2248
        %v2399 = vpack.c.bf16 %v2253, %v2251
        %v2400 = vpack.c.bf16 %v2254, %v2252
        %v2401 = vpack.c.bf16 %v2257, %v2255
        %v2402 = vpack.c.bf16 %v2258, %v2256
        %v2403 = vpack.c.bf16 %v2261, %v2259
        %v2404 = vpack.c.bf16 %v2262, %v2260
        %v2405 = vpack.c.bf16 %v2265, %v2263
        %v2406 = vpack.c.bf16 %v2266, %v2264
        %v2407 = vpack.c.bf16 %v2269, %v2267
        %v2408 = vpack.c.bf16 %v2270, %v2268
        %v2409 = vpack.c.bf16 %v2273, %v2271
        %v2410 = vpack.c.bf16 %v2274, %v2272
        %v2411 = vpack.c.bf16 %v2277, %v2275
        %v2412 = vpack.c.bf16 %v2278, %v2276
        %v2413 = vpack.c.bf16 %v2281, %v2279
        %v2414 = vpack.c.bf16 %v2282, %v2280
        %v2415 = vpack.c.bf16 %v2285, %v2283
        %v2416 = vpack.c.bf16 %v2286, %v2284
        %v2417 = vpack.c.bf16 %v2289, %v2287
        %v2418 = vpack.c.bf16 %v2290, %v2288
        %v2419 = vld [vmem:[#allocation3] sm:$0x1]
        %2421 = vset.pattern.permute.xlu0 0
        %2422 = vperm.xlu0 %2421, %v2419
        %v2423 = vpop.permute.xlu0 %2422
        %v2425 = vlaneseq
        %v2426 = vshrl.u32 %v2425, 7
        %v2427 = vsub.s32 0, %v2426
        %v2428 = vrot.slane %v2423, %v2427
        %v2431 = vunpack.c.l.s4 1966171168
        %v2432 = vunpack.c.0.s8 %v2431
        %v2433 = vlaneseq
        %v2434 = vshrl.u32 %v2433, 7
        %v2435 = vsub.s32 %v2432, %v2434
        %v2436 = vrot.slane %v386, %v2435
        %v2437 = vcombine.high %v2436, %v2436
        %v2439 = vunpack.c.l.s4 1966171168
        %v2440 = vunpack.c.0.s8 %v2439
        %v2441 = vlaneseq
        %v2442 = vshrl.u32 %v2441, 7
        %v2443 = vsub.s32 %v2440, %v2442
        %v2444 = vrot.slane %v2436, %v2443
        %v2446 = vunpack.c.l.s4 1966171168
        %v2447 = vunpack.c.0.s8 %v2446
        %v2448 = vlaneseq
        %v2449 = vshrl.u32 %v2448, 7
        %v2450 = vsub.s32 %v2447, %v2449
        %v2451 = vrot.slane %v2437, %v2450
        %2454 = vmatprep.subr.bf16.mxu0 %v2292
        %2455 = vmatpush1.bf16.xpose.msra.mxu0 %v2291
        %2456 = vmatprep.subr.bf16.mxu0 %v2294
        %2457 = vmatpush1.bf16.xpose.msra.mxu0 %v2293
        %2458 = vmatprep.subr.bf16.mxu0 %v2296
        %2459 = vmatpush1.bf16.xpose.msra.mxu0 %v2295
        %2460 = vmatprep.subr.bf16.mxu0 %v2298
        %2461 = vmatpush1.bf16.xpose.msra.mxu0 %v2297
        %2462 = vmatprep.subr.bf16.mxu0 %v2300
        %2463 = vmatpush1.bf16.xpose.msra.mxu0 %v2299
        %2464 = vmatprep.subr.bf16.mxu0 %v2302
        %2465 = vmatpush1.bf16.xpose.msra.mxu0 %v2301
        %2466 = vmatprep.subr.bf16.mxu0 %v2304
        %2467 = vmatpush1.bf16.xpose.msra.mxu0 %v2303
        %2468 = vmatprep.subr.bf16.mxu0 %v2306
        %2469 = vmatpush1.bf16.xpose.msra.mxu0 %v2305
        %2470 = vmatprep.subr.bf16.mxu0 0
        %2471 = vmatpush1.bf16.xpose.msra.mxu0 0
        %2472 = vmatprep.subr.bf16.mxu0 0
        %2473 = vmatpush1.bf16.xpose.msra.mxu0 0
        %2474 = vmatprep.subr.bf16.mxu0 0
        %2475 = vmatpush1.bf16.xpose.msra.mxu0 0
        %2476 = vmatprep.subr.bf16.mxu0 0
        %2477 = vmatpush1.bf16.xpose.msra.mxu0 0
        %2478 = vmatprep.subr.bf16.mxu0 0
        %2479 = vmatpush1.bf16.xpose.msra.mxu0 0
        %2480 = vmatprep.subr.bf16.mxu0 0
        %2481 = vmatpush1.bf16.xpose.msra.mxu0 0
        %2482 = vmatprep.subr.bf16.mxu0 0
        %2483 = vmatpush1.bf16.xpose.msra.mxu0 0
        %2484 = vmatprep.subr.bf16.mxu0 0
        %2485 = vmatpush1.bf16.xpose.msra.mxu0 0
        %2486 = vmatprep.mubr.bf16.mxu0 %v2451
        %2487 = vmatmul.mubr.bf16.gmra.mrb[0].mxu0 %v2444
        %v2488 = vpop.f32.mrb[0].mxu0
        %v2489 = vadd.f32 %v2428, %v2488
        %v2490 = vpop.f32.mrb[0].mxu0
        %v2491 = vpop.f32.mrb[0].mxu0
        %v2492 = vpop.f32.mrb[0].mxu0
        %2493 = vdwg.mxu0
        %2494 = vmatprep.subr.bf16.mxu0 %v2308
        %2495 = vmatpush1.bf16.xpose.msra.mxu0 %v2307
        %2496 = vmatprep.subr.bf16.mxu0 %v2310
        %2497 = vmatpush1.bf16.xpose.msra.mxu0 %v2309
        %2498 = vmatprep.subr.bf16.mxu0 %v2312
        %2499 = vmatpush1.bf16.xpose.msra.mxu0 %v2311
        %2500 = vmatprep.subr.bf16.mxu0 %v2314
        %2501 = vmatpush1.bf16.xpose.msra.mxu0 %v2313
        %2502 = vmatprep.subr.bf16.mxu0 %v2316
        %2503 = vmatpush1.bf16.xpose.msra.mxu0 %v2315
        %2504 = vmatprep.subr.bf16.mxu0 %v2318
        %2505 = vmatpush1.bf16.xpose.msra.mxu0 %v2317
        %2506 = vmatprep.subr.bf16.mxu0 %v2320
        %2507 = vmatpush1.bf16.xpose.msra.mxu0 %v2319
        %2508 = vmatprep.subr.bf16.mxu0 %v2322
        %2509 = vmatpush1.bf16.xpose.msra.mxu0 %v2321
        %2510 = vmatprep.subr.bf16.mxu0 0
        %2511 = vmatpush1.bf16.xpose.msra.mxu0 0
        %2512 = vmatprep.subr.bf16.mxu0 0
        %2513 = vmatpush1.bf16.xpose.msra.mxu0 0
        %2514 = vmatprep.subr.bf16.mxu0 0
        %2515 = vmatpush1.bf16.xpose.msra.mxu0 0
        %2516 = vmatprep.subr.bf16.mxu0 0
        %2517 = vmatpush1.bf16.xpose.msra.mxu0 0
        %2518 = vmatprep.subr.bf16.mxu0 0
        %2519 = vmatpush1.bf16.xpose.msra.mxu0 0
        %2520 = vmatprep.subr.bf16.mxu0 0
        %2521 = vmatpush1.bf16.xpose.msra.mxu0 0
        %2522 = vmatprep.subr.bf16.mxu0 0
        %2523 = vmatpush1.bf16.xpose.msra.mxu0 0
        %2524 = vmatprep.subr.bf16.mxu0 0
        %2525 = vmatpush1.bf16.xpose.msra.mxu0 0
        %2526 = vmatprep.mubr.bf16.mxu0 %v2451
        %2527 = vmatmul.mubr.bf16.gmra.mrb[0].mxu0 %v2444
        %v2528 = vpop.f32.mrb[0].mxu0
        %v2529 = vadd.f32 %v2428, %v2528
        %v2530 = vpop.f32.mrb[0].mxu0
        %v2531 = vpop.f32.mrb[0].mxu0
        %v2532 = vpop.f32.mrb[0].mxu0
        %2533 = vdwg.mxu0
        %2534 = vmatprep.subr.bf16.mxu0 %v2324
        %2535 = vmatpush1.bf16.xpose.msra.mxu0 %v2323
        %2536 = vmatprep.subr.bf16.mxu0 %v2326
        %2537 = vmatpush1.bf16.xpose.msra.mxu0 %v2325
        %2538 = vmatprep.subr.bf16.mxu0 %v2328
        %2539 = vmatpush1.bf16.xpose.msra.mxu0 %v2327
        %2540 = vmatprep.subr.bf16.mxu0 %v2330
        %2541 = vmatpush1.bf16.xpose.msra.mxu0 %v2329
        %2542 = vmatprep.subr.bf16.mxu0 %v2332
        %2543 = vmatpush1.bf16.xpose.msra.mxu0 %v2331
        %2544 = vmatprep.subr.bf16.mxu0 %v2334
        %2545 = vmatpush1.bf16.xpose.msra.mxu0 %v2333
        %2546 = vmatprep.subr.bf16.mxu0 %v2336
        %2547 = vmatpush1.bf16.xpose.msra.mxu0 %v2335
        %2548 = vmatprep.subr.bf16.mxu0 %v2338
        %2549 = vmatpush1.bf16.xpose.msra.mxu0 %v2337
        %2550 = vmatprep.subr.bf16.mxu0 0
        %2551 = vmatpush1.bf16.xpose.msra.mxu0 0
        %2552 = vmatprep.subr.bf16.mxu0 0
        %2553 = vmatpush1.bf16.xpose.msra.mxu0 0
        %2554 = vmatprep.subr.bf16.mxu0 0
        %2555 = vmatpush1.bf16.xpose.msra.mxu0 0
        %2556 = vmatprep.subr.bf16.mxu0 0
        %2557 = vmatpush1.bf16.xpose.msra.mxu0 0
        %2558 = vmatprep.subr.bf16.mxu0 0
        %2559 = vmatpush1.bf16.xpose.msra.mxu0 0
        %2560 = vmatprep.subr.bf16.mxu0 0
        %2561 = vmatpush1.bf16.xpose.msra.mxu0 0
        %2562 = vmatprep.subr.bf16.mxu0 0
        %2563 = vmatpush1.bf16.xpose.msra.mxu0 0
        %2564 = vmatprep.subr.bf16.mxu0 0
        %2565 = vmatpush1.bf16.xpose.msra.mxu0 0
        %2566 = vmatprep.mubr.bf16.mxu0 %v2451
        %2567 = vmatmul.mubr.bf16.gmra.mrb[0].mxu0 %v2444
        %v2568 = vpop.f32.mrb[0].mxu0
        %v2569 = vadd.f32 %v2428, %v2568
        %v2570 = vpop.f32.mrb[0].mxu0
        %v2571 = vpop.f32.mrb[0].mxu0
        %v2572 = vpop.f32.mrb[0].mxu0
        %2573 = vdwg.mxu0
        %2574 = vmatprep.subr.bf16.mxu0 %v2340
        %2575 = vmatpush1.bf16.xpose.msra.mxu0 %v2339
        %2576 = vmatprep.subr.bf16.mxu0 %v2342
        %2577 = vmatpush1.bf16.xpose.msra.mxu0 %v2341
        %2578 = vmatprep.subr.bf16.mxu0 %v2344
        %2579 = vmatpush1.bf16.xpose.msra.mxu0 %v2343
        %2580 = vmatprep.subr.bf16.mxu0 %v2346
        %2581 = vmatpush1.bf16.xpose.msra.mxu0 %v2345
        %2582 = vmatprep.subr.bf16.mxu0 %v2348
        %2583 = vmatpush1.bf16.xpose.msra.mxu0 %v2347
        %2584 = vmatprep.subr.bf16.mxu0 %v2350
        %2585 = vmatpush1.bf16.xpose.msra.mxu0 %v2349
        %2586 = vmatprep.subr.bf16.mxu0 %v2352
        %2587 = vmatpush1.bf16.xpose.msra.mxu0 %v2351
        %2588 = vmatprep.subr.bf16.mxu0 %v2354
        %2589 = vmatpush1.bf16.xpose.msra.mxu0 %v2353
        %2590 = vmatprep.subr.bf16.mxu0 0
        %2591 = vmatpush1.bf16.xpose.msra.mxu0 0
        %2592 = vmatprep.subr.bf16.mxu0 0
        %2593 = vmatpush1.bf16.xpose.msra.mxu0 0
        %2594 = vmatprep.subr.bf16.mxu0 0
        %2595 = vmatpush1.bf16.xpose.msra.mxu0 0
        %2596 = vmatprep.subr.bf16.mxu0 0
        %2597 = vmatpush1.bf16.xpose.msra.mxu0 0
        %2598 = vmatprep.subr.bf16.mxu0 0
        %2599 = vmatpush1.bf16.xpose.msra.mxu0 0
        %2600 = vmatprep.subr.bf16.mxu0 0
        %2601 = vmatpush1.bf16.xpose.msra.mxu0 0
        %2602 = vmatprep.subr.bf16.mxu0 0
        %2603 = vmatpush1.bf16.xpose.msra.mxu0 0
        %2604 = vmatprep.subr.bf16.mxu0 0
        %2605 = vmatpush1.bf16.xpose.msra.mxu0 0
        %2606 = vmatprep.mubr.bf16.mxu0 %v2451
        %2607 = vmatmul.mubr.bf16.gmra.mrb[0].mxu0 %v2444
        %v2608 = vpop.f32.mrb[0].mxu0
        %v2609 = vadd.f32 %v2428, %v2608
        %v2610 = vpop.f32.mrb[0].mxu0
        %v2611 = vpop.f32.mrb[0].mxu0
        %v2612 = vpop.f32.mrb[0].mxu0
        %2613 = vdwg.mxu0
        %2614 = vmatprep.subr.bf16.mxu0 %v2356
        %2615 = vmatpush1.bf16.xpose.msra.mxu0 %v2355
        %2616 = vmatprep.subr.bf16.mxu0 %v2358
        %2617 = vmatpush1.bf16.xpose.msra.mxu0 %v2357
        %2618 = vmatprep.subr.bf16.mxu0 %v2360
        %2619 = vmatpush1.bf16.xpose.msra.mxu0 %v2359
        %2620 = vmatprep.subr.bf16.mxu0 %v2362
        %2621 = vmatpush1.bf16.xpose.msra.mxu0 %v2361
        %2622 = vmatprep.subr.bf16.mxu0 %v2364
        %2623 = vmatpush1.bf16.xpose.msra.mxu0 %v2363
        %2624 = vmatprep.subr.bf16.mxu0 %v2366
        %2625 = vmatpush1.bf16.xpose.msra.mxu0 %v2365
        %2626 = vmatprep.subr.bf16.mxu0 %v2368
        %2627 = vmatpush1.bf16.xpose.msra.mxu0 %v2367
        %2628 = vmatprep.subr.bf16.mxu0 %v2370
        %2629 = vmatpush1.bf16.xpose.msra.mxu0 %v2369
        %2630 = vmatprep.subr.bf16.mxu0 0
        %2631 = vmatpush1.bf16.xpose.msra.mxu0 0
        %2632 = vmatprep.subr.bf16.mxu0 0
        %2633 = vmatpush1.bf16.xpose.msra.mxu0 0
        %2634 = vmatprep.subr.bf16.mxu0 0
        %2635 = vmatpush1.bf16.xpose.msra.mxu0 0
        %2636 = vmatprep.subr.bf16.mxu0 0
        %2637 = vmatpush1.bf16.xpose.msra.mxu0 0
        %2638 = vmatprep.subr.bf16.mxu0 0
        %2639 = vmatpush1.bf16.xpose.msra.mxu0 0
        %2640 = vmatprep.subr.bf16.mxu0 0
        %2641 = vmatpush1.bf16.xpose.msra.mxu0 0
        %2642 = vmatprep.subr.bf16.mxu0 0
        %2643 = vmatpush1.bf16.xpose.msra.mxu0 0
        %2644 = vmatprep.subr.bf16.mxu0 0
        %2645 = vmatpush1.bf16.xpose.msra.mxu0 0
        %2646 = vmatprep.mubr.bf16.mxu0 %v2451
        %2647 = vmatmul.mubr.bf16.gmra.mrb[0].mxu0 %v2444
        %v2648 = vpop.f32.mrb[0].mxu0
        %v2649 = vadd.f32 %v2428, %v2648
        %v2650 = vpop.f32.mrb[0].mxu0
        %v2651 = vpop.f32.mrb[0].mxu0
        %v2652 = vpop.f32.mrb[0].mxu0
        %2653 = vdwg.mxu0
        %2654 = vmatprep.subr.bf16.mxu0 %v2372
        %2655 = vmatpush1.bf16.xpose.msra.mxu0 %v2371
        %2656 = vmatprep.subr.bf16.mxu0 %v2374
        %2657 = vmatpush1.bf16.xpose.msra.mxu0 %v2373
        %2658 = vmatprep.subr.bf16.mxu0 %v2376
        %2659 = vmatpush1.bf16.xpose.msra.mxu0 %v2375
        %2660 = vmatprep.subr.bf16.mxu0 %v2378
        %2661 = vmatpush1.bf16.xpose.msra.mxu0 %v2377
        %2662 = vmatprep.subr.bf16.mxu0 %v2380
        %2663 = vmatpush1.bf16.xpose.msra.mxu0 %v2379
        %2664 = vmatprep.subr.bf16.mxu0 %v2382
        %2665 = vmatpush1.bf16.xpose.msra.mxu0 %v2381
        %2666 = vmatprep.subr.bf16.mxu0 %v2384
        %2667 = vmatpush1.bf16.xpose.msra.mxu0 %v2383
        %2668 = vmatprep.subr.bf16.mxu0 %v2386
        %2669 = vmatpush1.bf16.xpose.msra.mxu0 %v2385
        %2670 = vmatprep.subr.bf16.mxu0 0
        %2671 = vmatpush1.bf16.xpose.msra.mxu0 0
        %2672 = vmatprep.subr.bf16.mxu0 0
        %2673 = vmatpush1.bf16.xpose.msra.mxu0 0
        %2674 = vmatprep.subr.bf16.mxu0 0
        %2675 = vmatpush1.bf16.xpose.msra.mxu0 0
        %2676 = vmatprep.subr.bf16.mxu0 0
        %2677 = vmatpush1.bf16.xpose.msra.mxu0 0
        %2678 = vmatprep.subr.bf16.mxu0 0
        %2679 = vmatpush1.bf16.xpose.msra.mxu0 0
        %2680 = vmatprep.subr.bf16.mxu0 0
        %2681 = vmatpush1.bf16.xpose.msra.mxu0 0
        %2682 = vmatprep.subr.bf16.mxu0 0
        %2683 = vmatpush1.bf16.xpose.msra.mxu0 0
        %2684 = vmatprep.subr.bf16.mxu0 0
        %2685 = vmatpush1.bf16.xpose.msra.mxu0 0
        %2686 = vmatprep.mubr.bf16.mxu0 %v2451
        %2687 = vmatmul.mubr.bf16.gmra.mrb[0].mxu0 %v2444
        %v2688 = vpop.f32.mrb[0].mxu0
        %v2689 = vadd.f32 %v2428, %v2688
        %v2690 = vpop.f32.mrb[0].mxu0
        %v2691 = vpop.f32.mrb[0].mxu0
        %v2692 = vpop.f32.mrb[0].mxu0
        %2693 = vdwg.mxu0
        %2694 = vmatprep.subr.bf16.mxu0 %v2388
        %2695 = vmatpush1.bf16.xpose.msra.mxu0 %v2387
        %2696 = vmatprep.subr.bf16.mxu0 %v2390
        %2697 = vmatpush1.bf16.xpose.msra.mxu0 %v2389
        %2698 = vmatprep.subr.bf16.mxu0 %v2392
        %2699 = vmatpush1.bf16.xpose.msra.mxu0 %v2391
        %2700 = vmatprep.subr.bf16.mxu0 %v2394
        %2701 = vmatpush1.bf16.xpose.msra.mxu0 %v2393
        %2702 = vmatprep.subr.bf16.mxu0 %v2396
        %2703 = vmatpush1.bf16.xpose.msra.mxu0 %v2395
        %2704 = vmatprep.subr.bf16.mxu0 %v2398
        %2705 = vmatpush1.bf16.xpose.msra.mxu0 %v2397
        %2706 = vmatprep.subr.bf16.mxu0 %v2400
        %2707 = vmatpush1.bf16.xpose.msra.mxu0 %v2399
        %2708 = vmatprep.subr.bf16.mxu0 %v2402
        %2709 = vmatpush1.bf16.xpose.msra.mxu0 %v2401
        %2710 = vmatprep.subr.bf16.mxu0 0
        %2711 = vmatpush1.bf16.xpose.msra.mxu0 0
        %2712 = vmatprep.subr.bf16.mxu0 0
        %2713 = vmatpush1.bf16.xpose.msra.mxu0 0
        %2714 = vmatprep.subr.bf16.mxu0 0
        %2715 = vmatpush1.bf16.xpose.msra.mxu0 0
        %2716 = vmatprep.subr.bf16.mxu0 0
        %2717 = vmatpush1.bf16.xpose.msra.mxu0 0
        %2718 = vmatprep.subr.bf16.mxu0 0
        %2719 = vmatpush1.bf16.xpose.msra.mxu0 0
        %2720 = vmatprep.subr.bf16.mxu0 0
        %2721 = vmatpush1.bf16.xpose.msra.mxu0 0
        %2722 = vmatprep.subr.bf16.mxu0 0
        %2723 = vmatpush1.bf16.xpose.msra.mxu0 0
        %2724 = vmatprep.subr.bf16.mxu0 0
        %2725 = vmatpush1.bf16.xpose.msra.mxu0 0
        %2726 = vmatprep.mubr.bf16.mxu0 %v2451
        %2727 = vmatmul.mubr.bf16.gmra.mrb[0].mxu0 %v2444
        %v2728 = vpop.f32.mrb[0].mxu0
        %v2729 = vadd.f32 %v2428, %v2728
        %v2730 = vpop.f32.mrb[0].mxu0
        %v2731 = vpop.f32.mrb[0].mxu0
        %v2732 = vpop.f32.mrb[0].mxu0
        %2733 = vdwg.mxu0
        %2734 = vmatprep.subr.bf16.mxu0 %v2404
        %2735 = vmatpush1.bf16.xpose.msra.mxu0 %v2403
        %2736 = vmatprep.subr.bf16.mxu0 %v2406
        %2737 = vmatpush1.bf16.xpose.msra.mxu0 %v2405
        %2738 = vmatprep.subr.bf16.mxu0 %v2408
        %2739 = vmatpush1.bf16.xpose.msra.mxu0 %v2407
        %2740 = vmatprep.subr.bf16.mxu0 %v2410
        %2741 = vmatpush1.bf16.xpose.msra.mxu0 %v2409
        %2742 = vmatprep.subr.bf16.mxu0 %v2412
        %2743 = vmatpush1.bf16.xpose.msra.mxu0 %v2411
        %2744 = vmatprep.subr.bf16.mxu0 %v2414
        %2745 = vmatpush1.bf16.xpose.msra.mxu0 %v2413
        %2746 = vmatprep.subr.bf16.mxu0 %v2416
        %2747 = vmatpush1.bf16.xpose.msra.mxu0 %v2415
        %2748 = vmatprep.subr.bf16.mxu0 %v2418
        %2749 = vmatpush1.bf16.xpose.msra.mxu0 %v2417
        %2750 = vmatprep.subr.bf16.mxu0 0
        %2751 = vmatpush1.bf16.xpose.msra.mxu0 0
        %2752 = vmatprep.subr.bf16.mxu0 0
        %2753 = vmatpush1.bf16.xpose.msra.mxu0 0
        %2754 = vmatprep.subr.bf16.mxu0 0
        %2755 = vmatpush1.bf16.xpose.msra.mxu0 0
        %2756 = vmatprep.subr.bf16.mxu0 0
        %2757 = vmatpush1.bf16.xpose.msra.mxu0 0
        %2758 = vmatprep.subr.bf16.mxu0 0
        %2759 = vmatpush1.bf16.xpose.msra.mxu0 0
        %2760 = vmatprep.subr.bf16.mxu0 0
        %2761 = vmatpush1.bf16.xpose.msra.mxu0 0
        %2762 = vmatprep.subr.bf16.mxu0 0
        %2763 = vmatpush1.bf16.xpose.msra.mxu0 0
        %2764 = vmatprep.subr.bf16.mxu0 0
        %2765 = vmatpush1.bf16.xpose.msra.mxu0 0
        %2766 = vmatprep.mubr.bf16.mxu0 %v2451
        %2767 = vmatmul.mubr.bf16.gmra.mrb[0].mxu0 %v2444
        %v2768 = vpop.f32.mrb[0].mxu0
        %v2769 = vadd.f32 %v2428, %v2768
        %v2770 = vpop.f32.mrb[0].mxu0
        %v2771 = vpop.f32.mrb[0].mxu0
        %v2772 = vpop.f32.mrb[0].mxu0
        %2773 = vdwg.mxu0
        %v2774 = vld [vmem:[%s338] sm:$0x1]
        %v2775 = vld [vmem:[%s338 + $0x1] sm:$0x1]
        %v2776 = vld [vmem:[%s338 + $0x2] sm:$0x1]
        %v2777 = vld [vmem:[%s338 + $0x3] sm:$0x1]
        %v2778 = vld [vmem:[%s338 + $0x4] sm:$0x1]
        %v2779 = vld [vmem:[%s338 + $0x5] sm:$0x1]
        %v2780 = vld [vmem:[%s338 + $0x6] sm:$0x1]
        %v2781 = vld [vmem:[%s338 + $0x7] sm:$0x1]
        %v2782 = vadd.f32 %v2489, %v2774
        %v2783 = vadd.f32 %v2529, %v2775
        %v2784 = vadd.f32 %v2569, %v2776
        %v2785 = vadd.f32 %v2609, %v2777
        %v2786 = vadd.f32 %v2649, %v2778
        %v2787 = vadd.f32 %v2689, %v2779
        %v2788 = vadd.f32 %v2729, %v2780
        %v2789 = vadd.f32 %v2769, %v2781
        %2790 = vst [vmem:[#allocation2] sm:$0x1] %v2782
        %2791 = vst [vmem:[#allocation2 + $0x1] sm:$0x1] %v2783
        %2792 = vst [vmem:[#allocation2 + $0x2] sm:$0x1] %v2784
        %2793 = vst [vmem:[#allocation2 + $0x3] sm:$0x1] %v2785
        %2794 = vst [vmem:[#allocation2 + $0x4] sm:$0x1] %v2786
        %2795 = vst [vmem:[#allocation2 + $0x5] sm:$0x1] %v2787
        %2796 = vst [vmem:[#allocation2 + $0x6] sm:$0x1] %v2788
        %2797 = vst [vmem:[#allocation2 + $0x7] sm:$0x1] %v2789
        %v2798 = vld [vmem:[#allocation2] sm:$0x1]
        %v2799 = vld [vmem:[#allocation2 + $0x1] sm:$0x1]
        %v2800 = vld [vmem:[#allocation2 + $0x2] sm:$0x1]
        %v2801 = vld [vmem:[#allocation2 + $0x3] sm:$0x1]
        %v2802 = vld [vmem:[#allocation2 + $0x4] sm:$0x1]
        %v2803 = vld [vmem:[#allocation2 + $0x5] sm:$0x1]
        %v2804 = vld [vmem:[#allocation2 + $0x6] sm:$0x1]
        %v2805 = vld [vmem:[#allocation2 + $0x7] sm:$0x1]
        %vm2806 = vcmask 1040384
        %v2807 = vsel %vm2806, %v2798, -inf
        %2808 = vmax.xlane.f32.xlu0 %v2807
        %v2809 = vpop.xlane.xlu0 %2808
        %v2810 = vsel %vm2806, %v2799, -inf
        %2811 = vmax.xlane.f32.xlu0 %v2810
        %v2812 = vpop.xlane.xlu0 %2811
        %v2813 = vsel %vm2806, %v2800, -inf
        %2814 = vmax.xlane.f32.xlu0 %v2813
        %v2815 = vpop.xlane.xlu0 %2814
        %v2816 = vsel %vm2806, %v2801, -inf
        %2817 = vmax.xlane.f32.xlu0 %v2816
        %v2818 = vpop.xlane.xlu0 %2817
        %v2819 = vsel %vm2806, %v2802, -inf
        %2820 = vmax.xlane.f32.xlu0 %v2819
        %v2821 = vpop.xlane.xlu0 %2820
        %v2822 = vsel %vm2806, %v2803, -inf
        %2823 = vmax.xlane.f32.xlu0 %v2822
        %v2824 = vpop.xlane.xlu0 %2823
        %v2825 = vsel %vm2806, %v2804, -inf
        %2826 = vmax.xlane.f32.xlu0 %v2825
        %v2827 = vpop.xlane.xlu0 %2826
        %v2828 = vsel %vm2806, %v2805, -inf
        %2829 = vmax.xlane.f32.xlu0 %v2828
        %v2830 = vpop.xlane.xlu0 %2829
        %v2831 = vsub.f32 %v2798, %v2809
        %v2832 = vsub.f32 %v2799, %v2812
        %v2833 = vsub.f32 %v2800, %v2815
        %v2834 = vsub.f32 %v2801, %v2818
        %v2835 = vsub.f32 %v2802, %v2821
        %v2836 = vsub.f32 %v2803, %v2824
        %v2837 = vsub.f32 %v2804, %v2827
        %v2838 = vsub.f32 %v2805, %v2830
        %v2839 = vmul.f32 %v2831, 1.442695
        %v2840 = vpow.pop %v2839
        %v2841 = vmul.f32 %v2832, 1.442695
        %v2842 = vpow.pop %v2841
        %v2843 = vmul.f32 %v2833, 1.442695
        %v2844 = vpow.pop %v2843
        %v2845 = vmul.f32 %v2834, 1.442695
        %v2846 = vpow.pop %v2845
        %v2847 = vmul.f32 %v2835, 1.442695
        %v2848 = vpow.pop %v2847
        %v2849 = vmul.f32 %v2836, 1.442695
        %v2850 = vpow.pop %v2849
        %v2851 = vmul.f32 %v2837, 1.442695
        %v2852 = vpow.pop %v2851
        %v2853 = vmul.f32 %v2838, 1.442695
        %v2854 = vpow.pop %v2853
        %v2855 = vsel %vm2806, %v2840, 0.0
        %2856 = vadd.xlane.f32.xlu0 %v2855
        %v2857 = vpop.xlane.xlu0 %2856
        %v2858 = vsel %vm2806, %v2842, 0.0
        %2859 = vadd.xlane.f32.xlu0 %v2858
        %v2860 = vpop.xlane.xlu0 %2859
        %v2861 = vsel %vm2806, %v2844, 0.0
        %2862 = vadd.xlane.f32.xlu0 %v2861
        %v2863 = vpop.xlane.xlu0 %2862
        %v2864 = vsel %vm2806, %v2846, 0.0
        %2865 = vadd.xlane.f32.xlu0 %v2864
        %v2866 = vpop.xlane.xlu0 %2865
        %v2867 = vsel %vm2806, %v2848, 0.0
        %2868 = vadd.xlane.f32.xlu0 %v2867
        %v2869 = vpop.xlane.xlu0 %2868
        %v2870 = vsel %vm2806, %v2850, 0.0
        %2871 = vadd.xlane.f32.xlu0 %v2870
        %v2872 = vpop.xlane.xlu0 %2871
        %v2873 = vsel %vm2806, %v2852, 0.0
        %2874 = vadd.xlane.f32.xlu0 %v2873
        %v2875 = vpop.xlane.xlu0 %2874
        %v2876 = vsel %vm2806, %v2854, 0.0
        %2877 = vadd.xlane.f32.xlu0 %v2876
        %v2878 = vpop.xlane.xlu0 %2877
        %v2879 = vrcp.pop %v2857
        %v2880 = vmul.f32 %v2840, %v2879
        %v2881 = vrcp.pop %v2860
        %v2882 = vmul.f32 %v2842, %v2881
        %v2883 = vrcp.pop %v2863
        %v2884 = vmul.f32 %v2844, %v2883
        %v2885 = vrcp.pop %v2866
        %v2886 = vmul.f32 %v2846, %v2885
        %v2887 = vrcp.pop %v2869
        %v2888 = vmul.f32 %v2848, %v2887
        %v2889 = vrcp.pop %v2872
        %v2890 = vmul.f32 %v2850, %v2889
        %v2891 = vrcp.pop %v2875
        %v2892 = vmul.f32 %v2852, %v2891
        %v2893 = vrcp.pop %v2878
        %v2894 = vmul.f32 %v2854, %v2893
        %v2895 = vld [vmem:[%s329] sm:$0xff]
        %v2896 = vld [vmem:[%s329 + $0x8] sm:$0xff]
        %v2897 = vld [vmem:[%s329 + $0x10] sm:$0xff]
        %v2898 = vld [vmem:[%s329 + $0x18] sm:$0xff]
        %v2899 = vld [vmem:[%s329 + $0x20] sm:$0xff]
        %v2900 = vld [vmem:[%s329 + $0x28] sm:$0xff]
        %v2901 = vld [vmem:[%s329 + $0x30] sm:$0xff]
        %v2902 = vld [vmem:[%s329 + $0x38] sm:$0xff]
        %v2903 = vld [vmem:[%s329 + $0x40] sm:$0xff]
        %v2904 = vld [vmem:[%s329 + $0x48] sm:$0xff]
        %v2905 = vld [vmem:[%s329 + $0x50] sm:$0xff]
        %v2906 = vld [vmem:[%s329 + $0x58] sm:$0xff]
        %v2907 = vld [vmem:[%s329 + $0x60] sm:$0xff]
        %v2908 = vld [vmem:[%s329 + $0x68] sm:$0xff]
        %v2909 = vld [vmem:[%s329 + $0x70] sm:$0xff]
        %v2910 = vld [vmem:[%s329 + $0x78] sm:$0xff]
        %v2911 = vld [vmem:[%s329 + $0x80] sm:$0xff]
        %v2912 = vld [vmem:[%s329 + $0x88] sm:$0xff]
        %v2913 = vld [vmem:[%s329 + $0x90] sm:$0xff]
        %v2914 = vld [vmem:[%s329 + $0x98] sm:$0xff]
        %v2915 = vld [vmem:[%s329 + $0xa0] sm:$0xff]
        %v2916 = vld [vmem:[%s329 + $0xa8] sm:$0xff]
        %v2917 = vld [vmem:[%s329 + $0xb0] sm:$0xff]
        %v2918 = vld [vmem:[%s329 + $0xb8] sm:$0xff]
        %v2919 = vld [vmem:[%s329 + $0xc0] sm:$0xff]
        %v2920 = vld [vmem:[%s329 + $0xc8] sm:$0xff]
        %v2921 = vld [vmem:[%s329 + $0xd0] sm:$0xff]
        %v2922 = vld [vmem:[%s329 + $0xd8] sm:$0xff]
        %v2923 = vld [vmem:[%s329 + $0xe0] sm:$0xff]
        %v2924 = vld [vmem:[%s329 + $0xe8] sm:$0xff]
        %v2925 = vld [vmem:[%s329 + $0xf0] sm:$0xff]
        %v2926 = vld [vmem:[%s329 + $0xf8] sm:$0xff]
        %v2927 = vld [vmem:[%s329 + $0x100] sm:$0xff]
        %v2928 = vld [vmem:[%s329 + $0x108] sm:$0xff]
        %v2929 = vld [vmem:[%s329 + $0x110] sm:$0xff]
        %v2930 = vld [vmem:[%s329 + $0x118] sm:$0xff]
        %v2931 = vld [vmem:[%s329 + $0x120] sm:$0xff]
        %v2932 = vld [vmem:[%s329 + $0x128] sm:$0xff]
        %v2933 = vld [vmem:[%s329 + $0x130] sm:$0xff]
        %v2934 = vld [vmem:[%s329 + $0x138] sm:$0xff]
        %v2935 = vld [vmem:[%s329 + $0x140] sm:$0xff]
        %v2936 = vld [vmem:[%s329 + $0x148] sm:$0xff]
        %v2937 = vld [vmem:[%s329 + $0x150] sm:$0xff]
        %v2938 = vld [vmem:[%s329 + $0x158] sm:$0xff]
        %v2939 = vld [vmem:[%s329 + $0x160] sm:$0xff]
        %v2940 = vld [vmem:[%s329 + $0x168] sm:$0xff]
        %v2941 = vld [vmem:[%s329 + $0x170] sm:$0xff]
        %v2942 = vld [vmem:[%s329 + $0x178] sm:$0xff]
        %v2943 = vld [vmem:[%s329 + $0x180] sm:$0xff]
        %v2944 = vld [vmem:[%s329 + $0x188] sm:$0xff]
        %v2945 = vld [vmem:[%s329 + $0x190] sm:$0xff]
        %v2946 = vld [vmem:[%s329 + $0x198] sm:$0xff]
        %v2947 = vld [vmem:[%s329 + $0x1a0] sm:$0xff]
        %v2948 = vld [vmem:[%s329 + $0x1a8] sm:$0xff]
        %v2949 = vld [vmem:[%s329 + $0x1b0] sm:$0xff]
        %v2950 = vld [vmem:[%s329 + $0x1b8] sm:$0xff]
        %v2951 = vld [vmem:[%s329 + $0x1c0] sm:$0xff]
        %v2952 = vld [vmem:[%s329 + $0x1c8] sm:$0xff]
        %v2953 = vld [vmem:[%s329 + $0x1d0] sm:$0xff]
        %v2954 = vld [vmem:[%s329 + $0x1d8] sm:$0xff]
        %v2955 = vld [vmem:[%s329 + $0x1e0] sm:$0xff]
        %v2956 = vld [vmem:[%s329 + $0x1e8] sm:$0xff]
        %v2957 = vld [vmem:[%s329 + $0x1f0] sm:$0xff]
        %v2958 = vld [vmem:[%s329 + $0x1f8] sm:$0xff]
        %v2959 = vld [vmem:[%s329 + $0x200] sm:$0xff]
        %v2960 = vld [vmem:[%s329 + $0x208] sm:$0xff]
        %v2961 = vld [vmem:[%s329 + $0x210] sm:$0xff]
        %v2962 = vld [vmem:[%s329 + $0x218] sm:$0xff]
        %v2963 = vld [vmem:[%s329 + $0x220] sm:$0xff]
        %v2964 = vld [vmem:[%s329 + $0x228] sm:$0xff]
        %v2965 = vld [vmem:[%s329 + $0x230] sm:$0xff]
        %v2966 = vld [vmem:[%s329 + $0x238] sm:$0xff]
        %v2967 = vld [vmem:[%s329 + $0x240] sm:$0xff]
        %v2968 = vld [vmem:[%s329 + $0x248] sm:$0xff]
        %v2969 = vld [vmem:[%s329 + $0x250] sm:$0xff]
        %v2970 = vld [vmem:[%s329 + $0x258] sm:$0xff]
        %v2971 = vld [vmem:[%s329 + $0x260] sm:$0xff]
        %v2972 = vld [vmem:[%s329 + $0x268] sm:$0xff]
        %v2973 = vld [vmem:[%s329 + $0x270] sm:$0xff]
        %v2974 = vld [vmem:[%s329 + $0x278] sm:$0xff]
        %v2975 = vld [vmem:[%s329 + $0x280] sm:$0xff]
        %v2976 = vld [vmem:[%s329 + $0x288] sm:$0xff]
        %v2977 = vld [vmem:[%s329 + $0x290] sm:$0xff]
        %v2978 = vld [vmem:[%s329 + $0x298] sm:$0xff]
        %v2979 = vld [vmem:[%s329 + $0x2a0] sm:$0xff]
        %v2980 = vld [vmem:[%s329 + $0x2a8] sm:$0xff]
        %v2981 = vld [vmem:[%s329 + $0x2b0] sm:$0xff]
        %v2982 = vld [vmem:[%s329 + $0x2b8] sm:$0xff]
        %v2983 = vld [vmem:[%s329 + $0x2c0] sm:$0xff]
        %v2984 = vld [vmem:[%s329 + $0x2c8] sm:$0xff]
        %v2985 = vld [vmem:[%s329 + $0x2d0] sm:$0xff]
        %v2986 = vld [vmem:[%s329 + $0x2d8] sm:$0xff]
        %v2987 = vld [vmem:[%s329 + $0x2e0] sm:$0xff]
        %v2988 = vld [vmem:[%s329 + $0x2e8] sm:$0xff]
        %v2989 = vld [vmem:[%s329 + $0x2f0] sm:$0xff]
        %v2990 = vld [vmem:[%s329 + $0x2f8] sm:$0xff]
        %v2991 = vld [vmem:[%s329 + $0x300] sm:$0xff]
        %v2992 = vld [vmem:[%s329 + $0x308] sm:$0xff]
        %v2993 = vld [vmem:[%s329 + $0x310] sm:$0xff]
        %v2994 = vld [vmem:[%s329 + $0x318] sm:$0xff]
        %v2995 = vld [vmem:[%s329 + $0x320] sm:$0xff]
        %v2996 = vld [vmem:[%s329 + $0x328] sm:$0xff]
        %v2997 = vld [vmem:[%s329 + $0x330] sm:$0xff]
        %v2998 = vld [vmem:[%s329 + $0x338] sm:$0xff]
        %v2999 = vld [vmem:[%s329 + $0x340] sm:$0xff]
        %v3000 = vld [vmem:[%s329 + $0x348] sm:$0xff]
        %v3001 = vld [vmem:[%s329 + $0x350] sm:$0xff]
        %v3002 = vld [vmem:[%s329 + $0x358] sm:$0xff]
        %v3003 = vld [vmem:[%s329 + $0x360] sm:$0xff]
        %v3004 = vld [vmem:[%s329 + $0x368] sm:$0xff]
        %v3005 = vld [vmem:[%s329 + $0x370] sm:$0xff]
        %v3006 = vld [vmem:[%s329 + $0x378] sm:$0xff]
        %v3007 = vld [vmem:[%s329 + $0x380] sm:$0xff]
        %v3008 = vld [vmem:[%s329 + $0x388] sm:$0xff]
        %v3009 = vld [vmem:[%s329 + $0x390] sm:$0xff]
        %v3010 = vld [vmem:[%s329 + $0x398] sm:$0xff]
        %v3011 = vld [vmem:[%s329 + $0x3a0] sm:$0xff]
        %v3012 = vld [vmem:[%s329 + $0x3a8] sm:$0xff]
        %v3013 = vld [vmem:[%s329 + $0x3b0] sm:$0xff]
        %v3014 = vld [vmem:[%s329 + $0x3b8] sm:$0xff]
        %v3015 = vld [vmem:[%s329 + $0x3c0] sm:$0xff]
        %v3016 = vld [vmem:[%s329 + $0x3c8] sm:$0xff]
        %v3017 = vld [vmem:[%s329 + $0x3d0] sm:$0xff]
        %v3018 = vld [vmem:[%s329 + $0x3d8] sm:$0xff]
        %v3019 = vld [vmem:[%s329 + $0x3e0] sm:$0xff]
        %v3020 = vld [vmem:[%s329 + $0x3e8] sm:$0xff]
        %v3021 = vld [vmem:[%s329 + $0x3f0] sm:$0xff]
        %v3022 = vld [vmem:[%s329 + $0x3f8] sm:$0xff]
        %v3023 = vpack.c.bf16 %v2880, %v2880
        %v3024 = vpack.c.bf16 %v2882, %v2882
        %v3025 = vpack.c.bf16 %v2884, %v2884
        %v3026 = vpack.c.bf16 %v2886, %v2886
        %v3027 = vpack.c.bf16 %v2888, %v2888
        %v3028 = vpack.c.bf16 %v2890, %v2890
        %v3029 = vpack.c.bf16 %v2892, %v2892
        %v3030 = vpack.c.bf16 %v2894, %v2894
        %v3047 = vunpack.c.l.b16 %v2895
        %v3048 = vunpack.c.h.b16 %v2895
        %v3049 = vunpack.c.l.b16 %v2896
        %v3050 = vunpack.c.h.b16 %v2896
        %v3051 = vunpack.c.l.b16 %v2897
        %v3052 = vunpack.c.h.b16 %v2897
        %v3053 = vunpack.c.l.b16 %v2898
        %v3054 = vunpack.c.h.b16 %v2898
        %v3055 = vunpack.c.l.b16 %v2899
        %v3056 = vunpack.c.h.b16 %v2899
        %v3057 = vunpack.c.l.b16 %v2900
        %v3058 = vunpack.c.h.b16 %v2900
        %v3059 = vunpack.c.l.b16 %v2901
        %v3060 = vunpack.c.h.b16 %v2901
        %v3061 = vunpack.c.l.b16 %v2902
        %v3062 = vunpack.c.h.b16 %v2902
        %v3063 = vunpack.c.l.b16 %v2903
        %v3064 = vunpack.c.h.b16 %v2903
        %v3065 = vunpack.c.l.b16 %v2904
        %v3066 = vunpack.c.h.b16 %v2904
        %v3067 = vunpack.c.l.b16 %v2905
        %v3068 = vunpack.c.h.b16 %v2905
        %v3069 = vunpack.c.l.b16 %v2906
        %v3070 = vunpack.c.h.b16 %v2906
        %v3071 = vunpack.c.l.b16 %v2907
        %v3072 = vunpack.c.h.b16 %v2907
        %v3073 = vunpack.c.l.b16 %v2908
        %v3074 = vunpack.c.h.b16 %v2908
        %v3075 = vunpack.c.l.b16 %v2909
        %v3076 = vunpack.c.h.b16 %v2909
        %v3077 = vunpack.c.l.b16 %v2910
        %v3078 = vunpack.c.h.b16 %v2910
        %v3079 = vpack.c.b16 %v3049, %v3047
        %v3080 = vpack.c.b16 %v3050, %v3048
        %v3081 = vpack.c.b16 %v3053, %v3051
        %v3082 = vpack.c.b16 %v3054, %v3052
        %v3083 = vpack.c.b16 %v3057, %v3055
        %v3084 = vpack.c.b16 %v3058, %v3056
        %v3085 = vpack.c.b16 %v3061, %v3059
        %v3086 = vpack.c.b16 %v3062, %v3060
        %v3087 = vpack.c.b16 %v3065, %v3063
        %v3088 = vpack.c.b16 %v3066, %v3064
        %v3089 = vpack.c.b16 %v3069, %v3067
        %v3090 = vpack.c.b16 %v3070, %v3068
        %v3091 = vpack.c.b16 %v3073, %v3071
        %v3092 = vpack.c.b16 %v3074, %v3072
        %v3093 = vpack.c.b16 %v3077, %v3075
        %v3094 = vpack.c.b16 %v3078, %v3076
        %3111 = vmatprep.subr.bf16.mxu0 %v3080
        %3112 = vmatpush1.bf16.msra.mxu0 %v3079
        %3113 = vmatprep.subr.bf16.mxu0 %v3082
        %3114 = vmatpush1.bf16.msra.mxu0 %v3081
        %3115 = vmatprep.subr.bf16.mxu0 %v3084
        %3116 = vmatpush1.bf16.msra.mxu0 %v3083
        %3117 = vmatprep.subr.bf16.mxu0 %v3086
        %3118 = vmatpush1.bf16.msra.mxu0 %v3085
        %3119 = vmatprep.subr.bf16.mxu0 %v3088
        %3120 = vmatpush1.bf16.msra.mxu0 %v3087
        %3121 = vmatprep.subr.bf16.mxu0 %v3090
        %3122 = vmatpush1.bf16.msra.mxu0 %v3089
        %3123 = vmatprep.subr.bf16.mxu0 %v3092
        %3124 = vmatpush1.bf16.msra.mxu0 %v3091
        %3125 = vmatprep.subr.bf16.mxu0 %v3094
        %3126 = vmatpush1.bf16.msra.mxu0 %v3093
        %3127 = vmatprep.subr.bf16.mxu0 0
        %3128 = vmatpush1.bf16.msra.mxu0 0
        %3129 = vmatprep.subr.bf16.mxu0 0
        %3130 = vmatpush1.bf16.msra.mxu0 0
        %3131 = vmatprep.subr.bf16.mxu0 0
        %3132 = vmatpush1.bf16.msra.mxu0 0
        %3133 = vmatprep.subr.bf16.mxu0 0
        %3134 = vmatpush1.bf16.msra.mxu0 0
        %3135 = vmatprep.subr.bf16.mxu0 0
        %3136 = vmatpush1.bf16.msra.mxu0 0
        %3137 = vmatprep.subr.bf16.mxu0 0
        %3138 = vmatpush1.bf16.msra.mxu0 0
        %3139 = vmatprep.subr.bf16.mxu0 0
        %3140 = vmatpush1.bf16.msra.mxu0 0
        %3141 = vmatprep.subr.bf16.mxu0 0
        %3142 = vmatpush1.bf16.msra.mxu0 0
        %3143 = vmatprep.mubr.bf16.mxu0 0
        %3144 = vmatmul.mubr.bf16.gmra.mrb[0].mxu0 %v3023
        %v3145 = vpop.f32.mrb[0].mxu0
        %v3146 = vadd.f32 0.0, %v3145
        %v3147 = vpop.f32.mrb[0].mxu0
        %v3148 = vadd.f32 0.0, %v3147
        %v3149 = vpop.f32.mrb[0].mxu0
        %v3150 = vpop.f32.mrb[0].mxu0
        %3151 = vdwg.mxu0
        %v3168 = vunpack.c.l.b16 %v2911
        %v3169 = vunpack.c.h.b16 %v2911
        %v3170 = vunpack.c.l.b16 %v2912
        %v3171 = vunpack.c.h.b16 %v2912
        %v3172 = vunpack.c.l.b16 %v2913
        %v3173 = vunpack.c.h.b16 %v2913
        %v3174 = vunpack.c.l.b16 %v2914
        %v3175 = vunpack.c.h.b16 %v2914
        %v3176 = vunpack.c.l.b16 %v2915
        %v3177 = vunpack.c.h.b16 %v2915
        %v3178 = vunpack.c.l.b16 %v2916
        %v3179 = vunpack.c.h.b16 %v2916
        %v3180 = vunpack.c.l.b16 %v2917
        %v3181 = vunpack.c.h.b16 %v2917
        %v3182 = vunpack.c.l.b16 %v2918
        %v3183 = vunpack.c.h.b16 %v2918
        %v3184 = vunpack.c.l.b16 %v2919
        %v3185 = vunpack.c.h.b16 %v2919
        %v3186 = vunpack.c.l.b16 %v2920
        %v3187 = vunpack.c.h.b16 %v2920
        %v3188 = vunpack.c.l.b16 %v2921
        %v3189 = vunpack.c.h.b16 %v2921
        %v3190 = vunpack.c.l.b16 %v2922
        %v3191 = vunpack.c.h.b16 %v2922
        %v3192 = vunpack.c.l.b16 %v2923
        %v3193 = vunpack.c.h.b16 %v2923
        %v3194 = vunpack.c.l.b16 %v2924
        %v3195 = vunpack.c.h.b16 %v2924
        %v3196 = vunpack.c.l.b16 %v2925
        %v3197 = vunpack.c.h.b16 %v2925
        %v3198 = vunpack.c.l.b16 %v2926
        %v3199 = vunpack.c.h.b16 %v2926
        %v3200 = vpack.c.b16 %v3170, %v3168
        %v3201 = vpack.c.b16 %v3171, %v3169
        %v3202 = vpack.c.b16 %v3174, %v3172
        %v3203 = vpack.c.b16 %v3175, %v3173
        %v3204 = vpack.c.b16 %v3178, %v3176
        %v3205 = vpack.c.b16 %v3179, %v3177
        %v3206 = vpack.c.b16 %v3182, %v3180
        %v3207 = vpack.c.b16 %v3183, %v3181
        %v3208 = vpack.c.b16 %v3186, %v3184
        %v3209 = vpack.c.b16 %v3187, %v3185
        %v3210 = vpack.c.b16 %v3190, %v3188
        %v3211 = vpack.c.b16 %v3191, %v3189
        %v3212 = vpack.c.b16 %v3194, %v3192
        %v3213 = vpack.c.b16 %v3195, %v3193
        %v3214 = vpack.c.b16 %v3198, %v3196
        %v3215 = vpack.c.b16 %v3199, %v3197
        %3232 = vmatprep.subr.bf16.mxu0 %v3201
        %3233 = vmatpush1.bf16.msra.mxu0 %v3200
        %3234 = vmatprep.subr.bf16.mxu0 %v3203
        %3235 = vmatpush1.bf16.msra.mxu0 %v3202
        %3236 = vmatprep.subr.bf16.mxu0 %v3205
        %3237 = vmatpush1.bf16.msra.mxu0 %v3204
        %3238 = vmatprep.subr.bf16.mxu0 %v3207
        %3239 = vmatpush1.bf16.msra.mxu0 %v3206
        %3240 = vmatprep.subr.bf16.mxu0 %v3209
        %3241 = vmatpush1.bf16.msra.mxu0 %v3208
        %3242 = vmatprep.subr.bf16.mxu0 %v3211
        %3243 = vmatpush1.bf16.msra.mxu0 %v3210
        %3244 = vmatprep.subr.bf16.mxu0 %v3213
        %3245 = vmatpush1.bf16.msra.mxu0 %v3212
        %3246 = vmatprep.subr.bf16.mxu0 %v3215
        %3247 = vmatpush1.bf16.msra.mxu0 %v3214
        %3248 = vmatprep.subr.bf16.mxu0 0
        %3249 = vmatpush1.bf16.msra.mxu0 0
        %3250 = vmatprep.subr.bf16.mxu0 0
        %3251 = vmatpush1.bf16.msra.mxu0 0
        %3252 = vmatprep.subr.bf16.mxu0 0
        %3253 = vmatpush1.bf16.msra.mxu0 0
        %3254 = vmatprep.subr.bf16.mxu0 0
        %3255 = vmatpush1.bf16.msra.mxu0 0
        %3256 = vmatprep.subr.bf16.mxu0 0
        %3257 = vmatpush1.bf16.msra.mxu0 0
        %3258 = vmatprep.subr.bf16.mxu0 0
        %3259 = vmatpush1.bf16.msra.mxu0 0
        %3260 = vmatprep.subr.bf16.mxu0 0
        %3261 = vmatpush1.bf16.msra.mxu0 0
        %3262 = vmatprep.subr.bf16.mxu0 0
        %3263 = vmatpush1.bf16.msra.mxu0 0
        %3264 = vmatprep.mubr.bf16.mxu0 0
        %3265 = vmatmul.mubr.bf16.gmra.mrb[0].mxu0 %v3024
        %v3266 = vpop.f32.mrb[0].mxu0
        %v3267 = vadd.f32 0.0, %v3266
        %v3268 = vpop.f32.mrb[0].mxu0
        %v3269 = vadd.f32 0.0, %v3268
        %v3270 = vpop.f32.mrb[0].mxu0
        %v3271 = vpop.f32.mrb[0].mxu0
        %3272 = vdwg.mxu0
        %v3289 = vunpack.c.l.b16 %v2927
        %v3290 = vunpack.c.h.b16 %v2927
        %v3291 = vunpack.c.l.b16 %v2928
        %v3292 = vunpack.c.h.b16 %v2928
        %v3293 = vunpack.c.l.b16 %v2929
        %v3294 = vunpack.c.h.b16 %v2929
        %v3295 = vunpack.c.l.b16 %v2930
        %v3296 = vunpack.c.h.b16 %v2930
        %v3297 = vunpack.c.l.b16 %v2931
        %v3298 = vunpack.c.h.b16 %v2931
        %v3299 = vunpack.c.l.b16 %v2932
        %v3300 = vunpack.c.h.b16 %v2932
        %v3301 = vunpack.c.l.b16 %v2933
        %v3302 = vunpack.c.h.b16 %v2933
        %v3303 = vunpack.c.l.b16 %v2934
        %v3304 = vunpack.c.h.b16 %v2934
        %v3305 = vunpack.c.l.b16 %v2935
        %v3306 = vunpack.c.h.b16 %v2935
        %v3307 = vunpack.c.l.b16 %v2936
        %v3308 = vunpack.c.h.b16 %v2936
        %v3309 = vunpack.c.l.b16 %v2937
        %v3310 = vunpack.c.h.b16 %v2937
        %v3311 = vunpack.c.l.b16 %v2938
        %v3312 = vunpack.c.h.b16 %v2938
        %v3313 = vunpack.c.l.b16 %v2939
        %v3314 = vunpack.c.h.b16 %v2939
        %v3315 = vunpack.c.l.b16 %v2940
        %v3316 = vunpack.c.h.b16 %v2940
        %v3317 = vunpack.c.l.b16 %v2941
        %v3318 = vunpack.c.h.b16 %v2941
        %v3319 = vunpack.c.l.b16 %v2942
        %v3320 = vunpack.c.h.b16 %v2942
        %v3321 = vpack.c.b16 %v3291, %v3289
        %v3322 = vpack.c.b16 %v3292, %v3290
        %v3323 = vpack.c.b16 %v3295, %v3293
        %v3324 = vpack.c.b16 %v3296, %v3294
        %v3325 = vpack.c.b16 %v3299, %v3297
        %v3326 = vpack.c.b16 %v3300, %v3298
        %v3327 = vpack.c.b16 %v3303, %v3301
        %v3328 = vpack.c.b16 %v3304, %v3302
        %v3329 = vpack.c.b16 %v3307, %v3305
        %v3330 = vpack.c.b16 %v3308, %v3306
        %v3331 = vpack.c.b16 %v3311, %v3309
        %v3332 = vpack.c.b16 %v3312, %v3310
        %v3333 = vpack.c.b16 %v3315, %v3313
        %v3334 = vpack.c.b16 %v3316, %v3314
        %v3335 = vpack.c.b16 %v3319, %v3317
        %v3336 = vpack.c.b16 %v3320, %v3318
        %3353 = vmatprep.subr.bf16.mxu0 %v3322
        %3354 = vmatpush1.bf16.msra.mxu0 %v3321
        %3355 = vmatprep.subr.bf16.mxu0 %v3324
        %3356 = vmatpush1.bf16.msra.mxu0 %v3323
        %3357 = vmatprep.subr.bf16.mxu0 %v3326
        %3358 = vmatpush1.bf16.msra.mxu0 %v3325
        %3359 = vmatprep.subr.bf16.mxu0 %v3328
        %3360 = vmatpush1.bf16.msra.mxu0 %v3327
        %3361 = vmatprep.subr.bf16.mxu0 %v3330
        %3362 = vmatpush1.bf16.msra.mxu0 %v3329
        %3363 = vmatprep.subr.bf16.mxu0 %v3332
        %3364 = vmatpush1.bf16.msra.mxu0 %v3331
        %3365 = vmatprep.subr.bf16.mxu0 %v3334
        %3366 = vmatpush1.bf16.msra.mxu0 %v3333
        %3367 = vmatprep.subr.bf16.mxu0 %v3336
        %3368 = vmatpush1.bf16.msra.mxu0 %v3335
        %3369 = vmatprep.subr.bf16.mxu0 0
        %3370 = vmatpush1.bf16.msra.mxu0 0
        %3371 = vmatprep.subr.bf16.mxu0 0
        %3372 = vmatpush1.bf16.msra.mxu0 0
        %3373 = vmatprep.subr.bf16.mxu0 0
        %3374 = vmatpush1.bf16.msra.mxu0 0
        %3375 = vmatprep.subr.bf16.mxu0 0
        %3376 = vmatpush1.bf16.msra.mxu0 0
        %3377 = vmatprep.subr.bf16.mxu0 0
        %3378 = vmatpush1.bf16.msra.mxu0 0
        %3379 = vmatprep.subr.bf16.mxu0 0
        %3380 = vmatpush1.bf16.msra.mxu0 0
        %3381 = vmatprep.subr.bf16.mxu0 0
        %3382 = vmatpush1.bf16.msra.mxu0 0
        %3383 = vmatprep.subr.bf16.mxu0 0
        %3384 = vmatpush1.bf16.msra.mxu0 0
        %3385 = vmatprep.mubr.bf16.mxu0 0
        %3386 = vmatmul.mubr.bf16.gmra.mrb[0].mxu0 %v3025
        %v3387 = vpop.f32.mrb[0].mxu0
        %v3388 = vadd.f32 0.0, %v3387
        %v3389 = vpop.f32.mrb[0].mxu0
        %v3390 = vadd.f32 0.0, %v3389
        %v3391 = vpop.f32.mrb[0].mxu0
        %v3392 = vpop.f32.mrb[0].mxu0
        %3393 = vdwg.mxu0
        %v3410 = vunpack.c.l.b16 %v2943
        %v3411 = vunpack.c.h.b16 %v2943
        %v3412 = vunpack.c.l.b16 %v2944
        %v3413 = vunpack.c.h.b16 %v2944
        %v3414 = vunpack.c.l.b16 %v2945
        %v3415 = vunpack.c.h.b16 %v2945
        %v3416 = vunpack.c.l.b16 %v2946
        %v3417 = vunpack.c.h.b16 %v2946
        %v3418 = vunpack.c.l.b16 %v2947
        %v3419 = vunpack.c.h.b16 %v2947
        %v3420 = vunpack.c.l.b16 %v2948
        %v3421 = vunpack.c.h.b16 %v2948
        %v3422 = vunpack.c.l.b16 %v2949
        %v3423 = vunpack.c.h.b16 %v2949
        %v3424 = vunpack.c.l.b16 %v2950
        %v3425 = vunpack.c.h.b16 %v2950
        %v3426 = vunpack.c.l.b16 %v2951
        %v3427 = vunpack.c.h.b16 %v2951
        %v3428 = vunpack.c.l.b16 %v2952
        %v3429 = vunpack.c.h.b16 %v2952
        %v3430 = vunpack.c.l.b16 %v2953
        %v3431 = vunpack.c.h.b16 %v2953
        %v3432 = vunpack.c.l.b16 %v2954
        %v3433 = vunpack.c.h.b16 %v2954
        %v3434 = vunpack.c.l.b16 %v2955
        %v3435 = vunpack.c.h.b16 %v2955
        %v3436 = vunpack.c.l.b16 %v2956
        %v3437 = vunpack.c.h.b16 %v2956
        %v3438 = vunpack.c.l.b16 %v2957
        %v3439 = vunpack.c.h.b16 %v2957
        %v3440 = vunpack.c.l.b16 %v2958
        %v3441 = vunpack.c.h.b16 %v2958
        %v3442 = vpack.c.b16 %v3412, %v3410
        %v3443 = vpack.c.b16 %v3413, %v3411
        %v3444 = vpack.c.b16 %v3416, %v3414
        %v3445 = vpack.c.b16 %v3417, %v3415
        %v3446 = vpack.c.b16 %v3420, %v3418
        %v3447 = vpack.c.b16 %v3421, %v3419
        %v3448 = vpack.c.b16 %v3424, %v3422
        %v3449 = vpack.c.b16 %v3425, %v3423
        %v3450 = vpack.c.b16 %v3428, %v3426
        %v3451 = vpack.c.b16 %v3429, %v3427
        %v3452 = vpack.c.b16 %v3432, %v3430
        %v3453 = vpack.c.b16 %v3433, %v3431
        %v3454 = vpack.c.b16 %v3436, %v3434
        %v3455 = vpack.c.b16 %v3437, %v3435
        %v3456 = vpack.c.b16 %v3440, %v3438
        %v3457 = vpack.c.b16 %v3441, %v3439
        %3474 = vmatprep.subr.bf16.mxu0 %v3443
        %3475 = vmatpush1.bf16.msra.mxu0 %v3442
        %3476 = vmatprep.subr.bf16.mxu0 %v3445
        %3477 = vmatpush1.bf16.msra.mxu0 %v3444
        %3478 = vmatprep.subr.bf16.mxu0 %v3447
        %3479 = vmatpush1.bf16.msra.mxu0 %v3446
        %3480 = vmatprep.subr.bf16.mxu0 %v3449
        %3481 = vmatpush1.bf16.msra.mxu0 %v3448
        %3482 = vmatprep.subr.bf16.mxu0 %v3451
        %3483 = vmatpush1.bf16.msra.mxu0 %v3450
        %3484 = vmatprep.subr.bf16.mxu0 %v3453
        %3485 = vmatpush1.bf16.msra.mxu0 %v3452
        %3486 = vmatprep.subr.bf16.mxu0 %v3455
        %3487 = vmatpush1.bf16.msra.mxu0 %v3454
        %3488 = vmatprep.subr.bf16.mxu0 %v3457
        %3489 = vmatpush1.bf16.msra.mxu0 %v3456
        %3490 = vmatprep.subr.bf16.mxu0 0
        %3491 = vmatpush1.bf16.msra.mxu0 0
        %3492 = vmatprep.subr.bf16.mxu0 0
        %3493 = vmatpush1.bf16.msra.mxu0 0
        %3494 = vmatprep.subr.bf16.mxu0 0
        %3495 = vmatpush1.bf16.msra.mxu0 0
        %3496 = vmatprep.subr.bf16.mxu0 0
        %3497 = vmatpush1.bf16.msra.mxu0 0
        %3498 = vmatprep.subr.bf16.mxu0 0
        %3499 = vmatpush1.bf16.msra.mxu0 0
        %3500 = vmatprep.subr.bf16.mxu0 0
        %3501 = vmatpush1.bf16.msra.mxu0 0
        %3502 = vmatprep.subr.bf16.mxu0 0
        %3503 = vmatpush1.bf16.msra.mxu0 0
        %3504 = vmatprep.subr.bf16.mxu0 0
        %3505 = vmatpush1.bf16.msra.mxu0 0
        %3506 = vmatprep.mubr.bf16.mxu0 0
        %3507 = vmatmul.mubr.bf16.gmra.mrb[0].mxu0 %v3026
        %v3508 = vpop.f32.mrb[0].mxu0
        %v3509 = vadd.f32 0.0, %v3508
        %v3510 = vpop.f32.mrb[0].mxu0
        %v3511 = vadd.f32 0.0, %v3510
        %v3512 = vpop.f32.mrb[0].mxu0
        %v3513 = vpop.f32.mrb[0].mxu0
        %3514 = vdwg.mxu0
        %v3531 = vunpack.c.l.b16 %v2959
        %v3532 = vunpack.c.h.b16 %v2959
        %v3533 = vunpack.c.l.b16 %v2960
        %v3534 = vunpack.c.h.b16 %v2960
        %v3535 = vunpack.c.l.b16 %v2961
        %v3536 = vunpack.c.h.b16 %v2961
        %v3537 = vunpack.c.l.b16 %v2962
        %v3538 = vunpack.c.h.b16 %v2962
        %v3539 = vunpack.c.l.b16 %v2963
        %v3540 = vunpack.c.h.b16 %v2963
        %v3541 = vunpack.c.l.b16 %v2964
        %v3542 = vunpack.c.h.b16 %v2964
        %v3543 = vunpack.c.l.b16 %v2965
        %v3544 = vunpack.c.h.b16 %v2965
        %v3545 = vunpack.c.l.b16 %v2966
        %v3546 = vunpack.c.h.b16 %v2966
        %v3547 = vunpack.c.l.b16 %v2967
        %v3548 = vunpack.c.h.b16 %v2967
        %v3549 = vunpack.c.l.b16 %v2968
        %v3550 = vunpack.c.h.b16 %v2968
        %v3551 = vunpack.c.l.b16 %v2969
        %v3552 = vunpack.c.h.b16 %v2969
        %v3553 = vunpack.c.l.b16 %v2970
        %v3554 = vunpack.c.h.b16 %v2970
        %v3555 = vunpack.c.l.b16 %v2971
        %v3556 = vunpack.c.h.b16 %v2971
        %v3557 = vunpack.c.l.b16 %v2972
        %v3558 = vunpack.c.h.b16 %v2972
        %v3559 = vunpack.c.l.b16 %v2973
        %v3560 = vunpack.c.h.b16 %v2973
        %v3561 = vunpack.c.l.b16 %v2974
        %v3562 = vunpack.c.h.b16 %v2974
        %v3563 = vpack.c.b16 %v3533, %v3531
        %v3564 = vpack.c.b16 %v3534, %v3532
        %v3565 = vpack.c.b16 %v3537, %v3535
        %v3566 = vpack.c.b16 %v3538, %v3536
        %v3567 = vpack.c.b16 %v3541, %v3539
        %v3568 = vpack.c.b16 %v3542, %v3540
        %v3569 = vpack.c.b16 %v3545, %v3543
        %v3570 = vpack.c.b16 %v3546, %v3544
        %v3571 = vpack.c.b16 %v3549, %v3547
        %v3572 = vpack.c.b16 %v3550, %v3548
        %v3573 = vpack.c.b16 %v3553, %v3551
        %v3574 = vpack.c.b16 %v3554, %v3552
        %v3575 = vpack.c.b16 %v3557, %v3555
        %v3576 = vpack.c.b16 %v3558, %v3556
        %v3577 = vpack.c.b16 %v3561, %v3559
        %v3578 = vpack.c.b16 %v3562, %v3560
        %3595 = vmatprep.subr.bf16.mxu0 %v3564
        %3596 = vmatpush1.bf16.msra.mxu0 %v3563
        %3597 = vmatprep.subr.bf16.mxu0 %v3566
        %3598 = vmatpush1.bf16.msra.mxu0 %v3565
        %3599 = vmatprep.subr.bf16.mxu0 %v3568
        %3600 = vmatpush1.bf16.msra.mxu0 %v3567
        %3601 = vmatprep.subr.bf16.mxu0 %v3570
        %3602 = vmatpush1.bf16.msra.mxu0 %v3569
        %3603 = vmatprep.subr.bf16.mxu0 %v3572
        %3604 = vmatpush1.bf16.msra.mxu0 %v3571
        %3605 = vmatprep.subr.bf16.mxu0 %v3574
        %3606 = vmatpush1.bf16.msra.mxu0 %v3573
        %3607 = vmatprep.subr.bf16.mxu0 %v3576
        %3608 = vmatpush1.bf16.msra.mxu0 %v3575
        %3609 = vmatprep.subr.bf16.mxu0 %v3578
        %3610 = vmatpush1.bf16.msra.mxu0 %v3577
        %3611 = vmatprep.subr.bf16.mxu0 0
        %3612 = vmatpush1.bf16.msra.mxu0 0
        %3613 = vmatprep.subr.bf16.mxu0 0
        %3614 = vmatpush1.bf16.msra.mxu0 0
        %3615 = vmatprep.subr.bf16.mxu0 0
        %3616 = vmatpush1.bf16.msra.mxu0 0
        %3617 = vmatprep.subr.bf16.mxu0 0
        %3618 = vmatpush1.bf16.msra.mxu0 0
        %3619 = vmatprep.subr.bf16.mxu0 0
        %3620 = vmatpush1.bf16.msra.mxu0 0
        %3621 = vmatprep.subr.bf16.mxu0 0
        %3622 = vmatpush1.bf16.msra.mxu0 0
        %3623 = vmatprep.subr.bf16.mxu0 0
        %3624 = vmatpush1.bf16.msra.mxu0 0
        %3625 = vmatprep.subr.bf16.mxu0 0
        %3626 = vmatpush1.bf16.msra.mxu0 0
        %3627 = vmatprep.mubr.bf16.mxu0 0
        %3628 = vmatmul.mubr.bf16.gmra.mrb[0].mxu0 %v3027
        %v3629 = vpop.f32.mrb[0].mxu0
        %v3630 = vadd.f32 0.0, %v3629
        %v3631 = vpop.f32.mrb[0].mxu0
        %v3632 = vadd.f32 0.0, %v3631
        %v3633 = vpop.f32.mrb[0].mxu0
        %v3634 = vpop.f32.mrb[0].mxu0
        %3635 = vdwg.mxu0
        %v3652 = vunpack.c.l.b16 %v2975
        %v3653 = vunpack.c.h.b16 %v2975
        %v3654 = vunpack.c.l.b16 %v2976
        %v3655 = vunpack.c.h.b16 %v2976
        %v3656 = vunpack.c.l.b16 %v2977
        %v3657 = vunpack.c.h.b16 %v2977
        %v3658 = vunpack.c.l.b16 %v2978
        %v3659 = vunpack.c.h.b16 %v2978
        %v3660 = vunpack.c.l.b16 %v2979
        %v3661 = vunpack.c.h.b16 %v2979
        %v3662 = vunpack.c.l.b16 %v2980
        %v3663 = vunpack.c.h.b16 %v2980
        %v3664 = vunpack.c.l.b16 %v2981
        %v3665 = vunpack.c.h.b16 %v2981
        %v3666 = vunpack.c.l.b16 %v2982
        %v3667 = vunpack.c.h.b16 %v2982
        %v3668 = vunpack.c.l.b16 %v2983
        %v3669 = vunpack.c.h.b16 %v2983
        %v3670 = vunpack.c.l.b16 %v2984
        %v3671 = vunpack.c.h.b16 %v2984
        %v3672 = vunpack.c.l.b16 %v2985
        %v3673 = vunpack.c.h.b16 %v2985
        %v3674 = vunpack.c.l.b16 %v2986
        %v3675 = vunpack.c.h.b16 %v2986
        %v3676 = vunpack.c.l.b16 %v2987
        %v3677 = vunpack.c.h.b16 %v2987
        %v3678 = vunpack.c.l.b16 %v2988
        %v3679 = vunpack.c.h.b16 %v2988
        %v3680 = vunpack.c.l.b16 %v2989
        %v3681 = vunpack.c.h.b16 %v2989
        %v3682 = vunpack.c.l.b16 %v2990
        %v3683 = vunpack.c.h.b16 %v2990
        %v3684 = vpack.c.b16 %v3654, %v3652
        %v3685 = vpack.c.b16 %v3655, %v3653
        %v3686 = vpack.c.b16 %v3658, %v3656
        %v3687 = vpack.c.b16 %v3659, %v3657
        %v3688 = vpack.c.b16 %v3662, %v3660
        %v3689 = vpack.c.b16 %v3663, %v3661
        %v3690 = vpack.c.b16 %v3666, %v3664
        %v3691 = vpack.c.b16 %v3667, %v3665
        %v3692 = vpack.c.b16 %v3670, %v3668
        %v3693 = vpack.c.b16 %v3671, %v3669
        %v3694 = vpack.c.b16 %v3674, %v3672
        %v3695 = vpack.c.b16 %v3675, %v3673
        %v3696 = vpack.c.b16 %v3678, %v3676
        %v3697 = vpack.c.b16 %v3679, %v3677
        %v3698 = vpack.c.b16 %v3682, %v3680
        %v3699 = vpack.c.b16 %v3683, %v3681
        %3716 = vmatprep.subr.bf16.mxu0 %v3685
        %3717 = vmatpush1.bf16.msra.mxu0 %v3684
        %3718 = vmatprep.subr.bf16.mxu0 %v3687
        %3719 = vmatpush1.bf16.msra.mxu0 %v3686
        %3720 = vmatprep.subr.bf16.mxu0 %v3689
        %3721 = vmatpush1.bf16.msra.mxu0 %v3688
        %3722 = vmatprep.subr.bf16.mxu0 %v3691
        %3723 = vmatpush1.bf16.msra.mxu0 %v3690
        %3724 = vmatprep.subr.bf16.mxu0 %v3693
        %3725 = vmatpush1.bf16.msra.mxu0 %v3692
        %3726 = vmatprep.subr.bf16.mxu0 %v3695
        %3727 = vmatpush1.bf16.msra.mxu0 %v3694
        %3728 = vmatprep.subr.bf16.mxu0 %v3697
        %3729 = vmatpush1.bf16.msra.mxu0 %v3696
        %3730 = vmatprep.subr.bf16.mxu0 %v3699
        %3731 = vmatpush1.bf16.msra.mxu0 %v3698
        %3732 = vmatprep.subr.bf16.mxu0 0
        %3733 = vmatpush1.bf16.msra.mxu0 0
        %3734 = vmatprep.subr.bf16.mxu0 0
        %3735 = vmatpush1.bf16.msra.mxu0 0
        %3736 = vmatprep.subr.bf16.mxu0 0
        %3737 = vmatpush1.bf16.msra.mxu0 0
        %3738 = vmatprep.subr.bf16.mxu0 0
        %3739 = vmatpush1.bf16.msra.mxu0 0
        %3740 = vmatprep.subr.bf16.mxu0 0
        %3741 = vmatpush1.bf16.msra.mxu0 0
        %3742 = vmatprep.subr.bf16.mxu0 0
        %3743 = vmatpush1.bf16.msra.mxu0 0
        %3744 = vmatprep.subr.bf16.mxu0 0
        %3745 = vmatpush1.bf16.msra.mxu0 0
        %3746 = vmatprep.subr.bf16.mxu0 0
        %3747 = vmatpush1.bf16.msra.mxu0 0
        %3748 = vmatprep.mubr.bf16.mxu0 0
        %3749 = vmatmul.mubr.bf16.gmra.mrb[0].mxu0 %v3028
        %v3750 = vpop.f32.mrb[0].mxu0
        %v3751 = vadd.f32 0.0, %v3750
        %v3752 = vpop.f32.mrb[0].mxu0
        %v3753 = vadd.f32 0.0, %v3752
        %v3754 = vpop.f32.mrb[0].mxu0
        %v3755 = vpop.f32.mrb[0].mxu0
        %3756 = vdwg.mxu0
        %v3773 = vunpack.c.l.b16 %v2991
        %v3774 = vunpack.c.h.b16 %v2991
        %v3775 = vunpack.c.l.b16 %v2992
        %v3776 = vunpack.c.h.b16 %v2992
        %v3777 = vunpack.c.l.b16 %v2993
        %v3778 = vunpack.c.h.b16 %v2993
        %v3779 = vunpack.c.l.b16 %v2994
        %v3780 = vunpack.c.h.b16 %v2994
        %v3781 = vunpack.c.l.b16 %v2995
        %v3782 = vunpack.c.h.b16 %v2995
        %v3783 = vunpack.c.l.b16 %v2996
        %v3784 = vunpack.c.h.b16 %v2996
        %v3785 = vunpack.c.l.b16 %v2997
        %v3786 = vunpack.c.h.b16 %v2997
        %v3787 = vunpack.c.l.b16 %v2998
        %v3788 = vunpack.c.h.b16 %v2998
        %v3789 = vunpack.c.l.b16 %v2999
        %v3790 = vunpack.c.h.b16 %v2999
        %v3791 = vunpack.c.l.b16 %v3000
        %v3792 = vunpack.c.h.b16 %v3000
        %v3793 = vunpack.c.l.b16 %v3001
        %v3794 = vunpack.c.h.b16 %v3001
        %v3795 = vunpack.c.l.b16 %v3002
        %v3796 = vunpack.c.h.b16 %v3002
        %v3797 = vunpack.c.l.b16 %v3003
        %v3798 = vunpack.c.h.b16 %v3003
        %v3799 = vunpack.c.l.b16 %v3004
        %v3800 = vunpack.c.h.b16 %v3004
        %v3801 = vunpack.c.l.b16 %v3005
        %v3802 = vunpack.c.h.b16 %v3005
        %v3803 = vunpack.c.l.b16 %v3006
        %v3804 = vunpack.c.h.b16 %v3006
        %v3805 = vpack.c.b16 %v3775, %v3773
        %v3806 = vpack.c.b16 %v3776, %v3774
        %v3807 = vpack.c.b16 %v3779, %v3777
        %v3808 = vpack.c.b16 %v3780, %v3778
        %v3809 = vpack.c.b16 %v3783, %v3781
        %v3810 = vpack.c.b16 %v3784, %v3782
        %v3811 = vpack.c.b16 %v3787, %v3785
        %v3812 = vpack.c.b16 %v3788, %v3786
        %v3813 = vpack.c.b16 %v3791, %v3789
        %v3814 = vpack.c.b16 %v3792, %v3790
        %v3815 = vpack.c.b16 %v3795, %v3793
        %v3816 = vpack.c.b16 %v3796, %v3794
        %v3817 = vpack.c.b16 %v3799, %v3797
        %v3818 = vpack.c.b16 %v3800, %v3798
        %v3819 = vpack.c.b16 %v3803, %v3801
        %v3820 = vpack.c.b16 %v3804, %v3802
        %3837 = vmatprep.subr.bf16.mxu0 %v3806
        %3838 = vmatpush1.bf16.msra.mxu0 %v3805
        %3839 = vmatprep.subr.bf16.mxu0 %v3808
        %3840 = vmatpush1.bf16.msra.mxu0 %v3807
        %3841 = vmatprep.subr.bf16.mxu0 %v3810
        %3842 = vmatpush1.bf16.msra.mxu0 %v3809
        %3843 = vmatprep.subr.bf16.mxu0 %v3812
        %3844 = vmatpush1.bf16.msra.mxu0 %v3811
        %3845 = vmatprep.subr.bf16.mxu0 %v3814
        %3846 = vmatpush1.bf16.msra.mxu0 %v3813
        %3847 = vmatprep.subr.bf16.mxu0 %v3816
        %3848 = vmatpush1.bf16.msra.mxu0 %v3815
        %3849 = vmatprep.subr.bf16.mxu0 %v3818
        %3850 = vmatpush1.bf16.msra.mxu0 %v3817
        %3851 = vmatprep.subr.bf16.mxu0 %v3820
        %3852 = vmatpush1.bf16.msra.mxu0 %v3819
        %3853 = vmatprep.subr.bf16.mxu0 0
        %3854 = vmatpush1.bf16.msra.mxu0 0
        %3855 = vmatprep.subr.bf16.mxu0 0
        %3856 = vmatpush1.bf16.msra.mxu0 0
        %3857 = vmatprep.subr.bf16.mxu0 0
        %3858 = vmatpush1.bf16.msra.mxu0 0
        %3859 = vmatprep.subr.bf16.mxu0 0
        %3860 = vmatpush1.bf16.msra.mxu0 0
        %3861 = vmatprep.subr.bf16.mxu0 0
        %3862 = vmatpush1.bf16.msra.mxu0 0
        %3863 = vmatprep.subr.bf16.mxu0 0
        %3864 = vmatpush1.bf16.msra.mxu0 0
        %3865 = vmatprep.subr.bf16.mxu0 0
        %3866 = vmatpush1.bf16.msra.mxu0 0
        %3867 = vmatprep.subr.bf16.mxu0 0
        %3868 = vmatpush1.bf16.msra.mxu0 0
        %3869 = vmatprep.mubr.bf16.mxu0 0
        %3870 = vmatmul.mubr.bf16.gmra.mrb[0].mxu0 %v3029
        %v3871 = vpop.f32.mrb[0].mxu0
        %v3872 = vadd.f32 0.0, %v3871
        %v3873 = vpop.f32.mrb[0].mxu0
        %v3874 = vadd.f32 0.0, %v3873
        %v3875 = vpop.f32.mrb[0].mxu0
        %v3876 = vpop.f32.mrb[0].mxu0
        %3877 = vdwg.mxu0
        %v3894 = vunpack.c.l.b16 %v3007
        %v3895 = vunpack.c.h.b16 %v3007
        %v3896 = vunpack.c.l.b16 %v3008
        %v3897 = vunpack.c.h.b16 %v3008
        %v3898 = vunpack.c.l.b16 %v3009
        %v3899 = vunpack.c.h.b16 %v3009
        %v3900 = vunpack.c.l.b16 %v3010
        %v3901 = vunpack.c.h.b16 %v3010
        %v3902 = vunpack.c.l.b16 %v3011
        %v3903 = vunpack.c.h.b16 %v3011
        %v3904 = vunpack.c.l.b16 %v3012
        %v3905 = vunpack.c.h.b16 %v3012
        %v3906 = vunpack.c.l.b16 %v3013
        %v3907 = vunpack.c.h.b16 %v3013
        %v3908 = vunpack.c.l.b16 %v3014
        %v3909 = vunpack.c.h.b16 %v3014
        %v3910 = vunpack.c.l.b16 %v3015
        %v3911 = vunpack.c.h.b16 %v3015
        %v3912 = vunpack.c.l.b16 %v3016
        %v3913 = vunpack.c.h.b16 %v3016
        %v3914 = vunpack.c.l.b16 %v3017
        %v3915 = vunpack.c.h.b16 %v3017
        %v3916 = vunpack.c.l.b16 %v3018
        %v3917 = vunpack.c.h.b16 %v3018
        %v3918 = vunpack.c.l.b16 %v3019
        %v3919 = vunpack.c.h.b16 %v3019
        %v3920 = vunpack.c.l.b16 %v3020
        %v3921 = vunpack.c.h.b16 %v3020
        %v3922 = vunpack.c.l.b16 %v3021
        %v3923 = vunpack.c.h.b16 %v3021
        %v3924 = vunpack.c.l.b16 %v3022
        %v3925 = vunpack.c.h.b16 %v3022
        %v3926 = vpack.c.b16 %v3896, %v3894
        %v3927 = vpack.c.b16 %v3897, %v3895
        %v3928 = vpack.c.b16 %v3900, %v3898
        %v3929 = vpack.c.b16 %v3901, %v3899
        %v3930 = vpack.c.b16 %v3904, %v3902
        %v3931 = vpack.c.b16 %v3905, %v3903
        %v3932 = vpack.c.b16 %v3908, %v3906
        %v3933 = vpack.c.b16 %v3909, %v3907
        %v3934 = vpack.c.b16 %v3912, %v3910
        %v3935 = vpack.c.b16 %v3913, %v3911
        %v3936 = vpack.c.b16 %v3916, %v3914
        %v3937 = vpack.c.b16 %v3917, %v3915
        %v3938 = vpack.c.b16 %v3920, %v3918
        %v3939 = vpack.c.b16 %v3921, %v3919
        %v3940 = vpack.c.b16 %v3924, %v3922
        %v3941 = vpack.c.b16 %v3925, %v3923
        %3958 = vmatprep.subr.bf16.mxu0 %v3927
        %3959 = vmatpush1.bf16.msra.mxu0 %v3926
        %3960 = vmatprep.subr.bf16.mxu0 %v3929
        %3961 = vmatpush1.bf16.msra.mxu0 %v3928
        %3962 = vmatprep.subr.bf16.mxu0 %v3931
        %3963 = vmatpush1.bf16.msra.mxu0 %v3930
        %3964 = vmatprep.subr.bf16.mxu0 %v3933
        %3965 = vmatpush1.bf16.msra.mxu0 %v3932
        %3966 = vmatprep.subr.bf16.mxu0 %v3935
        %3967 = vmatpush1.bf16.msra.mxu0 %v3934
        %3968 = vmatprep.subr.bf16.mxu0 %v3937
        %3969 = vmatpush1.bf16.msra.mxu0 %v3936
        %3970 = vmatprep.subr.bf16.mxu0 %v3939
        %3971 = vmatpush1.bf16.msra.mxu0 %v3938
        %3972 = vmatprep.subr.bf16.mxu0 %v3941
        %3973 = vmatpush1.bf16.msra.mxu0 %v3940
        %3974 = vmatprep.subr.bf16.mxu0 0
        %3975 = vmatpush1.bf16.msra.mxu0 0
        %3976 = vmatprep.subr.bf16.mxu0 0
        %3977 = vmatpush1.bf16.msra.mxu0 0
        %3978 = vmatprep.subr.bf16.mxu0 0
        %3979 = vmatpush1.bf16.msra.mxu0 0
        %3980 = vmatprep.subr.bf16.mxu0 0
        %3981 = vmatpush1.bf16.msra.mxu0 0
        %3982 = vmatprep.subr.bf16.mxu0 0
        %3983 = vmatpush1.bf16.msra.mxu0 0
        %3984 = vmatprep.subr.bf16.mxu0 0
        %3985 = vmatpush1.bf16.msra.mxu0 0
        %3986 = vmatprep.subr.bf16.mxu0 0
        %3987 = vmatpush1.bf16.msra.mxu0 0
        %3988 = vmatprep.subr.bf16.mxu0 0
        %3989 = vmatpush1.bf16.msra.mxu0 0
        %3990 = vmatprep.mubr.bf16.mxu0 0
        %3991 = vmatmul.mubr.bf16.gmra.mrb[0].mxu0 %v3030
        %v3992 = vpop.f32.mrb[0].mxu0
        %v3993 = vadd.f32 0.0, %v3992
        %v3994 = vpop.f32.mrb[0].mxu0
        %v3995 = vadd.f32 0.0, %v3994
        %v3996 = vpop.f32.mrb[0].mxu0
        %v3997 = vpop.f32.mrb[0].mxu0
        %3998 = vdwg.mxu0
        %v3999 = vld [vmem:[%s6] sm:$0x3]
        %v4001 = vlaneseq
        %v4002 = vshrl.u32 %v4001, 7
        %v4003 = vsub.s32 0, %v4002
        %v4004 = vrot.slane %v3999, %v4003
        %v4005 = vlaneseq
        %v4006 = vshrl.u32 %v4005, 7
        %v4007 = vsub.s32 1, %v4006
        %v4008 = vrot.slane %v3999, %v4007
        %v4011 = vmul.f32 %v3146, %v4004
        %v4012 = vmul.f32 %v3148, %v4008
        %v4013 = vmul.f32 %v3267, %v4004
        %v4014 = vmul.f32 %v3269, %v4008
        %v4015 = vmul.f32 %v3388, %v4004
        %v4016 = vmul.f32 %v3390, %v4008
        %v4017 = vmul.f32 %v3509, %v4004
        %v4018 = vmul.f32 %v3511, %v4008
        %v4019 = vmul.f32 %v3630, %v4004
        %v4020 = vmul.f32 %v3632, %v4008
        %v4021 = vmul.f32 %v3751, %v4004
        %v4022 = vmul.f32 %v3753, %v4008
        %v4023 = vmul.f32 %v3872, %v4004
        %v4024 = vmul.f32 %v3874, %v4008
        %v4025 = vmul.f32 %v3993, %v4004
        %v4026 = vmul.f32 %v3995, %v4008
        %v4043 = vrot.slane %v4013, 7
        %vm4044 = vcmask 1041409
        %v4045 = vsel %vm4044, %v4043, %v4011
        %v4046 = vrot.slane %v4015, 6
        %vm4047 = vcmask 1042434
        %v4048 = vsel %vm4047, %v4046, %v4045
        %v4049 = vrot.slane %v4017, 5
        %vm4050 = vcmask 1043459
        %v4051 = vsel %vm4050, %v4049, %v4048
        %v4052 = vrot.slane %v4019, 4
        %vm4053 = vcmask 1044484
        %v4054 = vsel %vm4053, %v4052, %v4051
        %v4055 = vrot.slane %v4021, 3
        %vm4056 = vcmask 1045509
        %v4057 = vsel %vm4056, %v4055, %v4054
        %v4058 = vrot.slane %v4023, 2
        %vm4059 = vcmask 1046534
        %v4060 = vsel %vm4059, %v4058, %v4057
        %v4061 = vrot.slane %v4025, 1
        %vm4062 = vcmask 1047559
        %v4063 = vsel %vm4062, %v4061, %v4060
        %v4064 = vrot.slane %v4014, 7
        %v4065 = vsel %vm4044, %v4064, %v4012
        %v4066 = vrot.slane %v4016, 6
        %v4067 = vsel %vm4047, %v4066, %v4065
        %v4068 = vrot.slane %v4018, 5
        %v4069 = vsel %vm4050, %v4068, %v4067
        %v4070 = vrot.slane %v4020, 4
        %v4071 = vsel %vm4053, %v4070, %v4069
        %v4072 = vrot.slane %v4022, 3
        %v4073 = vsel %vm4056, %v4072, %v4071
        %v4074 = vrot.slane %v4024, 2
        %v4075 = vsel %vm4059, %v4074, %v4073
        %v4076 = vrot.slane %v4026, 1
        %v4077 = vsel %vm4062, %v4076, %v4075
        %v4080 = vadd.f32 %v4063, %v4077
        %4081 = vadd.xlane.f32.xlu0 %v4080
        %v4082 = vpop.xlane.xlu0 %4081
        %v4083 = vld [vmem:[#allocation4] sm:$0x1]
        %v4085 = vlaneseq
        %v4086 = vshrl.u32 %v4085, 7
        %v4087 = vsub.s32 0, %v4086
        %v4088 = vrot.slane %v4083, %v4087
        %v4090 = vadd.f32 %v4082, %v4088
        %vm4091 = vcmask 7168
        %4092 = vst.msk [vmem:[%s384] sm:$0xff] %vm4091, %v4090
        %p4093 = scmp.lt.s32.totalorder %s29, 1
        %s4094 = scalar_select %p4093, %s29, 1
        %s4095 = smul.addr %s4094, 8
        %s4096 = scalar_lea.vmem %s8, %s4095
        // Predicated region
        $region65: #{tpu_custom_call.1} parent=51 // pred_check
          %p4097 = pneg %p225
        $region66: #{tpu_custom_call.1} parent=51 // pred_check_branch
          %4099 = sbr.rel (%p4097) target = $region68
        $region67: #{tpu_custom_call.1} parent=51 // pred_region
          _
        $region68: #{tpu_custom_call.1} parent=51 // pred_fallthru
          _
      $region52: #{tpu_custom_call.1} parent=5 // pred_fallthru
        _
      %p4100 = scmp.le.s32.totalorder 2, %s24
      // Predicated region
      $region69: #{tpu_custom_call.1} parent=5 // pred_check
        %p4101 = pneg %p4100
      $region70: #{tpu_custom_call.1} parent=5 // pred_check_branch
        %4103 = sbr.rel (%p4101) target = $region72
      $region71: #{tpu_custom_call.1} parent=5 // pred_region
        %s4104 = ssub.s32 %s24, 2
        // Predicated region
        $region73: #{tpu_custom_call.1} parent=71 // pred_check
          %p4105 = pneg %p231
        $region74: #{tpu_custom_call.1} parent=71 // pred_check_branch
          %4107 = sbr.rel (%p4105) target = $region76
        $region75: #{tpu_custom_call.1} parent=71 // pred_region
          %p4108 = scmp.lt.s32.totalorder %s30, 1
          %s4109 = scalar_select %p4108, %s30, 1
          %s4110 = smul.addr %s4109, 8
          %s4111 = scalar_lea.vmem %s8, %s4110
        $region76: #{tpu_custom_call.1} parent=71 // pred_fallthru
          _
      $region72: #{tpu_custom_call.1} parent=5 // pred_fallthru
        _
    $region6: #{tpu_custom_call.1} parent=1 // loop_footer
      %s28 = sadd.s32 1, %s24
    $region7: #{tpu_custom_call.1} parent=1 // loop_footer_branch
      %23 = sbr.rel target = $region3
    $region8: #{tpu_custom_call.1} parent=1 // loop_exit
      _
    %4112 = vsyncpa [#allocation6], 1
    %s4113 = scalar_lea.sflag [#allocation6], 1
    %4114 = vsyncpa %s4113, 1
    %4115 = vsyncpa [#allocation8], 1
    %s4116 = scalar_lea.sflag [#allocation8], 1
    %4117 = vsyncpa %s4116, 1

// kernel: tpu_custom_call.1
$region0: #{tpu_custom_call.1}
  #allocation0 [shape = 'u32[]', space=smem, size = 0x4, offset = 0x4, fixed_abs, tag = 'smem constant byte address 0x4 - core index']
  #allocation1 [shape = 'u32[144,128]{1,0:T(1,128)}', space=vmem, size = 0x12000, scoped, tag = 'internal scratch']
  #allocation2 [shape = 'f32[8,1,128]{2,1,0:T(1,128)}', space=vmem, size = 0x1000, scoped, tag = 'scratch operand']
  #allocation3 [shape = 'f32[1,1,1]{2,1,0:T(1,128)S(1)}', space=vmem, size = 0x200, scoped, tag = 'scoped memory for tpu_custom_call.1']
  #allocation4 [shape = 'f32[1,1]{1,0:T(1,128)S(1)}', space=vmem, size = 0x200, scoped, tag = 'scoped memory for tpu_custom_call.1']
  %s0 = inlined_call_operand.hbm [shape: bf16[16,128,256], index: 0, kind: input, shape index: {}]
  %s1 = inlined_call_operand.hbm [shape: f32[16,1,128], index: 1, kind: input, shape index: {}]
  %s2 = inlined_call_operand.hbm [shape: bf16[256,256], index: 2, kind: input, shape index: {}]
  %s3 = inlined_call_operand.vmem [shape: f32[1,256], index: 3, kind: input, shape index: {}]
  %s4 = inlined_call_operand.vmem [shape: bf16[1,1,256], index: 4, kind: input, shape index: {}]
  %s5 = inlined_call_operand.<no memory space> [shape: f32[1,1,1], index: 5, kind: input, shape index: {}]
  %s6 = inlined_call_operand.vmem [shape: f32[1,256], index: 6, kind: input, shape index: {}]
  %s7 = inlined_call_operand.<no memory space> [shape: f32[1,1], index: 7, kind: input, shape index: {}]
  %s8 = inlined_call_operand.vmem [shape: f32[16,1], index: 8, kind: output, shape index: {}]
  %s9 = sld [smem:[#allocation0]]
  $region77: #{tpu_custom_call.1} parent=0
    _
  %s11 = ssub.s32 1, %s9
  %s12 = scalar_select 0, %s11, %s9
  %v13 = vstv %s5
  %14 = vst [vmem:[#allocation3] sm:$0x1] %v13
  %v15 = vstv %s7
  %16 = vst [vmem:[#allocation4] sm:$0x1] %v15
  $region1: #{tpu_custom_call.1} parent=0
    #allocation5 [shape = 'u8[1048576]{0}', space=vmem, size = 0x100000, scoped, tag = 'input window, operand 0']
    #allocation6 [shape = 's32[2]{0}', space=sflag, size = 0x8, scoped, tag = 'scoped memory for tpu_custom_call.1']
    #allocation7 [shape = 'u8[8192]{0}', space=vmem, size = 0x2000, scoped, tag = 'input window, operand 1']
    #allocation8 [shape = 's32[2]{0}', space=sflag, size = 0x8, scoped, tag = 'scoped memory for tpu_custom_call.1']
    #allocation9 [shape = 'u8[131072]{0}', space=vmem, size = 0x20000, scoped, tag = 'input window, operand 2, single buffered']
    %17 = vsyncpa [#allocation6], 0
    %s18 = scalar_lea.sflag [#allocation6], 1
    %19 = vsyncpa %s18, 0
    %20 = vsyncpa [#allocation8], 0
    %s21 = scalar_lea.sflag [#allocation8], 1
    %22 = vsyncpa %s21, 0
    loop: start=0, step=1, limit=4
    $region2: #{tpu_custom_call.1} parent=1 // loop_pre_header
      _
    $region3: #{tpu_custom_call.1} parent=1 // loop_header
      %s24 = sphi 0, %s28
      %p25 = scmp.ge.s32.totalorder %s24, 4
      %s34 = sphi 0, %s36
      %s37 = sphi 0, %s34
      %s38 = sphi 0, %s37
      %s54 = sphi 0, %s38
      %s60 = sphi 0, %s62
      %s63 = sphi 0, %s60
      %s64 = sphi 0, %s63
      %s80 = sphi 0, %s64
      %s84 = sphi 0, %s84
      %s86 = sphi 0, %s84
      %s87 = sphi 0, %s86
      %s101 = sphi 0, %s87
      %s105 = sphi 0, %s105
      %s107 = sphi 0, %s105
      %s108 = sphi 0, %s107
      %s122 = sphi 0, %s108
      %s126 = sphi 0, %s126
      %s128 = sphi 0, %s126
      %s129 = sphi 0, %s128
      %s143 = sphi 0, %s129
      %s147 = sphi 0, %s147
      %s149 = sphi 0, %s147
      %s150 = sphi 0, %s149
      %s164 = sphi 0, %s150
      %s168 = sphi 0, %s168
      %s170 = sphi 0, %s168
      %s171 = sphi 0, %s170
      %s185 = sphi 0, %s171
      %s189 = sphi 0, %s189
      %s191 = sphi 0, %s189
      %s192 = sphi 0, %s191
      %s206 = sphi 0, %s192
      %s212 = sphi 0, %s214
      %s215 = sphi 0, %s212
      %s216 = sphi 0, %s215
      %s232 = sphi 0, %s216
    $region4: #{tpu_custom_call.1} parent=1 // loop_header_branch
      %27 = sbr.rel (%p25) target = $region8
    $region5: #{tpu_custom_call.1} parent=1 // loop_body
      %s29 = ssub.s32 %s24, 1
      %s30 = ssub.s32 %s24, 2
      %s31 = sadd.s32 %s24, 1
      %s32 = ssub.s32 %s24, %s31
      %p33 = scmp.eq.s32.totalorder %s32, 0
      %s35 = sadd.s32 %s34, 1
      %s36 = scalar_select %p33, %s34, %s35
      %p39 = pneg %p33
      %p40 = scmp.eq.s32.totalorder %s24, 1
      %p41 = por %p39, %p40
      %p42 = scmp.ne.s32.totalorder %s34, %s37
      %p43 = scmp.eq.s32.totalorder %s24, 0
      %p44 = por %p42, %p43
      %p45 = scmp.ne.s32.totalorder %s34, %s37
      %p46 = scmp.eq.s32.totalorder %s29, 1
      %p47 = por %p45, %p46
      %p48 = scmp.ne.s32.totalorder %s37, %s38
      %p49 = scmp.eq.s32.totalorder %s29, 0
      %p50 = por %p48, %p49
      %p51 = scmp.ne.s32.totalorder %s37, %s38
      %p52 = scmp.eq.s32.totalorder %s30, 1
      %p53 = por %p51, %p52
      %p55 = scmp.ne.s32.totalorder %s38, %s54
      %p56 = scmp.eq.s32.totalorder %s30, 0
      %p57 = por %p55, %p56
      %s58 = ssub.s32 %s24, %s31
      %p59 = scmp.eq.s32.totalorder %s58, 0
      %s61 = sadd.s32 %s60, 1
      %s62 = scalar_select %p59, %s60, %s61
      %p65 = pneg %p59
      %p66 = scmp.eq.s32.totalorder %s24, 1
      %p67 = por %p65, %p66
      %p68 = scmp.ne.s32.totalorder %s60, %s63
      %p69 = scmp.eq.s32.totalorder %s24, 0
      %p70 = por %p68, %p69
      %p71 = scmp.ne.s32.totalorder %s60, %s63
      %p72 = scmp.eq.s32.totalorder %s29, 1
      %p73 = por %p71, %p72
      %p74 = scmp.ne.s32.totalorder %s63, %s64
      %p75 = scmp.eq.s32.totalorder %s29, 0
      %p76 = por %p74, %p75
      %p77 = scmp.ne.s32.totalorder %s63, %s64
      %p78 = scmp.eq.s32.totalorder %s30, 1
      %p79 = por %p77, %p78
      %p81 = scmp.ne.s32.totalorder %s64, %s80
      %p82 = scmp.eq.s32.totalorder %s30, 0
      %p83 = por %p81, %p82
      %s85 = sadd.s32 %s84, 1
      %p88 = scmp.eq.s32.totalorder %s24, 1
      %p89 = scmp.ne.s32.totalorder %s84, %s86
      %p90 = scmp.eq.s32.totalorder %s24, 0
      %p91 = por %p89, %p90
      %p92 = scmp.ne.s32.totalorder %s84, %s86
      %p93 = scmp.eq.s32.totalorder %s29, 1
      %p94 = por %p92, %p93
      %p95 = scmp.ne.s32.totalorder %s86, %s87
      %p96 = scmp.eq.s32.totalorder %s29, 0
      %p97 = por %p95, %p96
      %p98 = scmp.ne.s32.totalorder %s86, %s87
      %p99 = scmp.eq.s32.totalorder %s30, 1
      %p100 = por %p98, %p99
      %p102 = scmp.ne.s32.totalorder %s87, %s101
      %p103 = scmp.eq.s32.totalorder %s30, 0
      %p104 = por %p102, %p103
      %s106 = sadd.s32 %s105, 1
      %p109 = scmp.eq.s32.totalorder %s24, 1
      %p110 = scmp.ne.s32.totalorder %s105, %s107
      %p111 = scmp.eq.s32.totalorder %s24, 0
      %p112 = por %p110, %p111
      %p113 = scmp.ne.s32.totalorder %s105, %s107
      %p114 = scmp.eq.s32.totalorder %s29, 1
      %p115 = por %p113, %p114
      %p116 = scmp.ne.s32.totalorder %s107, %s108
      %p117 = scmp.eq.s32.totalorder %s29, 0
      %p118 = por %p116, %p117
      %p119 = scmp.ne.s32.totalorder %s107, %s108
      %p120 = scmp.eq.s32.totalorder %s30, 1
      %p121 = por %p119, %p120
      %p123 = scmp.ne.s32.totalorder %s108, %s122
      %p124 = scmp.eq.s32.totalorder %s30, 0
      %p125 = por %p123, %p124
      %s127 = sadd.s32 %s126, 1
      %p130 = scmp.eq.s32.totalorder %s24, 1
      %p131 = scmp.ne.s32.totalorder %s126, %s128
      %p132 = scmp.eq.s32.totalorder %s24, 0
      %p133 = por %p131, %p132
      %p134 = scmp.ne.s32.totalorder %s126, %s128
      %p135 = scmp.eq.s32.totalorder %s29, 1
      %p136 = por %p134, %p135
      %p137 = scmp.ne.s32.totalorder %s128, %s129
      %p138 = scmp.eq.s32.totalorder %s29, 0
      %p139 = por %p137, %p138
      %p140 = scmp.ne.s32.totalorder %s128, %s129
      %p141 = scmp.eq.s32.totalorder %s30, 1
      %p142 = por %p140, %p141
      %p144 = scmp.ne.s32.totalorder %s129, %s143
      %p145 = scmp.eq.s32.totalorder %s30, 0
      %p146 = por %p144, %p145
      %s148 = sadd.s32 %s147, 1
      %p151 = scmp.eq.s32.totalorder %s24, 1
      %p152 = scmp.ne.s32.totalorder %s147, %s149
      %p153 = scmp.eq.s32.totalorder %s24, 0
      %p154 = por %p152, %p153
      %p155 = scmp.ne.s32.totalorder %s147, %s149
      %p156 = scmp.eq.s32.totalorder %s29, 1
      %p157 = por %p155, %p156
      %p158 = scmp.ne.s32.totalorder %s149, %s150
      %p159 = scmp.eq.s32.totalorder %s29, 0
      %p160 = por %p158, %p159
      %p161 = scmp.ne.s32.totalorder %s149, %s150
      %p162 = scmp.eq.s32.totalorder %s30, 1
      %p163 = por %p161, %p162
      %p165 = scmp.ne.s32.totalorder %s150, %s164
      %p166 = scmp.eq.s32.totalorder %s30, 0
      %p167 = por %p165, %p166
      %s169 = sadd.s32 %s168, 1
      %p172 = scmp.eq.s32.totalorder %s24, 1
      %p173 = scmp.ne.s32.totalorder %s168, %s170
      %p174 = scmp.eq.s32.totalorder %s24, 0
      %p175 = por %p173, %p174
      %p176 = scmp.ne.s32.totalorder %s168, %s170
      %p177 = scmp.eq.s32.totalorder %s29, 1
      %p178 = por %p176, %p177
      %p179 = scmp.ne.s32.totalorder %s170, %s171
      %p180 = scmp.eq.s32.totalorder %s29, 0
      %p181 = por %p179, %p180
      %p182 = scmp.ne.s32.totalorder %s170, %s171
      %p183 = scmp.eq.s32.totalorder %s30, 1
      %p184 = por %p182, %p183
      %p186 = scmp.ne.s32.totalorder %s171, %s185
      %p187 = scmp.eq.s32.totalorder %s30, 0
      %p188 = por %p186, %p187
      %s190 = sadd.s32 %s189, 1
      %p193 = scmp.eq.s32.totalorder %s24, 1
      %p194 = scmp.ne.s32.totalorder %s189, %s191
      %p195 = scmp.eq.s32.totalorder %s24, 0
      %p196 = por %p194, %p195
      %p197 = scmp.ne.s32.totalorder %s189, %s191
      %p198 = scmp.eq.s32.totalorder %s29, 1
      %p199 = por %p197, %p198
      %p200 = scmp.ne.s32.totalorder %s191, %s192
      %p201 = scmp.eq.s32.totalorder %s29, 0
      %p202 = por %p200, %p201
      %p203 = scmp.ne.s32.totalorder %s191, %s192
      %p204 = scmp.eq.s32.totalorder %s30, 1
      %p205 = por %p203, %p204
      %p207 = scmp.ne.s32.totalorder %s192, %s206
      %p208 = scmp.eq.s32.totalorder %s30, 0
      %p209 = por %p207, %p208
      %s210 = ssub.s32 %s24, %s31
      %p211 = scmp.eq.s32.totalorder %s210, 0
      %s213 = sadd.s32 %s212, 1
      %s214 = scalar_select %p211, %s212, %s213
      %p217 = pneg %p211
      %p218 = scmp.eq.s32.totalorder %s24, 1
      %p219 = por %p217, %p218
      %p220 = scmp.ne.s32.totalorder %s212, %s215
      %p221 = scmp.eq.s32.totalorder %s24, 0
      %p222 = por %p220, %p221
      %p223 = scmp.ne.s32.totalorder %s212, %s215
      %p224 = scmp.eq.s32.totalorder %s29, 1
      %p225 = por %p223, %p224
      %p226 = scmp.ne.s32.totalorder %s215, %s216
      %p227 = scmp.eq.s32.totalorder %s29, 0
      %p228 = por %p226, %p227
      %p229 = scmp.ne.s32.totalorder %s215, %s216
      %p230 = scmp.eq.s32.totalorder %s30, 1
      %p231 = por %p229, %p230
      %p233 = scmp.ne.s32.totalorder %s216, %s232
      %p234 = scmp.eq.s32.totalorder %s30, 0
      %p235 = por %p233, %p234
      %p236 = scmp.le.s32.totalorder 1, %s24
      %p237 = scmp.lt.s32.totalorder %s24, 3
      %p238 = pnand %p236, %p237
      %p239 = pneg %p238
      // Predicated region
      $region9: #{tpu_custom_call.1} parent=5 // pred_check
        _
      $region10: #{tpu_custom_call.1} parent=5 // pred_check_branch
        %241 = sbr.rel (%p238) target = $region12
      $region11: #{tpu_custom_call.1} parent=5 // pred_region
        %s242 = ssub.s32 %s24, 1
        // Predicated region
        $region13: #{tpu_custom_call.1} parent=11 // pred_check
          %p243 = pneg %p97
        $region14: #{tpu_custom_call.1} parent=11 // pred_check_branch
          %245 = sbr.rel (%p243) target = $region16
        $region15: #{tpu_custom_call.1} parent=11 // pred_region
          %s247 = ssub.s32 4096, 4096
          %248 = vsyncadd [#allocation8], %s247
          %s249 = sshll.u32 [#allocation9], 4
          %s250 = int_to_ptr.vmem [resolvable:$true] %s249
          %255 = dma.hbm_to_vmem [thread:$0]  %s2, 4096, %s250, [#allocation8], 128, 128, 8
        $region16: #{tpu_custom_call.1} parent=11 // pred_fallthru
          _
        // Predicated region
        $region17: #{tpu_custom_call.1} parent=11 // pred_check
          %p256 = pneg %p118
        $region18: #{tpu_custom_call.1} parent=11 // pred_check_branch
          %258 = sbr.rel (%p256) target = $region20
        $region19: #{tpu_custom_call.1} parent=11 // pred_region
          _
        $region20: #{tpu_custom_call.1} parent=11 // pred_fallthru
          _
        // Predicated region
        $region21: #{tpu_custom_call.1} parent=11 // pred_check
          %p259 = pneg %p139
        $region22: #{tpu_custom_call.1} parent=11 // pred_check_branch
          %261 = sbr.rel (%p259) target = $region24
        $region23: #{tpu_custom_call.1} parent=11 // pred_region
          _
        $region24: #{tpu_custom_call.1} parent=11 // pred_fallthru
          _
        // Predicated region
        $region25: #{tpu_custom_call.1} parent=11 // pred_check
          %p262 = pneg %p160
        $region26: #{tpu_custom_call.1} parent=11 // pred_check_branch
          %264 = sbr.rel (%p262) target = $region28
        $region27: #{tpu_custom_call.1} parent=11 // pred_region
          _
        $region28: #{tpu_custom_call.1} parent=11 // pred_fallthru
          _
        // Predicated region
        $region29: #{tpu_custom_call.1} parent=11 // pred_check
          %p265 = pneg %p181
        $region30: #{tpu_custom_call.1} parent=11 // pred_check_branch
          %267 = sbr.rel (%p265) target = $region32
        $region31: #{tpu_custom_call.1} parent=11 // pred_region
          _
        $region32: #{tpu_custom_call.1} parent=11 // pred_fallthru
          _
        // Predicated region
        $region33: #{tpu_custom_call.1} parent=11 // pred_check
          %p268 = pneg %p202
        $region34: #{tpu_custom_call.1} parent=11 // pred_check_branch
          %270 = sbr.rel (%p268) target = $region36
        $region35: #{tpu_custom_call.1} parent=11 // pred_region
          _
        $region36: #{tpu_custom_call.1} parent=11 // pred_fallthru
          _
      $region12: #{tpu_custom_call.1} parent=5 // pred_fallthru
        _
      %p271 = scmp.lt.s32.totalorder %s24, 2
      // Predicated region
      $region37: #{tpu_custom_call.1} parent=5 // pred_check
        %p272 = pneg %p271
      $region38: #{tpu_custom_call.1} parent=5 // pred_check_branch
        %274 = sbr.rel (%p272) target = $region40
      $region39: #{tpu_custom_call.1} parent=5 // pred_region
        // Predicated region
        $region41: #{tpu_custom_call.1} parent=39 // pred_check
          %p275 = pneg %p44
        $region42: #{tpu_custom_call.1} parent=39 // pred_check_branch
          %277 = sbr.rel (%p275) target = $region44
        $region43: #{tpu_custom_call.1} parent=39 // pred_region
          %s278 = sand.u32 %s34, 1
          %s279 = scalar_lea.sflag [#allocation6], %s278
          %s280 = sand.u32 %s34, 1
          %s281 = smul.addr %s280, 1024
          %s282 = scalar_lea.vmem [#allocation5], %s281
          %s283 = smul.u32 8, %s24
          %s285 = ssub.s32 16384, 16384
          %286 = vsyncadd %s279, %s285
          %s287 = smul.addr %s283, 32
          %s288 = smul.addr %s287, 64
          %s289 = scalar_lea.hbm %s0, %s288
          %s290 = sshll.u32 %s282, 4
          %s291 = int_to_ptr.vmem [resolvable:$true] %s290
          %296 = dma.hbm_to_vmem [thread:$0]  %s289, 16384, %s291, %s279, 128, 128, 8
        $region44: #{tpu_custom_call.1} parent=39 // pred_fallthru
          _
        // Predicated region
        $region45: #{tpu_custom_call.1} parent=39 // pred_check
          %p297 = pneg %p70
        $region46: #{tpu_custom_call.1} parent=39 // pred_check_branch
          %299 = sbr.rel (%p297) target = $region48
        $region47: #{tpu_custom_call.1} parent=39 // pred_region
          %s300 = sand.u32 %s24, 1
          %s301 = scalar_lea.sflag [#allocation8], %s300
          %s302 = sand.u32 %s60, 1
          %s303 = smul.addr %s302, 8
          %s304 = scalar_lea.vmem [#allocation7], %s303
          %s305 = smul.u32 8, %s24
          %s307 = ssub.s32 128, 128
          %308 = vsyncadd %s301, %s307
          %s309 = smul.addr %s305, 16
          %s310 = scalar_lea.hbm %s1, %s309
          %s311 = sshll.u32 %s304, 4
          %s312 = int_to_ptr.vmem [resolvable:$true] %s311
          %317 = dma.hbm_to_vmem [thread:$0]  %s310, 128, %s312, %s301, 16, 16, 1
        $region48: #{tpu_custom_call.1} parent=39 // pred_fallthru
          _
      $region40: #{tpu_custom_call.1} parent=5 // pred_fallthru
        _
      %p318 = scmp.le.s32.totalorder 1, %s24
      %p319 = scmp.lt.s32.totalorder %s24, 3
      %p320 = pnand %p318, %p319
      %p321 = pneg %p320
      // Predicated region
      $region49: #{tpu_custom_call.1} parent=5 // pred_check
        _
      $region50: #{tpu_custom_call.1} parent=5 // pred_check_branch
        %323 = sbr.rel (%p320) target = $region52
      $region51: #{tpu_custom_call.1} parent=5 // pred_region
        %s324 = ssub.s32 %s24, 1
        %s325 = sand.u32 %s37, 1
        %s326 = scalar_lea.sflag [#allocation6], %s325
        %s327 = sand.u32 %s37, 1
        %s328 = smul.addr %s327, 1024
        %s329 = scalar_lea.vmem [#allocation5], %s328
        // Predicated region
        $region53: #{tpu_custom_call.1} parent=51 // pred_check
          %p330 = pneg %p50
        $region54: #{tpu_custom_call.1} parent=51 // pred_check_branch
          %332 = sbr.rel (%p330) target = $region56
        $region55: #{tpu_custom_call.1} parent=51 // pred_region
          %333 = dma.done %s326, 16384
        $region56: #{tpu_custom_call.1} parent=51 // pred_fallthru
          _
        %s334 = sand.u32 %s29, 1
        %s335 = scalar_lea.sflag [#allocation8], %s334
        %s336 = sand.u32 %s63, 1
        %s337 = smul.addr %s336, 8
        %s338 = scalar_lea.vmem [#allocation7], %s337
        // Predicated region
        $region57: #{tpu_custom_call.1} parent=51 // pred_check
          %p339 = pneg %p76
        $region58: #{tpu_custom_call.1} parent=51 // pred_check_branch
          %341 = sbr.rel (%p339) target = $region60
        $region59: #{tpu_custom_call.1} parent=51 // pred_region
          %342 = dma.done %s335, 128
        $region60: #{tpu_custom_call.1} parent=51 // pred_fallthru
          _
        // Predicated region
        $region61: #{tpu_custom_call.1} parent=51 // pred_check
          %p343 = pneg %p97
        $region62: #{tpu_custom_call.1} parent=51 // pred_check_branch
          %345 = sbr.rel (%p343) target = $region64
        $region63: #{tpu_custom_call.1} parent=51 // pred_region
          %346 = dma.done [#allocation8], 4096
        $region64: #{tpu_custom_call.1} parent=51 // pred_fallthru
          _
        %s347 = sand.u32 %s37, 1
        %s348 = scalar_lea.sflag [#allocation6], %s347
        %s349 = sand.u32 %s37, 1
        %s350 = smul.addr %s349, 1024
        %s351 = scalar_lea.vmem [#allocation5], %s350
        %p352 = pneg %p50
        %p353 = pneg %p47
        %s354 = sand.u32 %s29, 1
        %s355 = scalar_lea.sflag [#allocation8], %s354
        %s356 = sand.u32 %s63, 1
        %s357 = smul.addr %s356, 8
        %s358 = scalar_lea.vmem [#allocation7], %s357
        %p359 = pneg %p76
        %p360 = pneg %p73
        %p361 = pneg %p97
        %p362 = pneg %p94
        %p363 = pneg %p118
        %p364 = pneg %p115
        %p365 = pneg %p139
        %p366 = pneg %p136
        %p367 = pneg %p160
        %p368 = pneg %p157
        %p369 = pneg %p181
        %p370 = pneg %p178
        %p371 = pneg %p202
        %p372 = pneg %p199
        %p373 = pneg %p228
        %p374 = pneg %p225
        %p375 = scmp.lt.s32.totalorder %s29, 1
        %s376 = scalar_select %p375, %s29, 1
        %s377 = smul.addr %s376, 8
        %s378 = scalar_lea.vmem %s8, %s377
        %s379 = smul.u32 8, %s29
        %s380 = smul.u32 8, %s29
        %p381 = scmp.lt.s32.totalorder %s29, 1
        %s382 = scalar_select %p381, %s29, 1
        %s383 = smul.addr %s382, 8
        %s384 = scalar_lea.vmem %s8, %s383
        %v386 = vld [vmem:[%s4] sm:$0x3]
        %s387 = smul.u32 0, 2
        %s388 = smul.addr %s387, 4
        %s389 = scalar_lea.vmem %s329, %s388 [#allocation5]
        %v390 = vld [vmem:[%s389] sm:$0xff]
        %v391 = vld [vmem:[%s389 + $0x8] sm:$0xff]
        %v392 = vld [vmem:[%s389 + $0x10] sm:$0xff]
        %v393 = vld [vmem:[%s389 + $0x18] sm:$0xff]
        %v394 = vld [vmem:[%s389 + $0x20] sm:$0xff]
        %v395 = vld [vmem:[%s389 + $0x28] sm:$0xff]
        %v396 = vld [vmem:[%s389 + $0x30] sm:$0xff]
        %v397 = vld [vmem:[%s389 + $0x38] sm:$0xff]
        %v398 = vld [vmem:[%s389 + $0x40] sm:$0xff]
        %v399 = vld [vmem:[%s389 + $0x48] sm:$0xff]
        %v400 = vld [vmem:[%s389 + $0x50] sm:$0xff]
        %v401 = vld [vmem:[%s389 + $0x58] sm:$0xff]
        %v402 = vld [vmem:[%s389 + $0x60] sm:$0xff]
        %v403 = vld [vmem:[%s389 + $0x68] sm:$0xff]
        %v404 = vld [vmem:[%s389 + $0x70] sm:$0xff]
        %v405 = vld [vmem:[%s389 + $0x78] sm:$0xff]
        %v406 = vld [vmem:[%s389 + $0x80] sm:$0xff]
        %v407 = vld [vmem:[%s389 + $0x88] sm:$0xff]
        %v408 = vld [vmem:[%s389 + $0x90] sm:$0xff]
        %v409 = vld [vmem:[%s389 + $0x98] sm:$0xff]
        %v410 = vld [vmem:[%s389 + $0xa0] sm:$0xff]
        %v411 = vld [vmem:[%s389 + $0xa8] sm:$0xff]
        %v412 = vld [vmem:[%s389 + $0xb0] sm:$0xff]
        %v413 = vld [vmem:[%s389 + $0xb8] sm:$0xff]
        %v414 = vld [vmem:[%s389 + $0xc0] sm:$0xff]
        %v415 = vld [vmem:[%s389 + $0xc8] sm:$0xff]
        %v416 = vld [vmem:[%s389 + $0xd0] sm:$0xff]
        %v417 = vld [vmem:[%s389 + $0xd8] sm:$0xff]
        %v418 = vld [vmem:[%s389 + $0xe0] sm:$0xff]
        %v419 = vld [vmem:[%s389 + $0xe8] sm:$0xff]
        %v420 = vld [vmem:[%s389 + $0xf0] sm:$0xff]
        %v421 = vld [vmem:[%s389 + $0xf8] sm:$0xff]
        %v422 = vld [vmem:[%s389 + $0x100] sm:$0xff]
        %v423 = vld [vmem:[%s389 + $0x108] sm:$0xff]
        %v424 = vld [vmem:[%s389 + $0x110] sm:$0xff]
        %v425 = vld [vmem:[%s389 + $0x118] sm:$0xff]
        %v426 = vld [vmem:[%s389 + $0x120] sm:$0xff]
        %v427 = vld [vmem:[%s389 + $0x128] sm:$0xff]
        %v428 = vld [vmem:[%s389 + $0x130] sm:$0xff]
        %v429 = vld [vmem:[%s389 + $0x138] sm:$0xff]
        %v430 = vld [vmem:[%s389 + $0x140] sm:$0xff]
        %v431 = vld [vmem:[%s389 + $0x148] sm:$0xff]
        %v432 = vld [vmem:[%s389 + $0x150] sm:$0xff]
        %v433 = vld [vmem:[%s389 + $0x158] sm:$0xff]
        %v434 = vld [vmem:[%s389 + $0x160] sm:$0xff]
        %v435 = vld [vmem:[%s389 + $0x168] sm:$0xff]
        %v436 = vld [vmem:[%s389 + $0x170] sm:$0xff]
        %v437 = vld [vmem:[%s389 + $0x178] sm:$0xff]
        %v438 = vld [vmem:[%s389 + $0x180] sm:$0xff]
        %v439 = vld [vmem:[%s389 + $0x188] sm:$0xff]
        %v440 = vld [vmem:[%s389 + $0x190] sm:$0xff]
        %v441 = vld [vmem:[%s389 + $0x198] sm:$0xff]
        %v442 = vld [vmem:[%s389 + $0x1a0] sm:$0xff]
        %v443 = vld [vmem:[%s389 + $0x1a8] sm:$0xff]
        %v444 = vld [vmem:[%s389 + $0x1b0] sm:$0xff]
        %v445 = vld [vmem:[%s389 + $0x1b8] sm:$0xff]
        %v446 = vld [vmem:[%s389 + $0x1c0] sm:$0xff]
        %v447 = vld [vmem:[%s389 + $0x1c8] sm:$0xff]
        %v448 = vld [vmem:[%s389 + $0x1d0] sm:$0xff]
        %v449 = vld [vmem:[%s389 + $0x1d8] sm:$0xff]
        %v450 = vld [vmem:[%s389 + $0x1e0] sm:$0xff]
        %v451 = vld [vmem:[%s389 + $0x1e8] sm:$0xff]
        %v452 = vld [vmem:[%s389 + $0x1f0] sm:$0xff]
        %v453 = vld [vmem:[%s389 + $0x1f8] sm:$0xff]
        %v454 = vld [vmem:[%s389 + $0x200] sm:$0xff]
        %v455 = vld [vmem:[%s389 + $0x208] sm:$0xff]
        %v456 = vld [vmem:[%s389 + $0x210] sm:$0xff]
        %v457 = vld [vmem:[%s389 + $0x218] sm:$0xff]
        %v458 = vld [vmem:[%s389 + $0x220] sm:$0xff]
        %v459 = vld [vmem:[%s389 + $0x228] sm:$0xff]
        %v460 = vld [vmem:[%s389 + $0x230] sm:$0xff]
        %v461 = vld [vmem:[%s389 + $0x238] sm:$0xff]
        %v462 = vld [vmem:[%s389 + $0x240] sm:$0xff]
        %v463 = vld [vmem:[%s389 + $0x248] sm:$0xff]
        %v464 = vld [vmem:[%s389 + $0x250] sm:$0xff]
        %v465 = vld [vmem:[%s389 + $0x258] sm:$0xff]
        %v466 = vld [vmem:[%s389 + $0x260] sm:$0xff]
        %v467 = vld [vmem:[%s389 + $0x268] sm:$0xff]
        %v468 = vld [vmem:[%s389 + $0x270] sm:$0xff]
        %v469 = vld [vmem:[%s389 + $0x278] sm:$0xff]
        %v470 = vld [vmem:[%s389 + $0x280] sm:$0xff]
        %v471 = vld [vmem:[%s389 + $0x288] sm:$0xff]
        %v472 = vld [vmem:[%s389 + $0x290] sm:$0xff]
        %v473 = vld [vmem:[%s389 + $0x298] sm:$0xff]
        %v474 = vld [vmem:[%s389 + $0x2a0] sm:$0xff]
        %v475 = vld [vmem:[%s389 + $0x2a8] sm:$0xff]
        %v476 = vld [vmem:[%s389 + $0x2b0] sm:$0xff]
        %v477 = vld [vmem:[%s389 + $0x2b8] sm:$0xff]
        %v478 = vld [vmem:[%s389 + $0x2c0] sm:$0xff]
        %v479 = vld [vmem:[%s389 + $0x2c8] sm:$0xff]
        %v480 = vld [vmem:[%s389 + $0x2d0] sm:$0xff]
        %v481 = vld [vmem:[%s389 + $0x2d8] sm:$0xff]
        %v482 = vld [vmem:[%s389 + $0x2e0] sm:$0xff]
        %v483 = vld [vmem:[%s389 + $0x2e8] sm:$0xff]
        %v484 = vld [vmem:[%s389 + $0x2f0] sm:$0xff]
        %v485 = vld [vmem:[%s389 + $0x2f8] sm:$0xff]
        %v486 = vld [vmem:[%s389 + $0x300] sm:$0xff]
        %v487 = vld [vmem:[%s389 + $0x308] sm:$0xff]
        %v488 = vld [vmem:[%s389 + $0x310] sm:$0xff]
        %v489 = vld [vmem:[%s389 + $0x318] sm:$0xff]
        %v490 = vld [vmem:[%s389 + $0x320] sm:$0xff]
        %v491 = vld [vmem:[%s389 + $0x328] sm:$0xff]
        %v492 = vld [vmem:[%s389 + $0x330] sm:$0xff]
        %v493 = vld [vmem:[%s389 + $0x338] sm:$0xff]
        %v494 = vld [vmem:[%s389 + $0x340] sm:$0xff]
        %v495 = vld [vmem:[%s389 + $0x348] sm:$0xff]
        %v496 = vld [vmem:[%s389 + $0x350] sm:$0xff]
        %v497 = vld [vmem:[%s389 + $0x358] sm:$0xff]
        %v498 = vld [vmem:[%s389 + $0x360] sm:$0xff]
        %v499 = vld [vmem:[%s389 + $0x368] sm:$0xff]
        %v500 = vld [vmem:[%s389 + $0x370] sm:$0xff]
        %v501 = vld [vmem:[%s389 + $0x378] sm:$0xff]
        %v502 = vld [vmem:[%s389 + $0x380] sm:$0xff]
        %v503 = vld [vmem:[%s389 + $0x388] sm:$0xff]
        %v504 = vld [vmem:[%s389 + $0x390] sm:$0xff]
        %v505 = vld [vmem:[%s389 + $0x398] sm:$0xff]
        %v506 = vld [vmem:[%s389 + $0x3a0] sm:$0xff]
        %v507 = vld [vmem:[%s389 + $0x3a8] sm:$0xff]
        %v508 = vld [vmem:[%s389 + $0x3b0] sm:$0xff]
        %v509 = vld [vmem:[%s389 + $0x3b8] sm:$0xff]
        %v510 = vld [vmem:[%s389 + $0x3c0] sm:$0xff]
        %v511 = vld [vmem:[%s389 + $0x3c8] sm:$0xff]
        %v512 = vld [vmem:[%s389 + $0x3d0] sm:$0xff]
        %v513 = vld [vmem:[%s389 + $0x3d8] sm:$0xff]
        %v514 = vld [vmem:[%s389 + $0x3e0] sm:$0xff]
        %v515 = vld [vmem:[%s389 + $0x3e8] sm:$0xff]
        %v516 = vld [vmem:[%s389 + $0x3f0] sm:$0xff]
        %v517 = vld [vmem:[%s389 + $0x3f8] sm:$0xff]
        %v518 = vld [vmem:[#allocation9] sm:$0xff]
        %v519 = vld [vmem:[#allocation9 + $0x8] sm:$0xff]
        %v520 = vld [vmem:[#allocation9 + $0x10] sm:$0xff]
        %v521 = vld [vmem:[#allocation9 + $0x18] sm:$0xff]
        %v522 = vld [vmem:[#allocation9 + $0x20] sm:$0xff]
        %v523 = vld [vmem:[#allocation9 + $0x28] sm:$0xff]
        %v524 = vld [vmem:[#allocation9 + $0x30] sm:$0xff]
        %v525 = vld [vmem:[#allocation9 + $0x38] sm:$0xff]
        %v526 = vld [vmem:[#allocation9 + $0x40] sm:$0xff]
        %v527 = vld [vmem:[#allocation9 + $0x48] sm:$0xff]
        %v528 = vld [vmem:[#allocation9 + $0x50] sm:$0xff]
        %v529 = vld [vmem:[#allocation9 + $0x58] sm:$0xff]
        %v530 = vld [vmem:[#allocation9 + $0x60] sm:$0xff]
        %v531 = vld [vmem:[#allocation9 + $0x68] sm:$0xff]
        %v532 = vld [vmem:[#allocation9 + $0x70] sm:$0xff]
        %v533 = vld [vmem:[#allocation9 + $0x78] sm:$0xff]
        %v534 = vld [vmem:[#allocation9 + $0x80] sm:$0xff]
        %v535 = vld [vmem:[#allocation9 + $0x88] sm:$0xff]
        %v536 = vld [vmem:[#allocation9 + $0x90] sm:$0xff]
        %v537 = vld [vmem:[#allocation9 + $0x98] sm:$0xff]
        %v538 = vld [vmem:[#allocation9 + $0xa0] sm:$0xff]
        %v539 = vld [vmem:[#allocation9 + $0xa8] sm:$0xff]
        %v540 = vld [vmem:[#allocation9 + $0xb0] sm:$0xff]
        %v541 = vld [vmem:[#allocation9 + $0xb8] sm:$0xff]
        %v542 = vld [vmem:[#allocation9 + $0xc0] sm:$0xff]
        %v543 = vld [vmem:[#allocation9 + $0xc8] sm:$0xff]
        %v544 = vld [vmem:[#allocation9 + $0xd0] sm:$0xff]
        %v545 = vld [vmem:[#allocation9 + $0xd8] sm:$0xff]
        %v546 = vld [vmem:[#allocation9 + $0xe0] sm:$0xff]
        %v547 = vld [vmem:[#allocation9 + $0xe8] sm:$0xff]
        %v548 = vld [vmem:[#allocation9 + $0xf0] sm:$0xff]
        %v549 = vld [vmem:[#allocation9 + $0xf8] sm:$0xff]
        %v550 = vld [vmem:[%s3] sm:$0x3]
        %v552 = vlaneseq
        %v553 = vshrl.u32 %v552, 7
        %v554 = vsub.s32 0, %v553
        %v555 = vrot.slane %v550, %v554
        %v556 = vlaneseq
        %v557 = vshrl.u32 %v556, 7
        %v558 = vsub.s32 1, %v557
        %v559 = vrot.slane %v550, %v558
        %v690 = vunpack.c.l.b16 %v390
        %v691 = vunpack.c.h.b16 %v390
        %v692 = vunpack.c.l.b16 %v391
        %v693 = vunpack.c.h.b16 %v391
        %v694 = vunpack.c.l.b16 %v392
        %v695 = vunpack.c.h.b16 %v392
        %v696 = vunpack.c.l.b16 %v393
        %v697 = vunpack.c.h.b16 %v393
        %v698 = vunpack.c.l.b16 %v394
        %v699 = vunpack.c.h.b16 %v394
        %v700 = vunpack.c.l.b16 %v395
        %v701 = vunpack.c.h.b16 %v395
        %v702 = vunpack.c.l.b16 %v396
        %v703 = vunpack.c.h.b16 %v396
        %v704 = vunpack.c.l.b16 %v397
        %v705 = vunpack.c.h.b16 %v397
        %v706 = vunpack.c.l.b16 %v398
        %v707 = vunpack.c.h.b16 %v398
        %v708 = vunpack.c.l.b16 %v399
        %v709 = vunpack.c.h.b16 %v399
        %v710 = vunpack.c.l.b16 %v400
        %v711 = vunpack.c.h.b16 %v400
        %v712 = vunpack.c.l.b16 %v401
        %v713 = vunpack.c.h.b16 %v401
        %v714 = vunpack.c.l.b16 %v402
        %v715 = vunpack.c.h.b16 %v402
        %v716 = vunpack.c.l.b16 %v403
        %v717 = vunpack.c.h.b16 %v403
        %v718 = vunpack.c.l.b16 %v404
        %v719 = vunpack.c.h.b16 %v404
        %v720 = vunpack.c.l.b16 %v405
        %v721 = vunpack.c.h.b16 %v405
        %v722 = vunpack.c.l.b16 %v406
        %v723 = vunpack.c.h.b16 %v406
        %v724 = vunpack.c.l.b16 %v407
        %v725 = vunpack.c.h.b16 %v407
        %v726 = vunpack.c.l.b16 %v408
        %v727 = vunpack.c.h.b16 %v408
        %v728 = vunpack.c.l.b16 %v409
        %v729 = vunpack.c.h.b16 %v409
        %v730 = vunpack.c.l.b16 %v410
        %v731 = vunpack.c.h.b16 %v410
        %v732 = vunpack.c.l.b16 %v411
        %v733 = vunpack.c.h.b16 %v411
        %v734 = vunpack.c.l.b16 %v412
        %v735 = vunpack.c.h.b16 %v412
        %v736 = vunpack.c.l.b16 %v413
        %v737 = vunpack.c.h.b16 %v413
        %v738 = vunpack.c.l.b16 %v414
        %v739 = vunpack.c.h.b16 %v414
        %v740 = vunpack.c.l.b16 %v415
        %v741 = vunpack.c.h.b16 %v415
        %v742 = vunpack.c.l.b16 %v416
        %v743 = vunpack.c.h.b16 %v416
        %v744 = vunpack.c.l.b16 %v417
        %v745 = vunpack.c.h.b16 %v417
        %v746 = vunpack.c.l.b16 %v418
        %v747 = vunpack.c.h.b16 %v418
        %v748 = vunpack.c.l.b16 %v419
        %v749 = vunpack.c.h.b16 %v419
        %v750 = vunpack.c.l.b16 %v420
        %v751 = vunpack.c.h.b16 %v420
        %v752 = vunpack.c.l.b16 %v421
        %v753 = vunpack.c.h.b16 %v421
        %v754 = vunpack.c.l.b16 %v422
        %v755 = vunpack.c.h.b16 %v422
        %v756 = vunpack.c.l.b16 %v423
        %v757 = vunpack.c.h.b16 %v423
        %v758 = vunpack.c.l.b16 %v424
        %v759 = vunpack.c.h.b16 %v424
        %v760 = vunpack.c.l.b16 %v425
        %v761 = vunpack.c.h.b16 %v425
        %v762 = vunpack.c.l.b16 %v426
        %v763 = vunpack.c.h.b16 %v426
        %v764 = vunpack.c.l.b16 %v427
        %v765 = vunpack.c.h.b16 %v427
        %v766 = vunpack.c.l.b16 %v428
        %v767 = vunpack.c.h.b16 %v428
        %v768 = vunpack.c.l.b16 %v429
        %v769 = vunpack.c.h.b16 %v429
        %v770 = vunpack.c.l.b16 %v430
        %v771 = vunpack.c.h.b16 %v430
        %v772 = vunpack.c.l.b16 %v431
        %v773 = vunpack.c.h.b16 %v431
        %v774 = vunpack.c.l.b16 %v432
        %v775 = vunpack.c.h.b16 %v432
        %v776 = vunpack.c.l.b16 %v433
        %v777 = vunpack.c.h.b16 %v433
        %v778 = vunpack.c.l.b16 %v434
        %v779 = vunpack.c.h.b16 %v434
        %v780 = vunpack.c.l.b16 %v435
        %v781 = vunpack.c.h.b16 %v435
        %v782 = vunpack.c.l.b16 %v436
        %v783 = vunpack.c.h.b16 %v436
        %v784 = vunpack.c.l.b16 %v437
        %v785 = vunpack.c.h.b16 %v437
        %v786 = vunpack.c.l.b16 %v438
        %v787 = vunpack.c.h.b16 %v438
        %v788 = vunpack.c.l.b16 %v439
        %v789 = vunpack.c.h.b16 %v439
        %v790 = vunpack.c.l.b16 %v440
        %v791 = vunpack.c.h.b16 %v440
        %v792 = vunpack.c.l.b16 %v441
        %v793 = vunpack.c.h.b16 %v441
        %v794 = vunpack.c.l.b16 %v442
        %v795 = vunpack.c.h.b16 %v442
        %v796 = vunpack.c.l.b16 %v443
        %v797 = vunpack.c.h.b16 %v443
        %v798 = vunpack.c.l.b16 %v444
        %v799 = vunpack.c.h.b16 %v444
        %v800 = vunpack.c.l.b16 %v445
        %v801 = vunpack.c.h.b16 %v445
        %v802 = vunpack.c.l.b16 %v446
        %v803 = vunpack.c.h.b16 %v446
        %v804 = vunpack.c.l.b16 %v447
        %v805 = vunpack.c.h.b16 %v447
        %v806 = vunpack.c.l.b16 %v448
        %v807 = vunpack.c.h.b16 %v448
        %v808 = vunpack.c.l.b16 %v449
        %v809 = vunpack.c.h.b16 %v449
        %v810 = vunpack.c.l.b16 %v450
        %v811 = vunpack.c.h.b16 %v450
        %v812 = vunpack.c.l.b16 %v451
        %v813 = vunpack.c.h.b16 %v451
        %v814 = vunpack.c.l.b16 %v452
        %v815 = vunpack.c.h.b16 %v452
        %v816 = vunpack.c.l.b16 %v453
        %v817 = vunpack.c.h.b16 %v453
        %v818 = vunpack.c.l.b16 %v454
        %v819 = vunpack.c.h.b16 %v454
        %v820 = vunpack.c.l.b16 %v455
        %v821 = vunpack.c.h.b16 %v455
        %v822 = vunpack.c.l.b16 %v456
        %v823 = vunpack.c.h.b16 %v456
        %v824 = vunpack.c.l.b16 %v457
        %v825 = vunpack.c.h.b16 %v457
        %v826 = vunpack.c.l.b16 %v458
        %v827 = vunpack.c.h.b16 %v458
        %v828 = vunpack.c.l.b16 %v459
        %v829 = vunpack.c.h.b16 %v459
        %v830 = vunpack.c.l.b16 %v460
        %v831 = vunpack.c.h.b16 %v460
        %v832 = vunpack.c.l.b16 %v461
        %v833 = vunpack.c.h.b16 %v461
        %v834 = vunpack.c.l.b16 %v462
        %v835 = vunpack.c.h.b16 %v462
        %v836 = vunpack.c.l.b16 %v463
        %v837 = vunpack.c.h.b16 %v463
        %v838 = vunpack.c.l.b16 %v464
        %v839 = vunpack.c.h.b16 %v464
        %v840 = vunpack.c.l.b16 %v465
        %v841 = vunpack.c.h.b16 %v465
        %v842 = vunpack.c.l.b16 %v466
        %v843 = vunpack.c.h.b16 %v466
        %v844 = vunpack.c.l.b16 %v467
        %v845 = vunpack.c.h.b16 %v467
        %v846 = vunpack.c.l.b16 %v468
        %v847 = vunpack.c.h.b16 %v468
        %v848 = vunpack.c.l.b16 %v469
        %v849 = vunpack.c.h.b16 %v469
        %v850 = vunpack.c.l.b16 %v470
        %v851 = vunpack.c.h.b16 %v470
        %v852 = vunpack.c.l.b16 %v471
        %v853 = vunpack.c.h.b16 %v471
        %v854 = vunpack.c.l.b16 %v472
        %v855 = vunpack.c.h.b16 %v472
        %v856 = vunpack.c.l.b16 %v473
        %v857 = vunpack.c.h.b16 %v473
        %v858 = vunpack.c.l.b16 %v474
        %v859 = vunpack.c.h.b16 %v474
        %v860 = vunpack.c.l.b16 %v475
        %v861 = vunpack.c.h.b16 %v475
        %v862 = vunpack.c.l.b16 %v476
        %v863 = vunpack.c.h.b16 %v476
        %v864 = vunpack.c.l.b16 %v477
        %v865 = vunpack.c.h.b16 %v477
        %v866 = vunpack.c.l.b16 %v478
        %v867 = vunpack.c.h.b16 %v478
        %v868 = vunpack.c.l.b16 %v479
        %v869 = vunpack.c.h.b16 %v479
        %v870 = vunpack.c.l.b16 %v480
        %v871 = vunpack.c.h.b16 %v480
        %v872 = vunpack.c.l.b16 %v481
        %v873 = vunpack.c.h.b16 %v481
        %v874 = vunpack.c.l.b16 %v482
        %v875 = vunpack.c.h.b16 %v482
        %v876 = vunpack.c.l.b16 %v483
        %v877 = vunpack.c.h.b16 %v483
        %v878 = vunpack.c.l.b16 %v484
        %v879 = vunpack.c.h.b16 %v484
        %v880 = vunpack.c.l.b16 %v485
        %v881 = vunpack.c.h.b16 %v485
        %v882 = vunpack.c.l.b16 %v486
        %v883 = vunpack.c.h.b16 %v486
        %v884 = vunpack.c.l.b16 %v487
        %v885 = vunpack.c.h.b16 %v487
        %v886 = vunpack.c.l.b16 %v488
        %v887 = vunpack.c.h.b16 %v488
        %v888 = vunpack.c.l.b16 %v489
        %v889 = vunpack.c.h.b16 %v489
        %v890 = vunpack.c.l.b16 %v490
        %v891 = vunpack.c.h.b16 %v490
        %v892 = vunpack.c.l.b16 %v491
        %v893 = vunpack.c.h.b16 %v491
        %v894 = vunpack.c.l.b16 %v492
        %v895 = vunpack.c.h.b16 %v492
        %v896 = vunpack.c.l.b16 %v493
        %v897 = vunpack.c.h.b16 %v493
        %v898 = vunpack.c.l.b16 %v494
        %v899 = vunpack.c.h.b16 %v494
        %v900 = vunpack.c.l.b16 %v495
        %v901 = vunpack.c.h.b16 %v495
        %v902 = vunpack.c.l.b16 %v496
        %v903 = vunpack.c.h.b16 %v496
        %v904 = vunpack.c.l.b16 %v497
        %v905 = vunpack.c.h.b16 %v497
        %v906 = vunpack.c.l.b16 %v498
        %v907 = vunpack.c.h.b16 %v498
        %v908 = vunpack.c.l.b16 %v499
        %v909 = vunpack.c.h.b16 %v499
        %v910 = vunpack.c.l.b16 %v500
        %v911 = vunpack.c.h.b16 %v500
        %v912 = vunpack.c.l.b16 %v501
        %v913 = vunpack.c.h.b16 %v501
        %v914 = vunpack.c.l.b16 %v502
        %v915 = vunpack.c.h.b16 %v502
        %v916 = vunpack.c.l.b16 %v503
        %v917 = vunpack.c.h.b16 %v503
        %v918 = vunpack.c.l.b16 %v504
        %v919 = vunpack.c.h.b16 %v504
        %v920 = vunpack.c.l.b16 %v505
        %v921 = vunpack.c.h.b16 %v505
        %v922 = vunpack.c.l.b16 %v506
        %v923 = vunpack.c.h.b16 %v506
        %v924 = vunpack.c.l.b16 %v507
        %v925 = vunpack.c.h.b16 %v507
        %v926 = vunpack.c.l.b16 %v508
        %v927 = vunpack.c.h.b16 %v508
        %v928 = vunpack.c.l.b16 %v509
        %v929 = vunpack.c.h.b16 %v509
        %v930 = vunpack.c.l.b16 %v510
        %v931 = vunpack.c.h.b16 %v510
        %v932 = vunpack.c.l.b16 %v511
        %v933 = vunpack.c.h.b16 %v511
        %v934 = vunpack.c.l.b16 %v512
        %v935 = vunpack.c.h.b16 %v512
        %v936 = vunpack.c.l.b16 %v513
        %v937 = vunpack.c.h.b16 %v513
        %v938 = vunpack.c.l.b16 %v514
        %v939 = vunpack.c.h.b16 %v514
        %v940 = vunpack.c.l.b16 %v515
        %v941 = vunpack.c.h.b16 %v515
        %v942 = vunpack.c.l.b16 %v516
        %v943 = vunpack.c.h.b16 %v516
        %v944 = vunpack.c.l.b16 %v517
        %v945 = vunpack.c.h.b16 %v517
        %v946 = vpack.c.b16 %v692, %v690
        %v947 = vpack.c.b16 %v693, %v691
        %v948 = vpack.c.b16 %v696, %v694
        %v949 = vpack.c.b16 %v697, %v695
        %v950 = vpack.c.b16 %v700, %v698
        %v951 = vpack.c.b16 %v701, %v699
        %v952 = vpack.c.b16 %v704, %v702
        %v953 = vpack.c.b16 %v705, %v703
        %v954 = vpack.c.b16 %v708, %v706
        %v955 = vpack.c.b16 %v709, %v707
        %v956 = vpack.c.b16 %v712, %v710
        %v957 = vpack.c.b16 %v713, %v711
        %v958 = vpack.c.b16 %v716, %v714
        %v959 = vpack.c.b16 %v717, %v715
        %v960 = vpack.c.b16 %v720, %v718
        %v961 = vpack.c.b16 %v721, %v719
        %v962 = vpack.c.b16 %v724, %v722
        %v963 = vpack.c.b16 %v725, %v723
        %v964 = vpack.c.b16 %v728, %v726
        %v965 = vpack.c.b16 %v729, %v727
        %v966 = vpack.c.b16 %v732, %v730
        %v967 = vpack.c.b16 %v733, %v731
        %v968 = vpack.c.b16 %v736, %v734
        %v969 = vpack.c.b16 %v737, %v735
        %v970 = vpack.c.b16 %v740, %v738
        %v971 = vpack.c.b16 %v741, %v739
        %v972 = vpack.c.b16 %v744, %v742
        %v973 = vpack.c.b16 %v745, %v743
        %v974 = vpack.c.b16 %v748, %v746
        %v975 = vpack.c.b16 %v749, %v747
        %v976 = vpack.c.b16 %v752, %v750
        %v977 = vpack.c.b16 %v753, %v751
        %v978 = vpack.c.b16 %v756, %v754
        %v979 = vpack.c.b16 %v757, %v755
        %v980 = vpack.c.b16 %v760, %v758
        %v981 = vpack.c.b16 %v761, %v759
        %v982 = vpack.c.b16 %v764, %v762
        %v983 = vpack.c.b16 %v765, %v763
        %v984 = vpack.c.b16 %v768, %v766
        %v985 = vpack.c.b16 %v769, %v767
        %v986 = vpack.c.b16 %v772, %v770
        %v987 = vpack.c.b16 %v773, %v771
        %v988 = vpack.c.b16 %v776, %v774
        %v989 = vpack.c.b16 %v777, %v775
        %v990 = vpack.c.b16 %v780, %v778
        %v991 = vpack.c.b16 %v781, %v779
        %v992 = vpack.c.b16 %v784, %v782
        %v993 = vpack.c.b16 %v785, %v783
        %v994 = vpack.c.b16 %v788, %v786
        %v995 = vpack.c.b16 %v789, %v787
        %v996 = vpack.c.b16 %v792, %v790
        %v997 = vpack.c.b16 %v793, %v791
        %v998 = vpack.c.b16 %v796, %v794
        %v999 = vpack.c.b16 %v797, %v795
        %v1000 = vpack.c.b16 %v800, %v798
        %v1001 = vpack.c.b16 %v801, %v799
        %v1002 = vpack.c.b16 %v804, %v802
        %v1003 = vpack.c.b16 %v805, %v803
        %v1004 = vpack.c.b16 %v808, %v806
        %v1005 = vpack.c.b16 %v809, %v807
        %v1006 = vpack.c.b16 %v812, %v810
        %v1007 = vpack.c.b16 %v813, %v811
        %v1008 = vpack.c.b16 %v816, %v814
        %v1009 = vpack.c.b16 %v817, %v815
        %v1010 = vpack.c.b16 %v820, %v818
        %v1011 = vpack.c.b16 %v821, %v819
        %v1012 = vpack.c.b16 %v824, %v822
        %v1013 = vpack.c.b16 %v825, %v823
        %v1014 = vpack.c.b16 %v828, %v826
        %v1015 = vpack.c.b16 %v829, %v827
        %v1016 = vpack.c.b16 %v832, %v830
        %v1017 = vpack.c.b16 %v833, %v831
        %v1018 = vpack.c.b16 %v836, %v834
        %v1019 = vpack.c.b16 %v837, %v835
        %v1020 = vpack.c.b16 %v840, %v838
        %v1021 = vpack.c.b16 %v841, %v839
        %v1022 = vpack.c.b16 %v844, %v842
        %v1023 = vpack.c.b16 %v845, %v843
        %v1024 = vpack.c.b16 %v848, %v846
        %v1025 = vpack.c.b16 %v849, %v847
        %v1026 = vpack.c.b16 %v852, %v850
        %v1027 = vpack.c.b16 %v853, %v851
        %v1028 = vpack.c.b16 %v856, %v854
        %v1029 = vpack.c.b16 %v857, %v855
        %v1030 = vpack.c.b16 %v860, %v858
        %v1031 = vpack.c.b16 %v861, %v859
        %v1032 = vpack.c.b16 %v864, %v862
        %v1033 = vpack.c.b16 %v865, %v863
        %v1034 = vpack.c.b16 %v868, %v866
        %v1035 = vpack.c.b16 %v869, %v867
        %v1036 = vpack.c.b16 %v872, %v870
        %v1037 = vpack.c.b16 %v873, %v871
        %v1038 = vpack.c.b16 %v876, %v874
        %v1039 = vpack.c.b16 %v877, %v875
        %v1040 = vpack.c.b16 %v880, %v878
        %v1041 = vpack.c.b16 %v881, %v879
        %v1042 = vpack.c.b16 %v884, %v882
        %v1043 = vpack.c.b16 %v885, %v883
        %v1044 = vpack.c.b16 %v888, %v886
        %v1045 = vpack.c.b16 %v889, %v887
        %v1046 = vpack.c.b16 %v892, %v890
        %v1047 = vpack.c.b16 %v893, %v891
        %v1048 = vpack.c.b16 %v896, %v894
        %v1049 = vpack.c.b16 %v897, %v895
        %v1050 = vpack.c.b16 %v900, %v898
        %v1051 = vpack.c.b16 %v901, %v899
        %v1052 = vpack.c.b16 %v904, %v902
        %v1053 = vpack.c.b16 %v905, %v903
        %v1054 = vpack.c.b16 %v908, %v906
        %v1055 = vpack.c.b16 %v909, %v907
        %v1056 = vpack.c.b16 %v912, %v910
        %v1057 = vpack.c.b16 %v913, %v911
        %v1058 = vpack.c.b16 %v916, %v914
        %v1059 = vpack.c.b16 %v917, %v915
        %v1060 = vpack.c.b16 %v920, %v918
        %v1061 = vpack.c.b16 %v921, %v919
        %v1062 = vpack.c.b16 %v924, %v922
        %v1063 = vpack.c.b16 %v925, %v923
        %v1064 = vpack.c.b16 %v928, %v926
        %v1065 = vpack.c.b16 %v929, %v927
        %v1066 = vpack.c.b16 %v932, %v930
        %v1067 = vpack.c.b16 %v933, %v931
        %v1068 = vpack.c.b16 %v936, %v934
        %v1069 = vpack.c.b16 %v937, %v935
        %v1070 = vpack.c.b16 %v940, %v938
        %v1071 = vpack.c.b16 %v941, %v939
        %v1072 = vpack.c.b16 %v944, %v942
        %v1073 = vpack.c.b16 %v945, %v943
        %v1234 = vunpack.c.l.b16 %v518
        %v1235 = vunpack.c.h.b16 %v518
        %v1236 = vunpack.c.l.b16 %v519
        %v1237 = vunpack.c.h.b16 %v519
        %v1238 = vunpack.c.l.b16 %v520
        %v1239 = vunpack.c.h.b16 %v520
        %v1240 = vunpack.c.l.b16 %v521
        %v1241 = vunpack.c.h.b16 %v521
        %v1242 = vunpack.c.l.b16 %v522
        %v1243 = vunpack.c.h.b16 %v522
        %v1244 = vunpack.c.l.b16 %v523
        %v1245 = vunpack.c.h.b16 %v523
        %v1246 = vunpack.c.l.b16 %v524
        %v1247 = vunpack.c.h.b16 %v524
        %v1248 = vunpack.c.l.b16 %v525
        %v1249 = vunpack.c.h.b16 %v525
        %v1250 = vunpack.c.l.b16 %v526
        %v1251 = vunpack.c.h.b16 %v526
        %v1252 = vunpack.c.l.b16 %v527
        %v1253 = vunpack.c.h.b16 %v527
        %v1254 = vunpack.c.l.b16 %v528
        %v1255 = vunpack.c.h.b16 %v528
        %v1256 = vunpack.c.l.b16 %v529
        %v1257 = vunpack.c.h.b16 %v529
        %v1258 = vunpack.c.l.b16 %v530
        %v1259 = vunpack.c.h.b16 %v530
        %v1260 = vunpack.c.l.b16 %v531
        %v1261 = vunpack.c.h.b16 %v531
        %v1262 = vunpack.c.l.b16 %v532
        %v1263 = vunpack.c.h.b16 %v532
        %v1264 = vunpack.c.l.b16 %v533
        %v1265 = vunpack.c.h.b16 %v533
        %v1266 = vunpack.c.l.b16 %v534
        %v1267 = vunpack.c.h.b16 %v534
        %v1268 = vunpack.c.l.b16 %v535
        %v1269 = vunpack.c.h.b16 %v535
        %v1270 = vunpack.c.l.b16 %v536
        %v1271 = vunpack.c.h.b16 %v536
        %v1272 = vunpack.c.l.b16 %v537
        %v1273 = vunpack.c.h.b16 %v537
        %v1274 = vunpack.c.l.b16 %v538
        %v1275 = vunpack.c.h.b16 %v538
        %v1276 = vunpack.c.l.b16 %v539
        %v1277 = vunpack.c.h.b16 %v539
        %v1278 = vunpack.c.l.b16 %v540
        %v1279 = vunpack.c.h.b16 %v540
        %v1280 = vunpack.c.l.b16 %v541
        %v1281 = vunpack.c.h.b16 %v541
        %v1282 = vunpack.c.l.b16 %v542
        %v1283 = vunpack.c.h.b16 %v542
        %v1284 = vunpack.c.l.b16 %v543
        %v1285 = vunpack.c.h.b16 %v543
        %v1286 = vunpack.c.l.b16 %v544
        %v1287 = vunpack.c.h.b16 %v544
        %v1288 = vunpack.c.l.b16 %v545
        %v1289 = vunpack.c.h.b16 %v545
        %v1290 = vunpack.c.l.b16 %v546
        %v1291 = vunpack.c.h.b16 %v546
        %v1292 = vunpack.c.l.b16 %v547
        %v1293 = vunpack.c.h.b16 %v547
        %v1294 = vunpack.c.l.b16 %v548
        %v1295 = vunpack.c.h.b16 %v548
        %v1296 = vunpack.c.l.b16 %v549
        %v1297 = vunpack.c.h.b16 %v549
        %v1298 = vpack.c.b16 %v1236, %v1234
        %v1299 = vpack.c.b16 %v1237, %v1235
        %v1300 = vpack.c.b16 %v1240, %v1238
        %v1301 = vpack.c.b16 %v1241, %v1239
        %v1302 = vpack.c.b16 %v1244, %v1242
        %v1303 = vpack.c.b16 %v1245, %v1243
        %v1304 = vpack.c.b16 %v1248, %v1246
        %v1305 = vpack.c.b16 %v1249, %v1247
        %v1306 = vpack.c.b16 %v1252, %v1250
        %v1307 = vpack.c.b16 %v1253, %v1251
        %v1308 = vpack.c.b16 %v1256, %v1254
        %v1309 = vpack.c.b16 %v1257, %v1255
        %v1310 = vpack.c.b16 %v1260, %v1258
        %v1311 = vpack.c.b16 %v1261, %v1259
        %v1312 = vpack.c.b16 %v1264, %v1262
        %v1313 = vpack.c.b16 %v1265, %v1263
        %v1314 = vpack.c.b16 %v1268, %v1266
        %v1315 = vpack.c.b16 %v1269, %v1267
        %v1316 = vpack.c.b16 %v1272, %v1270
        %v1317 = vpack.c.b16 %v1273, %v1271
        %v1318 = vpack.c.b16 %v1276, %v1274
        %v1319 = vpack.c.b16 %v1277, %v1275
        %v1320 = vpack.c.b16 %v1280, %v1278
        %v1321 = vpack.c.b16 %v1281, %v1279
        %v1322 = vpack.c.b16 %v1284, %v1282
        %v1323 = vpack.c.b16 %v1285, %v1283
        %v1324 = vpack.c.b16 %v1288, %v1286
        %v1325 = vpack.c.b16 %v1289, %v1287
        %v1326 = vpack.c.b16 %v1292, %v1290
        %v1327 = vpack.c.b16 %v1293, %v1291
        %v1328 = vpack.c.b16 %v1296, %v1294
        %v1329 = vpack.c.b16 %v1297, %v1295
        %1362 = vmatprep.subr.bf16.mxu0 %v1299
        %1363 = vmatpush1.bf16.msra.mxu0 %v1298
        %1364 = vmatprep.subr.bf16.mxu0 %v1301
        %1365 = vmatpush1.bf16.msra.mxu0 %v1300
        %1366 = vmatprep.subr.bf16.mxu0 %v1303
        %1367 = vmatpush1.bf16.msra.mxu0 %v1302
        %1368 = vmatprep.subr.bf16.mxu0 %v1305
        %1369 = vmatpush1.bf16.msra.mxu0 %v1304
        %1370 = vmatprep.subr.bf16.mxu0 %v1307
        %1371 = vmatpush1.bf16.msra.mxu0 %v1306
        %1372 = vmatprep.subr.bf16.mxu0 %v1309
        %1373 = vmatpush1.bf16.msra.mxu0 %v1308
        %1374 = vmatprep.subr.bf16.mxu0 %v1311
        %1375 = vmatpush1.bf16.msra.mxu0 %v1310
        %1376 = vmatprep.subr.bf16.mxu0 %v1313
        %1377 = vmatpush1.bf16.msra.mxu0 %v1312
        %1378 = vmatprep.subr.bf16.mxu0 %v1315
        %1379 = vmatpush1.bf16.msra.mxu0 %v1314
        %1380 = vmatprep.subr.bf16.mxu0 %v1317
        %1381 = vmatpush1.bf16.msra.mxu0 %v1316
        %1382 = vmatprep.subr.bf16.mxu0 %v1319
        %1383 = vmatpush1.bf16.msra.mxu0 %v1318
        %1384 = vmatprep.subr.bf16.mxu0 %v1321
        %1385 = vmatpush1.bf16.msra.mxu0 %v1320
        %1386 = vmatprep.subr.bf16.mxu0 %v1323
        %1387 = vmatpush1.bf16.msra.mxu0 %v1322
        %1388 = vmatprep.subr.bf16.mxu0 %v1325
        %1389 = vmatpush1.bf16.msra.mxu0 %v1324
        %1390 = vmatprep.subr.bf16.mxu0 %v1327
        %1391 = vmatpush1.bf16.msra.mxu0 %v1326
        %1392 = vmatprep.subr.bf16.mxu0 %v1329
        %1393 = vmatpush1.bf16.msra.mxu0 %v1328
        %1394 = vmatprep.mubr.bf16.mxu0 %v947
        %1395 = vmatmul.mubr.bf16.gmra.mrb[0].mxu0 %v946
        %v1396 = vpop.f32.mrb[0].mxu0
        %v1397 = vadd.f32 %v555, %v1396
        %v1398 = vpop.f32.mrb[0].mxu0
        %v1399 = vadd.f32 %v559, %v1398
        %v1400 = vpop.f32.mrb[0].mxu0
        %v1401 = vadd.f32 %v555, %v1400
        %v1402 = vpop.f32.mrb[0].mxu0
        %v1403 = vadd.f32 %v559, %v1402
        %1404 = vmatprep.mubr.bf16.mxu0 %v949
        %1405 = vmatmul.mubr.bf16.gmra.mrb[0].mxu0 %v948
        %v1406 = vpop.f32.mrb[0].mxu0
        %v1407 = vadd.f32 %v555, %v1406
        %v1408 = vpop.f32.mrb[0].mxu0
        %v1409 = vadd.f32 %v559, %v1408
        %v1410 = vpop.f32.mrb[0].mxu0
        %v1411 = vadd.f32 %v555, %v1410
        %v1412 = vpop.f32.mrb[0].mxu0
        %v1413 = vadd.f32 %v559, %v1412
        %1414 = vmatprep.mubr.bf16.mxu0 %v951
        %1415 = vmatmul.mubr.bf16.gmra.mrb[0].mxu0 %v950
        %v1416 = vpop.f32.mrb[0].mxu0
        %v1417 = vadd.f32 %v555, %v1416
        %v1418 = vpop.f32.mrb[0].mxu0
        %v1419 = vadd.f32 %v559, %v1418
        %v1420 = vpop.f32.mrb[0].mxu0
        %v1421 = vadd.f32 %v555, %v1420
        %v1422 = vpop.f32.mrb[0].mxu0
        %v1423 = vadd.f32 %v559, %v1422
        %1424 = vmatprep.mubr.bf16.mxu0 %v953
        %1425 = vmatmul.mubr.bf16.gmra.mrb[0].mxu0 %v952
        %v1426 = vpop.f32.mrb[0].mxu0
        %v1427 = vadd.f32 %v555, %v1426
        %v1428 = vpop.f32.mrb[0].mxu0
        %v1429 = vadd.f32 %v559, %v1428
        %v1430 = vpop.f32.mrb[0].mxu0
        %v1431 = vadd.f32 %v555, %v1430
        %v1432 = vpop.f32.mrb[0].mxu0
        %v1433 = vadd.f32 %v559, %v1432
        %1434 = vmatprep.mubr.bf16.mxu0 %v955
        %1435 = vmatmul.mubr.bf16.gmra.mrb[0].mxu0 %v954
        %v1436 = vpop.f32.mrb[0].mxu0
        %v1437 = vadd.f32 %v555, %v1436
        %v1438 = vpop.f32.mrb[0].mxu0
        %v1439 = vadd.f32 %v559, %v1438
        %v1440 = vpop.f32.mrb[0].mxu0
        %v1441 = vadd.f32 %v555, %v1440
        %v1442 = vpop.f32.mrb[0].mxu0
        %v1443 = vadd.f32 %v559, %v1442
        %1444 = vmatprep.mubr.bf16.mxu0 %v957
        %1445 = vmatmul.mubr.bf16.gmra.mrb[0].mxu0 %v956
        %v1446 = vpop.f32.mrb[0].mxu0
        %v1447 = vadd.f32 %v555, %v1446
        %v1448 = vpop.f32.mrb[0].mxu0
        %v1449 = vadd.f32 %v559, %v1448
        %v1450 = vpop.f32.mrb[0].mxu0
        %v1451 = vadd.f32 %v555, %v1450
        %v1452 = vpop.f32.mrb[0].mxu0
        %v1453 = vadd.f32 %v559, %v1452
        %1454 = vmatprep.mubr.bf16.mxu0 %v959
        %1455 = vmatmul.mubr.bf16.gmra.mrb[0].mxu0 %v958
        %v1456 = vpop.f32.mrb[0].mxu0
        %v1457 = vadd.f32 %v555, %v1456
        %v1458 = vpop.f32.mrb[0].mxu0
        %v1459 = vadd.f32 %v559, %v1458
        %v1460 = vpop.f32.mrb[0].mxu0
        %v1461 = vadd.f32 %v555, %v1460
        %v1462 = vpop.f32.mrb[0].mxu0
        %v1463 = vadd.f32 %v559, %v1462
        %1464 = vmatprep.mubr.bf16.mxu0 %v961
        %1465 = vmatmul.mubr.bf16.gmra.mrb[0].mxu0 %v960
        %v1466 = vpop.f32.mrb[0].mxu0
        %v1467 = vadd.f32 %v555, %v1466
        %v1468 = vpop.f32.mrb[0].mxu0
        %v1469 = vadd.f32 %v559, %v1468
        %v1470 = vpop.f32.mrb[0].mxu0
        %v1471 = vadd.f32 %v555, %v1470
        %v1472 = vpop.f32.mrb[0].mxu0
        %v1473 = vadd.f32 %v559, %v1472
        %1474 = vmatprep.mubr.bf16.mxu0 %v963
        %1475 = vmatmul.mubr.bf16.gmra.mrb[0].mxu0 %v962
        %v1476 = vpop.f32.mrb[0].mxu0
        %v1477 = vadd.f32 %v555, %v1476
        %v1478 = vpop.f32.mrb[0].mxu0
        %v1479 = vadd.f32 %v559, %v1478
        %v1480 = vpop.f32.mrb[0].mxu0
        %v1481 = vadd.f32 %v555, %v1480
        %v1482 = vpop.f32.mrb[0].mxu0
        %v1483 = vadd.f32 %v559, %v1482
        %1484 = vmatprep.mubr.bf16.mxu0 %v965
        %1485 = vmatmul.mubr.bf16.gmra.mrb[0].mxu0 %v964
        %v1486 = vpop.f32.mrb[0].mxu0
        %v1487 = vadd.f32 %v555, %v1486
        %v1488 = vpop.f32.mrb[0].mxu0
        %v1489 = vadd.f32 %v559, %v1488
        %v1490 = vpop.f32.mrb[0].mxu0
        %v1491 = vadd.f32 %v555, %v1490
        %v1492 = vpop.f32.mrb[0].mxu0
        %v1493 = vadd.f32 %v559, %v1492
        %1494 = vmatprep.mubr.bf16.mxu0 %v967
        %1495 = vmatmul.mubr.bf16.gmra.mrb[0].mxu0 %v966
        %v1496 = vpop.f32.mrb[0].mxu0
        %v1497 = vadd.f32 %v555, %v1496
        %v1498 = vpop.f32.mrb[0].mxu0
        %v1499 = vadd.f32 %v559, %v1498
        %v1500 = vpop.f32.mrb[0].mxu0
        %v1501 = vadd.f32 %v555, %v1500
        %v1502 = vpop.f32.mrb[0].mxu0
        %v1503 = vadd.f32 %v559, %v1502
        %1504 = vmatprep.mubr.bf16.mxu0 %v969
        %1505 = vmatmul.mubr.bf16.gmra.mrb[0].mxu0 %v968
        %v1506 = vpop.f32.mrb[0].mxu0
        %v1507 = vadd.f32 %v555, %v1506
        %v1508 = vpop.f32.mrb[0].mxu0
        %v1509 = vadd.f32 %v559, %v1508
        %v1510 = vpop.f32.mrb[0].mxu0
        %v1511 = vadd.f32 %v555, %v1510
        %v1512 = vpop.f32.mrb[0].mxu0
        %v1513 = vadd.f32 %v559, %v1512
        %1514 = vmatprep.mubr.bf16.mxu0 %v971
        %1515 = vmatmul.mubr.bf16.gmra.mrb[0].mxu0 %v970
        %v1516 = vpop.f32.mrb[0].mxu0
        %v1517 = vadd.f32 %v555, %v1516
        %v1518 = vpop.f32.mrb[0].mxu0
        %v1519 = vadd.f32 %v559, %v1518
        %v1520 = vpop.f32.mrb[0].mxu0
        %v1521 = vadd.f32 %v555, %v1520
        %v1522 = vpop.f32.mrb[0].mxu0
        %v1523 = vadd.f32 %v559, %v1522
        %1524 = vmatprep.mubr.bf16.mxu0 %v973
        %1525 = vmatmul.mubr.bf16.gmra.mrb[0].mxu0 %v972
        %v1526 = vpop.f32.mrb[0].mxu0
        %v1527 = vadd.f32 %v555, %v1526
        %v1528 = vpop.f32.mrb[0].mxu0
        %v1529 = vadd.f32 %v559, %v1528
        %v1530 = vpop.f32.mrb[0].mxu0
        %v1531 = vadd.f32 %v555, %v1530
        %v1532 = vpop.f32.mrb[0].mxu0
        %v1533 = vadd.f32 %v559, %v1532
        %1534 = vmatprep.mubr.bf16.mxu0 %v975
        %1535 = vmatmul.mubr.bf16.gmra.mrb[0].mxu0 %v974
        %v1536 = vpop.f32.mrb[0].mxu0
        %v1537 = vadd.f32 %v555, %v1536
        %v1538 = vpop.f32.mrb[0].mxu0
        %v1539 = vadd.f32 %v559, %v1538
        %v1540 = vpop.f32.mrb[0].mxu0
        %v1541 = vadd.f32 %v555, %v1540
        %v1542 = vpop.f32.mrb[0].mxu0
        %v1543 = vadd.f32 %v559, %v1542
        %1544 = vmatprep.mubr.bf16.mxu0 %v977
        %1545 = vmatmul.mubr.bf16.gmra.mrb[0].mxu0 %v976
        %v1546 = vpop.f32.mrb[0].mxu0
        %v1547 = vadd.f32 %v555, %v1546
        %v1548 = vpop.f32.mrb[0].mxu0
        %v1549 = vadd.f32 %v559, %v1548
        %v1550 = vpop.f32.mrb[0].mxu0
        %v1551 = vadd.f32 %v555, %v1550
        %v1552 = vpop.f32.mrb[0].mxu0
        %v1553 = vadd.f32 %v559, %v1552
        %1554 = vmatprep.mubr.bf16.mxu0 %v979
        %1555 = vmatmul.mubr.bf16.gmra.mrb[0].mxu0 %v978
        %v1556 = vpop.f32.mrb[0].mxu0
        %v1557 = vadd.f32 %v555, %v1556
        %v1558 = vpop.f32.mrb[0].mxu0
        %v1559 = vadd.f32 %v559, %v1558
        %v1560 = vpop.f32.mrb[0].mxu0
        %v1561 = vadd.f32 %v555, %v1560
        %v1562 = vpop.f32.mrb[0].mxu0
        %v1563 = vadd.f32 %v559, %v1562
        %1564 = vmatprep.mubr.bf16.mxu0 %v981
        %1565 = vmatmul.mubr.bf16.gmra.mrb[0].mxu0 %v980
        %v1566 = vpop.f32.mrb[0].mxu0
        %v1567 = vadd.f32 %v555, %v1566
        %v1568 = vpop.f32.mrb[0].mxu0
        %v1569 = vadd.f32 %v559, %v1568
        %v1570 = vpop.f32.mrb[0].mxu0
        %v1571 = vadd.f32 %v555, %v1570
        %v1572 = vpop.f32.mrb[0].mxu0
        %v1573 = vadd.f32 %v559, %v1572
        %1574 = vmatprep.mubr.bf16.mxu0 %v983
        %1575 = vmatmul.mubr.bf16.gmra.mrb[0].mxu0 %v982
        %v1576 = vpop.f32.mrb[0].mxu0
        %v1577 = vadd.f32 %v555, %v1576
        %v1578 = vpop.f32.mrb[0].mxu0
        %v1579 = vadd.f32 %v559, %v1578
        %v1580 = vpop.f32.mrb[0].mxu0
        %v1581 = vadd.f32 %v555, %v1580
        %v1582 = vpop.f32.mrb[0].mxu0
        %v1583 = vadd.f32 %v559, %v1582
        %1584 = vmatprep.mubr.bf16.mxu0 %v985
        %1585 = vmatmul.mubr.bf16.gmra.mrb[0].mxu0 %v984
        %v1586 = vpop.f32.mrb[0].mxu0
        %v1587 = vadd.f32 %v555, %v1586
        %v1588 = vpop.f32.mrb[0].mxu0
        %v1589 = vadd.f32 %v559, %v1588
        %v1590 = vpop.f32.mrb[0].mxu0
        %v1591 = vadd.f32 %v555, %v1590
        %v1592 = vpop.f32.mrb[0].mxu0
        %v1593 = vadd.f32 %v559, %v1592
        %1594 = vmatprep.mubr.bf16.mxu0 %v987
        %1595 = vmatmul.mubr.bf16.gmra.mrb[0].mxu0 %v986
        %v1596 = vpop.f32.mrb[0].mxu0
        %v1597 = vadd.f32 %v555, %v1596
        %v1598 = vpop.f32.mrb[0].mxu0
        %v1599 = vadd.f32 %v559, %v1598
        %v1600 = vpop.f32.mrb[0].mxu0
        %v1601 = vadd.f32 %v555, %v1600
        %v1602 = vpop.f32.mrb[0].mxu0
        %v1603 = vadd.f32 %v559, %v1602
        %1604 = vmatprep.mubr.bf16.mxu0 %v989
        %1605 = vmatmul.mubr.bf16.gmra.mrb[0].mxu0 %v988
        %v1606 = vpop.f32.mrb[0].mxu0
        %v1607 = vadd.f32 %v555, %v1606
        %v1608 = vpop.f32.mrb[0].mxu0
        %v1609 = vadd.f32 %v559, %v1608
        %v1610 = vpop.f32.mrb[0].mxu0
        %v1611 = vadd.f32 %v555, %v1610
        %v1612 = vpop.f32.mrb[0].mxu0
        %v1613 = vadd.f32 %v559, %v1612
        %1614 = vmatprep.mubr.bf16.mxu0 %v991
        %1615 = vmatmul.mubr.bf16.gmra.mrb[0].mxu0 %v990
        %v1616 = vpop.f32.mrb[0].mxu0
        %v1617 = vadd.f32 %v555, %v1616
        %v1618 = vpop.f32.mrb[0].mxu0
        %v1619 = vadd.f32 %v559, %v1618
        %v1620 = vpop.f32.mrb[0].mxu0
        %v1621 = vadd.f32 %v555, %v1620
        %v1622 = vpop.f32.mrb[0].mxu0
        %v1623 = vadd.f32 %v559, %v1622
        %1624 = vmatprep.mubr.bf16.mxu0 %v993
        %1625 = vmatmul.mubr.bf16.gmra.mrb[0].mxu0 %v992
        %v1626 = vpop.f32.mrb[0].mxu0
        %v1627 = vadd.f32 %v555, %v1626
        %v1628 = vpop.f32.mrb[0].mxu0
        %v1629 = vadd.f32 %v559, %v1628
        %v1630 = vpop.f32.mrb[0].mxu0
        %v1631 = vadd.f32 %v555, %v1630
        %v1632 = vpop.f32.mrb[0].mxu0
        %v1633 = vadd.f32 %v559, %v1632
        %1634 = vmatprep.mubr.bf16.mxu0 %v995
        %1635 = vmatmul.mubr.bf16.gmra.mrb[0].mxu0 %v994
        %v1636 = vpop.f32.mrb[0].mxu0
        %v1637 = vadd.f32 %v555, %v1636
        %v1638 = vpop.f32.mrb[0].mxu0
        %v1639 = vadd.f32 %v559, %v1638
        %v1640 = vpop.f32.mrb[0].mxu0
        %v1641 = vadd.f32 %v555, %v1640
        %v1642 = vpop.f32.mrb[0].mxu0
        %v1643 = vadd.f32 %v559, %v1642
        %1644 = vmatprep.mubr.bf16.mxu0 %v997
        %1645 = vmatmul.mubr.bf16.gmra.mrb[0].mxu0 %v996
        %v1646 = vpop.f32.mrb[0].mxu0
        %v1647 = vadd.f32 %v555, %v1646
        %v1648 = vpop.f32.mrb[0].mxu0
        %v1649 = vadd.f32 %v559, %v1648
        %v1650 = vpop.f32.mrb[0].mxu0
        %v1651 = vadd.f32 %v555, %v1650
        %v1652 = vpop.f32.mrb[0].mxu0
        %v1653 = vadd.f32 %v559, %v1652
        %1654 = vmatprep.mubr.bf16.mxu0 %v999
        %1655 = vmatmul.mubr.bf16.gmra.mrb[0].mxu0 %v998
        %v1656 = vpop.f32.mrb[0].mxu0
        %v1657 = vadd.f32 %v555, %v1656
        %v1658 = vpop.f32.mrb[0].mxu0
        %v1659 = vadd.f32 %v559, %v1658
        %v1660 = vpop.f32.mrb[0].mxu0
        %v1661 = vadd.f32 %v555, %v1660
        %v1662 = vpop.f32.mrb[0].mxu0
        %v1663 = vadd.f32 %v559, %v1662
        %1664 = vmatprep.mubr.bf16.mxu0 %v1001
        %1665 = vmatmul.mubr.bf16.gmra.mrb[0].mxu0 %v1000
        %v1666 = vpop.f32.mrb[0].mxu0
        %v1667 = vadd.f32 %v555, %v1666
        %v1668 = vpop.f32.mrb[0].mxu0
        %v1669 = vadd.f32 %v559, %v1668
        %v1670 = vpop.f32.mrb[0].mxu0
        %v1671 = vadd.f32 %v555, %v1670
        %v1672 = vpop.f32.mrb[0].mxu0
        %v1673 = vadd.f32 %v559, %v1672
        %1674 = vmatprep.mubr.bf16.mxu0 %v1003
        %1675 = vmatmul.mubr.bf16.gmra.mrb[0].mxu0 %v1002
        %v1676 = vpop.f32.mrb[0].mxu0
        %v1677 = vadd.f32 %v555, %v1676
        %v1678 = vpop.f32.mrb[0].mxu0
        %v1679 = vadd.f32 %v559, %v1678
        %v1680 = vpop.f32.mrb[0].mxu0
        %v1681 = vadd.f32 %v555, %v1680
        %v1682 = vpop.f32.mrb[0].mxu0
        %v1683 = vadd.f32 %v559, %v1682
        %1684 = vmatprep.mubr.bf16.mxu0 %v1005
        %1685 = vmatmul.mubr.bf16.gmra.mrb[0].mxu0 %v1004
        %v1686 = vpop.f32.mrb[0].mxu0
        %v1687 = vadd.f32 %v555, %v1686
        %v1688 = vpop.f32.mrb[0].mxu0
        %v1689 = vadd.f32 %v559, %v1688
        %v1690 = vpop.f32.mrb[0].mxu0
        %v1691 = vadd.f32 %v555, %v1690
        %v1692 = vpop.f32.mrb[0].mxu0
        %v1693 = vadd.f32 %v559, %v1692
        %1694 = vmatprep.mubr.bf16.mxu0 %v1007
        %1695 = vmatmul.mubr.bf16.gmra.mrb[0].mxu0 %v1006
        %v1696 = vpop.f32.mrb[0].mxu0
        %v1697 = vadd.f32 %v555, %v1696
        %v1698 = vpop.f32.mrb[0].mxu0
        %v1699 = vadd.f32 %v559, %v1698
        %v1700 = vpop.f32.mrb[0].mxu0
        %v1701 = vadd.f32 %v555, %v1700
        %v1702 = vpop.f32.mrb[0].mxu0
        %v1703 = vadd.f32 %v559, %v1702
        %1704 = vmatprep.mubr.bf16.mxu0 %v1009
        %1705 = vmatmul.mubr.bf16.gmra.mrb[0].mxu0 %v1008
        %v1706 = vpop.f32.mrb[0].mxu0
        %v1707 = vadd.f32 %v555, %v1706
        %v1708 = vpop.f32.mrb[0].mxu0
        %v1709 = vadd.f32 %v559, %v1708
        %v1710 = vpop.f32.mrb[0].mxu0
        %v1711 = vadd.f32 %v555, %v1710
        %v1712 = vpop.f32.mrb[0].mxu0
        %v1713 = vadd.f32 %v559, %v1712
        %1714 = vmatprep.mubr.bf16.mxu0 %v1011
        %1715 = vmatmul.mubr.bf16.gmra.mrb[0].mxu0 %v1010
        %v1716 = vpop.f32.mrb[0].mxu0
        %v1717 = vadd.f32 %v555, %v1716
        %v1718 = vpop.f32.mrb[0].mxu0
        %v1719 = vadd.f32 %v559, %v1718
        %v1720 = vpop.f32.mrb[0].mxu0
        %v1721 = vadd.f32 %v555, %v1720
        %v1722 = vpop.f32.mrb[0].mxu0
        %v1723 = vadd.f32 %v559, %v1722
        %1724 = vmatprep.mubr.bf16.mxu0 %v1013
        %1725 = vmatmul.mubr.bf16.gmra.mrb[0].mxu0 %v1012
        %v1726 = vpop.f32.mrb[0].mxu0
        %v1727 = vadd.f32 %v555, %v1726
        %v1728 = vpop.f32.mrb[0].mxu0
        %v1729 = vadd.f32 %v559, %v1728
        %v1730 = vpop.f32.mrb[0].mxu0
        %v1731 = vadd.f32 %v555, %v1730
        %v1732 = vpop.f32.mrb[0].mxu0
        %v1733 = vadd.f32 %v559, %v1732
        %1734 = vmatprep.mubr.bf16.mxu0 %v1015
        %1735 = vmatmul.mubr.bf16.gmra.mrb[0].mxu0 %v1014
        %v1736 = vpop.f32.mrb[0].mxu0
        %v1737 = vadd.f32 %v555, %v1736
        %v1738 = vpop.f32.mrb[0].mxu0
        %v1739 = vadd.f32 %v559, %v1738
        %v1740 = vpop.f32.mrb[0].mxu0
        %v1741 = vadd.f32 %v555, %v1740
        %v1742 = vpop.f32.mrb[0].mxu0
        %v1743 = vadd.f32 %v559, %v1742
        %1744 = vmatprep.mubr.bf16.mxu0 %v1017
        %1745 = vmatmul.mubr.bf16.gmra.mrb[0].mxu0 %v1016
        %v1746 = vpop.f32.mrb[0].mxu0
        %v1747 = vadd.f32 %v555, %v1746
        %v1748 = vpop.f32.mrb[0].mxu0
        %v1749 = vadd.f32 %v559, %v1748
        %v1750 = vpop.f32.mrb[0].mxu0
        %v1751 = vadd.f32 %v555, %v1750
        %v1752 = vpop.f32.mrb[0].mxu0
        %v1753 = vadd.f32 %v559, %v1752
        %1754 = vmatprep.mubr.bf16.mxu0 %v1019
        %1755 = vmatmul.mubr.bf16.gmra.mrb[0].mxu0 %v1018
        %v1756 = vpop.f32.mrb[0].mxu0
        %v1757 = vadd.f32 %v555, %v1756
        %v1758 = vpop.f32.mrb[0].mxu0
        %v1759 = vadd.f32 %v559, %v1758
        %v1760 = vpop.f32.mrb[0].mxu0
        %v1761 = vadd.f32 %v555, %v1760
        %v1762 = vpop.f32.mrb[0].mxu0
        %v1763 = vadd.f32 %v559, %v1762
        %1764 = vmatprep.mubr.bf16.mxu0 %v1021
        %1765 = vmatmul.mubr.bf16.gmra.mrb[0].mxu0 %v1020
        %v1766 = vpop.f32.mrb[0].mxu0
        %v1767 = vadd.f32 %v555, %v1766
        %v1768 = vpop.f32.mrb[0].mxu0
        %v1769 = vadd.f32 %v559, %v1768
        %v1770 = vpop.f32.mrb[0].mxu0
        %v1771 = vadd.f32 %v555, %v1770
        %v1772 = vpop.f32.mrb[0].mxu0
        %v1773 = vadd.f32 %v559, %v1772
        %1774 = vmatprep.mubr.bf16.mxu0 %v1023
        %1775 = vmatmul.mubr.bf16.gmra.mrb[0].mxu0 %v1022
        %v1776 = vpop.f32.mrb[0].mxu0
        %v1777 = vadd.f32 %v555, %v1776
        %v1778 = vpop.f32.mrb[0].mxu0
        %v1779 = vadd.f32 %v559, %v1778
        %v1780 = vpop.f32.mrb[0].mxu0
        %v1781 = vadd.f32 %v555, %v1780
        %v1782 = vpop.f32.mrb[0].mxu0
        %v1783 = vadd.f32 %v559, %v1782
        %1784 = vmatprep.mubr.bf16.mxu0 %v1025
        %1785 = vmatmul.mubr.bf16.gmra.mrb[0].mxu0 %v1024
        %v1786 = vpop.f32.mrb[0].mxu0
        %v1787 = vadd.f32 %v555, %v1786
        %v1788 = vpop.f32.mrb[0].mxu0
        %v1789 = vadd.f32 %v559, %v1788
        %v1790 = vpop.f32.mrb[0].mxu0
        %v1791 = vadd.f32 %v555, %v1790
        %v1792 = vpop.f32.mrb[0].mxu0
        %v1793 = vadd.f32 %v559, %v1792
        %1794 = vmatprep.mubr.bf16.mxu0 %v1027
        %1795 = vmatmul.mubr.bf16.gmra.mrb[0].mxu0 %v1026
        %v1796 = vpop.f32.mrb[0].mxu0
        %v1797 = vadd.f32 %v555, %v1796
        %v1798 = vpop.f32.mrb[0].mxu0
        %v1799 = vadd.f32 %v559, %v1798
        %v1800 = vpop.f32.mrb[0].mxu0
        %v1801 = vadd.f32 %v555, %v1800
        %v1802 = vpop.f32.mrb[0].mxu0
        %v1803 = vadd.f32 %v559, %v1802
        %1804 = vmatprep.mubr.bf16.mxu0 %v1029
        %1805 = vmatmul.mubr.bf16.gmra.mrb[0].mxu0 %v1028
        %v1806 = vpop.f32.mrb[0].mxu0
        %v1807 = vadd.f32 %v555, %v1806
        %v1808 = vpop.f32.mrb[0].mxu0
        %v1809 = vadd.f32 %v559, %v1808
        %v1810 = vpop.f32.mrb[0].mxu0
        %v1811 = vadd.f32 %v555, %v1810
        %v1812 = vpop.f32.mrb[0].mxu0
        %v1813 = vadd.f32 %v559, %v1812
        %1814 = vmatprep.mubr.bf16.mxu0 %v1031
        %1815 = vmatmul.mubr.bf16.gmra.mrb[0].mxu0 %v1030
        %v1816 = vpop.f32.mrb[0].mxu0
        %v1817 = vadd.f32 %v555, %v1816
        %v1818 = vpop.f32.mrb[0].mxu0
        %v1819 = vadd.f32 %v559, %v1818
        %v1820 = vpop.f32.mrb[0].mxu0
        %v1821 = vadd.f32 %v555, %v1820
        %v1822 = vpop.f32.mrb[0].mxu0
        %v1823 = vadd.f32 %v559, %v1822
        %1824 = vmatprep.mubr.bf16.mxu0 %v1033
        %1825 = vmatmul.mubr.bf16.gmra.mrb[0].mxu0 %v1032
        %v1826 = vpop.f32.mrb[0].mxu0
        %v1827 = vadd.f32 %v555, %v1826
        %v1828 = vpop.f32.mrb[0].mxu0
        %v1829 = vadd.f32 %v559, %v1828
        %v1830 = vpop.f32.mrb[0].mxu0
        %v1831 = vadd.f32 %v555, %v1830
        %v1832 = vpop.f32.mrb[0].mxu0
        %v1833 = vadd.f32 %v559, %v1832
        %1834 = vmatprep.mubr.bf16.mxu0 %v1035
        %1835 = vmatmul.mubr.bf16.gmra.mrb[0].mxu0 %v1034
        %v1836 = vpop.f32.mrb[0].mxu0
        %v1837 = vadd.f32 %v555, %v1836
        %v1838 = vpop.f32.mrb[0].mxu0
        %v1839 = vadd.f32 %v559, %v1838
        %v1840 = vpop.f32.mrb[0].mxu0
        %v1841 = vadd.f32 %v555, %v1840
        %v1842 = vpop.f32.mrb[0].mxu0
        %v1843 = vadd.f32 %v559, %v1842
        %1844 = vmatprep.mubr.bf16.mxu0 %v1037
        %1845 = vmatmul.mubr.bf16.gmra.mrb[0].mxu0 %v1036
        %v1846 = vpop.f32.mrb[0].mxu0
        %v1847 = vadd.f32 %v555, %v1846
        %v1848 = vpop.f32.mrb[0].mxu0
        %v1849 = vadd.f32 %v559, %v1848
        %v1850 = vpop.f32.mrb[0].mxu0
        %v1851 = vadd.f32 %v555, %v1850
        %v1852 = vpop.f32.mrb[0].mxu0
        %v1853 = vadd.f32 %v559, %v1852
        %1854 = vmatprep.mubr.bf16.mxu0 %v1039
        %1855 = vmatmul.mubr.bf16.gmra.mrb[0].mxu0 %v1038
        %v1856 = vpop.f32.mrb[0].mxu0
        %v1857 = vadd.f32 %v555, %v1856
        %v1858 = vpop.f32.mrb[0].mxu0
        %v1859 = vadd.f32 %v559, %v1858
        %v1860 = vpop.f32.mrb[0].mxu0
        %v1861 = vadd.f32 %v555, %v1860
        %v1862 = vpop.f32.mrb[0].mxu0
        %v1863 = vadd.f32 %v559, %v1862
        %1864 = vmatprep.mubr.bf16.mxu0 %v1041
        %1865 = vmatmul.mubr.bf16.gmra.mrb[0].mxu0 %v1040
        %v1866 = vpop.f32.mrb[0].mxu0
        %v1867 = vadd.f32 %v555, %v1866
        %v1868 = vpop.f32.mrb[0].mxu0
        %v1869 = vadd.f32 %v559, %v1868
        %v1870 = vpop.f32.mrb[0].mxu0
        %v1871 = vadd.f32 %v555, %v1870
        %v1872 = vpop.f32.mrb[0].mxu0
        %v1873 = vadd.f32 %v559, %v1872
        %1874 = vmatprep.mubr.bf16.mxu0 %v1043
        %1875 = vmatmul.mubr.bf16.gmra.mrb[0].mxu0 %v1042
        %v1876 = vpop.f32.mrb[0].mxu0
        %v1877 = vadd.f32 %v555, %v1876
        %v1878 = vpop.f32.mrb[0].mxu0
        %v1879 = vadd.f32 %v559, %v1878
        %v1880 = vpop.f32.mrb[0].mxu0
        %v1881 = vadd.f32 %v555, %v1880
        %v1882 = vpop.f32.mrb[0].mxu0
        %v1883 = vadd.f32 %v559, %v1882
        %1884 = vmatprep.mubr.bf16.mxu0 %v1045
        %1885 = vmatmul.mubr.bf16.gmra.mrb[0].mxu0 %v1044
        %v1886 = vpop.f32.mrb[0].mxu0
        %v1887 = vadd.f32 %v555, %v1886
        %v1888 = vpop.f32.mrb[0].mxu0
        %v1889 = vadd.f32 %v559, %v1888
        %v1890 = vpop.f32.mrb[0].mxu0
        %v1891 = vadd.f32 %v555, %v1890
        %v1892 = vpop.f32.mrb[0].mxu0
        %v1893 = vadd.f32 %v559, %v1892
        %1894 = vmatprep.mubr.bf16.mxu0 %v1047
        %1895 = vmatmul.mubr.bf16.gmra.mrb[0].mxu0 %v1046
        %v1896 = vpop.f32.mrb[0].mxu0
        %v1897 = vadd.f32 %v555, %v1896
        %v1898 = vpop.f32.mrb[0].mxu0
        %v1899 = vadd.f32 %v559, %v1898
        %v1900 = vpop.f32.mrb[0].mxu0
        %v1901 = vadd.f32 %v555, %v1900
        %v1902 = vpop.f32.mrb[0].mxu0
        %v1903 = vadd.f32 %v559, %v1902
        %1904 = vmatprep.mubr.bf16.mxu0 %v1049
        %1905 = vmatmul.mubr.bf16.gmra.mrb[0].mxu0 %v1048
        %v1906 = vpop.f32.mrb[0].mxu0
        %v1907 = vadd.f32 %v555, %v1906
        %v1908 = vpop.f32.mrb[0].mxu0
        %v1909 = vadd.f32 %v559, %v1908
        %v1910 = vpop.f32.mrb[0].mxu0
        %v1911 = vadd.f32 %v555, %v1910
        %v1912 = vpop.f32.mrb[0].mxu0
        %v1913 = vadd.f32 %v559, %v1912
        %1914 = vmatprep.mubr.bf16.mxu0 %v1051
        %1915 = vmatmul.mubr.bf16.gmra.mrb[0].mxu0 %v1050
        %v1916 = vpop.f32.mrb[0].mxu0
        %v1917 = vadd.f32 %v555, %v1916
        %v1918 = vpop.f32.mrb[0].mxu0
        %v1919 = vadd.f32 %v559, %v1918
        %v1920 = vpop.f32.mrb[0].mxu0
        %v1921 = vadd.f32 %v555, %v1920
        %v1922 = vpop.f32.mrb[0].mxu0
        %v1923 = vadd.f32 %v559, %v1922
        %1924 = vmatprep.mubr.bf16.mxu0 %v1053
        %1925 = vmatmul.mubr.bf16.gmra.mrb[0].mxu0 %v1052
        %v1926 = vpop.f32.mrb[0].mxu0
        %v1927 = vadd.f32 %v555, %v1926
        %v1928 = vpop.f32.mrb[0].mxu0
        %v1929 = vadd.f32 %v559, %v1928
        %v1930 = vpop.f32.mrb[0].mxu0
        %v1931 = vadd.f32 %v555, %v1930
        %v1932 = vpop.f32.mrb[0].mxu0
        %v1933 = vadd.f32 %v559, %v1932
        %1934 = vmatprep.mubr.bf16.mxu0 %v1055
        %1935 = vmatmul.mubr.bf16.gmra.mrb[0].mxu0 %v1054
        %v1936 = vpop.f32.mrb[0].mxu0
        %v1937 = vadd.f32 %v555, %v1936
        %v1938 = vpop.f32.mrb[0].mxu0
        %v1939 = vadd.f32 %v559, %v1938
        %v1940 = vpop.f32.mrb[0].mxu0
        %v1941 = vadd.f32 %v555, %v1940
        %v1942 = vpop.f32.mrb[0].mxu0
        %v1943 = vadd.f32 %v559, %v1942
        %1944 = vmatprep.mubr.bf16.mxu0 %v1057
        %1945 = vmatmul.mubr.bf16.gmra.mrb[0].mxu0 %v1056
        %v1946 = vpop.f32.mrb[0].mxu0
        %v1947 = vadd.f32 %v555, %v1946
        %v1948 = vpop.f32.mrb[0].mxu0
        %v1949 = vadd.f32 %v559, %v1948
        %v1950 = vpop.f32.mrb[0].mxu0
        %v1951 = vadd.f32 %v555, %v1950
        %v1952 = vpop.f32.mrb[0].mxu0
        %v1953 = vadd.f32 %v559, %v1952
        %1954 = vmatprep.mubr.bf16.mxu0 %v1059
        %1955 = vmatmul.mubr.bf16.gmra.mrb[0].mxu0 %v1058
        %v1956 = vpop.f32.mrb[0].mxu0
        %v1957 = vadd.f32 %v555, %v1956
        %v1958 = vpop.f32.mrb[0].mxu0
        %v1959 = vadd.f32 %v559, %v1958
        %v1960 = vpop.f32.mrb[0].mxu0
        %v1961 = vadd.f32 %v555, %v1960
        %v1962 = vpop.f32.mrb[0].mxu0
        %v1963 = vadd.f32 %v559, %v1962
        %1964 = vmatprep.mubr.bf16.mxu0 %v1061
        %1965 = vmatmul.mubr.bf16.gmra.mrb[0].mxu0 %v1060
        %v1966 = vpop.f32.mrb[0].mxu0
        %v1967 = vadd.f32 %v555, %v1966
        %v1968 = vpop.f32.mrb[0].mxu0
        %v1969 = vadd.f32 %v559, %v1968
        %v1970 = vpop.f32.mrb[0].mxu0
        %v1971 = vadd.f32 %v555, %v1970
        %v1972 = vpop.f32.mrb[0].mxu0
        %v1973 = vadd.f32 %v559, %v1972
        %1974 = vmatprep.mubr.bf16.mxu0 %v1063
        %1975 = vmatmul.mubr.bf16.gmra.mrb[0].mxu0 %v1062
        %v1976 = vpop.f32.mrb[0].mxu0
        %v1977 = vadd.f32 %v555, %v1976
        %v1978 = vpop.f32.mrb[0].mxu0
        %v1979 = vadd.f32 %v559, %v1978
        %v1980 = vpop.f32.mrb[0].mxu0
        %v1981 = vadd.f32 %v555, %v1980
        %v1982 = vpop.f32.mrb[0].mxu0
        %v1983 = vadd.f32 %v559, %v1982
        %1984 = vmatprep.mubr.bf16.mxu0 %v1065
        %1985 = vmatmul.mubr.bf16.gmra.mrb[0].mxu0 %v1064
        %v1986 = vpop.f32.mrb[0].mxu0
        %v1987 = vadd.f32 %v555, %v1986
        %v1988 = vpop.f32.mrb[0].mxu0
        %v1989 = vadd.f32 %v559, %v1988
        %v1990 = vpop.f32.mrb[0].mxu0
        %v1991 = vadd.f32 %v555, %v1990
        %v1992 = vpop.f32.mrb[0].mxu0
        %v1993 = vadd.f32 %v559, %v1992
        %1994 = vmatprep.mubr.bf16.mxu0 %v1067
        %1995 = vmatmul.mubr.bf16.gmra.mrb[0].mxu0 %v1066
        %v1996 = vpop.f32.mrb[0].mxu0
        %v1997 = vadd.f32 %v555, %v1996
        %v1998 = vpop.f32.mrb[0].mxu0
        %v1999 = vadd.f32 %v559, %v1998
        %v2000 = vpop.f32.mrb[0].mxu0
        %v2001 = vadd.f32 %v555, %v2000
        %v2002 = vpop.f32.mrb[0].mxu0
        %v2003 = vadd.f32 %v559, %v2002
        %2004 = vmatprep.mubr.bf16.mxu0 %v1069
        %2005 = vmatmul.mubr.bf16.gmra.mrb[0].mxu0 %v1068
        %v2006 = vpop.f32.mrb[0].mxu0
        %v2007 = vadd.f32 %v555, %v2006
        %v2008 = vpop.f32.mrb[0].mxu0
        %v2009 = vadd.f32 %v559, %v2008
        %v2010 = vpop.f32.mrb[0].mxu0
        %v2011 = vadd.f32 %v555, %v2010
        %v2012 = vpop.f32.mrb[0].mxu0
        %v2013 = vadd.f32 %v559, %v2012
        %2014 = vmatprep.mubr.bf16.mxu0 %v1071
        %2015 = vmatmul.mubr.bf16.gmra.mrb[0].mxu0 %v1070
        %v2016 = vpop.f32.mrb[0].mxu0
        %v2017 = vadd.f32 %v555, %v2016
        %v2018 = vpop.f32.mrb[0].mxu0
        %v2019 = vadd.f32 %v559, %v2018
        %v2020 = vpop.f32.mrb[0].mxu0
        %v2021 = vadd.f32 %v555, %v2020
        %v2022 = vpop.f32.mrb[0].mxu0
        %v2023 = vadd.f32 %v559, %v2022
        %2024 = vmatprep.mubr.bf16.mxu0 %v1073
        %2025 = vmatmul.mubr.bf16.gmra.mrb[0].mxu0 %v1072
        %v2026 = vpop.f32.mrb[0].mxu0
        %v2027 = vadd.f32 %v555, %v2026
        %v2028 = vpop.f32.mrb[0].mxu0
        %v2029 = vadd.f32 %v559, %v2028
        %v2030 = vpop.f32.mrb[0].mxu0
        %v2031 = vadd.f32 %v555, %v2030
        %v2032 = vpop.f32.mrb[0].mxu0
        %v2033 = vadd.f32 %v559, %v2032
        %2034 = vdwg.mxu0
        %v2035 = vtanh.pop %v1397
        %v2036 = vtanh.pop %v1399
        %v2037 = vtanh.pop %v1401
        %v2038 = vtanh.pop %v1403
        %v2039 = vtanh.pop %v1407
        %v2040 = vtanh.pop %v1409
        %v2041 = vtanh.pop %v1411
        %v2042 = vtanh.pop %v1413
        %v2043 = vtanh.pop %v1417
        %v2044 = vtanh.pop %v1419
        %v2045 = vtanh.pop %v1421
        %v2046 = vtanh.pop %v1423
        %v2047 = vtanh.pop %v1427
        %v2048 = vtanh.pop %v1429
        %v2049 = vtanh.pop %v1431
        %v2050 = vtanh.pop %v1433
        %v2051 = vtanh.pop %v1437
        %v2052 = vtanh.pop %v1439
        %v2053 = vtanh.pop %v1441
        %v2054 = vtanh.pop %v1443
        %v2055 = vtanh.pop %v1447
        %v2056 = vtanh.pop %v1449
        %v2057 = vtanh.pop %v1451
        %v2058 = vtanh.pop %v1453
        %v2059 = vtanh.pop %v1457
        %v2060 = vtanh.pop %v1459
        %v2061 = vtanh.pop %v1461
        %v2062 = vtanh.pop %v1463
        %v2063 = vtanh.pop %v1467
        %v2064 = vtanh.pop %v1469
        %v2065 = vtanh.pop %v1471
        %v2066 = vtanh.pop %v1473
        %v2067 = vtanh.pop %v1477
        %v2068 = vtanh.pop %v1479
        %v2069 = vtanh.pop %v1481
        %v2070 = vtanh.pop %v1483
        %v2071 = vtanh.pop %v1487
        %v2072 = vtanh.pop %v1489
        %v2073 = vtanh.pop %v1491
        %v2074 = vtanh.pop %v1493
        %v2075 = vtanh.pop %v1497
        %v2076 = vtanh.pop %v1499
        %v2077 = vtanh.pop %v1501
        %v2078 = vtanh.pop %v1503
        %v2079 = vtanh.pop %v1507
        %v2080 = vtanh.pop %v1509
        %v2081 = vtanh.pop %v1511
        %v2082 = vtanh.pop %v1513
        %v2083 = vtanh.pop %v1517
        %v2084 = vtanh.pop %v1519
        %v2085 = vtanh.pop %v1521
        %v2086 = vtanh.pop %v1523
        %v2087 = vtanh.pop %v1527
        %v2088 = vtanh.pop %v1529
        %v2089 = vtanh.pop %v1531
        %v2090 = vtanh.pop %v1533
        %v2091 = vtanh.pop %v1537
        %v2092 = vtanh.pop %v1539
        %v2093 = vtanh.pop %v1541
        %v2094 = vtanh.pop %v1543
        %v2095 = vtanh.pop %v1547
        %v2096 = vtanh.pop %v1549
        %v2097 = vtanh.pop %v1551
        %v2098 = vtanh.pop %v1553
        %v2099 = vtanh.pop %v1557
        %v2100 = vtanh.pop %v1559
        %v2101 = vtanh.pop %v1561
        %v2102 = vtanh.pop %v1563
        %v2103 = vtanh.pop %v1567
        %v2104 = vtanh.pop %v1569
        %v2105 = vtanh.pop %v1571
        %v2106 = vtanh.pop %v1573
        %v2107 = vtanh.pop %v1577
        %v2108 = vtanh.pop %v1579
        %v2109 = vtanh.pop %v1581
        %v2110 = vtanh.pop %v1583
        %v2111 = vtanh.pop %v1587
        %v2112 = vtanh.pop %v1589
        %v2113 = vtanh.pop %v1591
        %v2114 = vtanh.pop %v1593
        %v2115 = vtanh.pop %v1597
        %v2116 = vtanh.pop %v1599
        %v2117 = vtanh.pop %v1601
        %v2118 = vtanh.pop %v1603
        %v2119 = vtanh.pop %v1607
        %v2120 = vtanh.pop %v1609
        %v2121 = vtanh.pop %v1611
        %v2122 = vtanh.pop %v1613
        %v2123 = vtanh.pop %v1617
        %v2124 = vtanh.pop %v1619
        %v2125 = vtanh.pop %v1621
        %v2126 = vtanh.pop %v1623
        %v2127 = vtanh.pop %v1627
        %v2128 = vtanh.pop %v1629
        %v2129 = vtanh.pop %v1631
        %v2130 = vtanh.pop %v1633
        %v2131 = vtanh.pop %v1637
        %v2132 = vtanh.pop %v1639
        %v2133 = vtanh.pop %v1641
        %v2134 = vtanh.pop %v1643
        %v2135 = vtanh.pop %v1647
        %v2136 = vtanh.pop %v1649
        %v2137 = vtanh.pop %v1651
        %v2138 = vtanh.pop %v1653
        %v2139 = vtanh.pop %v1657
        %v2140 = vtanh.pop %v1659
        %v2141 = vtanh.pop %v1661
        %v2142 = vtanh.pop %v1663
        %v2143 = vtanh.pop %v1667
        %v2144 = vtanh.pop %v1669
        %v2145 = vtanh.pop %v1671
        %v2146 = vtanh.pop %v1673
        %v2147 = vtanh.pop %v1677
        %v2148 = vtanh.pop %v1679
        %v2149 = vtanh.pop %v1681
        %v2150 = vtanh.pop %v1683
        %v2151 = vtanh.pop %v1687
        %v2152 = vtanh.pop %v1689
        %v2153 = vtanh.pop %v1691
        %v2154 = vtanh.pop %v1693
        %v2155 = vtanh.pop %v1697
        %v2156 = vtanh.pop %v1699
        %v2157 = vtanh.pop %v1701
        %v2158 = vtanh.pop %v1703
        %v2159 = vtanh.pop %v1707
        %v2160 = vtanh.pop %v1709
        %v2161 = vtanh.pop %v1711
        %v2162 = vtanh.pop %v1713
        %v2163 = vtanh.pop %v1717
        %v2164 = vtanh.pop %v1719
        %v2165 = vtanh.pop %v1721
        %v2166 = vtanh.pop %v1723
        %v2167 = vtanh.pop %v1727
        %v2168 = vtanh.pop %v1729
        %v2169 = vtanh.pop %v1731
        %v2170 = vtanh.pop %v1733
        %v2171 = vtanh.pop %v1737
        %v2172 = vtanh.pop %v1739
        %v2173 = vtanh.pop %v1741
        %v2174 = vtanh.pop %v1743
        %v2175 = vtanh.pop %v1747
        %v2176 = vtanh.pop %v1749
        %v2177 = vtanh.pop %v1751
        %v2178 = vtanh.pop %v1753
        %v2179 = vtanh.pop %v1757
        %v2180 = vtanh.pop %v1759
        %v2181 = vtanh.pop %v1761
        %v2182 = vtanh.pop %v1763
        %v2183 = vtanh.pop %v1767
        %v2184 = vtanh.pop %v1769
        %v2185 = vtanh.pop %v1771
        %v2186 = vtanh.pop %v1773
        %v2187 = vtanh.pop %v1777
        %v2188 = vtanh.pop %v1779
        %v2189 = vtanh.pop %v1781
        %v2190 = vtanh.pop %v1783
        %v2191 = vtanh.pop %v1787
        %v2192 = vtanh.pop %v1789
        %v2193 = vtanh.pop %v1791
        %v2194 = vtanh.pop %v1793
        %v2195 = vtanh.pop %v1797
        %v2196 = vtanh.pop %v1799
        %v2197 = vtanh.pop %v1801
        %v2198 = vtanh.pop %v1803
        %v2199 = vtanh.pop %v1807
        %v2200 = vtanh.pop %v1809
        %v2201 = vtanh.pop %v1811
        %v2202 = vtanh.pop %v1813
        %v2203 = vtanh.pop %v1817
        %v2204 = vtanh.pop %v1819
        %v2205 = vtanh.pop %v1821
        %v2206 = vtanh.pop %v1823
        %v2207 = vtanh.pop %v1827
        %v2208 = vtanh.pop %v1829
        %v2209 = vtanh.pop %v1831
        %v2210 = vtanh.pop %v1833
        %v2211 = vtanh.pop %v1837
        %v2212 = vtanh.pop %v1839
        %v2213 = vtanh.pop %v1841
        %v2214 = vtanh.pop %v1843
        %v2215 = vtanh.pop %v1847
        %v2216 = vtanh.pop %v1849
        %v2217 = vtanh.pop %v1851
        %v2218 = vtanh.pop %v1853
        %v2219 = vtanh.pop %v1857
        %v2220 = vtanh.pop %v1859
        %v2221 = vtanh.pop %v1861
        %v2222 = vtanh.pop %v1863
        %v2223 = vtanh.pop %v1867
        %v2224 = vtanh.pop %v1869
        %v2225 = vtanh.pop %v1871
        %v2226 = vtanh.pop %v1873
        %v2227 = vtanh.pop %v1877
        %v2228 = vtanh.pop %v1879
        %v2229 = vtanh.pop %v1881
        %v2230 = vtanh.pop %v1883
        %v2231 = vtanh.pop %v1887
        %v2232 = vtanh.pop %v1889
        %v2233 = vtanh.pop %v1891
        %v2234 = vtanh.pop %v1893
        %v2235 = vtanh.pop %v1897
        %v2236 = vtanh.pop %v1899
        %v2237 = vtanh.pop %v1901
        %v2238 = vtanh.pop %v1903
        %v2239 = vtanh.pop %v1907
        %v2240 = vtanh.pop %v1909
        %v2241 = vtanh.pop %v1911
        %v2242 = vtanh.pop %v1913
        %v2243 = vtanh.pop %v1917
        %v2244 = vtanh.pop %v1919
        %v2245 = vtanh.pop %v1921
        %v2246 = vtanh.pop %v1923
        %v2247 = vtanh.pop %v1927
        %v2248 = vtanh.pop %v1929
        %v2249 = vtanh.pop %v1931
        %v2250 = vtanh.pop %v1933
        %v2251 = vtanh.pop %v1937
        %v2252 = vtanh.pop %v1939
        %v2253 = vtanh.pop %v1941
        %v2254 = vtanh.pop %v1943
        %v2255 = vtanh.pop %v1947
        %v2256 = vtanh.pop %v1949
        %v2257 = vtanh.pop %v1951
        %v2258 = vtanh.pop %v1953
        %v2259 = vtanh.pop %v1957
        %v2260 = vtanh.pop %v1959
        %v2261 = vtanh.pop %v1961
        %v2262 = vtanh.pop %v1963
        %v2263 = vtanh.pop %v1967
        %v2264 = vtanh.pop %v1969
        %v2265 = vtanh.pop %v1971
        %v2266 = vtanh.pop %v1973
        %v2267 = vtanh.pop %v1977
        %v2268 = vtanh.pop %v1979
        %v2269 = vtanh.pop %v1981
        %v2270 = vtanh.pop %v1983
        %v2271 = vtanh.pop %v1987
        %v2272 = vtanh.pop %v1989
        %v2273 = vtanh.pop %v1991
        %v2274 = vtanh.pop %v1993
        %v2275 = vtanh.pop %v1997
        %v2276 = vtanh.pop %v1999
        %v2277 = vtanh.pop %v2001
        %v2278 = vtanh.pop %v2003
        %v2279 = vtanh.pop %v2007
        %v2280 = vtanh.pop %v2009
        %v2281 = vtanh.pop %v2011
        %v2282 = vtanh.pop %v2013
        %v2283 = vtanh.pop %v2017
        %v2284 = vtanh.pop %v2019
        %v2285 = vtanh.pop %v2021
        %v2286 = vtanh.pop %v2023
        %v2287 = vtanh.pop %v2027
        %v2288 = vtanh.pop %v2029
        %v2289 = vtanh.pop %v2031
        %v2290 = vtanh.pop %v2033
        %v2291 = vpack.c.bf16 %v2037, %v2035
        %v2292 = vpack.c.bf16 %v2038, %v2036
        %v2293 = vpack.c.bf16 %v2041, %v2039
        %v2294 = vpack.c.bf16 %v2042, %v2040
        %v2295 = vpack.c.bf16 %v2045, %v2043
        %v2296 = vpack.c.bf16 %v2046, %v2044
        %v2297 = vpack.c.bf16 %v2049, %v2047
        %v2298 = vpack.c.bf16 %v2050, %v2048
        %v2299 = vpack.c.bf16 %v2053, %v2051
        %v2300 = vpack.c.bf16 %v2054, %v2052
        %v2301 = vpack.c.bf16 %v2057, %v2055
        %v2302 = vpack.c.bf16 %v2058, %v2056
        %v2303 = vpack.c.bf16 %v2061, %v2059
        %v2304 = vpack.c.bf16 %v2062, %v2060
        %v2305 = vpack.c.bf16 %v2065, %v2063
        %v2306 = vpack.c.bf16 %v2066, %v2064
        %v2307 = vpack.c.bf16 %v2069, %v2067
        %v2308 = vpack.c.bf16 %v2070, %v2068
        %v2309 = vpack.c.bf16 %v2073, %v2071
        %v2310 = vpack.c.bf16 %v2074, %v2072
        %v2311 = vpack.c.bf16 %v2077, %v2075
        %v2312 = vpack.c.bf16 %v2078, %v2076
        %v2313 = vpack.c.bf16 %v2081, %v2079
        %v2314 = vpack.c.bf16 %v2082, %v2080
        %v2315 = vpack.c.bf16 %v2085, %v2083
        %v2316 = vpack.c.bf16 %v2086, %v2084
        %v2317 = vpack.c.bf16 %v2089, %v2087
        %v2318 = vpack.c.bf16 %v2090, %v2088
        %v2319 = vpack.c.bf16 %v2093, %v2091
        %v2320 = vpack.c.bf16 %v2094, %v2092
        %v2321 = vpack.c.bf16 %v2097, %v2095
        %v2322 = vpack.c.bf16 %v2098, %v2096
        %v2323 = vpack.c.bf16 %v2101, %v2099
        %v2324 = vpack.c.bf16 %v2102, %v2100
        %v2325 = vpack.c.bf16 %v2105, %v2103
        %v2326 = vpack.c.bf16 %v2106, %v2104
        %v2327 = vpack.c.bf16 %v2109, %v2107
        %v2328 = vpack.c.bf16 %v2110, %v2108
        %v2329 = vpack.c.bf16 %v2113, %v2111
        %v2330 = vpack.c.bf16 %v2114, %v2112
        %v2331 = vpack.c.bf16 %v2117, %v2115
        %v2332 = vpack.c.bf16 %v2118, %v2116
        %v2333 = vpack.c.bf16 %v2121, %v2119
        %v2334 = vpack.c.bf16 %v2122, %v2120
        %v2335 = vpack.c.bf16 %v2125, %v2123
        %v2336 = vpack.c.bf16 %v2126, %v2124
        %v2337 = vpack.c.bf16 %v2129, %v2127
        %v2338 = vpack.c.bf16 %v2130, %v2128
        %v2339 = vpack.c.bf16 %v2133, %v2131
        %v2340 = vpack.c.bf16 %v2134, %v2132
        %v2341 = vpack.c.bf16 %v2137, %v2135
        %v2342 = vpack.c.bf16 %v2138, %v2136
        %v2343 = vpack.c.bf16 %v2141, %v2139
        %v2344 = vpack.c.bf16 %v2142, %v2140
        %v2345 = vpack.c.bf16 %v2145, %v2143
        %v2346 = vpack.c.bf16 %v2146, %v2144
        %v2347 = vpack.c.bf16 %v2149, %v2147
        %v2348 = vpack.c.bf16 %v2150, %v2148
        %v2349 = vpack.c.bf16 %v2153, %v2151
        %v2350 = vpack.c.bf16 %v2154, %v2152
        %v2351 = vpack.c.bf16 %v2157, %v2155
        %v2352 = vpack.c.bf16 %v2158, %v2156
        %v2353 = vpack.c.bf16 %v2161, %v2159
        %v2354 = vpack.c.bf16 %v2162, %v2160
        %v2355 = vpack.c.bf16 %v2165, %v2163
        %v2356 = vpack.c.bf16 %v2166, %v2164
        %v2357 = vpack.c.bf16 %v2169, %v2167
        %v2358 = vpack.c.bf16 %v2170, %v2168
        %v2359 = vpack.c.bf16 %v2173, %v2171
        %v2360 = vpack.c.bf16 %v2174, %v2172
        %v2361 = vpack.c.bf16 %v2177, %v2175
        %v2362 = vpack.c.bf16 %v2178, %v2176
        %v2363 = vpack.c.bf16 %v2181, %v2179
        %v2364 = vpack.c.bf16 %v2182, %v2180
        %v2365 = vpack.c.bf16 %v2185, %v2183
        %v2366 = vpack.c.bf16 %v2186, %v2184
        %v2367 = vpack.c.bf16 %v2189, %v2187
        %v2368 = vpack.c.bf16 %v2190, %v2188
        %v2369 = vpack.c.bf16 %v2193, %v2191
        %v2370 = vpack.c.bf16 %v2194, %v2192
        %v2371 = vpack.c.bf16 %v2197, %v2195
        %v2372 = vpack.c.bf16 %v2198, %v2196
        %v2373 = vpack.c.bf16 %v2201, %v2199
        %v2374 = vpack.c.bf16 %v2202, %v2200
        %v2375 = vpack.c.bf16 %v2205, %v2203
        %v2376 = vpack.c.bf16 %v2206, %v2204
        %v2377 = vpack.c.bf16 %v2209, %v2207
        %v2378 = vpack.c.bf16 %v2210, %v2208
        %v2379 = vpack.c.bf16 %v2213, %v2211
        %v2380 = vpack.c.bf16 %v2214, %v2212
        %v2381 = vpack.c.bf16 %v2217, %v2215
        %v2382 = vpack.c.bf16 %v2218, %v2216
        %v2383 = vpack.c.bf16 %v2221, %v2219
        %v2384 = vpack.c.bf16 %v2222, %v2220
        %v2385 = vpack.c.bf16 %v2225, %v2223
        %v2386 = vpack.c.bf16 %v2226, %v2224
        %v2387 = vpack.c.bf16 %v2229, %v2227
        %v2388 = vpack.c.bf16 %v2230, %v2228
        %v2389 = vpack.c.bf16 %v2233, %v2231
        %v2390 = vpack.c.bf16 %v2234, %v2232
        %v2391 = vpack.c.bf16 %v2237, %v2235
        %v2392 = vpack.c.bf16 %v2238, %v2236
        %v2393 = vpack.c.bf16 %v2241, %v2239
        %v2394 = vpack.c.bf16 %v2242, %v2240
        %v2395 = vpack.c.bf16 %v2245, %v2243
        %v2396 = vpack.c.bf16 %v2246, %v2244
        %v2397 = vpack.c.bf16 %v2249, %v2247
        %v2398 = vpack.c.bf16 %v2250, %v2248
        %v2399 = vpack.c.bf16 %v2253, %v2251
        %v2400 = vpack.c.bf16 %v2254, %v2252
        %v2401 = vpack.c.bf16 %v2257, %v2255
        %v2402 = vpack.c.bf16 %v2258, %v2256
        %v2403 = vpack.c.bf16 %v2261, %v2259
        %v2404 = vpack.c.bf16 %v2262, %v2260
        %v2405 = vpack.c.bf16 %v2265, %v2263
        %v2406 = vpack.c.bf16 %v2266, %v2264
        %v2407 = vpack.c.bf16 %v2269, %v2267
        %v2408 = vpack.c.bf16 %v2270, %v2268
        %v2409 = vpack.c.bf16 %v2273, %v2271
        %v2410 = vpack.c.bf16 %v2274, %v2272
        %v2411 = vpack.c.bf16 %v2277, %v2275
        %v2412 = vpack.c.bf16 %v2278, %v2276
        %v2413 = vpack.c.bf16 %v2281, %v2279
        %v2414 = vpack.c.bf16 %v2282, %v2280
        %v2415 = vpack.c.bf16 %v2285, %v2283
        %v2416 = vpack.c.bf16 %v2286, %v2284
        %v2417 = vpack.c.bf16 %v2289, %v2287
        %v2418 = vpack.c.bf16 %v2290, %v2288
        %v2419 = vld [vmem:[#allocation3] sm:$0x1]
        %2421 = vset.pattern.permute.xlu0 0
        %2422 = vperm.xlu0 %2421, %v2419
        %v2423 = vpop.permute.xlu0 %2422
        %v2425 = vlaneseq
        %v2426 = vshrl.u32 %v2425, 7
        %v2427 = vsub.s32 0, %v2426
        %v2428 = vrot.slane %v2423, %v2427
        %v2431 = vunpack.c.l.s4 1966171168
        %v2432 = vunpack.c.0.s8 %v2431
        %v2433 = vlaneseq
        %v2434 = vshrl.u32 %v2433, 7
        %v2435 = vsub.s32 %v2432, %v2434
        %v2436 = vrot.slane %v386, %v2435
        %v2437 = vcombine.high %v2436, %v2436
        %v2439 = vunpack.c.l.s4 1966171168
        %v2440 = vunpack.c.0.s8 %v2439
        %v2441 = vlaneseq
        %v2442 = vshrl.u32 %v2441, 7
        %v2443 = vsub.s32 %v2440, %v2442
        %v2444 = vrot.slane %v2436, %v2443
        %v2446 = vunpack.c.l.s4 1966171168
        %v2447 = vunpack.c.0.s8 %v2446
        %v2448 = vlaneseq
        %v2449 = vshrl.u32 %v2448, 7
        %v2450 = vsub.s32 %v2447, %v2449
        %v2451 = vrot.slane %v2437, %v2450
        %2454 = vmatprep.subr.bf16.mxu0 %v2292
        %2455 = vmatpush1.bf16.xpose.msra.mxu0 %v2291
        %2456 = vmatprep.subr.bf16.mxu0 %v2294
        %2457 = vmatpush1.bf16.xpose.msra.mxu0 %v2293
        %2458 = vmatprep.subr.bf16.mxu0 %v2296
        %2459 = vmatpush1.bf16.xpose.msra.mxu0 %v2295
        %2460 = vmatprep.subr.bf16.mxu0 %v2298
        %2461 = vmatpush1.bf16.xpose.msra.mxu0 %v2297
        %2462 = vmatprep.subr.bf16.mxu0 %v2300
        %2463 = vmatpush1.bf16.xpose.msra.mxu0 %v2299
        %2464 = vmatprep.subr.bf16.mxu0 %v2302
        %2465 = vmatpush1.bf16.xpose.msra.mxu0 %v2301
        %2466 = vmatprep.subr.bf16.mxu0 %v2304
        %2467 = vmatpush1.bf16.xpose.msra.mxu0 %v2303
        %2468 = vmatprep.subr.bf16.mxu0 %v2306
        %2469 = vmatpush1.bf16.xpose.msra.mxu0 %v2305
        %2470 = vmatprep.subr.bf16.mxu0 0
        %2471 = vmatpush1.bf16.xpose.msra.mxu0 0
        %2472 = vmatprep.subr.bf16.mxu0 0
        %2473 = vmatpush1.bf16.xpose.msra.mxu0 0
        %2474 = vmatprep.subr.bf16.mxu0 0
        %2475 = vmatpush1.bf16.xpose.msra.mxu0 0
        %2476 = vmatprep.subr.bf16.mxu0 0
        %2477 = vmatpush1.bf16.xpose.msra.mxu0 0
        %2478 = vmatprep.subr.bf16.mxu0 0
        %2479 = vmatpush1.bf16.xpose.msra.mxu0 0
        %2480 = vmatprep.subr.bf16.mxu0 0
        %2481 = vmatpush1.bf16.xpose.msra.mxu0 0
        %2482 = vmatprep.subr.bf16.mxu0 0
        %2483 = vmatpush1.bf16.xpose.msra.mxu0 0
        %2484 = vmatprep.subr.bf16.mxu0 0
        %2485 = vmatpush1.bf16.xpose.msra.mxu0 0
        %2486 = vmatprep.mubr.bf16.mxu0 %v2451
        %2487 = vmatmul.mubr.bf16.gmra.mrb[0].mxu0 %v2444
        %v2488 = vpop.f32.mrb[0].mxu0
        %v2489 = vadd.f32 %v2428, %v2488
        %v2490 = vpop.f32.mrb[0].mxu0
        %v2491 = vpop.f32.mrb[0].mxu0
        %v2492 = vpop.f32.mrb[0].mxu0
        %2493 = vdwg.mxu0
        %2494 = vmatprep.subr.bf16.mxu0 %v2308
        %2495 = vmatpush1.bf16.xpose.msra.mxu0 %v2307
        %2496 = vmatprep.subr.bf16.mxu0 %v2310
        %2497 = vmatpush1.bf16.xpose.msra.mxu0 %v2309
        %2498 = vmatprep.subr.bf16.mxu0 %v2312
        %2499 = vmatpush1.bf16.xpose.msra.mxu0 %v2311
        %2500 = vmatprep.subr.bf16.mxu0 %v2314
        %2501 = vmatpush1.bf16.xpose.msra.mxu0 %v2313
        %2502 = vmatprep.subr.bf16.mxu0 %v2316
        %2503 = vmatpush1.bf16.xpose.msra.mxu0 %v2315
        %2504 = vmatprep.subr.bf16.mxu0 %v2318
        %2505 = vmatpush1.bf16.xpose.msra.mxu0 %v2317
        %2506 = vmatprep.subr.bf16.mxu0 %v2320
        %2507 = vmatpush1.bf16.xpose.msra.mxu0 %v2319
        %2508 = vmatprep.subr.bf16.mxu0 %v2322
        %2509 = vmatpush1.bf16.xpose.msra.mxu0 %v2321
        %2510 = vmatprep.subr.bf16.mxu0 0
        %2511 = vmatpush1.bf16.xpose.msra.mxu0 0
        %2512 = vmatprep.subr.bf16.mxu0 0
        %2513 = vmatpush1.bf16.xpose.msra.mxu0 0
        %2514 = vmatprep.subr.bf16.mxu0 0
        %2515 = vmatpush1.bf16.xpose.msra.mxu0 0
        %2516 = vmatprep.subr.bf16.mxu0 0
        %2517 = vmatpush1.bf16.xpose.msra.mxu0 0
        %2518 = vmatprep.subr.bf16.mxu0 0
        %2519 = vmatpush1.bf16.xpose.msra.mxu0 0
        %2520 = vmatprep.subr.bf16.mxu0 0
        %2521 = vmatpush1.bf16.xpose.msra.mxu0 0
        %2522 = vmatprep.subr.bf16.mxu0 0
        %2523 = vmatpush1.bf16.xpose.msra.mxu0 0
        %2524 = vmatprep.subr.bf16.mxu0 0
        %2525 = vmatpush1.bf16.xpose.msra.mxu0 0
        %2526 = vmatprep.mubr.bf16.mxu0 %v2451
        %2527 = vmatmul.mubr.bf16.gmra.mrb[0].mxu0 %v2444
        %v2528 = vpop.f32.mrb[0].mxu0
        %v2529 = vadd.f32 %v2428, %v2528
        %v2530 = vpop.f32.mrb[0].mxu0
        %v2531 = vpop.f32.mrb[0].mxu0
        %v2532 = vpop.f32.mrb[0].mxu0
        %2533 = vdwg.mxu0
        %2534 = vmatprep.subr.bf16.mxu0 %v2324
        %2535 = vmatpush1.bf16.xpose.msra.mxu0 %v2323
        %2536 = vmatprep.subr.bf16.mxu0 %v2326
        %2537 = vmatpush1.bf16.xpose.msra.mxu0 %v2325
        %2538 = vmatprep.subr.bf16.mxu0 %v2328
        %2539 = vmatpush1.bf16.xpose.msra.mxu0 %v2327
        %2540 = vmatprep.subr.bf16.mxu0 %v2330
        %2541 = vmatpush1.bf16.xpose.msra.mxu0 %v2329
        %2542 = vmatprep.subr.bf16.mxu0 %v2332
        %2543 = vmatpush1.bf16.xpose.msra.mxu0 %v2331
        %2544 = vmatprep.subr.bf16.mxu0 %v2334
        %2545 = vmatpush1.bf16.xpose.msra.mxu0 %v2333
        %2546 = vmatprep.subr.bf16.mxu0 %v2336
        %2547 = vmatpush1.bf16.xpose.msra.mxu0 %v2335
        %2548 = vmatprep.subr.bf16.mxu0 %v2338
        %2549 = vmatpush1.bf16.xpose.msra.mxu0 %v2337
        %2550 = vmatprep.subr.bf16.mxu0 0
        %2551 = vmatpush1.bf16.xpose.msra.mxu0 0
        %2552 = vmatprep.subr.bf16.mxu0 0
        %2553 = vmatpush1.bf16.xpose.msra.mxu0 0
        %2554 = vmatprep.subr.bf16.mxu0 0
        %2555 = vmatpush1.bf16.xpose.msra.mxu0 0
        %2556 = vmatprep.subr.bf16.mxu0 0
        %2557 = vmatpush1.bf16.xpose.msra.mxu0 0
        %2558 = vmatprep.subr.bf16.mxu0 0
        %2559 = vmatpush1.bf16.xpose.msra.mxu0 0
        %2560 = vmatprep.subr.bf16.mxu0 0
        %2561 = vmatpush1.bf16.xpose.msra.mxu0 0
        %2562 = vmatprep.subr.bf16.mxu0 0
        %2563 = vmatpush1.bf16.xpose.msra.mxu0 0
        %2564 = vmatprep.subr.bf16.mxu0 0
        %2565 = vmatpush1.bf16.xpose.msra.mxu0 0
        %2566 = vmatprep.mubr.bf16.mxu0 %v2451
        %2567 = vmatmul.mubr.bf16.gmra.mrb[0].mxu0 %v2444
        %v2568 = vpop.f32.mrb[0].mxu0
        %v2569 = vadd.f32 %v2428, %v2568
        %v2570 = vpop.f32.mrb[0].mxu0
        %v2571 = vpop.f32.mrb[0].mxu0
        %v2572 = vpop.f32.mrb[0].mxu0
        %2573 = vdwg.mxu0
        %2574 = vmatprep.subr.bf16.mxu0 %v2340
        %2575 = vmatpush1.bf16.xpose.msra.mxu0 %v2339
        %2576 = vmatprep.subr.bf16.mxu0 %v2342
        %2577 = vmatpush1.bf16.xpose.msra.mxu0 %v2341
        %2578 = vmatprep.subr.bf16.mxu0 %v2344
        %2579 = vmatpush1.bf16.xpose.msra.mxu0 %v2343
        %2580 = vmatprep.subr.bf16.mxu0 %v2346
        %2581 = vmatpush1.bf16.xpose.msra.mxu0 %v2345
        %2582 = vmatprep.subr.bf16.mxu0 %v2348
        %2583 = vmatpush1.bf16.xpose.msra.mxu0 %v2347
        %2584 = vmatprep.subr.bf16.mxu0 %v2350
        %2585 = vmatpush1.bf16.xpose.msra.mxu0 %v2349
        %2586 = vmatprep.subr.bf16.mxu0 %v2352
        %2587 = vmatpush1.bf16.xpose.msra.mxu0 %v2351
        %2588 = vmatprep.subr.bf16.mxu0 %v2354
        %2589 = vmatpush1.bf16.xpose.msra.mxu0 %v2353
        %2590 = vmatprep.subr.bf16.mxu0 0
        %2591 = vmatpush1.bf16.xpose.msra.mxu0 0
        %2592 = vmatprep.subr.bf16.mxu0 0
        %2593 = vmatpush1.bf16.xpose.msra.mxu0 0
        %2594 = vmatprep.subr.bf16.mxu0 0
        %2595 = vmatpush1.bf16.xpose.msra.mxu0 0
        %2596 = vmatprep.subr.bf16.mxu0 0
        %2597 = vmatpush1.bf16.xpose.msra.mxu0 0
        %2598 = vmatprep.subr.bf16.mxu0 0
        %2599 = vmatpush1.bf16.xpose.msra.mxu0 0
        %2600 = vmatprep.subr.bf16.mxu0 0
        %2601 = vmatpush1.bf16.xpose.msra.mxu0 0
        %2602 = vmatprep.subr.bf16.mxu0 0
        %2603 = vmatpush1.bf16.xpose.msra.mxu0 0
        %2604 = vmatprep.subr.bf16.mxu0 0
        %2605 = vmatpush1.bf16.xpose.msra.mxu0 0
        %2606 = vmatprep.mubr.bf16.mxu0 %v2451
        %2607 = vmatmul.mubr.bf16.gmra.mrb[0].mxu0 %v2444
        %v2608 = vpop.f32.mrb[0].mxu0
        %v2609 = vadd.f32 %v2428, %v2608
        %v2610 = vpop.f32.mrb[0].mxu0
        %v2611 = vpop.f32.mrb[0].mxu0
        %v2612 = vpop.f32.mrb[0].mxu0
        %2613 = vdwg.mxu0
        %2614 = vmatprep.subr.bf16.mxu0 %v2356
        %2615 = vmatpush1.bf16.xpose.msra.mxu0 %v2355
        %2616 = vmatprep.subr.bf16.mxu0 %v2358
        %2617 = vmatpush1.bf16.xpose.msra.mxu0 %v2357
        %2618 = vmatprep.subr.bf16.mxu0 %v2360
        %2619 = vmatpush1.bf16.xpose.msra.mxu0 %v2359
        %2620 = vmatprep.subr.bf16.mxu0 %v2362
        %2621 = vmatpush1.bf16.xpose.msra.mxu0 %v2361
        %2622 = vmatprep.subr.bf16.mxu0 %v2364
        %2623 = vmatpush1.bf16.xpose.msra.mxu0 %v2363
        %2624 = vmatprep.subr.bf16.mxu0 %v2366
        %2625 = vmatpush1.bf16.xpose.msra.mxu0 %v2365
        %2626 = vmatprep.subr.bf16.mxu0 %v2368
        %2627 = vmatpush1.bf16.xpose.msra.mxu0 %v2367
        %2628 = vmatprep.subr.bf16.mxu0 %v2370
        %2629 = vmatpush1.bf16.xpose.msra.mxu0 %v2369
        %2630 = vmatprep.subr.bf16.mxu0 0
        %2631 = vmatpush1.bf16.xpose.msra.mxu0 0
        %2632 = vmatprep.subr.bf16.mxu0 0
        %2633 = vmatpush1.bf16.xpose.msra.mxu0 0
        %2634 = vmatprep.subr.bf16.mxu0 0
        %2635 = vmatpush1.bf16.xpose.msra.mxu0 0
        %2636 = vmatprep.subr.bf16.mxu0 0
        %2637 = vmatpush1.bf16.xpose.msra.mxu0 0
        %2638 = vmatprep.subr.bf16.mxu0 0
        %2639 = vmatpush1.bf16.xpose.msra.mxu0 0
        %2640 = vmatprep.subr.bf16.mxu0 0
        %2641 = vmatpush1.bf16.xpose.msra.mxu0 0
        %2642 = vmatprep.subr.bf16.mxu0 0
        %2643 = vmatpush1.bf16.xpose.msra.mxu0 0
        %2644 = vmatprep.subr.bf16.mxu0 0
        %2645 = vmatpush1.bf16.xpose.msra.mxu0 0
        %2646 = vmatprep.mubr.bf16.mxu0 %v2451
        %2647 = vmatmul.mubr.bf16.gmra.mrb[0].mxu0 %v2444
        %v2648 = vpop.f32.mrb[0].mxu0
        %v2649 = vadd.f32 %v2428, %v2648
        %v2650 = vpop.f32.mrb[0].mxu0
        %v2651 = vpop.f32.mrb[0].mxu0
        %v2652 = vpop.f32.mrb[0].mxu0
        %2653 = vdwg.mxu0
        %2654 = vmatprep.subr.bf16.mxu0 %v2372
        %2655 = vmatpush1.bf16.xpose.msra.mxu0 %v2371
        %2656 = vmatprep.subr.bf16.mxu0 %v2374
        %2657 = vmatpush1.bf16.xpose.msra.mxu0 %v2373
        %2658 = vmatprep.subr.bf16.mxu0 %v2376
        %2659 = vmatpush1.bf16.xpose.msra.mxu0 %v2375
        %2660 = vmatprep.subr.bf16.mxu0 %v2378
        %2661 = vmatpush1.bf16.xpose.msra.mxu0 %v2377
        %2662 = vmatprep.subr.bf16.mxu0 %v2380
        %2663 = vmatpush1.bf16.xpose.msra.mxu0 %v2379
        %2664 = vmatprep.subr.bf16.mxu0 %v2382
        %2665 = vmatpush1.bf16.xpose.msra.mxu0 %v2381
        %2666 = vmatprep.subr.bf16.mxu0 %v2384
        %2667 = vmatpush1.bf16.xpose.msra.mxu0 %v2383
        %2668 = vmatprep.subr.bf16.mxu0 %v2386
        %2669 = vmatpush1.bf16.xpose.msra.mxu0 %v2385
        %2670 = vmatprep.subr.bf16.mxu0 0
        %2671 = vmatpush1.bf16.xpose.msra.mxu0 0
        %2672 = vmatprep.subr.bf16.mxu0 0
        %2673 = vmatpush1.bf16.xpose.msra.mxu0 0
        %2674 = vmatprep.subr.bf16.mxu0 0
        %2675 = vmatpush1.bf16.xpose.msra.mxu0 0
        %2676 = vmatprep.subr.bf16.mxu0 0
        %2677 = vmatpush1.bf16.xpose.msra.mxu0 0
        %2678 = vmatprep.subr.bf16.mxu0 0
        %2679 = vmatpush1.bf16.xpose.msra.mxu0 0
        %2680 = vmatprep.subr.bf16.mxu0 0
        %2681 = vmatpush1.bf16.xpose.msra.mxu0 0
        %2682 = vmatprep.subr.bf16.mxu0 0
        %2683 = vmatpush1.bf16.xpose.msra.mxu0 0
        %2684 = vmatprep.subr.bf16.mxu0 0
        %2685 = vmatpush1.bf16.xpose.msra.mxu0 0
        %2686 = vmatprep.mubr.bf16.mxu0 %v2451
        %2687 = vmatmul.mubr.bf16.gmra.mrb[0].mxu0 %v2444
        %v2688 = vpop.f32.mrb[0].mxu0
        %v2689 = vadd.f32 %v2428, %v2688
        %v2690 = vpop.f32.mrb[0].mxu0
        %v2691 = vpop.f32.mrb[0].mxu0
        %v2692 = vpop.f32.mrb[0].mxu0
        %2693 = vdwg.mxu0
        %2694 = vmatprep.subr.bf16.mxu0 %v2388
        %2695 = vmatpush1.bf16.xpose.msra.mxu0 %v2387
        %2696 = vmatprep.subr.bf16.mxu0 %v2390
        %2697 = vmatpush1.bf16.xpose.msra.mxu0 %v2389
        %2698 = vmatprep.subr.bf16.mxu0 %v2392
        %2699 = vmatpush1.bf16.xpose.msra.mxu0 %v2391
        %2700 = vmatprep.subr.bf16.mxu0 %v2394
        %2701 = vmatpush1.bf16.xpose.msra.mxu0 %v2393
        %2702 = vmatprep.subr.bf16.mxu0 %v2396
        %2703 = vmatpush1.bf16.xpose.msra.mxu0 %v2395
        %2704 = vmatprep.subr.bf16.mxu0 %v2398
        %2705 = vmatpush1.bf16.xpose.msra.mxu0 %v2397
        %2706 = vmatprep.subr.bf16.mxu0 %v2400
        %2707 = vmatpush1.bf16.xpose.msra.mxu0 %v2399
        %2708 = vmatprep.subr.bf16.mxu0 %v2402
        %2709 = vmatpush1.bf16.xpose.msra.mxu0 %v2401
        %2710 = vmatprep.subr.bf16.mxu0 0
        %2711 = vmatpush1.bf16.xpose.msra.mxu0 0
        %2712 = vmatprep.subr.bf16.mxu0 0
        %2713 = vmatpush1.bf16.xpose.msra.mxu0 0
        %2714 = vmatprep.subr.bf16.mxu0 0
        %2715 = vmatpush1.bf16.xpose.msra.mxu0 0
        %2716 = vmatprep.subr.bf16.mxu0 0
        %2717 = vmatpush1.bf16.xpose.msra.mxu0 0
        %2718 = vmatprep.subr.bf16.mxu0 0
        %2719 = vmatpush1.bf16.xpose.msra.mxu0 0
        %2720 = vmatprep.subr.bf16.mxu0 0
        %2721 = vmatpush1.bf16.xpose.msra.mxu0 0
        %2722 = vmatprep.subr.bf16.mxu0 0
        %2723 = vmatpush1.bf16.xpose.msra.mxu0 0
        %2724 = vmatprep.subr.bf16.mxu0 0
        %2725 = vmatpush1.bf16.xpose.msra.mxu0 0
        %2726 = vmatprep.mubr.bf16.mxu0 %v2451
        %2727 = vmatmul.mubr.bf16.gmra.mrb[0].mxu0 %v2444
        %v2728 = vpop.f32.mrb[0].mxu0
        %v2729 = vadd.f32 %v2428, %v2728
        %v2730 = vpop.f32.mrb[0].mxu0
        %v2731 = vpop.f32.mrb[0].mxu0
        %v2732 = vpop.f32.mrb[0].mxu0
        %2733 = vdwg.mxu0
        %2734 = vmatprep.subr.bf16.mxu0 %v2404
        %2735 = vmatpush1.bf16.xpose.msra.mxu0 %v2403
        %2736 = vmatprep.subr.bf16.mxu0 %v2406
        %2737 = vmatpush1.bf16.xpose.msra.mxu0 %v2405
        %2738 = vmatprep.subr.bf16.mxu0 %v2408
        %2739 = vmatpush1.bf16.xpose.msra.mxu0 %v2407
        %2740 = vmatprep.subr.bf16.mxu0 %v2410
        %2741 = vmatpush1.bf16.xpose.msra.mxu0 %v2409
        %2742 = vmatprep.subr.bf16.mxu0 %v2412
        %2743 = vmatpush1.bf16.xpose.msra.mxu0 %v2411
        %2744 = vmatprep.subr.bf16.mxu0 %v2414
        %2745 = vmatpush1.bf16.xpose.msra.mxu0 %v2413
        %2746 = vmatprep.subr.bf16.mxu0 %v2416
        %2747 = vmatpush1.bf16.xpose.msra.mxu0 %v2415
        %2748 = vmatprep.subr.bf16.mxu0 %v2418
        %2749 = vmatpush1.bf16.xpose.msra.mxu0 %v2417
        %2750 = vmatprep.subr.bf16.mxu0 0
        %2751 = vmatpush1.bf16.xpose.msra.mxu0 0
        %2752 = vmatprep.subr.bf16.mxu0 0
        %2753 = vmatpush1.bf16.xpose.msra.mxu0 0
        %2754 = vmatprep.subr.bf16.mxu0 0
        %2755 = vmatpush1.bf16.xpose.msra.mxu0 0
        %2756 = vmatprep.subr.bf16.mxu0 0
        %2757 = vmatpush1.bf16.xpose.msra.mxu0 0
        %2758 = vmatprep.subr.bf16.mxu0 0
        %2759 = vmatpush1.bf16.xpose.msra.mxu0 0
        %2760 = vmatprep.subr.bf16.mxu0 0
        %2761 = vmatpush1.bf16.xpose.msra.mxu0 0
        %2762 = vmatprep.subr.bf16.mxu0 0
        %2763 = vmatpush1.bf16.xpose.msra.mxu0 0
        %2764 = vmatprep.subr.bf16.mxu0 0
        %2765 = vmatpush1.bf16.xpose.msra.mxu0 0
        %2766 = vmatprep.mubr.bf16.mxu0 %v2451
        %2767 = vmatmul.mubr.bf16.gmra.mrb[0].mxu0 %v2444
        %v2768 = vpop.f32.mrb[0].mxu0
        %v2769 = vadd.f32 %v2428, %v2768
        %v2770 = vpop.f32.mrb[0].mxu0
        %v2771 = vpop.f32.mrb[0].mxu0
        %v2772 = vpop.f32.mrb[0].mxu0
        %2773 = vdwg.mxu0
        %v2774 = vld [vmem:[%s338] sm:$0x1]
        %v2775 = vld [vmem:[%s338 + $0x1] sm:$0x1]
        %v2776 = vld [vmem:[%s338 + $0x2] sm:$0x1]
        %v2777 = vld [vmem:[%s338 + $0x3] sm:$0x1]
        %v2778 = vld [vmem:[%s338 + $0x4] sm:$0x1]
        %v2779 = vld [vmem:[%s338 + $0x5] sm:$0x1]
        %v2780 = vld [vmem:[%s338 + $0x6] sm:$0x1]
        %v2781 = vld [vmem:[%s338 + $0x7] sm:$0x1]
        %v2782 = vadd.f32 %v2489, %v2774
        %v2783 = vadd.f32 %v2529, %v2775
        %v2784 = vadd.f32 %v2569, %v2776
        %v2785 = vadd.f32 %v2609, %v2777
        %v2786 = vadd.f32 %v2649, %v2778
        %v2787 = vadd.f32 %v2689, %v2779
        %v2788 = vadd.f32 %v2729, %v2780
        %v2789 = vadd.f32 %v2769, %v2781
        %2790 = vst [vmem:[#allocation2] sm:$0x1] %v2782
        %2791 = vst [vmem:[#allocation2 + $0x1] sm:$0x1] %v2783
        %2792 = vst [vmem:[#allocation2 + $0x2] sm:$0x1] %v2784
        %2793 = vst [vmem:[#allocation2 + $0x3] sm:$0x1] %v2785
        %2794 = vst [vmem:[#allocation2 + $0x4] sm:$0x1] %v2786
        %2795 = vst [vmem:[#allocation2 + $0x5] sm:$0x1] %v2787
        %2796 = vst [vmem:[#allocation2 + $0x6] sm:$0x1] %v2788
        %2797 = vst [vmem:[#allocation2 + $0x7] sm:$0x1] %v2789
        %v2798 = vld [vmem:[#allocation2] sm:$0x1]
        %v2799 = vld [vmem:[#allocation2 + $0x1] sm:$0x1]
        %v2800 = vld [vmem:[#allocation2 + $0x2] sm:$0x1]
        %v2801 = vld [vmem:[#allocation2 + $0x3] sm:$0x1]
        %v2802 = vld [vmem:[#allocation2 + $0x4] sm:$0x1]
        %v2803 = vld [vmem:[#allocation2 + $0x5] sm:$0x1]
        %v2804 = vld [vmem:[#allocation2 + $0x6] sm:$0x1]
        %v2805 = vld [vmem:[#allocation2 + $0x7] sm:$0x1]
        %vm2806 = vcmask 1040384
        %v2807 = vsel %vm2806, %v2798, -inf
        %2808 = vmax.xlane.f32.xlu0 %v2807
        %v2809 = vpop.xlane.xlu0 %2808
        %v2810 = vsel %vm2806, %v2799, -inf
        %2811 = vmax.xlane.f32.xlu0 %v2810
        %v2812 = vpop.xlane.xlu0 %2811
        %v2813 = vsel %vm2806, %v2800, -inf
        %2814 = vmax.xlane.f32.xlu0 %v2813
        %v2815 = vpop.xlane.xlu0 %2814
        %v2816 = vsel %vm2806, %v2801, -inf
        %2817 = vmax.xlane.f32.xlu0 %v2816
        %v2818 = vpop.xlane.xlu0 %2817
        %v2819 = vsel %vm2806, %v2802, -inf
        %2820 = vmax.xlane.f32.xlu0 %v2819
        %v2821 = vpop.xlane.xlu0 %2820
        %v2822 = vsel %vm2806, %v2803, -inf
        %2823 = vmax.xlane.f32.xlu0 %v2822
        %v2824 = vpop.xlane.xlu0 %2823
        %v2825 = vsel %vm2806, %v2804, -inf
        %2826 = vmax.xlane.f32.xlu0 %v2825
        %v2827 = vpop.xlane.xlu0 %2826
        %v2828 = vsel %vm2806, %v2805, -inf
        %2829 = vmax.xlane.f32.xlu0 %v2828
        %v2830 = vpop.xlane.xlu0 %2829
        %v2831 = vsub.f32 %v2798, %v2809
        %v2832 = vsub.f32 %v2799, %v2812
        %v2833 = vsub.f32 %v2800, %v2815
        %v2834 = vsub.f32 %v2801, %v2818
        %v2835 = vsub.f32 %v2802, %v2821
        %v2836 = vsub.f32 %v2803, %v2824
        %v2837 = vsub.f32 %v2804, %v2827
        %v2838 = vsub.f32 %v2805, %v2830
        %v2839 = vmul.f32 %v2831, 1.442695
        %v2840 = vpow.pop %v2839
        %v2841 = vmul.f32 %v2832, 1.442695
        %v2842 = vpow.pop %v2841
        %v2843 = vmul.f32 %v2833, 1.442695
        %v2844 = vpow.pop %v2843
        %v2845 = vmul.f32 %v2834, 1.442695
        %v2846 = vpow.pop %v2845
        %v2847 = vmul.f32 %v2835, 1.442695
        %v2848 = vpow.pop %v2847
        %v2849 = vmul.f32 %v2836, 1.442695
        %v2850 = vpow.pop %v2849
        %v2851 = vmul.f32 %v2837, 1.442695
        %v2852 = vpow.pop %v2851
        %v2853 = vmul.f32 %v2838, 1.442695
        %v2854 = vpow.pop %v2853
        %v2855 = vsel %vm2806, %v2840, 0.0
        %2856 = vadd.xlane.f32.xlu0 %v2855
        %v2857 = vpop.xlane.xlu0 %2856
        %v2858 = vsel %vm2806, %v2842, 0.0
        %2859 = vadd.xlane.f32.xlu0 %v2858
        %v2860 = vpop.xlane.xlu0 %2859
        %v2861 = vsel %vm2806, %v2844, 0.0
        %2862 = vadd.xlane.f32.xlu0 %v2861
        %v2863 = vpop.xlane.xlu0 %2862
        %v2864 = vsel %vm2806, %v2846, 0.0
        %2865 = vadd.xlane.f32.xlu0 %v2864
        %v2866 = vpop.xlane.xlu0 %2865
        %v2867 = vsel %vm2806, %v2848, 0.0
        %2868 = vadd.xlane.f32.xlu0 %v2867
        %v2869 = vpop.xlane.xlu0 %2868
        %v2870 = vsel %vm2806, %v2850, 0.0
        %2871 = vadd.xlane.f32.xlu0 %v2870
        %v2872 = vpop.xlane.xlu0 %2871
        %v2873 = vsel %vm2806, %v2852, 0.0
        %2874 = vadd.xlane.f32.xlu0 %v2873
        %v2875 = vpop.xlane.xlu0 %2874
        %v2876 = vsel %vm2806, %v2854, 0.0
        %2877 = vadd.xlane.f32.xlu0 %v2876
        %v2878 = vpop.xlane.xlu0 %2877
        %v2879 = vrcp.pop %v2857
        %v2880 = vmul.f32 %v2840, %v2879
        %v2881 = vrcp.pop %v2860
        %v2882 = vmul.f32 %v2842, %v2881
        %v2883 = vrcp.pop %v2863
        %v2884 = vmul.f32 %v2844, %v2883
        %v2885 = vrcp.pop %v2866
        %v2886 = vmul.f32 %v2846, %v2885
        %v2887 = vrcp.pop %v2869
        %v2888 = vmul.f32 %v2848, %v2887
        %v2889 = vrcp.pop %v2872
        %v2890 = vmul.f32 %v2850, %v2889
        %v2891 = vrcp.pop %v2875
        %v2892 = vmul.f32 %v2852, %v2891
        %v2893 = vrcp.pop %v2878
        %v2894 = vmul.f32 %v2854, %v2893
        %v2895 = vld [vmem:[%s329] sm:$0xff]
        %v2896 = vld [vmem:[%s329 + $0x8] sm:$0xff]
        %v2897 = vld [vmem:[%s329 + $0x10] sm:$0xff]
        %v2898 = vld [vmem:[%s329 + $0x18] sm:$0xff]
        %v2899 = vld [vmem:[%s329 + $0x20] sm:$0xff]
        %v2900 = vld [vmem:[%s329 + $0x28] sm:$0xff]
        %v2901 = vld [vmem:[%s329 + $0x30] sm:$0xff]
        %v2902 = vld [vmem:[%s329 + $0x38] sm:$0xff]
        %v2903 = vld [vmem:[%s329 + $0x40] sm:$0xff]
        %v2904 = vld [vmem:[%s329 + $0x48] sm:$0xff]
        %v2905 = vld [vmem:[%s329 + $0x50] sm:$0xff]
        %v2906 = vld [vmem:[%s329 + $0x58] sm:$0xff]
        %v2907 = vld [vmem:[%s329 + $0x60] sm:$0xff]
        %v2908 = vld [vmem:[%s329 + $0x68] sm:$0xff]
        %v2909 = vld [vmem:[%s329 + $0x70] sm:$0xff]
        %v2910 = vld [vmem:[%s329 + $0x78] sm:$0xff]
        %v2911 = vld [vmem:[%s329 + $0x80] sm:$0xff]
        %v2912 = vld [vmem:[%s329 + $0x88] sm:$0xff]
        %v2913 = vld [vmem:[%s329 + $0x90] sm:$0xff]
        %v2914 = vld [vmem:[%s329 + $0x98] sm:$0xff]
        %v2915 = vld [vmem:[%s329 + $0xa0] sm:$0xff]
        %v2916 = vld [vmem:[%s329 + $0xa8] sm:$0xff]
        %v2917 = vld [vmem:[%s329 + $0xb0] sm:$0xff]
        %v2918 = vld [vmem:[%s329 + $0xb8] sm:$0xff]
        %v2919 = vld [vmem:[%s329 + $0xc0] sm:$0xff]
        %v2920 = vld [vmem:[%s329 + $0xc8] sm:$0xff]
        %v2921 = vld [vmem:[%s329 + $0xd0] sm:$0xff]
        %v2922 = vld [vmem:[%s329 + $0xd8] sm:$0xff]
        %v2923 = vld [vmem:[%s329 + $0xe0] sm:$0xff]
        %v2924 = vld [vmem:[%s329 + $0xe8] sm:$0xff]
        %v2925 = vld [vmem:[%s329 + $0xf0] sm:$0xff]
        %v2926 = vld [vmem:[%s329 + $0xf8] sm:$0xff]
        %v2927 = vld [vmem:[%s329 + $0x100] sm:$0xff]
        %v2928 = vld [vmem:[%s329 + $0x108] sm:$0xff]
        %v2929 = vld [vmem:[%s329 + $0x110] sm:$0xff]
        %v2930 = vld [vmem:[%s329 + $0x118] sm:$0xff]
        %v2931 = vld [vmem:[%s329 + $0x120] sm:$0xff]
        %v2932 = vld [vmem:[%s329 + $0x128] sm:$0xff]
        %v2933 = vld [vmem:[%s329 + $0x130] sm:$0xff]
        %v2934 = vld [vmem:[%s329 + $0x138] sm:$0xff]
        %v2935 = vld [vmem:[%s329 + $0x140] sm:$0xff]
        %v2936 = vld [vmem:[%s329 + $0x148] sm:$0xff]
        %v2937 = vld [vmem:[%s329 + $0x150] sm:$0xff]
        %v2938 = vld [vmem:[%s329 + $0x158] sm:$0xff]
        %v2939 = vld [vmem:[%s329 + $0x160] sm:$0xff]
        %v2940 = vld [vmem:[%s329 + $0x168] sm:$0xff]
        %v2941 = vld [vmem:[%s329 + $0x170] sm:$0xff]
        %v2942 = vld [vmem:[%s329 + $0x178] sm:$0xff]
        %v2943 = vld [vmem:[%s329 + $0x180] sm:$0xff]
        %v2944 = vld [vmem:[%s329 + $0x188] sm:$0xff]
        %v2945 = vld [vmem:[%s329 + $0x190] sm:$0xff]
        %v2946 = vld [vmem:[%s329 + $0x198] sm:$0xff]
        %v2947 = vld [vmem:[%s329 + $0x1a0] sm:$0xff]
        %v2948 = vld [vmem:[%s329 + $0x1a8] sm:$0xff]
        %v2949 = vld [vmem:[%s329 + $0x1b0] sm:$0xff]
        %v2950 = vld [vmem:[%s329 + $0x1b8] sm:$0xff]
        %v2951 = vld [vmem:[%s329 + $0x1c0] sm:$0xff]
        %v2952 = vld [vmem:[%s329 + $0x1c8] sm:$0xff]
        %v2953 = vld [vmem:[%s329 + $0x1d0] sm:$0xff]
        %v2954 = vld [vmem:[%s329 + $0x1d8] sm:$0xff]
        %v2955 = vld [vmem:[%s329 + $0x1e0] sm:$0xff]
        %v2956 = vld [vmem:[%s329 + $0x1e8] sm:$0xff]
        %v2957 = vld [vmem:[%s329 + $0x1f0] sm:$0xff]
        %v2958 = vld [vmem:[%s329 + $0x1f8] sm:$0xff]
        %v2959 = vld [vmem:[%s329 + $0x200] sm:$0xff]
        %v2960 = vld [vmem:[%s329 + $0x208] sm:$0xff]
        %v2961 = vld [vmem:[%s329 + $0x210] sm:$0xff]
        %v2962 = vld [vmem:[%s329 + $0x218] sm:$0xff]
        %v2963 = vld [vmem:[%s329 + $0x220] sm:$0xff]
        %v2964 = vld [vmem:[%s329 + $0x228] sm:$0xff]
        %v2965 = vld [vmem:[%s329 + $0x230] sm:$0xff]
        %v2966 = vld [vmem:[%s329 + $0x238] sm:$0xff]
        %v2967 = vld [vmem:[%s329 + $0x240] sm:$0xff]
        %v2968 = vld [vmem:[%s329 + $0x248] sm:$0xff]
        %v2969 = vld [vmem:[%s329 + $0x250] sm:$0xff]
        %v2970 = vld [vmem:[%s329 + $0x258] sm:$0xff]
        %v2971 = vld [vmem:[%s329 + $0x260] sm:$0xff]
        %v2972 = vld [vmem:[%s329 + $0x268] sm:$0xff]
        %v2973 = vld [vmem:[%s329 + $0x270] sm:$0xff]
        %v2974 = vld [vmem:[%s329 + $0x278] sm:$0xff]
        %v2975 = vld [vmem:[%s329 + $0x280] sm:$0xff]
        %v2976 = vld [vmem:[%s329 + $0x288] sm:$0xff]
        %v2977 = vld [vmem:[%s329 + $0x290] sm:$0xff]
        %v2978 = vld [vmem:[%s329 + $0x298] sm:$0xff]
        %v2979 = vld [vmem:[%s329 + $0x2a0] sm:$0xff]
        %v2980 = vld [vmem:[%s329 + $0x2a8] sm:$0xff]
        %v2981 = vld [vmem:[%s329 + $0x2b0] sm:$0xff]
        %v2982 = vld [vmem:[%s329 + $0x2b8] sm:$0xff]
        %v2983 = vld [vmem:[%s329 + $0x2c0] sm:$0xff]
        %v2984 = vld [vmem:[%s329 + $0x2c8] sm:$0xff]
        %v2985 = vld [vmem:[%s329 + $0x2d0] sm:$0xff]
        %v2986 = vld [vmem:[%s329 + $0x2d8] sm:$0xff]
        %v2987 = vld [vmem:[%s329 + $0x2e0] sm:$0xff]
        %v2988 = vld [vmem:[%s329 + $0x2e8] sm:$0xff]
        %v2989 = vld [vmem:[%s329 + $0x2f0] sm:$0xff]
        %v2990 = vld [vmem:[%s329 + $0x2f8] sm:$0xff]
        %v2991 = vld [vmem:[%s329 + $0x300] sm:$0xff]
        %v2992 = vld [vmem:[%s329 + $0x308] sm:$0xff]
        %v2993 = vld [vmem:[%s329 + $0x310] sm:$0xff]
        %v2994 = vld [vmem:[%s329 + $0x318] sm:$0xff]
        %v2995 = vld [vmem:[%s329 + $0x320] sm:$0xff]
        %v2996 = vld [vmem:[%s329 + $0x328] sm:$0xff]
        %v2997 = vld [vmem:[%s329 + $0x330] sm:$0xff]
        %v2998 = vld [vmem:[%s329 + $0x338] sm:$0xff]
        %v2999 = vld [vmem:[%s329 + $0x340] sm:$0xff]
        %v3000 = vld [vmem:[%s329 + $0x348] sm:$0xff]
        %v3001 = vld [vmem:[%s329 + $0x350] sm:$0xff]
        %v3002 = vld [vmem:[%s329 + $0x358] sm:$0xff]
        %v3003 = vld [vmem:[%s329 + $0x360] sm:$0xff]
        %v3004 = vld [vmem:[%s329 + $0x368] sm:$0xff]
        %v3005 = vld [vmem:[%s329 + $0x370] sm:$0xff]
        %v3006 = vld [vmem:[%s329 + $0x378] sm:$0xff]
        %v3007 = vld [vmem:[%s329 + $0x380] sm:$0xff]
        %v3008 = vld [vmem:[%s329 + $0x388] sm:$0xff]
        %v3009 = vld [vmem:[%s329 + $0x390] sm:$0xff]
        %v3010 = vld [vmem:[%s329 + $0x398] sm:$0xff]
        %v3011 = vld [vmem:[%s329 + $0x3a0] sm:$0xff]
        %v3012 = vld [vmem:[%s329 + $0x3a8] sm:$0xff]
        %v3013 = vld [vmem:[%s329 + $0x3b0] sm:$0xff]
        %v3014 = vld [vmem:[%s329 + $0x3b8] sm:$0xff]
        %v3015 = vld [vmem:[%s329 + $0x3c0] sm:$0xff]
        %v3016 = vld [vmem:[%s329 + $0x3c8] sm:$0xff]
        %v3017 = vld [vmem:[%s329 + $0x3d0] sm:$0xff]
        %v3018 = vld [vmem:[%s329 + $0x3d8] sm:$0xff]
        %v3019 = vld [vmem:[%s329 + $0x3e0] sm:$0xff]
        %v3020 = vld [vmem:[%s329 + $0x3e8] sm:$0xff]
        %v3021 = vld [vmem:[%s329 + $0x3f0] sm:$0xff]
        %v3022 = vld [vmem:[%s329 + $0x3f8] sm:$0xff]
        %v3023 = vpack.c.bf16 %v2880, %v2880
        %v3024 = vpack.c.bf16 %v2882, %v2882
        %v3025 = vpack.c.bf16 %v2884, %v2884
        %v3026 = vpack.c.bf16 %v2886, %v2886
        %v3027 = vpack.c.bf16 %v2888, %v2888
        %v3028 = vpack.c.bf16 %v2890, %v2890
        %v3029 = vpack.c.bf16 %v2892, %v2892
        %v3030 = vpack.c.bf16 %v2894, %v2894
        %v3047 = vunpack.c.l.b16 %v2895
        %v3048 = vunpack.c.h.b16 %v2895
        %v3049 = vunpack.c.l.b16 %v2896
        %v3050 = vunpack.c.h.b16 %v2896
        %v3051 = vunpack.c.l.b16 %v2897
        %v3052 = vunpack.c.h.b16 %v2897
        %v3053 = vunpack.c.l.b16 %v2898
        %v3054 = vunpack.c.h.b16 %v2898
        %v3055 = vunpack.c.l.b16 %v2899
        %v3056 = vunpack.c.h.b16 %v2899
        %v3057 = vunpack.c.l.b16 %v2900
        %v3058 = vunpack.c.h.b16 %v2900
        %v3059 = vunpack.c.l.b16 %v2901
        %v3060 = vunpack.c.h.b16 %v2901
        %v3061 = vunpack.c.l.b16 %v2902
        %v3062 = vunpack.c.h.b16 %v2902
        %v3063 = vunpack.c.l.b16 %v2903
        %v3064 = vunpack.c.h.b16 %v2903
        %v3065 = vunpack.c.l.b16 %v2904
        %v3066 = vunpack.c.h.b16 %v2904
        %v3067 = vunpack.c.l.b16 %v2905
        %v3068 = vunpack.c.h.b16 %v2905
        %v3069 = vunpack.c.l.b16 %v2906
        %v3070 = vunpack.c.h.b16 %v2906
        %v3071 = vunpack.c.l.b16 %v2907
        %v3072 = vunpack.c.h.b16 %v2907
        %v3073 = vunpack.c.l.b16 %v2908
        %v3074 = vunpack.c.h.b16 %v2908
        %v3075 = vunpack.c.l.b16 %v2909
        %v3076 = vunpack.c.h.b16 %v2909
        %v3077 = vunpack.c.l.b16 %v2910
        %v3078 = vunpack.c.h.b16 %v2910
        %v3079 = vpack.c.b16 %v3049, %v3047
        %v3080 = vpack.c.b16 %v3050, %v3048
        %v3081 = vpack.c.b16 %v3053, %v3051
        %v3082 = vpack.c.b16 %v3054, %v3052
        %v3083 = vpack.c.b16 %v3057, %v3055
        %v3084 = vpack.c.b16 %v3058, %v3056
        %v3085 = vpack.c.b16 %v3061, %v3059
        %v3086 = vpack.c.b16 %v3062, %v3060
        %v3087 = vpack.c.b16 %v3065, %v3063
        %v3088 = vpack.c.b16 %v3066, %v3064
        %v3089 = vpack.c.b16 %v3069, %v3067
        %v3090 = vpack.c.b16 %v3070, %v3068
        %v3091 = vpack.c.b16 %v3073, %v3071
        %v3092 = vpack.c.b16 %v3074, %v3072
        %v3093 = vpack.c.b16 %v3077, %v3075
        %v3094 = vpack.c.b16 %v3078, %v3076
        %3111 = vmatprep.subr.bf16.mxu0 %v3080
        %3112 = vmatpush1.bf16.msra.mxu0 %v3079
        %3113 = vmatprep.subr.bf16.mxu0 %v3082
        %3114 = vmatpush1.bf16.msra.mxu0 %v3081
        %3115 = vmatprep.subr.bf16.mxu0 %v3084
        %3116 = vmatpush1.bf16.msra.mxu0 %v3083
        %3117 = vmatprep.subr.bf16.mxu0 %v3086
        %3118 = vmatpush1.bf16.msra.mxu0 %v3085
        %3119 = vmatprep.subr.bf16.mxu0 %v3088
        %3120 = vmatpush1.bf16.msra.mxu0 %v3087
        %3121 = vmatprep.subr.bf16.mxu0 %v3090
        %3122 = vmatpush1.bf16.msra.mxu0 %v3089
        %3123 = vmatprep.subr.bf16.mxu0 %v3092
        %3124 = vmatpush1.bf16.msra.mxu0 %v3091
        %3125 = vmatprep.subr.bf16.mxu0 %v3094
        %3126 = vmatpush1.bf16.msra.mxu0 %v3093
        %3127 = vmatprep.subr.bf16.mxu0 0
        %3128 = vmatpush1.bf16.msra.mxu0 0
        %3129 = vmatprep.subr.bf16.mxu0 0
        %3130 = vmatpush1.bf16.msra.mxu0 0
        %3131 = vmatprep.subr.bf16.mxu0 0
        %3132 = vmatpush1.bf16.msra.mxu0 0
        %3133 = vmatprep.subr.bf16.mxu0 0
        %3134 = vmatpush1.bf16.msra.mxu0 0
        %3135 = vmatprep.subr.bf16.mxu0 0
        %3136 = vmatpush1.bf16.msra.mxu0 0
        %3137 = vmatprep.subr.bf16.mxu0 0
        %3138 = vmatpush1.bf16.msra.mxu0 0
        %3139 = vmatprep.subr.bf16.mxu0 0
        %3140 = vmatpush1.bf16.msra.mxu0 0
        %3141 = vmatprep.subr.bf16.mxu0 0
        %3142 = vmatpush1.bf16.msra.mxu0 0
        %3143 = vmatprep.mubr.bf16.mxu0 0
        %3144 = vmatmul.mubr.bf16.gmra.mrb[0].mxu0 %v3023
        %v3145 = vpop.f32.mrb[0].mxu0
        %v3146 = vadd.f32 0.0, %v3145
        %v3147 = vpop.f32.mrb[0].mxu0
        %v3148 = vadd.f32 0.0, %v3147
        %v3149 = vpop.f32.mrb[0].mxu0
        %v3150 = vpop.f32.mrb[0].mxu0
        %3151 = vdwg.mxu0
        %v3168 = vunpack.c.l.b16 %v2911
        %v3169 = vunpack.c.h.b16 %v2911
        %v3170 = vunpack.c.l.b16 %v2912
        %v3171 = vunpack.c.h.b16 %v2912
        %v3172 = vunpack.c.l.b16 %v2913
        %v3173 = vunpack.c.h.b16 %v2913
        %v3174 = vunpack.c.l.b16 %v2914
        %v3175 = vunpack.c.h.b16 %v2914
        %v3176 = vunpack.c.l.b16 %v2915
        %v3177 = vunpack.c.h.b16 %v2915
        %v3178 = vunpack.c.l.b16 %v2916
        %v3179 = vunpack.c.h.b16 %v2916
        %v3180 = vunpack.c.l.b16 %v2917
        %v3181 = vunpack.c.h.b16 %v2917
        %v3182 = vunpack.c.l.b16 %v2918
        %v3183 = vunpack.c.h.b16 %v2918
        %v3184 = vunpack.c.l.b16 %v2919
        %v3185 = vunpack.c.h.b16 %v2919
        %v3186 = vunpack.c.l.b16 %v2920
        %v3187 = vunpack.c.h.b16 %v2920
        %v3188 = vunpack.c.l.b16 %v2921
        %v3189 = vunpack.c.h.b16 %v2921
        %v3190 = vunpack.c.l.b16 %v2922
        %v3191 = vunpack.c.h.b16 %v2922
        %v3192 = vunpack.c.l.b16 %v2923
        %v3193 = vunpack.c.h.b16 %v2923
        %v3194 = vunpack.c.l.b16 %v2924
        %v3195 = vunpack.c.h.b16 %v2924
        %v3196 = vunpack.c.l.b16 %v2925
        %v3197 = vunpack.c.h.b16 %v2925
        %v3198 = vunpack.c.l.b16 %v2926
        %v3199 = vunpack.c.h.b16 %v2926
        %v3200 = vpack.c.b16 %v3170, %v3168
        %v3201 = vpack.c.b16 %v3171, %v3169
        %v3202 = vpack.c.b16 %v3174, %v3172
        %v3203 = vpack.c.b16 %v3175, %v3173
        %v3204 = vpack.c.b16 %v3178, %v3176
        %v3205 = vpack.c.b16 %v3179, %v3177
        %v3206 = vpack.c.b16 %v3182, %v3180
        %v3207 = vpack.c.b16 %v3183, %v3181
        %v3208 = vpack.c.b16 %v3186, %v3184
        %v3209 = vpack.c.b16 %v3187, %v3185
        %v3210 = vpack.c.b16 %v3190, %v3188
        %v3211 = vpack.c.b16 %v3191, %v3189
        %v3212 = vpack.c.b16 %v3194, %v3192
        %v3213 = vpack.c.b16 %v3195, %v3193
        %v3214 = vpack.c.b16 %v3198, %v3196
        %v3215 = vpack.c.b16 %v3199, %v3197
        %3232 = vmatprep.subr.bf16.mxu0 %v3201
        %3233 = vmatpush1.bf16.msra.mxu0 %v3200
        %3234 = vmatprep.subr.bf16.mxu0 %v3203
        %3235 = vmatpush1.bf16.msra.mxu0 %v3202
        %3236 = vmatprep.subr.bf16.mxu0 %v3205
        %3237 = vmatpush1.bf16.msra.mxu0 %v3204
        %3238 = vmatprep.subr.bf16.mxu0 %v3207
        %3239 = vmatpush1.bf16.msra.mxu0 %v3206
        %3240 = vmatprep.subr.bf16.mxu0 %v3209
        %3241 = vmatpush1.bf16.msra.mxu0 %v3208
        %3242 = vmatprep.subr.bf16.mxu0 %v3211
        %3243 = vmatpush1.bf16.msra.mxu0 %v3210
        %3244 = vmatprep.subr.bf16.mxu0 %v3213
        %3245 = vmatpush1.bf16.msra.mxu0 %v3212
        %3246 = vmatprep.subr.bf16.mxu0 %v3215
        %3247 = vmatpush1.bf16.msra.mxu0 %v3214
        %3248 = vmatprep.subr.bf16.mxu0 0
        %3249 = vmatpush1.bf16.msra.mxu0 0
        %3250 = vmatprep.subr.bf16.mxu0 0
        %3251 = vmatpush1.bf16.msra.mxu0 0
        %3252 = vmatprep.subr.bf16.mxu0 0
        %3253 = vmatpush1.bf16.msra.mxu0 0
        %3254 = vmatprep.subr.bf16.mxu0 0
        %3255 = vmatpush1.bf16.msra.mxu0 0
        %3256 = vmatprep.subr.bf16.mxu0 0
        %3257 = vmatpush1.bf16.msra.mxu0 0
        %3258 = vmatprep.subr.bf16.mxu0 0
        %3259 = vmatpush1.bf16.msra.mxu0 0
        %3260 = vmatprep.subr.bf16.mxu0 0
        %3261 = vmatpush1.bf16.msra.mxu0 0
        %3262 = vmatprep.subr.bf16.mxu0 0
        %3263 = vmatpush1.bf16.msra.mxu0 0
        %3264 = vmatprep.mubr.bf16.mxu0 0
        %3265 = vmatmul.mubr.bf16.gmra.mrb[0].mxu0 %v3024
        %v3266 = vpop.f32.mrb[0].mxu0
        %v3267 = vadd.f32 0.0, %v3266
        %v3268 = vpop.f32.mrb[0].mxu0
        %v3269 = vadd.f32 0.0, %v3268
        %v3270 = vpop.f32.mrb[0].mxu0
        %v3271 = vpop.f32.mrb[0].mxu0
        %3272 = vdwg.mxu0
        %v3289 = vunpack.c.l.b16 %v2927
        %v3290 = vunpack.c.h.b16 %v2927
        %v3291 = vunpack.c.l.b16 %v2928
        %v3292 = vunpack.c.h.b16 %v2928
        %v3293 = vunpack.c.l.b16 %v2929
        %v3294 = vunpack.c.h.b16 %v2929
        %v3295 = vunpack.c.l.b16 %v2930
        %v3296 = vunpack.c.h.b16 %v2930
        %v3297 = vunpack.c.l.b16 %v2931
        %v3298 = vunpack.c.h.b16 %v2931
        %v3299 = vunpack.c.l.b16 %v2932
        %v3300 = vunpack.c.h.b16 %v2932
        %v3301 = vunpack.c.l.b16 %v2933
        %v3302 = vunpack.c.h.b16 %v2933
        %v3303 = vunpack.c.l.b16 %v2934
        %v3304 = vunpack.c.h.b16 %v2934
        %v3305 = vunpack.c.l.b16 %v2935
        %v3306 = vunpack.c.h.b16 %v2935
        %v3307 = vunpack.c.l.b16 %v2936
        %v3308 = vunpack.c.h.b16 %v2936
        %v3309 = vunpack.c.l.b16 %v2937
        %v3310 = vunpack.c.h.b16 %v2937
        %v3311 = vunpack.c.l.b16 %v2938
        %v3312 = vunpack.c.h.b16 %v2938
        %v3313 = vunpack.c.l.b16 %v2939
        %v3314 = vunpack.c.h.b16 %v2939
        %v3315 = vunpack.c.l.b16 %v2940
        %v3316 = vunpack.c.h.b16 %v2940
        %v3317 = vunpack.c.l.b16 %v2941
        %v3318 = vunpack.c.h.b16 %v2941
        %v3319 = vunpack.c.l.b16 %v2942
        %v3320 = vunpack.c.h.b16 %v2942
        %v3321 = vpack.c.b16 %v3291, %v3289
        %v3322 = vpack.c.b16 %v3292, %v3290
        %v3323 = vpack.c.b16 %v3295, %v3293
        %v3324 = vpack.c.b16 %v3296, %v3294
        %v3325 = vpack.c.b16 %v3299, %v3297
        %v3326 = vpack.c.b16 %v3300, %v3298
        %v3327 = vpack.c.b16 %v3303, %v3301
        %v3328 = vpack.c.b16 %v3304, %v3302
        %v3329 = vpack.c.b16 %v3307, %v3305
        %v3330 = vpack.c.b16 %v3308, %v3306
        %v3331 = vpack.c.b16 %v3311, %v3309
        %v3332 = vpack.c.b16 %v3312, %v3310
        %v3333 = vpack.c.b16 %v3315, %v3313
        %v3334 = vpack.c.b16 %v3316, %v3314
        %v3335 = vpack.c.b16 %v3319, %v3317
        %v3336 = vpack.c.b16 %v3320, %v3318
        %3353 = vmatprep.subr.bf16.mxu0 %v3322
        %3354 = vmatpush1.bf16.msra.mxu0 %v3321
        %3355 = vmatprep.subr.bf16.mxu0 %v3324
        %3356 = vmatpush1.bf16.msra.mxu0 %v3323
        %3357 = vmatprep.subr.bf16.mxu0 %v3326
        %3358 = vmatpush1.bf16.msra.mxu0 %v3325
        %3359 = vmatprep.subr.bf16.mxu0 %v3328
        %3360 = vmatpush1.bf16.msra.mxu0 %v3327
        %3361 = vmatprep.subr.bf16.mxu0 %v3330
        %3362 = vmatpush1.bf16.msra.mxu0 %v3329
        %3363 = vmatprep.subr.bf16.mxu0 %v3332
        %3364 = vmatpush1.bf16.msra.mxu0 %v3331
        %3365 = vmatprep.subr.bf16.mxu0 %v3334
        %3366 = vmatpush1.bf16.msra.mxu0 %v3333
        %3367 = vmatprep.subr.bf16.mxu0 %v3336
        %3368 = vmatpush1.bf16.msra.mxu0 %v3335
        %3369 = vmatprep.subr.bf16.mxu0 0
        %3370 = vmatpush1.bf16.msra.mxu0 0
        %3371 = vmatprep.subr.bf16.mxu0 0
        %3372 = vmatpush1.bf16.msra.mxu0 0
        %3373 = vmatprep.subr.bf16.mxu0 0
        %3374 = vmatpush1.bf16.msra.mxu0 0
        %3375 = vmatprep.subr.bf16.mxu0 0
        %3376 = vmatpush1.bf16.msra.mxu0 0
        %3377 = vmatprep.subr.bf16.mxu0 0
        %3378 = vmatpush1.bf16.msra.mxu0 0
        %3379 = vmatprep.subr.bf16.mxu0 0
        %3380 = vmatpush1.bf16.msra.mxu0 0
        %3381 = vmatprep.subr.bf16.mxu0 0
        %3382 = vmatpush1.bf16.msra.mxu0 0
        %3383 = vmatprep.subr.bf16.mxu0 0
        %3384 = vmatpush1.bf16.msra.mxu0 0
        %3385 = vmatprep.mubr.bf16.mxu0 0
        %3386 = vmatmul.mubr.bf16.gmra.mrb[0].mxu0 %v3025
        %v3387 = vpop.f32.mrb[0].mxu0
        %v3388 = vadd.f32 0.0, %v3387
        %v3389 = vpop.f32.mrb[0].mxu0
        %v3390 = vadd.f32 0.0, %v3389
        %v3391 = vpop.f32.mrb[0].mxu0
        %v3392 = vpop.f32.mrb[0].mxu0
        %3393 = vdwg.mxu0
        %v3410 = vunpack.c.l.b16 %v2943
        %v3411 = vunpack.c.h.b16 %v2943
        %v3412 = vunpack.c.l.b16 %v2944
        %v3413 = vunpack.c.h.b16 %v2944
        %v3414 = vunpack.c.l.b16 %v2945
        %v3415 = vunpack.c.h.b16 %v2945
        %v3416 = vunpack.c.l.b16 %v2946
        %v3417 = vunpack.c.h.b16 %v2946
        %v3418 = vunpack.c.l.b16 %v2947
        %v3419 = vunpack.c.h.b16 %v2947
        %v3420 = vunpack.c.l.b16 %v2948
        %v3421 = vunpack.c.h.b16 %v2948
        %v3422 = vunpack.c.l.b16 %v2949
        %v3423 = vunpack.c.h.b16 %v2949
        %v3424 = vunpack.c.l.b16 %v2950
        %v3425 = vunpack.c.h.b16 %v2950
        %v3426 = vunpack.c.l.b16 %v2951
        %v3427 = vunpack.c.h.b16 %v2951
        %v3428 = vunpack.c.l.b16 %v2952
        %v3429 = vunpack.c.h.b16 %v2952
        %v3430 = vunpack.c.l.b16 %v2953
        %v3431 = vunpack.c.h.b16 %v2953
        %v3432 = vunpack.c.l.b16 %v2954
        %v3433 = vunpack.c.h.b16 %v2954
        %v3434 = vunpack.c.l.b16 %v2955
        %v3435 = vunpack.c.h.b16 %v2955
        %v3436 = vunpack.c.l.b16 %v2956
        %v3437 = vunpack.c.h.b16 %v2956
        %v3438 = vunpack.c.l.b16 %v2957
        %v3439 = vunpack.c.h.b16 %v2957
        %v3440 = vunpack.c.l.b16 %v2958
        %v3441 = vunpack.c.h.b16 %v2958
        %v3442 = vpack.c.b16 %v3412, %v3410
        %v3443 = vpack.c.b16 %v3413, %v3411
        %v3444 = vpack.c.b16 %v3416, %v3414
        %v3445 = vpack.c.b16 %v3417, %v3415
        %v3446 = vpack.c.b16 %v3420, %v3418
        %v3447 = vpack.c.b16 %v3421, %v3419
        %v3448 = vpack.c.b16 %v3424, %v3422
        %v3449 = vpack.c.b16 %v3425, %v3423
        %v3450 = vpack.c.b16 %v3428, %v3426
        %v3451 = vpack.c.b16 %v3429, %v3427
        %v3452 = vpack.c.b16 %v3432, %v3430
        %v3453 = vpack.c.b16 %v3433, %v3431
        %v3454 = vpack.c.b16 %v3436, %v3434
        %v3455 = vpack.c.b16 %v3437, %v3435
        %v3456 = vpack.c.b16 %v3440, %v3438
        %v3457 = vpack.c.b16 %v3441, %v3439
        %3474 = vmatprep.subr.bf16.mxu0 %v3443
        %3475 = vmatpush1.bf16.msra.mxu0 %v3442
        %3476 = vmatprep.subr.bf16.mxu0 %v3445
        %3477 = vmatpush1.bf16.msra.mxu0 %v3444
        %3478 = vmatprep.subr.bf16.mxu0 %v3447
        %3479 = vmatpush1.bf16.msra.mxu0 %v3446
        %3480 = vmatprep.subr.bf16.mxu0 %v3449
        %3481 = vmatpush1.bf16.msra.mxu0 %v3448
        %3482 = vmatprep.subr.bf16.mxu0 %v3451
        %3483 = vmatpush1.bf16.msra.mxu0 %v3450
        %3484 = vmatprep.subr.bf16.mxu0 %v3453
        %3485 = vmatpush1.bf16.msra.mxu0 %v3452
        %3486 = vmatprep.subr.bf16.mxu0 %v3455
        %3487 = vmatpush1.bf16.msra.mxu0 %v3454
        %3488 = vmatprep.subr.bf16.mxu0 %v3457
        %3489 = vmatpush1.bf16.msra.mxu0 %v3456
        %3490 = vmatprep.subr.bf16.mxu0 0
        %3491 = vmatpush1.bf16.msra.mxu0 0
        %3492 = vmatprep.subr.bf16.mxu0 0
        %3493 = vmatpush1.bf16.msra.mxu0 0
        %3494 = vmatprep.subr.bf16.mxu0 0
        %3495 = vmatpush1.bf16.msra.mxu0 0
        %3496 = vmatprep.subr.bf16.mxu0 0
        %3497 = vmatpush1.bf16.msra.mxu0 0
        %3498 = vmatprep.subr.bf16.mxu0 0
        %3499 = vmatpush1.bf16.msra.mxu0 0
        %3500 = vmatprep.subr.bf16.mxu0 0
        %3501 = vmatpush1.bf16.msra.mxu0 0
        %3502 = vmatprep.subr.bf16.mxu0 0
        %3503 = vmatpush1.bf16.msra.mxu0 0
        %3504 = vmatprep.subr.bf16.mxu0 0
        %3505 = vmatpush1.bf16.msra.mxu0 0
        %3506 = vmatprep.mubr.bf16.mxu0 0
        %3507 = vmatmul.mubr.bf16.gmra.mrb[0].mxu0 %v3026
        %v3508 = vpop.f32.mrb[0].mxu0
        %v3509 = vadd.f32 0.0, %v3508
        %v3510 = vpop.f32.mrb[0].mxu0
        %v3511 = vadd.f32 0.0, %v3510
        %v3512 = vpop.f32.mrb[0].mxu0
        %v3513 = vpop.f32.mrb[0].mxu0
        %3514 = vdwg.mxu0
        %v3531 = vunpack.c.l.b16 %v2959
        %v3532 = vunpack.c.h.b16 %v2959
        %v3533 = vunpack.c.l.b16 %v2960
        %v3534 = vunpack.c.h.b16 %v2960
        %v3535 = vunpack.c.l.b16 %v2961
        %v3536 = vunpack.c.h.b16 %v2961
        %v3537 = vunpack.c.l.b16 %v2962
        %v3538 = vunpack.c.h.b16 %v2962
        %v3539 = vunpack.c.l.b16 %v2963
        %v3540 = vunpack.c.h.b16 %v2963
        %v3541 = vunpack.c.l.b16 %v2964
        %v3542 = vunpack.c.h.b16 %v2964
        %v3543 = vunpack.c.l.b16 %v2965
        %v3544 = vunpack.c.h.b16 %v2965
        %v3545 = vunpack.c.l.b16 %v2966
        %v3546 = vunpack.c.h.b16 %v2966
        %v3547 = vunpack.c.l.b16 %v2967
        %v3548 = vunpack.c.h.b16 %v2967
        %v3549 = vunpack.c.l.b16 %v2968
        %v3550 = vunpack.c.h.b16 %v2968
        %v3551 = vunpack.c.l.b16 %v2969
        %v3552 = vunpack.c.h.b16 %v2969
        %v3553 = vunpack.c.l.b16 %v2970
        %v3554 = vunpack.c.h.b16 %v2970
        %v3555 = vunpack.c.l.b16 %v2971
        %v3556 = vunpack.c.h.b16 %v2971
        %v3557 = vunpack.c.l.b16 %v2972
        %v3558 = vunpack.c.h.b16 %v2972
        %v3559 = vunpack.c.l.b16 %v2973
        %v3560 = vunpack.c.h.b16 %v2973
        %v3561 = vunpack.c.l.b16 %v2974
        %v3562 = vunpack.c.h.b16 %v2974
        %v3563 = vpack.c.b16 %v3533, %v3531
        %v3564 = vpack.c.b16 %v3534, %v3532
        %v3565 = vpack.c.b16 %v3537, %v3535
        %v3566 = vpack.c.b16 %v3538, %v3536
        %v3567 = vpack.c.b16 %v3541, %v3539
        %v3568 = vpack.c.b16 %v3542, %v3540
        %v3569 = vpack.c.b16 %v3545, %v3543
        %v3570 = vpack.c.b16 %v3546, %v3544
        %v3571 = vpack.c.b16 %v3549, %v3547
        %v3572 = vpack.c.b16 %v3550, %v3548
        %v3573 = vpack.c.b16 %v3553, %v3551
        %v3574 = vpack.c.b16 %v3554, %v3552
        %v3575 = vpack.c.b16 %v3557, %v3555
        %v3576 = vpack.c.b16 %v3558, %v3556
        %v3577 = vpack.c.b16 %v3561, %v3559
        %v3578 = vpack.c.b16 %v3562, %v3560
        %3595 = vmatprep.subr.bf16.mxu0 %v3564
        %3596 = vmatpush1.bf16.msra.mxu0 %v3563
        %3597 = vmatprep.subr.bf16.mxu0 %v3566
        %3598 = vmatpush1.bf16.msra.mxu0 %v3565
        %3599 = vmatprep.subr.bf16.mxu0 %v3568
        %3600 = vmatpush1.bf16.msra.mxu0 %v3567
        %3601 = vmatprep.subr.bf16.mxu0 %v3570
        %3602 = vmatpush1.bf16.msra.mxu0 %v3569
        %3603 = vmatprep.subr.bf16.mxu0 %v3572
        %3604 = vmatpush1.bf16.msra.mxu0 %v3571
        %3605 = vmatprep.subr.bf16.mxu0 %v3574
        %3606 = vmatpush1.bf16.msra.mxu0 %v3573
        %3607 = vmatprep.subr.bf16.mxu0 %v3576
        %3608 = vmatpush1.bf16.msra.mxu0 %v3575
        %3609 = vmatprep.subr.bf16.mxu0 %v3578
        %3610 = vmatpush1.bf16.msra.mxu0 %v3577
        %3611 = vmatprep.subr.bf16.mxu0 0
        %3612 = vmatpush1.bf16.msra.mxu0 0
        %3613 = vmatprep.subr.bf16.mxu0 0
        %3614 = vmatpush1.bf16.msra.mxu0 0
        %3615 = vmatprep.subr.bf16.mxu0 0
        %3616 = vmatpush1.bf16.msra.mxu0 0
        %3617 = vmatprep.subr.bf16.mxu0 0
        %3618 = vmatpush1.bf16.msra.mxu0 0
        %3619 = vmatprep.subr.bf16.mxu0 0
        %3620 = vmatpush1.bf16.msra.mxu0 0
        %3621 = vmatprep.subr.bf16.mxu0 0
        %3622 = vmatpush1.bf16.msra.mxu0 0
        %3623 = vmatprep.subr.bf16.mxu0 0
        %3624 = vmatpush1.bf16.msra.mxu0 0
        %3625 = vmatprep.subr.bf16.mxu0 0
        %3626 = vmatpush1.bf16.msra.mxu0 0
        %3627 = vmatprep.mubr.bf16.mxu0 0
        %3628 = vmatmul.mubr.bf16.gmra.mrb[0].mxu0 %v3027
        %v3629 = vpop.f32.mrb[0].mxu0
        %v3630 = vadd.f32 0.0, %v3629
        %v3631 = vpop.f32.mrb[0].mxu0
        %v3632 = vadd.f32 0.0, %v3631
        %v3633 = vpop.f32.mrb[0].mxu0
        %v3634 = vpop.f32.mrb[0].mxu0
        %3635 = vdwg.mxu0
        %v3652 = vunpack.c.l.b16 %v2975
        %v3653 = vunpack.c.h.b16 %v2975
        %v3654 = vunpack.c.l.b16 %v2976
        %v3655 = vunpack.c.h.b16 %v2976
        %v3656 = vunpack.c.l.b16 %v2977
        %v3657 = vunpack.c.h.b16 %v2977
        %v3658 = vunpack.c.l.b16 %v2978
        %v3659 = vunpack.c.h.b16 %v2978
        %v3660 = vunpack.c.l.b16 %v2979
        %v3661 = vunpack.c.h.b16 %v2979
        %v3662 = vunpack.c.l.b16 %v2980
        %v3663 = vunpack.c.h.b16 %v2980
        %v3664 = vunpack.c.l.b16 %v2981
        %v3665 = vunpack.c.h.b16 %v2981
        %v3666 = vunpack.c.l.b16 %v2982
        %v3667 = vunpack.c.h.b16 %v2982
        %v3668 = vunpack.c.l.b16 %v2983
        %v3669 = vunpack.c.h.b16 %v2983
        %v3670 = vunpack.c.l.b16 %v2984
        %v3671 = vunpack.c.h.b16 %v2984
        %v3672 = vunpack.c.l.b16 %v2985
        %v3673 = vunpack.c.h.b16 %v2985
        %v3674 = vunpack.c.l.b16 %v2986
        %v3675 = vunpack.c.h.b16 %v2986
        %v3676 = vunpack.c.l.b16 %v2987
        %v3677 = vunpack.c.h.b16 %v2987
        %v3678 = vunpack.c.l.b16 %v2988
        %v3679 = vunpack.c.h.b16 %v2988
        %v3680 = vunpack.c.l.b16 %v2989
        %v3681 = vunpack.c.h.b16 %v2989
        %v3682 = vunpack.c.l.b16 %v2990
        %v3683 = vunpack.c.h.b16 %v2990
        %v3684 = vpack.c.b16 %v3654, %v3652
        %v3685 = vpack.c.b16 %v3655, %v3653
        %v3686 = vpack.c.b16 %v3658, %v3656
        %v3687 = vpack.c.b16 %v3659, %v3657
        %v3688 = vpack.c.b16 %v3662, %v3660
        %v3689 = vpack.c.b16 %v3663, %v3661
        %v3690 = vpack.c.b16 %v3666, %v3664
        %v3691 = vpack.c.b16 %v3667, %v3665
        %v3692 = vpack.c.b16 %v3670, %v3668
        %v3693 = vpack.c.b16 %v3671, %v3669
        %v3694 = vpack.c.b16 %v3674, %v3672
        %v3695 = vpack.c.b16 %v3675, %v3673
        %v3696 = vpack.c.b16 %v3678, %v3676
        %v3697 = vpack.c.b16 %v3679, %v3677
        %v3698 = vpack.c.b16 %v3682, %v3680
        %v3699 = vpack.c.b16 %v3683, %v3681
        %3716 = vmatprep.subr.bf16.mxu0 %v3685
        %3717 = vmatpush1.bf16.msra.mxu0 %v3684
        %3718 = vmatprep.subr.bf16.mxu0 %v3687
        %3719 = vmatpush1.bf16.msra.mxu0 %v3686
        %3720 = vmatprep.subr.bf16.mxu0 %v3689
        %3721 = vmatpush1.bf16.msra.mxu0 %v3688
        %3722 = vmatprep.subr.bf16.mxu0 %v3691
        %3723 = vmatpush1.bf16.msra.mxu0 %v3690
        %3724 = vmatprep.subr.bf16.mxu0 %v3693
        %3725 = vmatpush1.bf16.msra.mxu0 %v3692
        %3726 = vmatprep.subr.bf16.mxu0 %v3695
        %3727 = vmatpush1.bf16.msra.mxu0 %v3694
        %3728 = vmatprep.subr.bf16.mxu0 %v3697
        %3729 = vmatpush1.bf16.msra.mxu0 %v3696
        %3730 = vmatprep.subr.bf16.mxu0 %v3699
        %3731 = vmatpush1.bf16.msra.mxu0 %v3698
        %3732 = vmatprep.subr.bf16.mxu0 0
        %3733 = vmatpush1.bf16.msra.mxu0 0
        %3734 = vmatprep.subr.bf16.mxu0 0
        %3735 = vmatpush1.bf16.msra.mxu0 0
        %3736 = vmatprep.subr.bf16.mxu0 0
        %3737 = vmatpush1.bf16.msra.mxu0 0
        %3738 = vmatprep.subr.bf16.mxu0 0
        %3739 = vmatpush1.bf16.msra.mxu0 0
        %3740 = vmatprep.subr.bf16.mxu0 0
        %3741 = vmatpush1.bf16.msra.mxu0 0
        %3742 = vmatprep.subr.bf16.mxu0 0
        %3743 = vmatpush1.bf16.msra.mxu0 0
        %3744 = vmatprep.subr.bf16.mxu0 0
        %3745 = vmatpush1.bf16.msra.mxu0 0
        %3746 = vmatprep.subr.bf16.mxu0 0
        %3747 = vmatpush1.bf16.msra.mxu0 0
        %3748 = vmatprep.mubr.bf16.mxu0 0
        %3749 = vmatmul.mubr.bf16.gmra.mrb[0].mxu0 %v3028
        %v3750 = vpop.f32.mrb[0].mxu0
        %v3751 = vadd.f32 0.0, %v3750
        %v3752 = vpop.f32.mrb[0].mxu0
        %v3753 = vadd.f32 0.0, %v3752
        %v3754 = vpop.f32.mrb[0].mxu0
        %v3755 = vpop.f32.mrb[0].mxu0
        %3756 = vdwg.mxu0
        %v3773 = vunpack.c.l.b16 %v2991
        %v3774 = vunpack.c.h.b16 %v2991
        %v3775 = vunpack.c.l.b16 %v2992
        %v3776 = vunpack.c.h.b16 %v2992
        %v3777 = vunpack.c.l.b16 %v2993
        %v3778 = vunpack.c.h.b16 %v2993
        %v3779 = vunpack.c.l.b16 %v2994
        %v3780 = vunpack.c.h.b16 %v2994
        %v3781 = vunpack.c.l.b16 %v2995
        %v3782 = vunpack.c.h.b16 %v2995
        %v3783 = vunpack.c.l.b16 %v2996
        %v3784 = vunpack.c.h.b16 %v2996
        %v3785 = vunpack.c.l.b16 %v2997
        %v3786 = vunpack.c.h.b16 %v2997
        %v3787 = vunpack.c.l.b16 %v2998
        %v3788 = vunpack.c.h.b16 %v2998
        %v3789 = vunpack.c.l.b16 %v2999
        %v3790 = vunpack.c.h.b16 %v2999
        %v3791 = vunpack.c.l.b16 %v3000
        %v3792 = vunpack.c.h.b16 %v3000
        %v3793 = vunpack.c.l.b16 %v3001
        %v3794 = vunpack.c.h.b16 %v3001
        %v3795 = vunpack.c.l.b16 %v3002
        %v3796 = vunpack.c.h.b16 %v3002
        %v3797 = vunpack.c.l.b16 %v3003
        %v3798 = vunpack.c.h.b16 %v3003
        %v3799 = vunpack.c.l.b16 %v3004
        %v3800 = vunpack.c.h.b16 %v3004
        %v3801 = vunpack.c.l.b16 %v3005
        %v3802 = vunpack.c.h.b16 %v3005
        %v3803 = vunpack.c.l.b16 %v3006
        %v3804 = vunpack.c.h.b16 %v3006
        %v3805 = vpack.c.b16 %v3775, %v3773
        %v3806 = vpack.c.b16 %v3776, %v3774
        %v3807 = vpack.c.b16 %v3779, %v3777
        %v3808 = vpack.c.b16 %v3780, %v3778
        %v3809 = vpack.c.b16 %v3783, %v3781
        %v3810 = vpack.c.b16 %v3784, %v3782
        %v3811 = vpack.c.b16 %v3787, %v3785
        %v3812 = vpack.c.b16 %v3788, %v3786
        %v3813 = vpack.c.b16 %v3791, %v3789
        %v3814 = vpack.c.b16 %v3792, %v3790
        %v3815 = vpack.c.b16 %v3795, %v3793
        %v3816 = vpack.c.b16 %v3796, %v3794
        %v3817 = vpack.c.b16 %v3799, %v3797
        %v3818 = vpack.c.b16 %v3800, %v3798
        %v3819 = vpack.c.b16 %v3803, %v3801
        %v3820 = vpack.c.b16 %v3804, %v3802
        %3837 = vmatprep.subr.bf16.mxu0 %v3806
        %3838 = vmatpush1.bf16.msra.mxu0 %v3805
        %3839 = vmatprep.subr.bf16.mxu0 %v3808
        %3840 = vmatpush1.bf16.msra.mxu0 %v3807
        %3841 = vmatprep.subr.bf16.mxu0 %v3810
        %3842 = vmatpush1.bf16.msra.mxu0 %v3809
        %3843 = vmatprep.subr.bf16.mxu0 %v3812
        %3844 = vmatpush1.bf16.msra.mxu0 %v3811
        %3845 = vmatprep.subr.bf16.mxu0 %v3814
        %3846 = vmatpush1.bf16.msra.mxu0 %v3813
        %3847 = vmatprep.subr.bf16.mxu0 %v3816
        %3848 = vmatpush1.bf16.msra.mxu0 %v3815
        %3849 = vmatprep.subr.bf16.mxu0 %v3818
        %3850 = vmatpush1.bf16.msra.mxu0 %v3817
        %3851 = vmatprep.subr.bf16.mxu0 %v3820
        %3852 = vmatpush1.bf16.msra.mxu0 %v3819
        %3853 = vmatprep.subr.bf16.mxu0 0
        %3854 = vmatpush1.bf16.msra.mxu0 0
        %3855 = vmatprep.subr.bf16.mxu0 0
        %3856 = vmatpush1.bf16.msra.mxu0 0
        %3857 = vmatprep.subr.bf16.mxu0 0
        %3858 = vmatpush1.bf16.msra.mxu0 0
        %3859 = vmatprep.subr.bf16.mxu0 0
        %3860 = vmatpush1.bf16.msra.mxu0 0
        %3861 = vmatprep.subr.bf16.mxu0 0
        %3862 = vmatpush1.bf16.msra.mxu0 0
        %3863 = vmatprep.subr.bf16.mxu0 0
        %3864 = vmatpush1.bf16.msra.mxu0 0
        %3865 = vmatprep.subr.bf16.mxu0 0
        %3866 = vmatpush1.bf16.msra.mxu0 0
        %3867 = vmatprep.subr.bf16.mxu0 0
        %3868 = vmatpush1.bf16.msra.mxu0 0
        %3869 = vmatprep.mubr.bf16.mxu0 0
        %3870 = vmatmul.mubr.bf16.gmra.mrb[0].mxu0 %v3029
        %v3871 = vpop.f32.mrb[0].mxu0
        %v3872 = vadd.f32 0.0, %v3871
        %v3873 = vpop.f32.mrb[0].mxu0
        %v3874 = vadd.f32 0.0, %v3873
        %v3875 = vpop.f32.mrb[0].mxu0
        %v3876 = vpop.f32.mrb[0].mxu0
        %3877 = vdwg.mxu0
        %v3894 = vunpack.c.l.b16 %v3007
        %v3895 = vunpack.c.h.b16 %v3007
        %v3896 = vunpack.c.l.b16 %v3008
        %v3897 = vunpack.c.h.b16 %v3008
        %v3898 = vunpack.c.l.b16 %v3009
        %v3899 = vunpack.c.h.b16 %v3009
        %v3900 = vunpack.c.l.b16 %v3010
        %v3901 = vunpack.c.h.b16 %v3010
        %v3902 = vunpack.c.l.b16 %v3011
        %v3903 = vunpack.c.h.b16 %v3011
        %v3904 = vunpack.c.l.b16 %v3012
        %v3905 = vunpack.c.h.b16 %v3012
        %v3906 = vunpack.c.l.b16 %v3013
        %v3907 = vunpack.c.h.b16 %v3013
        %v3908 = vunpack.c.l.b16 %v3014
        %v3909 = vunpack.c.h.b16 %v3014
        %v3910 = vunpack.c.l.b16 %v3015
        %v3911 = vunpack.c.h.b16 %v3015
        %v3912 = vunpack.c.l.b16 %v3016
        %v3913 = vunpack.c.h.b16 %v3016
        %v3914 = vunpack.c.l.b16 %v3017
        %v3915 = vunpack.c.h.b16 %v3017
        %v3916 = vunpack.c.l.b16 %v3018
        %v3917 = vunpack.c.h.b16 %v3018
        %v3918 = vunpack.c.l.b16 %v3019
        %v3919 = vunpack.c.h.b16 %v3019
        %v3920 = vunpack.c.l.b16 %v3020
        %v3921 = vunpack.c.h.b16 %v3020
        %v3922 = vunpack.c.l.b16 %v3021
        %v3923 = vunpack.c.h.b16 %v3021
        %v3924 = vunpack.c.l.b16 %v3022
        %v3925 = vunpack.c.h.b16 %v3022
        %v3926 = vpack.c.b16 %v3896, %v3894
        %v3927 = vpack.c.b16 %v3897, %v3895
        %v3928 = vpack.c.b16 %v3900, %v3898
        %v3929 = vpack.c.b16 %v3901, %v3899
        %v3930 = vpack.c.b16 %v3904, %v3902
        %v3931 = vpack.c.b16 %v3905, %v3903
        %v3932 = vpack.c.b16 %v3908, %v3906
        %v3933 = vpack.c.b16 %v3909, %v3907
        %v3934 = vpack.c.b16 %v3912, %v3910
        %v3935 = vpack.c.b16 %v3913, %v3911
        %v3936 = vpack.c.b16 %v3916, %v3914
        %v3937 = vpack.c.b16 %v3917, %v3915
        %v3938 = vpack.c.b16 %v3920, %v3918
        %v3939 = vpack.c.b16 %v3921, %v3919
        %v3940 = vpack.c.b16 %v3924, %v3922
        %v3941 = vpack.c.b16 %v3925, %v3923
        %3958 = vmatprep.subr.bf16.mxu0 %v3927
        %3959 = vmatpush1.bf16.msra.mxu0 %v3926
        %3960 = vmatprep.subr.bf16.mxu0 %v3929
        %3961 = vmatpush1.bf16.msra.mxu0 %v3928
        %3962 = vmatprep.subr.bf16.mxu0 %v3931
        %3963 = vmatpush1.bf16.msra.mxu0 %v3930
        %3964 = vmatprep.subr.bf16.mxu0 %v3933
        %3965 = vmatpush1.bf16.msra.mxu0 %v3932
        %3966 = vmatprep.subr.bf16.mxu0 %v3935
        %3967 = vmatpush1.bf16.msra.mxu0 %v3934
        %3968 = vmatprep.subr.bf16.mxu0 %v3937
        %3969 = vmatpush1.bf16.msra.mxu0 %v3936
        %3970 = vmatprep.subr.bf16.mxu0 %v3939
        %3971 = vmatpush1.bf16.msra.mxu0 %v3938
        %3972 = vmatprep.subr.bf16.mxu0 %v3941
        %3973 = vmatpush1.bf16.msra.mxu0 %v3940
        %3974 = vmatprep.subr.bf16.mxu0 0
        %3975 = vmatpush1.bf16.msra.mxu0 0
        %3976 = vmatprep.subr.bf16.mxu0 0
        %3977 = vmatpush1.bf16.msra.mxu0 0
        %3978 = vmatprep.subr.bf16.mxu0 0
        %3979 = vmatpush1.bf16.msra.mxu0 0
        %3980 = vmatprep.subr.bf16.mxu0 0
        %3981 = vmatpush1.bf16.msra.mxu0 0
        %3982 = vmatprep.subr.bf16.mxu0 0
        %3983 = vmatpush1.bf16.msra.mxu0 0
        %3984 = vmatprep.subr.bf16.mxu0 0
        %3985 = vmatpush1.bf16.msra.mxu0 0
        %3986 = vmatprep.subr.bf16.mxu0 0
        %3987 = vmatpush1.bf16.msra.mxu0 0
        %3988 = vmatprep.subr.bf16.mxu0 0
        %3989 = vmatpush1.bf16.msra.mxu0 0
        %3990 = vmatprep.mubr.bf16.mxu0 0
        %3991 = vmatmul.mubr.bf16.gmra.mrb[0].mxu0 %v3030
        %v3992 = vpop.f32.mrb[0].mxu0
        %v3993 = vadd.f32 0.0, %v3992
        %v3994 = vpop.f32.mrb[0].mxu0
        %v3995 = vadd.f32 0.0, %v3994
        %v3996 = vpop.f32.mrb[0].mxu0
        %v3997 = vpop.f32.mrb[0].mxu0
        %3998 = vdwg.mxu0
        %v3999 = vld [vmem:[%s6] sm:$0x3]
        %v4001 = vlaneseq
        %v4002 = vshrl.u32 %v4001, 7
        %v4003 = vsub.s32 0, %v4002
        %v4004 = vrot.slane %v3999, %v4003
        %v4005 = vlaneseq
        %v4006 = vshrl.u32 %v4005, 7
        %v4007 = vsub.s32 1, %v4006
        %v4008 = vrot.slane %v3999, %v4007
        %v4011 = vmul.f32 %v3146, %v4004
        %v4012 = vmul.f32 %v3148, %v4008
        %v4013 = vmul.f32 %v3267, %v4004
        %v4014 = vmul.f32 %v3269, %v4008
        %v4015 = vmul.f32 %v3388, %v4004
        %v4016 = vmul.f32 %v3390, %v4008
        %v4017 = vmul.f32 %v3509, %v4004
        %v4018 = vmul.f32 %v3511, %v4008
        %v4019 = vmul.f32 %v3630, %v4004
        %v4020 = vmul.f32 %v3632, %v4008
        %v4021 = vmul.f32 %v3751, %v4004
        %v4022 = vmul.f32 %v3753, %v4008
        %v4023 = vmul.f32 %v3872, %v4004
        %v4024 = vmul.f32 %v3874, %v4008
        %v4025 = vmul.f32 %v3993, %v4004
        %v4026 = vmul.f32 %v3995, %v4008
        %v4043 = vrot.slane %v4013, 7
        %vm4044 = vcmask 1041409
        %v4045 = vsel %vm4044, %v4043, %v4011
        %v4046 = vrot.slane %v4015, 6
        %vm4047 = vcmask 1042434
        %v4048 = vsel %vm4047, %v4046, %v4045
        %v4049 = vrot.slane %v4017, 5
        %vm4050 = vcmask 1043459
        %v4051 = vsel %vm4050, %v4049, %v4048
        %v4052 = vrot.slane %v4019, 4
        %vm4053 = vcmask 1044484
        %v4054 = vsel %vm4053, %v4052, %v4051
        %v4055 = vrot.slane %v4021, 3
        %vm4056 = vcmask 1045509
        %v4057 = vsel %vm4056, %v4055, %v4054
        %v4058 = vrot.slane %v4023, 2
        %vm4059 = vcmask 1046534
        %v4060 = vsel %vm4059, %v4058, %v4057
        %v4061 = vrot.slane %v4025, 1
        %vm4062 = vcmask 1047559
        %v4063 = vsel %vm4062, %v4061, %v4060
        %v4064 = vrot.slane %v4014, 7
        %v4065 = vsel %vm4044, %v4064, %v4012
        %v4066 = vrot.slane %v4016, 6
        %v4067 = vsel %vm4047, %v4066, %v4065
        %v4068 = vrot.slane %v4018, 5
        %v4069 = vsel %vm4050, %v4068, %v4067
        %v4070 = vrot.slane %v4020, 4
        %v4071 = vsel %vm4053, %v4070, %v4069
        %v4072 = vrot.slane %v4022, 3
        %v4073 = vsel %vm4056, %v4072, %v4071
        %v4074 = vrot.slane %v4024, 2
        %v4075 = vsel %vm4059, %v4074, %v4073
        %v4076 = vrot.slane %v4026, 1
        %v4077 = vsel %vm4062, %v4076, %v4075
        %v4080 = vadd.f32 %v4063, %v4077
        %4081 = vadd.xlane.f32.xlu0 %v4080
        %v4082 = vpop.xlane.xlu0 %4081
        %v4083 = vld [vmem:[#allocation4] sm:$0x1]
        %v4085 = vlaneseq
        %v4086 = vshrl.u32 %v4085, 7
        %v4087 = vsub.s32 0, %v4086
        %v4088 = vrot.slane %v4083, %v4087
        %v4090 = vadd.f32 %v4082, %v4088
        %vm4091 = vcmask 7168
        %4092 = vst.msk [vmem:[%s384] sm:$0xff] %vm4091, %v4090
        %p4093 = scmp.lt.s32.totalorder %s29, 1
        %s4094 = scalar_select %p4093, %s29, 1
        %s4095 = smul.addr %s4094, 8
        %s4096 = scalar_lea.vmem %s8, %s4095
        // Predicated region
        $region65: #{tpu_custom_call.1} parent=51 // pred_check
          %p4097 = pneg %p225
        $region66: #{tpu_custom_call.1} parent=51 // pred_check_branch
          %4099 = sbr.rel (%p4097) target = $region68
        $region67: #{tpu_custom_call.1} parent=51 // pred_region
          _
        $region68: #{tpu_custom_call.1} parent=51 // pred_fallthru
          _
      $region52: #{tpu_custom_call.1} parent=5 // pred_fallthru
        _
      %p4100 = scmp.le.s32.totalorder 2, %s24
      // Predicated region
      $region69: #{tpu_custom_call.1} parent=5 // pred_check
        %p4101 = pneg %p4100
      $region70: #{tpu_custom_call.1} parent=5 // pred_check_branch
        %4103 = sbr.rel (%p4101) target = $region72
      $region71: #{tpu_custom_call.1} parent=5 // pred_region
        %s4104 = ssub.s32 %s24, 2
        // Predicated region
        $region73: #{tpu_custom_call.1} parent=71 // pred_check
          %p4105 = pneg %p231
        $region74: #{tpu_custom_call.1} parent=71 // pred_check_branch
          %4107 = sbr.rel (%p4105) target = $region76
        $region75: #{tpu_custom_call.1} parent=71 // pred_region
          %p4108 = scmp.lt.s32.totalorder %s30, 1
          %s4109 = scalar_select %p4108, %s30, 1
          %s4110 = smul.addr %s4109, 8
          %s4111 = scalar_lea.vmem %s8, %s4110
        $region76: #{tpu_custom_call.1} parent=71 // pred_fallthru
          _
      $region72: #{tpu_custom_call.1} parent=5 // pred_fallthru
        _
    $region6: #{tpu_custom_call.1} parent=1 // loop_footer
      %s28 = sadd.s32 1, %s24
    $region7: #{tpu_custom_call.1} parent=1 // loop_footer_branch
      %23 = sbr.rel target = $region3
    $region8: #{tpu_custom_call.1} parent=1 // loop_exit
      _
    %4112 = vsyncpa [#allocation6], 1
    %s4113 = scalar_lea.sflag [#allocation6], 1
    %4114 = vsyncpa %s4113, 1
    %4115 = vsyncpa [#allocation8], 1
    %s4116 = scalar_lea.sflag [#allocation8], 1
    %4117 = vsyncpa %s4116, 1

</llo_original>
